<compile_context>
chip_gen: v7x
topology: tpu7x:2x2x1
jax: 0.10.0
libtpu: 0.0.40
codegen_flags: <defaults>
</compile_context>

<pallas_src>
import functools

import jax
import jax.numpy as jnp
from jax.experimental import pallas as pl
from jax.experimental.pallas import tpu as pltpu

_LANE = 128
_BN_EPS = 1e-5


def _round_up(x, m):
    return ((x + m - 1) // m) * m


@functools.lru_cache(maxsize=None)
def _vmem_budget():
    """(vmem_limit_bytes, tm_max) derived from the device generation.

    v5e/v6e report ~128 MiB of VMEM, v7x ~64 MiB; keep >=25% headroom and
    never request more than 100 MiB of scoped VMEM.
    """
    try:
        cap = int(pltpu.get_tpu_info().vmem_capacity_bytes)
    except Exception:
        cap = 64 * 1024 * 1024          # conservative default, fits every gen
    limit = int(min(cap * 3 // 4, 100 * 1024 * 1024))
    tm_max = 1024 if cap >= 100 * 1024 * 1024 else 512
    return limit, tm_max


def _compiler_params(semantics):
    limit, _ = _vmem_budget()
    return pltpu.CompilerParams(dimension_semantics=semantics,
                                vmem_limit_bytes=limit)


def _choose_tm(m, tm_max):
    """Balanced M tile (multiple of 8) that minimizes zero-row padding."""
    n_tiles = max(1, -(-m // tm_max))
    return _round_up(-(-m // n_tiles), 8)


def _pad_to(x, axis, size):
    pad = size - x.shape[axis]
    if pad <= 0:
        return x
    widths = [(0, 0)] * x.ndim
    widths[axis] = (0, pad)
    return jnp.pad(x, widths)


# ----------------------------------------------------------------------------
# Pallas kernels
# ----------------------------------------------------------------------------
def _fused_conv_bn_relu_kernel(p_ref, w_ref, g_ref, b_ref, o_ref,
                               y_scr, sum_scr, ssq_scr, *, inv_count, eps):
    """Single-pass conv (as MXU matmul) + train-mode BatchNorm + ReLU.

    grid = (phase, M-tiles), both axes "arbitrary" (sequential).  The pre-BN
    f32 activation lives in a VMEM scratch for the whole grid; per-channel
    sum / sum-of-squares accumulate in small VMEM scratches; the bf16 output
    (a VMEM-resident full-array block) is written once at the last grid step.
    NOTE: E[y^2]-E[y]^2 in f32 can cancel when |mean| >> std; acceptable here.
    """
    ph = pl.program_id(0)
    i = pl.program_id(1)
    n_ph = pl.num_programs(0)
    n_i = pl.num_programs(1)
    tm = p_ref.shape[0]

    @pl.when(jnp.logical_and(ph == 0, i == 0))
    def _():
        sum_scr[...] = jnp.zeros_like(sum_scr)
        ssq_scr[...] = jnp.zeros_like(ssq_scr)

    y = jnp.dot(p_ref[...], w_ref[...], preferred_element_type=jnp.float32)
    row = pl.multiple_of((ph * n_i + i) * tm, 8)
    y_scr[pl.ds(row, tm), :] = y
    sum_scr[...] += jnp.sum(y, axis=0, keepdims=True)
    ssq_scr[...] += jnp.sum(y * y, axis=0, keepdims=True)

    @pl.when(jnp.logical_and(ph == n_ph - 1, i == n_i - 1))
    def _():
        mean = sum_scr[...] * inv_count                       # (1, cp)
        var = jnp.maximum(ssq_scr[...] * inv_count - mean * mean, 0.0)
        scale = g_ref[...] * jax.lax.rsqrt(var + eps)
        shift = b_ref[...] - mean * scale
        o_ref[...] = jnp.maximum(y_scr[...] * scale + shift,
                                 0.0).astype(o_ref.dtype)


def _matmul_stats_kernel(p_ref, w_ref, y_ref, sum_ref, ssq_ref):
    """Two-pass fallback, pass 1: (TM,K)x(K,C) MXU matmul, bf16 y to HBM, and
    per-channel sum / sum-of-squares accumulated (in f32, pre-cast) in
    revisited output blocks across the M axis of the current phase."""
    i = pl.program_id(1)
    y = jnp.dot(p_ref[...], w_ref[...], preferred_element_type=jnp.float32)
    y_ref[...] = y.astype(y_ref.dtype)

    @pl.when(i == 0)
    def _():
        sum_ref[...] = jnp.zeros_like(sum_ref)
        ssq_ref[...] = jnp.zeros_like(ssq_ref)

    sum_ref[...] += jnp.sum(y, axis=0, keepdims=True)
    ssq_ref[...] += jnp.sum(y * y, axis=0, keepdims=True)


def _bn_relu_kernel(y_ref, scale_ref, shift_ref, o_ref):
    """Two-pass fallback, pass 2: BN affine (precomputed scale/shift) + ReLU."""
    o_ref[...] = jnp.maximum(
        y_ref[...].astype(jnp.float32) * scale_ref[...] + shift_ref[...],
        0.0).astype(o_ref.dtype)


def _matmul_bias_tanh_kernel(p_ref, w_ref, b_ref, o_ref):
    y = jnp.dot(p_ref[...], w_ref[...], preferred_element_type=jnp.float32)
    o_ref[...] = jnp.tanh(y + b_ref[...])


# ----------------------------------------------------------------------------
# pallas_call wrappers
# ----------------------------------------------------------------------------
def _fused_conv_bn_relu(patches, weights, gamma, beta, tm, true_m):
    # patches: (P, m_pad, K) bf16, weights: (P, K, cp) bf16, gamma/beta (1, cp)
    P, m_pad, K = patches.shape
    cp = weights.shape[-1]
    grid = (P, m_pad // tm)
    kernel = functools.partial(_fused_conv_bn_relu_kernel,
                               inv_count=1.0 / float(P * true_m), eps=_BN_EPS)
    out = pl.pallas_call(
        kernel,
        out_shape=jax.ShapeDtypeStruct((P * m_pad, cp), jnp.bfloat16),
        grid_spec=pltpu.PrefetchScalarGridSpec(
            num_scalar_prefetch=0,
            grid=grid,
            in_specs=[
                pl.BlockSpec((None, tm, K), lambda ph, i: (ph, i, 0)),
                pl.BlockSpec((None, K, cp), lambda ph, i: (ph, 0, 0)),
                pl.BlockSpec((1, cp), lambda ph, i: (0, 0)),
                pl.BlockSpec((1, cp), lambda ph, i: (0, 0)),
            ],
            out_specs=pl.BlockSpec((P * m_pad, cp), lambda ph, i: (0, 0)),
            scratch_shapes=[
                pltpu.VMEM((P * m_pad, cp), jnp.float32),
                pltpu.VMEM((1, cp), jnp.float32),
                pltpu.VMEM((1, cp), jnp.float32),
            ]),
        compiler_params=_compiler_params(("arbitrary", "arbitrary")),
    )(patches, weights, gamma, beta)
    return out.reshape(P, m_pad, cp)


def _conv_matmul_stats(patches, weights, tm):
    P, m_pad, K = patches.shape
    cp = weights.shape[-1]
    grid = (P, m_pad // tm)
    return pl.pallas_call(
        _matmul_stats_kernel,
        out_shape=(
            jax.ShapeDtypeStruct((P, m_pad, cp), jnp.bfloat16),
            jax.ShapeDtypeStruct((P, 1, cp), jnp.float32),
            jax.ShapeDtypeStruct((P, 1, cp), jnp.float32),
        ),
        grid_spec=pltpu.PrefetchScalarGridSpec(
            num_scalar_prefetch=0,
            grid=grid,
            in_specs=[
                pl.BlockSpec((None, tm, K), lambda ph, i: (ph, i, 0)),
                pl.BlockSpec((None, K, cp), lambda ph, i: (ph, 0, 0)),
            ],
            out_specs=(
                pl.BlockSpec((None, tm, cp), lambda ph, i: (ph, i, 0)),
                pl.BlockSpec((None, 1, cp), lambda ph, i: (ph, 0, 0)),
                pl.BlockSpec((None, 1, cp), lambda ph, i: (ph, 0, 0)),
            ),
        ),
        compiler_params=_compiler_params(("parallel", "arbitrary")),
    )(patches, weights)


def _bn_relu(y, scale, shift, tm):
    P, m_pad, cp = y.shape
    grid = (P, m_pad // tm)
    return pl.pallas_call(
        _bn_relu_kernel,
        out_shape=jax.ShapeDtypeStruct((P, m_pad, cp), jnp.bfloat16),
        grid_spec=pltpu.PrefetchScalarGridSpec(
            num_scalar_prefetch=0,
            grid=grid,
            in_specs=[
                pl.BlockSpec((None, tm, cp), lambda ph, i: (ph, i, 0)),
                pl.BlockSpec((1, cp), lambda ph, i: (0, 0)),
                pl.BlockSpec((1, cp), lambda ph, i: (0, 0)),
            ],
            out_specs=pl.BlockSpec((None, tm, cp), lambda ph, i: (ph, i, 0)),
        ),
        compiler_params=_compiler_params(("parallel", "parallel")),
    )(y, scale, shift)


def _conv_bias_tanh(patches, weights, bias, tm):
    P, m_pad, K = patches.shape
    cp = weights.shape[-1]
    grid = (P, m_pad // tm)
    return pl.pallas_call(
        _matmul_bias_tanh_kernel,
        out_shape=jax.ShapeDtypeStruct((P, m_pad, cp), jnp.float32),
        grid_spec=pltpu.PrefetchScalarGridSpec(
            num_scalar_prefetch=0,
            grid=grid,
            in_specs=[
                pl.BlockSpec((None, tm, K), lambda ph, i: (ph, i, 0)),
                pl.BlockSpec((None, K, cp), lambda ph, i: (ph, 0, 0)),
                pl.BlockSpec((1, cp), lambda ph, i: (0, 0)),
            ],
            out_specs=pl.BlockSpec((None, tm, cp), lambda ph, i: (ph, i, 0)),
        ),
        compiler_params=_compiler_params(("parallel", "parallel")),
    )(patches, weights, bias)


# ----------------------------------------------------------------------------
# Glue: phase-decomposed transposed conv (no zero-insertion waste)
# ----------------------------------------------------------------------------
def _phase_patches_s2(x):
    """ConvTranspose2d(k=4, s=2, p=1) as 4 output-phase 2x2 convolutions.
    Returns patches (4, N*H*W, 4*C), phase order (r, t), K order (dh, dw, cin)."""
    n, h, w, c = x.shape
    xp = jnp.pad(x, ((0, 0), (1, 1), (1, 1), (0, 0)))
    phases = []
    for r in range(2):
        for t in range(2):
            slab = xp[:, r:r + h + 1, t:t + w + 1, :]        # (n, h+1, w+1, c)
            cols = []
            for dh in range(2):
                for dw in range(2):
                    cols.append(slab[:, dh:dh + h, dw:dw + w, :])
            ph = jnp.stack(cols, axis=3)                     # (n, h, w, 4, c)
            phases.append(ph.reshape(n * h * w, 4 * c))
    return jnp.stack(phases, axis=0), (n, h, w)


def _phase_weights_s2(w):
    """PyTorch ConvTranspose2d weight (Cin, Cout, 4, 4) -> per-phase (4*Cin, Cout)
    matrices matching (dh, dw, cin) patch ordering: kh = 3 - r - 2*dh."""
    cin, cout = w.shape[0], w.shape[1]
    mats = []
    for r in range(2):
        for t in range(2):
            kh_idx = jnp.array([3 - r, 1 - r])
            kw_idx = jnp.array([3 - t, 1 - t])
            sub = w[:, :, kh_idx, :][:, :, :, kw_idx]        # (cin, cout, 2, 2)
            sub = jnp.transpose(sub, (2, 3, 0, 1))           # (dh, dw, cin, cout)
            mats.append(sub.reshape(4 * cin, cout))
    return jnp.stack(mats, axis=0)                           # (4, 4*cin, cout)


def _direct_patches_s1(x, k, pad_eff):
    """Stride-1 ConvTranspose2d == direct conv with flipped kernel, pad = k-1-p."""
    n, h, w, c = x.shape
    xp = jnp.pad(x, ((0, 0), (pad_eff, pad_eff), (pad_eff, pad_eff), (0, 0)))
    oh = h + 2 * pad_eff - k + 1
    ow = w + 2 * pad_eff - k + 1
    cols = []
    for dh in range(k):
        for dw in range(k):
            cols.append(xp[:, dh:dh + oh, dw:dw + ow, :])
    pt = jnp.stack(cols, axis=3).reshape(1, n * oh * ow, k * k * c)
    return pt, (n, oh, ow)


def _flipped_weight_s1(w, k):
    cin, cout = w.shape[0], w.shape[1]
    wf = w[:, :, ::-1, ::-1]
    return jnp.transpose(wf, (2, 3, 0, 1)).reshape(k * k * cin, cout)


# ----------------------------------------------------------------------------
# Model definition (mirrors EGANGenerator_64.__init__)
# ----------------------------------------------------------------------------
def make_layer_specs(z_dim, ngf, output_nc):
    # (cin, cout, kernel, stride, pad, has_batchnorm_relu)
    return [
        (z_dim,   ngf * 8, 4, 2, 1, True),
        (ngf * 8, ngf * 8, 4, 2, 1, True),
        (ngf * 8, ngf * 4, 4, 2, 1, True),
        (ngf * 4, ngf * 4, 4, 2, 1, True),
        (ngf * 4, ngf * 2, 4, 2, 1, True),
        (ngf * 2, output_nc, 3, 1, 0, False),   # final ConvT + Tanh
    ]


def init_params(key, layer_specs):
    params = []
    for (cin, cout, k, _s, _p, has_bn) in layer_specs:
        key, kw, kb = jax.random.split(key, 3)
        w = 0.05 * jax.random.normal(kw, (cin, cout, k, k), jnp.float32)
        b = 0.05 * jax.random.normal(kb, (cout,), jnp.float32)
        if has_bn:
            gamma = jnp.ones((cout,), jnp.float32)    # PyTorch BatchNorm2d default
            beta = jnp.zeros((cout,), jnp.float32)
        else:
            gamma = beta = None
        params.append((w, b, gamma, beta))
    return params


def egan_generator_64_forward(z, params, layer_specs, z_dim,
                              force_two_pass=False):
    limit, tm_max = _vmem_budget()
    fused_budget = limit // 2                       # headroom for pipelining
    x = z.reshape(-1, 1, 1, z_dim).astype(jnp.bfloat16)   # NHWC, H=W=1
    for (cin, cout, k, stride, pad, has_bn), (w, b, gamma, beta) in zip(
            layer_specs, params):
        if stride == 2:
            patches, (nb, hh, ww) = _phase_patches_s2(x)       # (4, M, 4*cin)
            wmat = _phase_weights_s2(w)                        # (4, 4*cin, cout)
            oh, ow = 2 * hh, 2 * ww
        else:
            patches, (nb, oh, ow) = _direct_patches_s1(x, k, k - 1 - pad)
            wmat = _flipped_weight_s1(w, k)[None]              # (1, k*k*cin, cout)

        P, M, K = patches.shape
        cp = _round_up(cout, _LANE)                            # lane-dense stores
        tm = _choose_tm(M, tm_max)
        m_pad = _round_up(M, tm)
        patches = _pad_to(patches, 1, m_pad).astype(jnp.bfloat16)
        wmat = _pad_to(wmat, 2, cp).astype(jnp.bfloat16)

        if has_bn:
            # Conv bias is dropped: exactly cancelled by the batch-mean
            # subtraction of train-mode BatchNorm.  Padded patch rows are
            # exactly zero, so padded y rows are zero and do not bias the
            # statistics (count uses the true M).
            g = jnp.pad(gamma, (0, cp - cout)).astype(jnp.float32)[None, :]
            be = jnp.pad(beta, (0, cp - cout)).astype(jnp.float32)[None, :]
            fused_bytes = (P * m_pad * cp * (4 + 2)     # f32 y scratch + bf16 out
                           + 2 * tm * K * 2             # double-buffered patches
                           + 2 * K * cp * 2             # weights (per phase)
                           + 4 * cp * 4 + (1 << 16))    # stats + slack
            if (not force_two_pass) and fused_bytes <= fused_budget:
                a = _fused_conv_bn_relu(patches, wmat, g, be, tm, M)
            else:
                # Two-pass fallback: bf16 y round-trips HBM; stats are f32.
                y, s_sum, s_sq = _conv_matmul_stats(patches, wmat, tm)
                count = jnp.float32(P * M)                     # true count
                mean = jnp.sum(s_sum, axis=(0, 1)) / count
                var = jnp.maximum(
                    jnp.sum(s_sq, axis=(0, 1)) / count - mean * mean, 0.0)
                scale = g[0] * jax.lax.rsqrt(var + _BN_EPS)
                shift = be[0] - mean * scale
                a = _bn_relu(y, scale[None, :], shift[None, :], tm)
        else:
            bp = jnp.pad(b, (0, cp - cout)).astype(jnp.float32)[None, :]
            a = _conv_bias_tanh(patches, wmat, bp, tm)

        a = a[:, :M, :cout]                                    # drop M / C padding
        if stride == 2:
            # interleave the 4 output phases: out[:, 2h+r, 2w+t, :]
            a = a.reshape(2, 2, nb, hh, ww, cout)
            a = jnp.transpose(a, (2, 3, 0, 4, 1, 5)).reshape(nb, oh, ow, cout)
        else:
            a = a.reshape(nb, oh, ow, cout)
        x = a
    return jnp.transpose(x.astype(jnp.float32), (0, 3, 1, 2))  # NHWC -> NCHW


# ----------------------------------------------------------------------------
# Pure-JAX reference (zero-insertion + im2col + jnp.dot), for validation only
# ----------------------------------------------------------------------------
def _reference_forward(z, params, layer_specs, z_dim):
    x = z.reshape(-1, 1, 1, z_dim).astype(jnp.float32)
    for (cin, cout, k, stride, pad, has_bn), (w, b, gamma, beta) in zip(
            layer_specs, params):
        nb, h, wd, c = x.shape
        if stride > 1:
            zmap = jnp.zeros((nb, (h - 1) * stride + 1, (wd - 1) * stride + 1, c),
                             x.dtype)
            zmap = zmap.at[:, ::stride, ::stride, :].set(x)
        else:
            zmap = x
        pe = k - 1 - pad
        zmap = jnp.pad(zmap, ((0, 0), (pe, pe), (pe, pe), (0, 0)))
        oh = zmap.shape[1] - k + 1
        ow = zmap.shape[2] - k + 1
        cols = []
        for dh in range(k):
            for dw in range(k):
                cols.append(zmap[:, dh:dh + oh, dw:dw + ow, :])
        pt = jnp.stack(cols, axis=3).reshape(nb * oh * ow, k * k * c)
        wm = _flipped_weight_s1(w, k)
        y = jnp.dot(pt.astype(jnp.bfloat16), wm.astype(jnp.bfloat16),
                    preferred_element_type=jnp.float32) + b[None, :]
        if has_bn:
            cnt = y.shape[0]
            mean = jnp.sum(y, axis=0) / cnt
            var = jnp.sum(y * y, axis=0) / cnt - mean * mean
            y = (y - mean[None, :]) * jax.lax.rsqrt(var[None, :] + 1e-5)
            y = jnp.maximum(y * gamma[None, :] + beta[None, :], 0.0)
        else:
            y = jnp.tanh(y)
        x = y.reshape(nb, oh, ow, cout)
    return jnp.transpose(x, (0, 3, 1, 2))


# ----------------------------------------------------------------------------
if __name__ == "__main__":
    # Small config: z_dim=8, ngf=8, output_nc=3, batch=2
    z_dim, ngf, output_nc, batch = 8, 8, 3, 2
    layer_specs = make_layer_specs(z_dim, ngf, output_nc)

    key = jax.random.PRNGKey(0)
    key, kz = jax.random.split(key)
    params = init_params(key, layer_specs)
    z = jax.random.normal(kz, (batch, z_dim), jnp.float32)

    fwd = jax.jit(functools.partial(egan_generator_64_forward,
                                    layer_specs=layer_specs, z_dim=z_dim))
    out = jax.block_until_ready(fwd(z, params))

    # Expected spatial chain: 1 -> 2 -> 4 -> 8 -> 16 -> 32 -> 34 (kernel=3, pad=0)
    assert out.shape == (batch, output_nc, 34, 34), out.shape
    assert bool(jnp.all(jnp.isfinite(out)))
    assert bool(jnp.all(jnp.abs(out) <= 1.0 + 1e-6))   # tanh range

    # Validate the fused (single-pass conv+BN+ReLU) Pallas path against a
    # straightforward zero-insertion reference (same bf16 matmul operands).
    ref_fwd = jax.jit(functools.partial(_reference_forward,
                                        layer_specs=layer_specs, z_dim=z_dim))
    ref = jax.block_until_ready(ref_fwd(z, params))
    err_fused = float(jnp.max(jnp.abs(out - ref)))
    assert err_fused < 2.5e-2, f"fused path mismatch vs reference: {err_fused}"

    # Also exercise the tiled two-pass fallback (used when a layer's y slab
    # does not fit in VMEM at production channel counts).  Looser tolerance:
    # its y intermediate is intentionally stored in bf16.
    fwd2 = jax.jit(functools.partial(egan_generator_64_forward,
                                     layer_specs=layer_specs, z_dim=z_dim,
                                     force_two_pass=True))
    out2 = jax.block_until_ready(fwd2(z, params))
    err_2pass = float(jnp.max(jnp.abs(out2 - ref)))
    assert err_2pass < 1e-1, f"two-pass path mismatch vs reference: {err_2pass}"

    print("KERNEL_OK")
</pallas_src>

<mosaic_0001>
module attributes {stable_mosaic.version = 11 : i64} {
  func.func @_fused_conv_bn_relu_kernel(%arg0: i32, %arg1: i32, %arg2: memref<1x8x32xbf16, #tpu.memory_space<vmem>>, %arg3: memref<1x32x128xbf16, #tpu.memory_space<vmem>>, %arg4: memref<1x128xf32, #tpu.memory_space<vmem>>, %arg5: memref<1x128xf32, #tpu.memory_space<vmem>>, %arg6: memref<32x128xbf16, #tpu.memory_space<vmem>>, %arg7: memref<32x128xf32, #tpu.memory_space<vmem>>, %arg8: memref<1x128xf32, #tpu.memory_space<vmem>>, %arg9: memref<1x128xf32, #tpu.memory_space<vmem>>) attributes {dimension_semantics = [#tpu.dimension_semantics<arbitrary>, #tpu.dimension_semantics<arbitrary>], iteration_bounds = array<i64: 4, 1>, scalar_prefetch = 0 : i64, scratch_operands = 3 : i64, tpu.core_type = #tpu.core_type<tc>, window_params = [{transform_indices = @transform_0, window_bounds = array<i64: 1, 8, 32>}, {transform_indices = @transform_1, window_bounds = array<i64: 1, 32, 128>}, {pipeline_mode = #tpu.pipeline_mode<synchronous>, transform_indices = @transform_2, window_bounds = array<i64: 1, 128>}, {pipeline_mode = #tpu.pipeline_mode<synchronous>, transform_indices = @transform_3, window_bounds = array<i64: 1, 128>}, {pipeline_mode = #tpu.pipeline_mode<synchronous>, transform_indices = @transform_4, window_bounds = array<i64: 32, 128>}]} {
    %c0_i32 = arith.constant 0 : i32
    %0 = arith.cmpi eq, %arg0, %c0_i32 : i32
    %c0_i32_0 = arith.constant 0 : i32
    %1 = arith.cmpi eq, %arg1, %c0_i32_0 : i32
    %2 = arith.andi %0, %1 : i1
    %3 = arith.extui %2 : i1 to i32
    %c0_i32_1 = arith.constant 0 : i32
    %4 = arith.cmpi ne, %3, %c0_i32_1 : i32
    scf.if %4 {
      %cst_20 = arith.constant 0.000000e+00 : f32
      %32 = vector.broadcast %cst_20 : f32 to vector<1x128xf32>
      %c0_21 = arith.constant 0 : index
      %c0_22 = arith.constant 0 : index
      %33 = vector.load %arg8[%c0_21, %c0_22] : memref<1x128xf32, #tpu.memory_space<vmem>>, vector<1x128xf32>
      tpu.vector_store %arg8[%c0_21, %c0_22], %32 {strides = array<i32>} : memref<1x128xf32, #tpu.memory_space<vmem>>, vector<1x128xf32>,
      %cst_23 = arith.constant 0.000000e+00 : f32
      %34 = vector.broadcast %cst_23 : f32 to vector<1x128xf32>
      %c0_24 = arith.constant 0 : index
      %c0_25 = arith.constant 0 : index
      %35 = vector.load %arg9[%c0_24, %c0_25] : memref<1x128xf32, #tpu.memory_space<vmem>>, vector<1x128xf32>
      tpu.vector_store %arg9[%c0_24, %c0_25], %34 {strides = array<i32>} : memref<1x128xf32, #tpu.memory_space<vmem>>, vector<1x128xf32>,
    } else {
    }
    %c0 = arith.constant 0 : index
    %c0_2 = arith.constant 0 : index
    %c0_3 = arith.constant 0 : index
    %5 = vector.load %arg2[%c0, %c0_2, %c0_3] : memref<1x8x32xbf16, #tpu.memory_space<vmem>>, vector<1x8x32xbf16>
    %6 = vector.shape_cast %5 : vector<1x8x32xbf16> to vector<8x32xbf16>
    %c0_4 = arith.constant 0 : index
    %c0_5 = arith.constant 0 : index
    %c0_6 = arith.constant 0 : index
    %7 = vector.load %arg3[%c0_4, %c0_5, %c0_6] : memref<1x32x128xbf16, #tpu.memory_space<vmem>>, vector<1x32x128xbf16>
    %8 = vector.shape_cast %7 : vector<1x32x128xbf16> to vector<32x128xbf16>
    %cst = arith.constant dense<0.000000e+00> : vector<8x128xf32>
    %9 = tpu.matmul %6, %8, %cst {dimension_numbers = #tpu.dot_dimension_numbers<[1], [0], [0], [1], [0, 0, 1, 1], [], []>} : vector<8x32xbf16>, vector<32x128xbf16>, vector<8x128xf32> -> vector<8x128xf32>
    %c1_i32 = arith.constant 1 : i32
    %10 = arith.muli %arg0, %c1_i32 : i32
    %11 = arith.addi %10, %arg1 : i32
    %c8_i32 = arith.constant 8 : i32
    %12 = arith.muli %11, %c8_i32 : i32
    %13 = tpu.assume_multiple %12, 8 : i32
    %14 = arith.index_cast %13 : i32 to index
    %c0_7 = arith.constant 0 : index
    %15 = vector.load %arg7[%14, %c0_7] : memref<32x128xf32, #tpu.memory_space<vmem>>, vector<8x128xf32>
    tpu.vector_store %arg7[%14, %c0_7], %9 {strides = array<i32>} : memref<32x128xf32, #tpu.memory_space<vmem>>, vector<8x128xf32>,
    %c0_8 = arith.constant 0 : index
    %c0_9 = arith.constant 0 : index
    %16 = vector.load %arg8[%c0_8, %c0_9] : memref<1x128xf32, #tpu.memory_space<vmem>>, vector<1x128xf32>
    %cst_10 = arith.constant dense<0.000000e+00> : vector<128xf32>
    %17 = vector.multi_reduction <add>, %9, %cst_10 [0] : vector<8x128xf32> to vector<128xf32>
    %18 = vector.shape_cast %17 : vector<128xf32> to vector<1x128xf32>
    %19 = arith.addf %16, %18 : vector<1x128xf32>
    %c0_11 = arith.constant 0 : index
    %c0_12 = arith.constant 0 : index
    %20 = vector.load %arg8[%c0_11, %c0_12] : memref<1x128xf32, #tpu.memory_space<vmem>>, vector<1x128xf32>
    tpu.vector_store %arg8[%c0_11, %c0_12], %19 {strides = array<i32>} : memref<1x128xf32, #tpu.memory_space<vmem>>, vector<1x128xf32>,
    %c0_13 = arith.constant 0 : index
    %c0_14 = arith.constant 0 : index
    %21 = vector.load %arg9[%c0_13, %c0_14] : memref<1x128xf32, #tpu.memory_space<vmem>>, vector<1x128xf32>
    %22 = arith.mulf %9, %9 : vector<8x128xf32>
    %cst_15 = arith.constant dense<0.000000e+00> : vector<128xf32>
    %23 = vector.multi_reduction <add>, %22, %cst_15 [0] : vector<8x128xf32> to vector<128xf32>
    %24 = vector.shape_cast %23 : vector<128xf32> to vector<1x128xf32>
    %25 = arith.addf %21, %24 : vector<1x128xf32>
    %c0_16 = arith.constant 0 : index
    %c0_17 = arith.constant 0 : index
    %26 = vector.load %arg9[%c0_16, %c0_17] : memref<1x128xf32, #tpu.memory_space<vmem>>, vector<1x128xf32>
    tpu.vector_store %arg9[%c0_16, %c0_17], %25 {strides = array<i32>} : memref<1x128xf32, #tpu.memory_space<vmem>>, vector<1x128xf32>,
    %c3_i32 = arith.constant 3 : i32
    %27 = arith.cmpi eq, %arg0, %c3_i32 : i32
    %c0_i32_18 = arith.constant 0 : i32
    %28 = arith.cmpi eq, %arg1, %c0_i32_18 : i32
    %29 = arith.andi %27, %28 : i1
    %30 = arith.extui %29 : i1 to i32
    %c0_i32_19 = arith.constant 0 : i32
    %31 = arith.cmpi ne, %30, %c0_i32_19 : i32
    scf.if %31 {
      %c0_20 = arith.constant 0 : index
      %c0_21 = arith.constant 0 : index
      %32 = vector.load %arg8[%c0_20, %c0_21] : memref<1x128xf32, #tpu.memory_space<vmem>>, vector<1x128xf32>
      %cst_22 = arith.constant 1.250000e-01 : f32
      %33 = vector.broadcast %cst_22 : f32 to vector<1x128xf32>
      %34 = arith.mulf %32, %33 : vector<1x128xf32>
      %c0_23 = arith.constant 0 : index
      %c0_24 = arith.constant 0 : index
      %35 = vector.load %arg9[%c0_23, %c0_24] : memref<1x128xf32, #tpu.memory_space<vmem>>, vector<1x128xf32>
      %cst_25 = arith.constant 1.250000e-01 : f32
      %36 = vector.broadcast %cst_25 : f32 to vector<1x128xf32>
      %37 = arith.mulf %35, %36 : vector<1x128xf32>
      %38 = arith.mulf %34, %34 : vector<1x128xf32>
      %39 = arith.subf %37, %38 : vector<1x128xf32>
      %cst_26 = arith.constant 0.000000e+00 : f32
      %40 = vector.broadcast %cst_26 : f32 to vector<1x128xf32>
      %41 = arith.maximumf %39, %40 : vector<1x128xf32>
      %c0_27 = arith.constant 0 : index
      %c0_28 = arith.constant 0 : index
      %42 = vector.load %arg4[%c0_27, %c0_28] : memref<1x128xf32, #tpu.memory_space<vmem>>, vector<1x128xf32>
      %cst_29 = arith.constant 9.99999974E-6 : f32
      %43 = vector.broadcast %cst_29 : f32 to vector<1x128xf32>
      %44 = arith.addf %41, %43 : vector<1x128xf32>
      %45 = math.rsqrt %44 : vector<1x128xf32>
      %46 = arith.mulf %42, %45 : vector<1x128xf32>
      %c0_30 = arith.constant 0 : index
      %c0_31 = arith.constant 0 : index
      %47 = vector.load %arg5[%c0_30, %c0_31] : memref<1x128xf32, #tpu.memory_space<vmem>>, vector<1x128xf32>
      %48 = arith.mulf %34, %46 : vector<1x128xf32>
      %49 = arith.subf %47, %48 : vector<1x128xf32>
      %c0_32 = arith.constant 0 : index
      %c0_33 = arith.constant 0 : index
      %50 = vector.load %arg7[%c0_32, %c0_33] : memref<32x128xf32, #tpu.memory_space<vmem>>, vector<32x128xf32>
      %51 = vector.broadcast %46 : vector<1x128xf32> to vector<32x128xf32>
      %52 = arith.mulf %50, %51 : vector<32x128xf32>
      %53 = vector.broadcast %49 : vector<1x128xf32> to vector<32x128xf32>
      %54 = arith.addf %52, %53 : vector<32x128xf32>
      %cst_34 = arith.constant 0.000000e+00 : f32
      %55 = vector.broadcast %cst_34 : f32 to vector<32x128xf32>
      %56 = arith.maximumf %54, %55 : vector<32x128xf32>
      %57 = arith.truncf %56 : vector<32x128xf32> to vector<32x128xbf16>
      %c0_35 = arith.constant 0 : index
      %c0_36 = arith.constant 0 : index
      %58 = vector.load %arg6[%c0_35, %c0_36] : memref<32x128xbf16, #tpu.memory_space<vmem>>, vector<32x128xbf16>
      tpu.vector_store %arg6[%c0_35, %c0_36], %57 {strides = array<i32>} : memref<32x128xbf16, #tpu.memory_space<vmem>>, vector<32x128xbf16>,
    } else {
    }
    return
  }
  func.func @transform_0(%arg0: i32, %arg1: i32) -> (i32, i32, i32) {
    %c0_i32 = arith.constant 0 : i32
    %c0_i32_0 = arith.constant 0 : i32
    return %arg0, %arg1, %c0_i32 : i32, i32, i32
  }
  func.func @transform_1(%arg0: i32, %arg1: i32) -> (i32, i32, i32) {
    %c0_i32 = arith.constant 0 : i32
    %c0_i32_0 = arith.constant 0 : i32
    %c0_i32_1 = arith.constant 0 : i32
    return %arg0, %c0_i32, %c0_i32_0 : i32, i32, i32
  }
  func.func @transform_2(%arg0: i32, %arg1: i32) -> (i32, i32) {
    %c0_i32 = arith.constant 0 : i32
    %c0_i32_0 = arith.constant 0 : i32
    %c0_i32_1 = arith.constant 0 : i32
    return %c0_i32, %c0_i32_0 : i32, i32
  }
  func.func @transform_3(%arg0: i32, %arg1: i32) -> (i32, i32) {
    %c0_i32 = arith.constant 0 : i32
    %c0_i32_0 = arith.constant 0 : i32
    %c0_i32_1 = arith.constant 0 : i32
    return %c0_i32, %c0_i32_0 : i32, i32
  }
  func.func @transform_4(%arg0: i32, %arg1: i32) -> (i32, i32) {
    %c0_i32 = arith.constant 0 : i32
    %c0_i32_0 = arith.constant 0 : i32
    %c0_i32_1 = arith.constant 0 : i32
    return %c0_i32, %c0_i32_0 : i32, i32
  }
}

module attributes {stable_mosaic.version = 11 : i64} {
  func.func @_fused_conv_bn_relu_kernel(%arg0: i32, %arg1: i32, %arg2: memref<1x8x256xbf16, #tpu.memory_space<vmem>>, %arg3: memref<1x256x128xbf16, #tpu.memory_space<vmem>>, %arg4: memref<1x128xf32, #tpu.memory_space<vmem>>, %arg5: memref<1x128xf32, #tpu.memory_space<vmem>>, %arg6: memref<32x128xbf16, #tpu.memory_space<vmem>>, %arg7: memref<32x128xf32, #tpu.memory_space<vmem>>, %arg8: memref<1x128xf32, #tpu.memory_space<vmem>>, %arg9: memref<1x128xf32, #tpu.memory_space<vmem>>) attributes {dimension_semantics = [#tpu.dimension_semantics<arbitrary>, #tpu.dimension_semantics<arbitrary>], iteration_bounds = array<i64: 4, 1>, scalar_prefetch = 0 : i64, scratch_operands = 3 : i64, tpu.core_type = #tpu.core_type<tc>, window_params = [{transform_indices = @transform_0, window_bounds = array<i64: 1, 8, 256>}, {transform_indices = @transform_1, window_bounds = array<i64: 1, 256, 128>}, {pipeline_mode = #tpu.pipeline_mode<synchronous>, transform_indices = @transform_2, window_bounds = array<i64: 1, 128>}, {pipeline_mode = #tpu.pipeline_mode<synchronous>, transform_indices = @transform_3, window_bounds = array<i64: 1, 128>}, {pipeline_mode = #tpu.pipeline_mode<synchronous>, transform_indices = @transform_4, window_bounds = array<i64: 32, 128>}]} {
    %c0_i32 = arith.constant 0 : i32
    %0 = arith.cmpi eq, %arg0, %c0_i32 : i32
    %c0_i32_0 = arith.constant 0 : i32
    %1 = arith.cmpi eq, %arg1, %c0_i32_0 : i32
    %2 = arith.andi %0, %1 : i1
    %3 = arith.extui %2 : i1 to i32
    %c0_i32_1 = arith.constant 0 : i32
    %4 = arith.cmpi ne, %3, %c0_i32_1 : i32
    scf.if %4 {
      %cst_20 = arith.constant 0.000000e+00 : f32
      %32 = vector.broadcast %cst_20 : f32 to vector<1x128xf32>
      %c0_21 = arith.constant 0 : index
      %c0_22 = arith.constant 0 : index
      %33 = vector.load %arg8[%c0_21, %c0_22] : memref<1x128xf32, #tpu.memory_space<vmem>>, vector<1x128xf32>
      tpu.vector_store %arg8[%c0_21, %c0_22], %32 {strides = array<i32>} : memref<1x128xf32, #tpu.memory_space<vmem>>, vector<1x128xf32>,
      %cst_23 = arith.constant 0.000000e+00 : f32
      %34 = vector.broadcast %cst_23 : f32 to vector<1x128xf32>
      %c0_24 = arith.constant 0 : index
      %c0_25 = arith.constant 0 : index
      %35 = vector.load %arg9[%c0_24, %c0_25] : memref<1x128xf32, #tpu.memory_space<vmem>>, vector<1x128xf32>
      tpu.vector_store %arg9[%c0_24, %c0_25], %34 {strides = array<i32>} : memref<1x128xf32, #tpu.memory_space<vmem>>, vector<1x128xf32>,
    } else {
    }
    %c0 = arith.constant 0 : index
    %c0_2 = arith.constant 0 : index
    %c0_3 = arith.constant 0 : index
    %5 = vector.load %arg2[%c0, %c0_2, %c0_3] : memref<1x8x256xbf16, #tpu.memory_space<vmem>>, vector<1x8x256xbf16>
    %6 = vector.shape_cast %5 : vector<1x8x256xbf16> to vector<8x256xbf16>
    %c0_4 = arith.constant 0 : index
    %c0_5 = arith.constant 0 : index
    %c0_6 = arith.constant 0 : index
    %7 = vector.load %arg3[%c0_4, %c0_5, %c0_6] : memref<1x256x128xbf16, #tpu.memory_space<vmem>>, vector<1x256x128xbf16>
    %8 = vector.shape_cast %7 : vector<1x256x128xbf16> to vector<256x128xbf16>
    %cst = arith.constant dense<0.000000e+00> : vector<8x128xf32>
    %9 = tpu.matmul %6, %8, %cst {dimension_numbers = #tpu.dot_dimension_numbers<[1], [0], [0], [1], [0, 0, 1, 1], [], []>} : vector<8x256xbf16>, vector<256x128xbf16>, vector<8x128xf32> -> vector<8x128xf32>
    %c1_i32 = arith.constant 1 : i32
    %10 = arith.muli %arg0, %c1_i32 : i32
    %11 = arith.addi %10, %arg1 : i32
    %c8_i32 = arith.constant 8 : i32
    %12 = arith.muli %11, %c8_i32 : i32
    %13 = tpu.assume_multiple %12, 8 : i32
    %14 = arith.index_cast %13 : i32 to index
    %c0_7 = arith.constant 0 : index
    %15 = vector.load %arg7[%14, %c0_7] : memref<32x128xf32, #tpu.memory_space<vmem>>, vector<8x128xf32>
    tpu.vector_store %arg7[%14, %c0_7], %9 {strides = array<i32>} : memref<32x128xf32, #tpu.memory_space<vmem>>, vector<8x128xf32>,
    %c0_8 = arith.constant 0 : index
    %c0_9 = arith.constant 0 : index
    %16 = vector.load %arg8[%c0_8, %c0_9] : memref<1x128xf32, #tpu.memory_space<vmem>>, vector<1x128xf32>
    %cst_10 = arith.constant dense<0.000000e+00> : vector<128xf32>
    %17 = vector.multi_reduction <add>, %9, %cst_10 [0] : vector<8x128xf32> to vector<128xf32>
    %18 = vector.shape_cast %17 : vector<128xf32> to vector<1x128xf32>
    %19 = arith.addf %16, %18 : vector<1x128xf32>
    %c0_11 = arith.constant 0 : index
    %c0_12 = arith.constant 0 : index
    %20 = vector.load %arg8[%c0_11, %c0_12] : memref<1x128xf32, #tpu.memory_space<vmem>>, vector<1x128xf32>
    tpu.vector_store %arg8[%c0_11, %c0_12], %19 {strides = array<i32>} : memref<1x128xf32, #tpu.memory_space<vmem>>, vector<1x128xf32>,
    %c0_13 = arith.constant 0 : index
    %c0_14 = arith.constant 0 : index
    %21 = vector.load %arg9[%c0_13, %c0_14] : memref<1x128xf32, #tpu.memory_space<vmem>>, vector<1x128xf32>
    %22 = arith.mulf %9, %9 : vector<8x128xf32>
    %cst_15 = arith.constant dense<0.000000e+00> : vector<128xf32>
    %23 = vector.multi_reduction <add>, %22, %cst_15 [0] : vector<8x128xf32> to vector<128xf32>
    %24 = vector.shape_cast %23 : vector<128xf32> to vector<1x128xf32>
    %25 = arith.addf %21, %24 : vector<1x128xf32>
    %c0_16 = arith.constant 0 : index
    %c0_17 = arith.constant 0 : index
    %26 = vector.load %arg9[%c0_16, %c0_17] : memref<1x128xf32, #tpu.memory_space<vmem>>, vector<1x128xf32>
    tpu.vector_store %arg9[%c0_16, %c0_17], %25 {strides = array<i32>} : memref<1x128xf32, #tpu.memory_space<vmem>>, vector<1x128xf32>,
    %c3_i32 = arith.constant 3 : i32
    %27 = arith.cmpi eq, %arg0, %c3_i32 : i32
    %c0_i32_18 = arith.constant 0 : i32
    %28 = arith.cmpi eq, %arg1, %c0_i32_18 : i32
    %29 = arith.andi %27, %28 : i1
    %30 = arith.extui %29 : i1 to i32
    %c0_i32_19 = arith.constant 0 : i32
    %31 = arith.cmpi ne, %30, %c0_i32_19 : i32
    scf.if %31 {
      %c0_20 = arith.constant 0 : index
      %c0_21 = arith.constant 0 : index
      %32 = vector.load %arg8[%c0_20, %c0_21] : memref<1x128xf32, #tpu.memory_space<vmem>>, vector<1x128xf32>
      %cst_22 = arith.constant 3.125000e-02 : f32
      %33 = vector.broadcast %cst_22 : f32 to vector<1x128xf32>
      %34 = arith.mulf %32, %33 : vector<1x128xf32>
      %c0_23 = arith.constant 0 : index
      %c0_24 = arith.constant 0 : index
      %35 = vector.load %arg9[%c0_23, %c0_24] : memref<1x128xf32, #tpu.memory_space<vmem>>, vector<1x128xf32>
      %cst_25 = arith.constant 3.125000e-02 : f32
      %36 = vector.broadcast %cst_25 : f32 to vector<1x128xf32>
      %37 = arith.mulf %35, %36 : vector<1x128xf32>
      %38 = arith.mulf %34, %34 : vector<1x128xf32>
      %39 = arith.subf %37, %38 : vector<1x128xf32>
      %cst_26 = arith.constant 0.000000e+00 : f32
      %40 = vector.broadcast %cst_26 : f32 to vector<1x128xf32>
      %41 = arith.maximumf %39, %40 : vector<1x128xf32>
      %c0_27 = arith.constant 0 : index
      %c0_28 = arith.constant 0 : index
      %42 = vector.load %arg4[%c0_27, %c0_28] : memref<1x128xf32, #tpu.memory_space<vmem>>, vector<1x128xf32>
      %cst_29 = arith.constant 9.99999974E-6 : f32
      %43 = vector.broadcast %cst_29 : f32 to vector<1x128xf32>
      %44 = arith.addf %41, %43 : vector<1x128xf32>
      %45 = math.rsqrt %44 : vector<1x128xf32>
      %46 = arith.mulf %42, %45 : vector<1x128xf32>
      %c0_30 = arith.constant 0 : index
      %c0_31 = arith.constant 0 : index
      %47 = vector.load %arg5[%c0_30, %c0_31] : memref<1x128xf32, #tpu.memory_space<vmem>>, vector<1x128xf32>
      %48 = arith.mulf %34, %46 : vector<1x128xf32>
      %49 = arith.subf %47, %48 : vector<1x128xf32>
      %c0_32 = arith.constant 0 : index
      %c0_33 = arith.constant 0 : index
      %50 = vector.load %arg7[%c0_32, %c0_33] : memref<32x128xf32, #tpu.memory_space<vmem>>, vector<32x128xf32>
      %51 = vector.broadcast %46 : vector<1x128xf32> to vector<32x128xf32>
      %52 = arith.mulf %50, %51 : vector<32x128xf32>
      %53 = vector.broadcast %49 : vector<1x128xf32> to vector<32x128xf32>
      %54 = arith.addf %52, %53 : vector<32x128xf32>
      %cst_34 = arith.constant 0.000000e+00 : f32
      %55 = vector.broadcast %cst_34 : f32 to vector<32x128xf32>
      %56 = arith.maximumf %54, %55 : vector<32x128xf32>
      %57 = arith.truncf %56 : vector<32x128xf32> to vector<32x128xbf16>
      %c0_35 = arith.constant 0 : index
      %c0_36 = arith.constant 0 : index
      %58 = vector.load %arg6[%c0_35, %c0_36] : memref<32x128xbf16, #tpu.memory_space<vmem>>, vector<32x128xbf16>
      tpu.vector_store %arg6[%c0_35, %c0_36], %57 {strides = array<i32>} : memref<32x128xbf16, #tpu.memory_space<vmem>>, vector<32x128xbf16>,
    } else {
    }
    return
  }
  func.func @transform_0(%arg0: i32, %arg1: i32) -> (i32, i32, i32) {
    %c0_i32 = arith.constant 0 : i32
    %c0_i32_0 = arith.constant 0 : i32
    return %arg0, %arg1, %c0_i32 : i32, i32, i32
  }
  func.func @transform_1(%arg0: i32, %arg1: i32) -> (i32, i32, i32) {
    %c0_i32 = arith.constant 0 : i32
    %c0_i32_0 = arith.constant 0 : i32
    %c0_i32_1 = arith.constant 0 : i32
    return %arg0, %c0_i32, %c0_i32_0 : i32, i32, i32
  }
  func.func @transform_2(%arg0: i32, %arg1: i32) -> (i32, i32) {
    %c0_i32 = arith.constant 0 : i32
    %c0_i32_0 = arith.constant 0 : i32
    %c0_i32_1 = arith.constant 0 : i32
    return %c0_i32, %c0_i32_0 : i32, i32
  }
  func.func @transform_3(%arg0: i32, %arg1: i32) -> (i32, i32) {
    %c0_i32 = arith.constant 0 : i32
    %c0_i32_0 = arith.constant 0 : i32
    %c0_i32_1 = arith.constant 0 : i32
    return %c0_i32, %c0_i32_0 : i32, i32
  }
  func.func @transform_4(%arg0: i32, %arg1: i32) -> (i32, i32) {
    %c0_i32 = arith.constant 0 : i32
    %c0_i32_0 = arith.constant 0 : i32
    %c0_i32_1 = arith.constant 0 : i32
    return %c0_i32, %c0_i32_0 : i32, i32
  }
}

module attributes {stable_mosaic.version = 11 : i64} {
  func.func @_fused_conv_bn_relu_kernel(%arg0: i32, %arg1: i32, %arg2: memref<1x32x256xbf16, #tpu.memory_space<vmem>>, %arg3: memref<1x256x128xbf16, #tpu.memory_space<vmem>>, %arg4: memref<1x128xf32, #tpu.memory_space<vmem>>, %arg5: memref<1x128xf32, #tpu.memory_space<vmem>>, %arg6: memref<128x128xbf16, #tpu.memory_space<vmem>>, %arg7: memref<128x128xf32, #tpu.memory_space<vmem>>, %arg8: memref<1x128xf32, #tpu.memory_space<vmem>>, %arg9: memref<1x128xf32, #tpu.memory_space<vmem>>) attributes {dimension_semantics = [#tpu.dimension_semantics<arbitrary>, #tpu.dimension_semantics<arbitrary>], iteration_bounds = array<i64: 4, 1>, scalar_prefetch = 0 : i64, scratch_operands = 3 : i64, tpu.core_type = #tpu.core_type<tc>, window_params = [{transform_indices = @transform_0, window_bounds = array<i64: 1, 32, 256>}, {transform_indices = @transform_1, window_bounds = array<i64: 1, 256, 128>}, {pipeline_mode = #tpu.pipeline_mode<synchronous>, transform_indices = @transform_2, window_bounds = array<i64: 1, 128>}, {pipeline_mode = #tpu.pipeline_mode<synchronous>, transform_indices = @transform_3, window_bounds = array<i64: 1, 128>}, {pipeline_mode = #tpu.pipeline_mode<synchronous>, transform_indices = @transform_4, window_bounds = array<i64: 128, 128>}]} {
    %c0_i32 = arith.constant 0 : i32
    %0 = arith.cmpi eq, %arg0, %c0_i32 : i32
    %c0_i32_0 = arith.constant 0 : i32
    %1 = arith.cmpi eq, %arg1, %c0_i32_0 : i32
    %2 = arith.andi %0, %1 : i1
    %3 = arith.extui %2 : i1 to i32
    %c0_i32_1 = arith.constant 0 : i32
    %4 = arith.cmpi ne, %3, %c0_i32_1 : i32
    scf.if %4 {
      %cst_20 = arith.constant 0.000000e+00 : f32
      %32 = vector.broadcast %cst_20 : f32 to vector<1x128xf32>
      %c0_21 = arith.constant 0 : index
      %c0_22 = arith.constant 0 : index
      %33 = vector.load %arg8[%c0_21, %c0_22] : memref<1x128xf32, #tpu.memory_space<vmem>>, vector<1x128xf32>
      tpu.vector_store %arg8[%c0_21, %c0_22], %32 {strides = array<i32>} : memref<1x128xf32, #tpu.memory_space<vmem>>, vector<1x128xf32>,
      %cst_23 = arith.constant 0.000000e+00 : f32
      %34 = vector.broadcast %cst_23 : f32 to vector<1x128xf32>
      %c0_24 = arith.constant 0 : index
      %c0_25 = arith.constant 0 : index
      %35 = vector.load %arg9[%c0_24, %c0_25] : memref<1x128xf32, #tpu.memory_space<vmem>>, vector<1x128xf32>
      tpu.vector_store %arg9[%c0_24, %c0_25], %34 {strides = array<i32>} : memref<1x128xf32, #tpu.memory_space<vmem>>, vector<1x128xf32>,
    } else {
    }
    %c0 = arith.constant 0 : index
    %c0_2 = arith.constant 0 : index
    %c0_3 = arith.constant 0 : index
    %5 = vector.load %arg2[%c0, %c0_2, %c0_3] : memref<1x32x256xbf16, #tpu.memory_space<vmem>>, vector<1x32x256xbf16>
    %6 = vector.shape_cast %5 : vector<1x32x256xbf16> to vector<32x256xbf16>
    %c0_4 = arith.constant 0 : index
    %c0_5 = arith.constant 0 : index
    %c0_6 = arith.constant 0 : index
    %7 = vector.load %arg3[%c0_4, %c0_5, %c0_6] : memref<1x256x128xbf16, #tpu.memory_space<vmem>>, vector<1x256x128xbf16>
    %8 = vector.shape_cast %7 : vector<1x256x128xbf16> to vector<256x128xbf16>
    %cst = arith.constant dense<0.000000e+00> : vector<32x128xf32>
    %9 = tpu.matmul %6, %8, %cst {dimension_numbers = #tpu.dot_dimension_numbers<[1], [0], [0], [1], [0, 0, 1, 1], [], []>} : vector<32x256xbf16>, vector<256x128xbf16>, vector<32x128xf32> -> vector<32x128xf32>
    %c1_i32 = arith.constant 1 : i32
    %10 = arith.muli %arg0, %c1_i32 : i32
    %11 = arith.addi %10, %arg1 : i32
    %c32_i32 = arith.constant 32 : i32
    %12 = arith.muli %11, %c32_i32 : i32
    %13 = tpu.assume_multiple %12, 8 : i32
    %14 = arith.index_cast %13 : i32 to index
    %c0_7 = arith.constant 0 : index
    %15 = vector.load %arg7[%14, %c0_7] : memref<128x128xf32, #tpu.memory_space<vmem>>, vector<32x128xf32>
    tpu.vector_store %arg7[%14, %c0_7], %9 {strides = array<i32>} : memref<128x128xf32, #tpu.memory_space<vmem>>, vector<32x128xf32>,
    %c0_8 = arith.constant 0 : index
    %c0_9 = arith.constant 0 : index
    %16 = vector.load %arg8[%c0_8, %c0_9] : memref<1x128xf32, #tpu.memory_space<vmem>>, vector<1x128xf32>
    %cst_10 = arith.constant dense<0.000000e+00> : vector<128xf32>
    %17 = vector.multi_reduction <add>, %9, %cst_10 [0] : vector<32x128xf32> to vector<128xf32>
    %18 = vector.shape_cast %17 : vector<128xf32> to vector<1x128xf32>
    %19 = arith.addf %16, %18 : vector<1x128xf32>
    %c0_11 = arith.constant 0 : index
    %c0_12 = arith.constant 0 : index
    %20 = vector.load %arg8[%c0_11, %c0_12] : memref<1x128xf32, #tpu.memory_space<vmem>>, vector<1x128xf32>
    tpu.vector_store %arg8[%c0_11, %c0_12], %19 {strides = array<i32>} : memref<1x128xf32, #tpu.memory_space<vmem>>, vector<1x128xf32>,
    %c0_13 = arith.constant 0 : index
    %c0_14 = arith.constant 0 : index
    %21 = vector.load %arg9[%c0_13, %c0_14] : memref<1x128xf32, #tpu.memory_space<vmem>>, vector<1x128xf32>
    %22 = arith.mulf %9, %9 : vector<32x128xf32>
    %cst_15 = arith.constant dense<0.000000e+00> : vector<128xf32>
    %23 = vector.multi_reduction <add>, %22, %cst_15 [0] : vector<32x128xf32> to vector<128xf32>
    %24 = vector.shape_cast %23 : vector<128xf32> to vector<1x128xf32>
    %25 = arith.addf %21, %24 : vector<1x128xf32>
    %c0_16 = arith.constant 0 : index
    %c0_17 = arith.constant 0 : index
    %26 = vector.load %arg9[%c0_16, %c0_17] : memref<1x128xf32, #tpu.memory_space<vmem>>, vector<1x128xf32>
    tpu.vector_store %arg9[%c0_16, %c0_17], %25 {strides = array<i32>} : memref<1x128xf32, #tpu.memory_space<vmem>>, vector<1x128xf32>,
    %c3_i32 = arith.constant 3 : i32
    %27 = arith.cmpi eq, %arg0, %c3_i32 : i32
    %c0_i32_18 = arith.constant 0 : i32
    %28 = arith.cmpi eq, %arg1, %c0_i32_18 : i32
    %29 = arith.andi %27, %28 : i1
    %30 = arith.extui %29 : i1 to i32
    %c0_i32_19 = arith.constant 0 : i32
    %31 = arith.cmpi ne, %30, %c0_i32_19 : i32
    scf.if %31 {
      %c0_20 = arith.constant 0 : index
      %c0_21 = arith.constant 0 : index
      %32 = vector.load %arg8[%c0_20, %c0_21] : memref<1x128xf32, #tpu.memory_space<vmem>>, vector<1x128xf32>
      %cst_22 = arith.constant 7.812500e-03 : f32
      %33 = vector.broadcast %cst_22 : f32 to vector<1x128xf32>
      %34 = arith.mulf %32, %33 : vector<1x128xf32>
      %c0_23 = arith.constant 0 : index
      %c0_24 = arith.constant 0 : index
      %35 = vector.load %arg9[%c0_23, %c0_24] : memref<1x128xf32, #tpu.memory_space<vmem>>, vector<1x128xf32>
      %cst_25 = arith.constant 7.812500e-03 : f32
      %36 = vector.broadcast %cst_25 : f32 to vector<1x128xf32>
      %37 = arith.mulf %35, %36 : vector<1x128xf32>
      %38 = arith.mulf %34, %34 : vector<1x128xf32>
      %39 = arith.subf %37, %38 : vector<1x128xf32>
      %cst_26 = arith.constant 0.000000e+00 : f32
      %40 = vector.broadcast %cst_26 : f32 to vector<1x128xf32>
      %41 = arith.maximumf %39, %40 : vector<1x128xf32>
      %c0_27 = arith.constant 0 : index
      %c0_28 = arith.constant 0 : index
      %42 = vector.load %arg4[%c0_27, %c0_28] : memref<1x128xf32, #tpu.memory_space<vmem>>, vector<1x128xf32>
      %cst_29 = arith.constant 9.99999974E-6 : f32
      %43 = vector.broadcast %cst_29 : f32 to vector<1x128xf32>
      %44 = arith.addf %41, %43 : vector<1x128xf32>
      %45 = math.rsqrt %44 : vector<1x128xf32>
      %46 = arith.mulf %42, %45 : vector<1x128xf32>
      %c0_30 = arith.constant 0 : index
      %c0_31 = arith.constant 0 : index
      %47 = vector.load %arg5[%c0_30, %c0_31] : memref<1x128xf32, #tpu.memory_space<vmem>>, vector<1x128xf32>
      %48 = arith.mulf %34, %46 : vector<1x128xf32>
      %49 = arith.subf %47, %48 : vector<1x128xf32>
      %c0_32 = arith.constant 0 : index
      %c0_33 = arith.constant 0 : index
      %50 = vector.load %arg7[%c0_32, %c0_33] : memref<128x128xf32, #tpu.memory_space<vmem>>, vector<128x128xf32>
      %51 = vector.broadcast %46 : vector<1x128xf32> to vector<128x128xf32>
      %52 = arith.mulf %50, %51 : vector<128x128xf32>
      %53 = vector.broadcast %49 : vector<1x128xf32> to vector<128x128xf32>
      %54 = arith.addf %52, %53 : vector<128x128xf32>
      %cst_34 = arith.constant 0.000000e+00 : f32
      %55 = vector.broadcast %cst_34 : f32 to vector<128x128xf32>
      %56 = arith.maximumf %54, %55 : vector<128x128xf32>
      %57 = arith.truncf %56 : vector<128x128xf32> to vector<128x128xbf16>
      %c0_35 = arith.constant 0 : index
      %c0_36 = arith.constant 0 : index
      %58 = vector.load %arg6[%c0_35, %c0_36] : memref<128x128xbf16, #tpu.memory_space<vmem>>, vector<128x128xbf16>
      tpu.vector_store %arg6[%c0_35, %c0_36], %57 {strides = array<i32>} : memref<128x128xbf16, #tpu.memory_space<vmem>>, vector<128x128xbf16>,
    } else {
    }
    return
  }
  func.func @transform_0(%arg0: i32, %arg1: i32) -> (i32, i32, i32) {
    %c0_i32 = arith.constant 0 : i32
    %c0_i32_0 = arith.constant 0 : i32
    return %arg0, %arg1, %c0_i32 : i32, i32, i32
  }
  func.func @transform_1(%arg0: i32, %arg1: i32) -> (i32, i32, i32) {
    %c0_i32 = arith.constant 0 : i32
    %c0_i32_0 = arith.constant 0 : i32
    %c0_i32_1 = arith.constant 0 : i32
    return %arg0, %c0_i32, %c0_i32_0 : i32, i32, i32
  }
  func.func @transform_2(%arg0: i32, %arg1: i32) -> (i32, i32) {
    %c0_i32 = arith.constant 0 : i32
    %c0_i32_0 = arith.constant 0 : i32
    %c0_i32_1 = arith.constant 0 : i32
    return %c0_i32, %c0_i32_0 : i32, i32
  }
  func.func @transform_3(%arg0: i32, %arg1: i32) -> (i32, i32) {
    %c0_i32 = arith.constant 0 : i32
    %c0_i32_0 = arith.constant 0 : i32
    %c0_i32_1 = arith.constant 0 : i32
    return %c0_i32, %c0_i32_0 : i32, i32
  }
  func.func @transform_4(%arg0: i32, %arg1: i32) -> (i32, i32) {
    %c0_i32 = arith.constant 0 : i32
    %c0_i32_0 = arith.constant 0 : i32
    %c0_i32_1 = arith.constant 0 : i32
    return %c0_i32, %c0_i32_0 : i32, i32
  }
}

module attributes {stable_mosaic.version = 11 : i64} {
  func.func @_fused_conv_bn_relu_kernel(%arg0: i32, %arg1: i32, %arg2: memref<1x128x128xbf16, #tpu.memory_space<vmem>>, %arg3: memref<1x128x128xbf16, #tpu.memory_space<vmem>>, %arg4: memref<1x128xf32, #tpu.memory_space<vmem>>, %arg5: memref<1x128xf32, #tpu.memory_space<vmem>>, %arg6: memref<512x128xbf16, #tpu.memory_space<vmem>>, %arg7: memref<512x128xf32, #tpu.memory_space<vmem>>, %arg8: memref<1x128xf32, #tpu.memory_space<vmem>>, %arg9: memref<1x128xf32, #tpu.memory_space<vmem>>) attributes {dimension_semantics = [#tpu.dimension_semantics<arbitrary>, #tpu.dimension_semantics<arbitrary>], iteration_bounds = array<i64: 4, 1>, scalar_prefetch = 0 : i64, scratch_operands = 3 : i64, tpu.core_type = #tpu.core_type<tc>, window_params = [{transform_indices = @transform_0, window_bounds = array<i64: 1, 128, 128>}, {transform_indices = @transform_1, window_bounds = array<i64: 1, 128, 128>}, {pipeline_mode = #tpu.pipeline_mode<synchronous>, transform_indices = @transform_2, window_bounds = array<i64: 1, 128>}, {pipeline_mode = #tpu.pipeline_mode<synchronous>, transform_indices = @transform_3, window_bounds = array<i64: 1, 128>}, {pipeline_mode = #tpu.pipeline_mode<synchronous>, transform_indices = @transform_4, window_bounds = array<i64: 512, 128>}]} {
    %c0_i32 = arith.constant 0 : i32
    %0 = arith.cmpi eq, %arg0, %c0_i32 : i32
    %c0_i32_0 = arith.constant 0 : i32
    %1 = arith.cmpi eq, %arg1, %c0_i32_0 : i32
    %2 = arith.andi %0, %1 : i1
    %3 = arith.extui %2 : i1 to i32
    %c0_i32_1 = arith.constant 0 : i32
    %4 = arith.cmpi ne, %3, %c0_i32_1 : i32
    scf.if %4 {
      %cst_20 = arith.constant 0.000000e+00 : f32
      %32 = vector.broadcast %cst_20 : f32 to vector<1x128xf32>
      %c0_21 = arith.constant 0 : index
      %c0_22 = arith.constant 0 : index
      %33 = vector.load %arg8[%c0_21, %c0_22] : memref<1x128xf32, #tpu.memory_space<vmem>>, vector<1x128xf32>
      tpu.vector_store %arg8[%c0_21, %c0_22], %32 {strides = array<i32>} : memref<1x128xf32, #tpu.memory_space<vmem>>, vector<1x128xf32>,
      %cst_23 = arith.constant 0.000000e+00 : f32
      %34 = vector.broadcast %cst_23 : f32 to vector<1x128xf32>
      %c0_24 = arith.constant 0 : index
      %c0_25 = arith.constant 0 : index
      %35 = vector.load %arg9[%c0_24, %c0_25] : memref<1x128xf32, #tpu.memory_space<vmem>>, vector<1x128xf32>
      tpu.vector_store %arg9[%c0_24, %c0_25], %34 {strides = array<i32>} : memref<1x128xf32, #tpu.memory_space<vmem>>, vector<1x128xf32>,
    } else {
    }
    %c0 = arith.constant 0 : index
    %c0_2 = arith.constant 0 : index
    %c0_3 = arith.constant 0 : index
    %5 = vector.load %arg2[%c0, %c0_2, %c0_3] : memref<1x128x128xbf16, #tpu.memory_space<vmem>>, vector<1x128x128xbf16>
    %6 = vector.shape_cast %5 : vector<1x128x128xbf16> to vector<128x128xbf16>
    %c0_4 = arith.constant 0 : index
    %c0_5 = arith.constant 0 : index
    %c0_6 = arith.constant 0 : index
    %7 = vector.load %arg3[%c0_4, %c0_5, %c0_6] : memref<1x128x128xbf16, #tpu.memory_space<vmem>>, vector<1x128x128xbf16>
    %8 = vector.shape_cast %7 : vector<1x128x128xbf16> to vector<128x128xbf16>
    %cst = arith.constant dense<0.000000e+00> : vector<128x128xf32>
    %9 = tpu.matmul %6, %8, %cst {dimension_numbers = #tpu.dot_dimension_numbers<[1], [0], [0], [1], [0, 0, 1, 1], [], []>} : vector<128x128xbf16>, vector<128x128xbf16>, vector<128x128xf32> -> vector<128x128xf32>
    %c1_i32 = arith.constant 1 : i32
    %10 = arith.muli %arg0, %c1_i32 : i32
    %11 = arith.addi %10, %arg1 : i32
    %c128_i32 = arith.constant 128 : i32
    %12 = arith.muli %11, %c128_i32 : i32
    %13 = tpu.assume_multiple %12, 8 : i32
    %14 = arith.index_cast %13 : i32 to index
    %c0_7 = arith.constant 0 : index
    %15 = vector.load %arg7[%14, %c0_7] : memref<512x128xf32, #tpu.memory_space<vmem>>, vector<128x128xf32>
    tpu.vector_store %arg7[%14, %c0_7], %9 {strides = array<i32>} : memref<512x128xf32, #tpu.memory_space<vmem>>, vector<128x128xf32>,
    %c0_8 = arith.constant 0 : index
    %c0_9 = arith.constant 0 : index
    %16 = vector.load %arg8[%c0_8, %c0_9] : memref<1x128xf32, #tpu.memory_space<vmem>>, vector<1x128xf32>
    %cst_10 = arith.constant dense<0.000000e+00> : vector<128xf32>
    %17 = vector.multi_reduction <add>, %9, %cst_10 [0] : vector<128x128xf32> to vector<128xf32>
    %18 = vector.shape_cast %17 : vector<128xf32> to vector<1x128xf32>
    %19 = arith.addf %16, %18 : vector<1x128xf32>
    %c0_11 = arith.constant 0 : index
    %c0_12 = arith.constant 0 : index
    %20 = vector.load %arg8[%c0_11, %c0_12] : memref<1x128xf32, #tpu.memory_space<vmem>>, vector<1x128xf32>
    tpu.vector_store %arg8[%c0_11, %c0_12], %19 {strides = array<i32>} : memref<1x128xf32, #tpu.memory_space<vmem>>, vector<1x128xf32>,
    %c0_13 = arith.constant 0 : index
    %c0_14 = arith.constant 0 : index
    %21 = vector.load %arg9[%c0_13, %c0_14] : memref<1x128xf32, #tpu.memory_space<vmem>>, vector<1x128xf32>
    %22 = arith.mulf %9, %9 : vector<128x128xf32>
    %cst_15 = arith.constant dense<0.000000e+00> : vector<128xf32>
    %23 = vector.multi_reduction <add>, %22, %cst_15 [0] : vector<128x128xf32> to vector<128xf32>
    %24 = vector.shape_cast %23 : vector<128xf32> to vector<1x128xf32>
    %25 = arith.addf %21, %24 : vector<1x128xf32>
    %c0_16 = arith.constant 0 : index
    %c0_17 = arith.constant 0 : index
    %26 = vector.load %arg9[%c0_16, %c0_17] : memref<1x128xf32, #tpu.memory_space<vmem>>, vector<1x128xf32>
    tpu.vector_store %arg9[%c0_16, %c0_17], %25 {strides = array<i32>} : memref<1x128xf32, #tpu.memory_space<vmem>>, vector<1x128xf32>,
    %c3_i32 = arith.constant 3 : i32
    %27 = arith.cmpi eq, %arg0, %c3_i32 : i32
    %c0_i32_18 = arith.constant 0 : i32
    %28 = arith.cmpi eq, %arg1, %c0_i32_18 : i32
    %29 = arith.andi %27, %28 : i1
    %30 = arith.extui %29 : i1 to i32
    %c0_i32_19 = arith.constant 0 : i32
    %31 = arith.cmpi ne, %30, %c0_i32_19 : i32
    scf.if %31 {
      %c0_20 = arith.constant 0 : index
      %c0_21 = arith.constant 0 : index
      %32 = vector.load %arg8[%c0_20, %c0_21] : memref<1x128xf32, #tpu.memory_space<vmem>>, vector<1x128xf32>
      %cst_22 = arith.constant 0.001953125 : f32
      %33 = vector.broadcast %cst_22 : f32 to vector<1x128xf32>
      %34 = arith.mulf %32, %33 : vector<1x128xf32>
      %c0_23 = arith.constant 0 : index
      %c0_24 = arith.constant 0 : index
      %35 = vector.load %arg9[%c0_23, %c0_24] : memref<1x128xf32, #tpu.memory_space<vmem>>, vector<1x128xf32>
      %cst_25 = arith.constant 0.001953125 : f32
      %36 = vector.broadcast %cst_25 : f32 to vector<1x128xf32>
      %37 = arith.mulf %35, %36 : vector<1x128xf32>
      %38 = arith.mulf %34, %34 : vector<1x128xf32>
      %39 = arith.subf %37, %38 : vector<1x128xf32>
      %cst_26 = arith.constant 0.000000e+00 : f32
      %40 = vector.broadcast %cst_26 : f32 to vector<1x128xf32>
      %41 = arith.maximumf %39, %40 : vector<1x128xf32>
      %c0_27 = arith.constant 0 : index
      %c0_28 = arith.constant 0 : index
      %42 = vector.load %arg4[%c0_27, %c0_28] : memref<1x128xf32, #tpu.memory_space<vmem>>, vector<1x128xf32>
      %cst_29 = arith.constant 9.99999974E-6 : f32
      %43 = vector.broadcast %cst_29 : f32 to vector<1x128xf32>
      %44 = arith.addf %41, %43 : vector<1x128xf32>
      %45 = math.rsqrt %44 : vector<1x128xf32>
      %46 = arith.mulf %42, %45 : vector<1x128xf32>
      %c0_30 = arith.constant 0 : index
      %c0_31 = arith.constant 0 : index
      %47 = vector.load %arg5[%c0_30, %c0_31] : memref<1x128xf32, #tpu.memory_space<vmem>>, vector<1x128xf32>
      %48 = arith.mulf %34, %46 : vector<1x128xf32>
      %49 = arith.subf %47, %48 : vector<1x128xf32>
      %c0_32 = arith.constant 0 : index
      %c0_33 = arith.constant 0 : index
      %50 = vector.load %arg7[%c0_32, %c0_33] : memref<512x128xf32, #tpu.memory_space<vmem>>, vector<512x128xf32>
      %51 = vector.broadcast %46 : vector<1x128xf32> to vector<512x128xf32>
      %52 = arith.mulf %50, %51 : vector<512x128xf32>
      %53 = vector.broadcast %49 : vector<1x128xf32> to vector<512x128xf32>
      %54 = arith.addf %52, %53 : vector<512x128xf32>
      %cst_34 = arith.constant 0.000000e+00 : f32
      %55 = vector.broadcast %cst_34 : f32 to vector<512x128xf32>
      %56 = arith.maximumf %54, %55 : vector<512x128xf32>
      %57 = arith.truncf %56 : vector<512x128xf32> to vector<512x128xbf16>
      %c0_35 = arith.constant 0 : index
      %c0_36 = arith.constant 0 : index
      %58 = vector.load %arg6[%c0_35, %c0_36] : memref<512x128xbf16, #tpu.memory_space<vmem>>, vector<512x128xbf16>
      tpu.vector_store %arg6[%c0_35, %c0_36], %57 {strides = array<i32>} : memref<512x128xbf16, #tpu.memory_space<vmem>>, vector<512x128xbf16>,
    } else {
    }
    return
  }
  func.func @transform_0(%arg0: i32, %arg1: i32) -> (i32, i32, i32) {
    %c0_i32 = arith.constant 0 : i32
    %c0_i32_0 = arith.constant 0 : i32
    return %arg0, %arg1, %c0_i32 : i32, i32, i32
  }
  func.func @transform_1(%arg0: i32, %arg1: i32) -> (i32, i32, i32) {
    %c0_i32 = arith.constant 0 : i32
    %c0_i32_0 = arith.constant 0 : i32
    %c0_i32_1 = arith.constant 0 : i32
    return %arg0, %c0_i32, %c0_i32_0 : i32, i32, i32
  }
  func.func @transform_2(%arg0: i32, %arg1: i32) -> (i32, i32) {
    %c0_i32 = arith.constant 0 : i32
    %c0_i32_0 = arith.constant 0 : i32
    %c0_i32_1 = arith.constant 0 : i32
    return %c0_i32, %c0_i32_0 : i32, i32
  }
  func.func @transform_3(%arg0: i32, %arg1: i32) -> (i32, i32) {
    %c0_i32 = arith.constant 0 : i32
    %c0_i32_0 = arith.constant 0 : i32
    %c0_i32_1 = arith.constant 0 : i32
    return %c0_i32, %c0_i32_0 : i32, i32
  }
  func.func @transform_4(%arg0: i32, %arg1: i32) -> (i32, i32) {
    %c0_i32 = arith.constant 0 : i32
    %c0_i32_0 = arith.constant 0 : i32
    %c0_i32_1 = arith.constant 0 : i32
    return %c0_i32, %c0_i32_0 : i32, i32
  }
}

module attributes {stable_mosaic.version = 11 : i64} {
  func.func @_fused_conv_bn_relu_kernel(%arg0: i32, %arg1: i32, %arg2: memref<1x512x128xbf16, #tpu.memory_space<vmem>>, %arg3: memref<1x128x128xbf16, #tpu.memory_space<vmem>>, %arg4: memref<1x128xf32, #tpu.memory_space<vmem>>, %arg5: memref<1x128xf32, #tpu.memory_space<vmem>>, %arg6: memref<2048x128xbf16, #tpu.memory_space<vmem>>, %arg7: memref<2048x128xf32, #tpu.memory_space<vmem>>, %arg8: memref<1x128xf32, #tpu.memory_space<vmem>>, %arg9: memref<1x128xf32, #tpu.memory_space<vmem>>) attributes {dimension_semantics = [#tpu.dimension_semantics<arbitrary>, #tpu.dimension_semantics<arbitrary>], iteration_bounds = array<i64: 4, 1>, scalar_prefetch = 0 : i64, scratch_operands = 3 : i64, tpu.core_type = #tpu.core_type<tc>, window_params = [{transform_indices = @transform_0, window_bounds = array<i64: 1, 512, 128>}, {transform_indices = @transform_1, window_bounds = array<i64: 1, 128, 128>}, {pipeline_mode = #tpu.pipeline_mode<synchronous>, transform_indices = @transform_2, window_bounds = array<i64: 1, 128>}, {pipeline_mode = #tpu.pipeline_mode<synchronous>, transform_indices = @transform_3, window_bounds = array<i64: 1, 128>}, {pipeline_mode = #tpu.pipeline_mode<synchronous>, transform_indices = @transform_4, window_bounds = array<i64: 2048, 128>}]} {
    %c0_i32 = arith.constant 0 : i32
    %0 = arith.cmpi eq, %arg0, %c0_i32 : i32
    %c0_i32_0 = arith.constant 0 : i32
    %1 = arith.cmpi eq, %arg1, %c0_i32_0 : i32
    %2 = arith.andi %0, %1 : i1
    %3 = arith.extui %2 : i1 to i32
    %c0_i32_1 = arith.constant 0 : i32
    %4 = arith.cmpi ne, %3, %c0_i32_1 : i32
    scf.if %4 {
      %cst_20 = arith.constant 0.000000e+00 : f32
      %32 = vector.broadcast %cst_20 : f32 to vector<1x128xf32>
      %c0_21 = arith.constant 0 : index
      %c0_22 = arith.constant 0 : index
      %33 = vector.load %arg8[%c0_21, %c0_22] : memref<1x128xf32, #tpu.memory_space<vmem>>, vector<1x128xf32>
      tpu.vector_store %arg8[%c0_21, %c0_22], %32 {strides = array<i32>} : memref<1x128xf32, #tpu.memory_space<vmem>>, vector<1x128xf32>,
      %cst_23 = arith.constant 0.000000e+00 : f32
      %34 = vector.broadcast %cst_23 : f32 to vector<1x128xf32>
      %c0_24 = arith.constant 0 : index
      %c0_25 = arith.constant 0 : index
      %35 = vector.load %arg9[%c0_24, %c0_25] : memref<1x128xf32, #tpu.memory_space<vmem>>, vector<1x128xf32>
      tpu.vector_store %arg9[%c0_24, %c0_25], %34 {strides = array<i32>} : memref<1x128xf32, #tpu.memory_space<vmem>>, vector<1x128xf32>,
    } else {
    }
    %c0 = arith.constant 0 : index
    %c0_2 = arith.constant 0 : index
    %c0_3 = arith.constant 0 : index
    %5 = vector.load %arg2[%c0, %c0_2, %c0_3] : memref<1x512x128xbf16, #tpu.memory_space<vmem>>, vector<1x512x128xbf16>
    %6 = vector.shape_cast %5 : vector<1x512x128xbf16> to vector<512x128xbf16>
    %c0_4 = arith.constant 0 : index
    %c0_5 = arith.constant 0 : index
    %c0_6 = arith.constant 0 : index
    %7 = vector.load %arg3[%c0_4, %c0_5, %c0_6] : memref<1x128x128xbf16, #tpu.memory_space<vmem>>, vector<1x128x128xbf16>
    %8 = vector.shape_cast %7 : vector<1x128x128xbf16> to vector<128x128xbf16>
    %cst = arith.constant dense<0.000000e+00> : vector<512x128xf32>
    %9 = tpu.matmul %6, %8, %cst {dimension_numbers = #tpu.dot_dimension_numbers<[1], [0], [0], [1], [0, 0, 1, 1], [], []>} : vector<512x128xbf16>, vector<128x128xbf16>, vector<512x128xf32> -> vector<512x128xf32>
    %c1_i32 = arith.constant 1 : i32
    %10 = arith.muli %arg0, %c1_i32 : i32
    %11 = arith.addi %10, %arg1 : i32
    %c512_i32 = arith.constant 512 : i32
    %12 = arith.muli %11, %c512_i32 : i32
    %13 = tpu.assume_multiple %12, 8 : i32
    %14 = arith.index_cast %13 : i32 to index
    %c0_7 = arith.constant 0 : index
    %15 = vector.load %arg7[%14, %c0_7] : memref<2048x128xf32, #tpu.memory_space<vmem>>, vector<512x128xf32>
    tpu.vector_store %arg7[%14, %c0_7], %9 {strides = array<i32>} : memref<2048x128xf32, #tpu.memory_space<vmem>>, vector<512x128xf32>,
    %c0_8 = arith.constant 0 : index
    %c0_9 = arith.constant 0 : index
    %16 = vector.load %arg8[%c0_8, %c0_9] : memref<1x128xf32, #tpu.memory_space<vmem>>, vector<1x128xf32>
    %cst_10 = arith.constant dense<0.000000e+00> : vector<128xf32>
    %17 = vector.multi_reduction <add>, %9, %cst_10 [0] : vector<512x128xf32> to vector<128xf32>
    %18 = vector.shape_cast %17 : vector<128xf32> to vector<1x128xf32>
    %19 = arith.addf %16, %18 : vector<1x128xf32>
    %c0_11 = arith.constant 0 : index
    %c0_12 = arith.constant 0 : index
    %20 = vector.load %arg8[%c0_11, %c0_12] : memref<1x128xf32, #tpu.memory_space<vmem>>, vector<1x128xf32>
    tpu.vector_store %arg8[%c0_11, %c0_12], %19 {strides = array<i32>} : memref<1x128xf32, #tpu.memory_space<vmem>>, vector<1x128xf32>,
    %c0_13 = arith.constant 0 : index
    %c0_14 = arith.constant 0 : index
    %21 = vector.load %arg9[%c0_13, %c0_14] : memref<1x128xf32, #tpu.memory_space<vmem>>, vector<1x128xf32>
    %22 = arith.mulf %9, %9 : vector<512x128xf32>
    %cst_15 = arith.constant dense<0.000000e+00> : vector<128xf32>
    %23 = vector.multi_reduction <add>, %22, %cst_15 [0] : vector<512x128xf32> to vector<128xf32>
    %24 = vector.shape_cast %23 : vector<128xf32> to vector<1x128xf32>
    %25 = arith.addf %21, %24 : vector<1x128xf32>
    %c0_16 = arith.constant 0 : index
    %c0_17 = arith.constant 0 : index
    %26 = vector.load %arg9[%c0_16, %c0_17] : memref<1x128xf32, #tpu.memory_space<vmem>>, vector<1x128xf32>
    tpu.vector_store %arg9[%c0_16, %c0_17], %25 {strides = array<i32>} : memref<1x128xf32, #tpu.memory_space<vmem>>, vector<1x128xf32>,
    %c3_i32 = arith.constant 3 : i32
    %27 = arith.cmpi eq, %arg0, %c3_i32 : i32
    %c0_i32_18 = arith.constant 0 : i32
    %28 = arith.cmpi eq, %arg1, %c0_i32_18 : i32
    %29 = arith.andi %27, %28 : i1
    %30 = arith.extui %29 : i1 to i32
    %c0_i32_19 = arith.constant 0 : i32
    %31 = arith.cmpi ne, %30, %c0_i32_19 : i32
    scf.if %31 {
      %c0_20 = arith.constant 0 : index
      %c0_21 = arith.constant 0 : index
      %32 = vector.load %arg8[%c0_20, %c0_21] : memref<1x128xf32, #tpu.memory_space<vmem>>, vector<1x128xf32>
      %cst_22 = arith.constant 4.8828125E-4 : f32
      %33 = vector.broadcast %cst_22 : f32 to vector<1x128xf32>
      %34 = arith.mulf %32, %33 : vector<1x128xf32>
      %c0_23 = arith.constant 0 : index
      %c0_24 = arith.constant 0 : index
      %35 = vector.load %arg9[%c0_23, %c0_24] : memref<1x128xf32, #tpu.memory_space<vmem>>, vector<1x128xf32>
      %cst_25 = arith.constant 4.8828125E-4 : f32
      %36 = vector.broadcast %cst_25 : f32 to vector<1x128xf32>
      %37 = arith.mulf %35, %36 : vector<1x128xf32>
      %38 = arith.mulf %34, %34 : vector<1x128xf32>
      %39 = arith.subf %37, %38 : vector<1x128xf32>
      %cst_26 = arith.constant 0.000000e+00 : f32
      %40 = vector.broadcast %cst_26 : f32 to vector<1x128xf32>
      %41 = arith.maximumf %39, %40 : vector<1x128xf32>
      %c0_27 = arith.constant 0 : index
      %c0_28 = arith.constant 0 : index
      %42 = vector.load %arg4[%c0_27, %c0_28] : memref<1x128xf32, #tpu.memory_space<vmem>>, vector<1x128xf32>
      %cst_29 = arith.constant 9.99999974E-6 : f32
      %43 = vector.broadcast %cst_29 : f32 to vector<1x128xf32>
      %44 = arith.addf %41, %43 : vector<1x128xf32>
      %45 = math.rsqrt %44 : vector<1x128xf32>
      %46 = arith.mulf %42, %45 : vector<1x128xf32>
      %c0_30 = arith.constant 0 : index
      %c0_31 = arith.constant 0 : index
      %47 = vector.load %arg5[%c0_30, %c0_31] : memref<1x128xf32, #tpu.memory_space<vmem>>, vector<1x128xf32>
      %48 = arith.mulf %34, %46 : vector<1x128xf32>
      %49 = arith.subf %47, %48 : vector<1x128xf32>
      %c0_32 = arith.constant 0 : index
      %c0_33 = arith.constant 0 : index
      %50 = vector.load %arg7[%c0_32, %c0_33] : memref<2048x128xf32, #tpu.memory_space<vmem>>, vector<2048x128xf32>
      %51 = vector.broadcast %46 : vector<1x128xf32> to vector<2048x128xf32>
      %52 = arith.mulf %50, %51 : vector<2048x128xf32>
      %53 = vector.broadcast %49 : vector<1x128xf32> to vector<2048x128xf32>
      %54 = arith.addf %52, %53 : vector<2048x128xf32>
      %cst_34 = arith.constant 0.000000e+00 : f32
      %55 = vector.broadcast %cst_34 : f32 to vector<2048x128xf32>
      %56 = arith.maximumf %54, %55 : vector<2048x128xf32>
      %57 = arith.truncf %56 : vector<2048x128xf32> to vector<2048x128xbf16>
      %c0_35 = arith.constant 0 : index
      %c0_36 = arith.constant 0 : index
      %58 = vector.load %arg6[%c0_35, %c0_36] : memref<2048x128xbf16, #tpu.memory_space<vmem>>, vector<2048x128xbf16>
      tpu.vector_store %arg6[%c0_35, %c0_36], %57 {strides = array<i32>} : memref<2048x128xbf16, #tpu.memory_space<vmem>>, vector<2048x128xbf16>,
    } else {
    }
    return
  }
  func.func @transform_0(%arg0: i32, %arg1: i32) -> (i32, i32, i32) {
    %c0_i32 = arith.constant 0 : i32
    %c0_i32_0 = arith.constant 0 : i32
    return %arg0, %arg1, %c0_i32 : i32, i32, i32
  }
  func.func @transform_1(%arg0: i32, %arg1: i32) -> (i32, i32, i32) {
    %c0_i32 = arith.constant 0 : i32
    %c0_i32_0 = arith.constant 0 : i32
    %c0_i32_1 = arith.constant 0 : i32
    return %arg0, %c0_i32, %c0_i32_0 : i32, i32, i32
  }
  func.func @transform_2(%arg0: i32, %arg1: i32) -> (i32, i32) {
    %c0_i32 = arith.constant 0 : i32
    %c0_i32_0 = arith.constant 0 : i32
    %c0_i32_1 = arith.constant 0 : i32
    return %c0_i32, %c0_i32_0 : i32, i32
  }
  func.func @transform_3(%arg0: i32, %arg1: i32) -> (i32, i32) {
    %c0_i32 = arith.constant 0 : i32
    %c0_i32_0 = arith.constant 0 : i32
    %c0_i32_1 = arith.constant 0 : i32
    return %c0_i32, %c0_i32_0 : i32, i32
  }
  func.func @transform_4(%arg0: i32, %arg1: i32) -> (i32, i32) {
    %c0_i32 = arith.constant 0 : i32
    %c0_i32_0 = arith.constant 0 : i32
    %c0_i32_1 = arith.constant 0 : i32
    return %c0_i32, %c0_i32_0 : i32, i32
  }
}

module attributes {stable_mosaic.version = 11 : i64} {
  func.func @_matmul_bias_tanh_kernel(%arg0: i32, %arg1: i32, %arg2: memref<1x464x144xbf16, #tpu.memory_space<vmem>>, %arg3: memref<1x144x128xbf16, #tpu.memory_space<vmem>>, %arg4: memref<1x128xf32, #tpu.memory_space<vmem>>, %arg5: memref<1x464x128xf32, #tpu.memory_space<vmem>>) attributes {dimension_semantics = [#tpu.dimension_semantics<parallel>, #tpu.dimension_semantics<parallel>], iteration_bounds = array<i64: 1, 5>, scalar_prefetch = 0 : i64, scratch_operands = 0 : i64, tpu.core_type = #tpu.core_type<tc>, window_params = [{transform_indices = @transform_0, window_bounds = array<i64: 1, 464, 144>}, {transform_indices = @transform_1, window_bounds = array<i64: 1, 144, 128>}, {pipeline_mode = #tpu.pipeline_mode<synchronous>, transform_indices = @transform_2, window_bounds = array<i64: 1, 128>}, {transform_indices = @transform_3, window_bounds = array<i64: 1, 464, 128>}]} {
    %c0 = arith.constant 0 : index
    %c0_0 = arith.constant 0 : index
    %c0_1 = arith.constant 0 : index
    %0 = vector.load %arg2[%c0, %c0_0, %c0_1] : memref<1x464x144xbf16, #tpu.memory_space<vmem>>, vector<1x464x144xbf16>
    %1 = vector.shape_cast %0 : vector<1x464x144xbf16> to vector<464x144xbf16>
    %c0_2 = arith.constant 0 : index
    %c0_3 = arith.constant 0 : index
    %c0_4 = arith.constant 0 : index
    %2 = vector.load %arg3[%c0_2, %c0_3, %c0_4] : memref<1x144x128xbf16, #tpu.memory_space<vmem>>, vector<1x144x128xbf16>
    %3 = vector.shape_cast %2 : vector<1x144x128xbf16> to vector<144x128xbf16>
    %cst = arith.constant dense<0.000000e+00> : vector<464x128xf32>
    %4 = tpu.matmul %1, %3, %cst {dimension_numbers = #tpu.dot_dimension_numbers<[1], [0], [0], [1], [0, 0, 1, 1], [], []>} : vector<464x144xbf16>, vector<144x128xbf16>, vector<464x128xf32> -> vector<464x128xf32>
    %c0_5 = arith.constant 0 : index
    %c0_6 = arith.constant 0 : index
    %5 = vector.load %arg4[%c0_5, %c0_6] : memref<1x128xf32, #tpu.memory_space<vmem>>, vector<1x128xf32>
    %6 = vector.broadcast %5 : vector<1x128xf32> to vector<464x128xf32>
    %7 = arith.addf %4, %6 : vector<464x128xf32>
    %8 = math.tanh %7 : vector<464x128xf32>
    %c0_7 = arith.constant 0 : index
    %c0_8 = arith.constant 0 : index
    %c0_9 = arith.constant 0 : index
    %9 = vector.load %arg5[%c0_7, %c0_8, %c0_9] : memref<1x464x128xf32, #tpu.memory_space<vmem>>, vector<1x464x128xf32>
    %10 = vector.shape_cast %9 : vector<1x464x128xf32> to vector<464x128xf32>
    %11 = vector.shape_cast %8 : vector<464x128xf32> to vector<1x464x128xf32>
    tpu.vector_store %arg5[%c0_7, %c0_8, %c0_9], %11 {strides = array<i32>} : memref<1x464x128xf32, #tpu.memory_space<vmem>>, vector<1x464x128xf32>,
    return
  }
  func.func @transform_0(%arg0: i32, %arg1: i32) -> (i32, i32, i32) {
    %c0_i32 = arith.constant 0 : i32
    %c0_i32_0 = arith.constant 0 : i32
    return %arg0, %arg1, %c0_i32 : i32, i32, i32
  }
  func.func @transform_1(%arg0: i32, %arg1: i32) -> (i32, i32, i32) {
    %c0_i32 = arith.constant 0 : i32
    %c0_i32_0 = arith.constant 0 : i32
    %c0_i32_1 = arith.constant 0 : i32
    return %arg0, %c0_i32, %c0_i32_0 : i32, i32, i32
  }
  func.func @transform_2(%arg0: i32, %arg1: i32) -> (i32, i32) {
    %c0_i32 = arith.constant 0 : i32
    %c0_i32_0 = arith.constant 0 : i32
    %c0_i32_1 = arith.constant 0 : i32
    return %c0_i32, %c0_i32_0 : i32, i32
  }
  func.func @transform_3(%arg0: i32, %arg1: i32) -> (i32, i32, i32) {
    %c0_i32 = arith.constant 0 : i32
    %c0_i32_0 = arith.constant 0 : i32
    return %arg0, %arg1, %c0_i32 : i32, i32, i32
  }
}

</mosaic_0001>

<llo_original>
// kernel: egan_generator_64_forward.7
$region0: #{egan_generator_64_forward.7}
  #allocation0 [shape = 'u32[]', space=smem, size = 0x4, offset = 0x4, fixed_abs, tag = 'smem constant byte address 0x4 - core index']
  #allocation1 [shape = 'u32[144,128]{1,0:T(1,128)}', space=vmem, size = 0x12000, scoped, tag = 'internal scratch']
  #allocation2 [shape = 'f32[32,128]{1,0:T(8,128)}', space=vmem, size = 0x4000, scoped, tag = 'scratch operand']
  #allocation3 [shape = 'f32[1,128]{1,0:T(1,128)}', space=vmem, size = 0x200, scoped, tag = 'scratch operand']
  #allocation4 [shape = 'f32[1,128]{1,0:T(1,128)}', space=vmem, size = 0x200, scoped, tag = 'scratch operand']
  %s0 = inlined_call_operand.vmem [shape: bf16[4,8,256], index: 0, kind: input, shape index: {}]
  %s1 = inlined_call_operand.vmem [shape: bf16[4,256,128], index: 1, kind: input, shape index: {}]
  %s2 = inlined_call_operand.vmem [shape: f32[1,128], index: 2, kind: input, shape index: {}]
  %s3 = inlined_call_operand.vmem [shape: f32[1,128], index: 3, kind: input, shape index: {}]
  %s4 = inlined_call_operand.vmem [shape: bf16[32,128], index: 4, kind: output, shape index: {}]
  %s5 = sld [smem:[#allocation0]]
  $region57: #{egan_generator_64_forward.7} parent=0
    _
  %s7 = ssub.s32 1, %s5
  %s8 = scalar_select 0, %s7, %s5
  loop: start=0, step=1, limit=6
  $region2: #{egan_generator_64_forward.7} parent=0 // loop_pre_header
    _
  $region3: #{egan_generator_64_forward.7} parent=0 // loop_header
    %s10 = sphi 0, %s14
    %p11 = scmp.ge.s32.totalorder %s10, 6
    %s17 = sphi 0, %s29
    %s18 = sphi 0, %s25
    %s19 = sphi 0, %s17
    %s20 = sphi 0, %s18
    %s21 = sphi 0, %s19
    %s22 = sphi 0, %s20
    %s34 = sphi 0, %s36
    %s37 = sphi 0, %s34
    %s38 = sphi 0, %s37
    %s54 = sphi 0, %s38
    %s60 = sphi 0, %s62
    %s63 = sphi 0, %s60
    %s64 = sphi 0, %s63
    %s80 = sphi 0, %s64
    %s84 = sphi 0, %s84
    %s86 = sphi 0, %s84
    %s87 = sphi 0, %s86
    %s101 = sphi 0, %s87
    %s105 = sphi 0, %s105
    %s107 = sphi 0, %s105
    %s108 = sphi 0, %s107
    %s122 = sphi 0, %s108
    %s126 = sphi 0, %s126
    %s128 = sphi 0, %s126
    %s129 = sphi 0, %s128
    %s143 = sphi 0, %s129
  $region4: #{egan_generator_64_forward.7} parent=0 // loop_header_branch
    %13 = sbr.rel (%p11) target = $region8
  $region5: #{egan_generator_64_forward.7} parent=0 // loop_body
    %s15 = ssub.s32 %s10, 1
    %s16 = ssub.s32 %s10, 2
    %s23 = sadd.s32 1, %s18
    %p24 = scmp.ge.s32.totalorder %s23, 1
    %s25 = scalar_select %p24, 0, %s23
    %s26 = sadd.s32 1, %s17
    %s27 = scalar_select %p24, %s26, %s17
    %p28 = scmp.ge.s32.totalorder %s27, 4
    %s29 = scalar_select %p28, 0, %s27
    %s30 = ssub.s32 %s17, %s29
    %s31 = ssub.s32 %s18, %s25
    %s32 = sor.u32 %s30, %s31
    %p33 = scmp.eq.s32.totalorder %s32, 0
    %s35 = sadd.s32 %s34, 1
    %s36 = scalar_select %p33, %s34, %s35
    %p39 = pneg %p33
    %p40 = scmp.eq.s32.totalorder %s10, 3
    %p41 = por %p39, %p40
    %p42 = scmp.ne.s32.totalorder %s34, %s37
    %p43 = scmp.eq.s32.totalorder %s10, 0
    %p44 = por %p42, %p43
    %p45 = scmp.ne.s32.totalorder %s34, %s37
    %p46 = scmp.eq.s32.totalorder %s15, 3
    %p47 = por %p45, %p46
    %p48 = scmp.ne.s32.totalorder %s37, %s38
    %p49 = scmp.eq.s32.totalorder %s15, 0
    %p50 = por %p48, %p49
    %p51 = scmp.ne.s32.totalorder %s37, %s38
    %p52 = scmp.eq.s32.totalorder %s16, 3
    %p53 = por %p51, %p52
    %p55 = scmp.ne.s32.totalorder %s38, %s54
    %p56 = scmp.eq.s32.totalorder %s16, 0
    %p57 = por %p55, %p56
    %s58 = ssub.s32 %s17, %s29
    %p59 = scmp.eq.s32.totalorder %s58, 0
    %s61 = sadd.s32 %s60, 1
    %s62 = scalar_select %p59, %s60, %s61
    %p65 = pneg %p59
    %p66 = scmp.eq.s32.totalorder %s10, 3
    %p67 = por %p65, %p66
    %p68 = scmp.ne.s32.totalorder %s60, %s63
    %p69 = scmp.eq.s32.totalorder %s10, 0
    %p70 = por %p68, %p69
    %p71 = scmp.ne.s32.totalorder %s60, %s63
    %p72 = scmp.eq.s32.totalorder %s15, 3
    %p73 = por %p71, %p72
    %p74 = scmp.ne.s32.totalorder %s63, %s64
    %p75 = scmp.eq.s32.totalorder %s15, 0
    %p76 = por %p74, %p75
    %p77 = scmp.ne.s32.totalorder %s63, %s64
    %p78 = scmp.eq.s32.totalorder %s16, 3
    %p79 = por %p77, %p78
    %p81 = scmp.ne.s32.totalorder %s64, %s80
    %p82 = scmp.eq.s32.totalorder %s16, 0
    %p83 = por %p81, %p82
    %s85 = sadd.s32 %s84, 1
    %p88 = scmp.eq.s32.totalorder %s10, 3
    %p89 = scmp.ne.s32.totalorder %s84, %s86
    %p90 = scmp.eq.s32.totalorder %s10, 0
    %p91 = por %p89, %p90
    %p92 = scmp.ne.s32.totalorder %s84, %s86
    %p93 = scmp.eq.s32.totalorder %s15, 3
    %p94 = por %p92, %p93
    %p95 = scmp.ne.s32.totalorder %s86, %s87
    %p96 = scmp.eq.s32.totalorder %s15, 0
    %p97 = por %p95, %p96
    %p98 = scmp.ne.s32.totalorder %s86, %s87
    %p99 = scmp.eq.s32.totalorder %s16, 3
    %p100 = por %p98, %p99
    %p102 = scmp.ne.s32.totalorder %s87, %s101
    %p103 = scmp.eq.s32.totalorder %s16, 0
    %p104 = por %p102, %p103
    %s106 = sadd.s32 %s105, 1
    %p109 = scmp.eq.s32.totalorder %s10, 3
    %p110 = scmp.ne.s32.totalorder %s105, %s107
    %p111 = scmp.eq.s32.totalorder %s10, 0
    %p112 = por %p110, %p111
    %p113 = scmp.ne.s32.totalorder %s105, %s107
    %p114 = scmp.eq.s32.totalorder %s15, 3
    %p115 = por %p113, %p114
    %p116 = scmp.ne.s32.totalorder %s107, %s108
    %p117 = scmp.eq.s32.totalorder %s15, 0
    %p118 = por %p116, %p117
    %p119 = scmp.ne.s32.totalorder %s107, %s108
    %p120 = scmp.eq.s32.totalorder %s16, 3
    %p121 = por %p119, %p120
    %p123 = scmp.ne.s32.totalorder %s108, %s122
    %p124 = scmp.eq.s32.totalorder %s16, 0
    %p125 = por %p123, %p124
    %s127 = sadd.s32 %s126, 1
    %p130 = scmp.eq.s32.totalorder %s10, 3
    %p131 = scmp.ne.s32.totalorder %s126, %s128
    %p132 = scmp.eq.s32.totalorder %s10, 0
    %p133 = por %p131, %p132
    %p134 = scmp.ne.s32.totalorder %s126, %s128
    %p135 = scmp.eq.s32.totalorder %s15, 3
    %p136 = por %p134, %p135
    %p137 = scmp.ne.s32.totalorder %s128, %s129
    %p138 = scmp.eq.s32.totalorder %s15, 0
    %p139 = por %p137, %p138
    %p140 = scmp.ne.s32.totalorder %s128, %s129
    %p141 = scmp.eq.s32.totalorder %s16, 3
    %p142 = por %p140, %p141
    %p144 = scmp.ne.s32.totalorder %s129, %s143
    %p145 = scmp.eq.s32.totalorder %s16, 0
    %p146 = por %p144, %p145
    %p147 = scmp.le.s32.totalorder 1, %s10
    %p148 = scmp.lt.s32.totalorder %s10, 5
    %p149 = pnand %p147, %p148
    %p150 = pneg %p149
    // Predicated region
    $region9: #{egan_generator_64_forward.7} parent=5 // pred_check
      _
    $region10: #{egan_generator_64_forward.7} parent=5 // pred_check_branch
      %152 = sbr.rel (%p149) target = $region12
    $region11: #{egan_generator_64_forward.7} parent=5 // pred_region
      %s153 = ssub.s32 %s10, 1
      // Predicated region
      $region13: #{egan_generator_64_forward.7} parent=11 // pred_check
        %p154 = pneg %p97
      $region14: #{egan_generator_64_forward.7} parent=11 // pred_check_branch
        %156 = sbr.rel (%p154) target = $region16
      $region15: #{egan_generator_64_forward.7} parent=11 // pred_region
        _
      $region16: #{egan_generator_64_forward.7} parent=11 // pred_fallthru
        _
      // Predicated region
      $region17: #{egan_generator_64_forward.7} parent=11 // pred_check
        %p157 = pneg %p118
      $region18: #{egan_generator_64_forward.7} parent=11 // pred_check_branch
        %159 = sbr.rel (%p157) target = $region20
      $region19: #{egan_generator_64_forward.7} parent=11 // pred_region
        _
      $region20: #{egan_generator_64_forward.7} parent=11 // pred_fallthru
        _
    $region12: #{egan_generator_64_forward.7} parent=5 // pred_fallthru
      _
    %p160 = scmp.lt.s32.totalorder %s10, 4
    // Predicated region
    $region21: #{egan_generator_64_forward.7} parent=5 // pred_check
      %p161 = pneg %p160
    $region22: #{egan_generator_64_forward.7} parent=5 // pred_check_branch
      %163 = sbr.rel (%p161) target = $region24
    $region23: #{egan_generator_64_forward.7} parent=5 // pred_region
      // Predicated region
      $region25: #{egan_generator_64_forward.7} parent=23 // pred_check
        %p164 = pneg %p44
      $region26: #{egan_generator_64_forward.7} parent=23 // pred_check_branch
        %166 = sbr.rel (%p164) target = $region28
      $region27: #{egan_generator_64_forward.7} parent=23 // pred_region
        %p167 = scmp.lt.s32.totalorder %s17, 3
        %s168 = scalar_select %p167, %s17, 3
        %p169 = scmp.lt.s32.totalorder %s18, 0
        %s170 = scalar_select %p169, %s18, 0
        %s171 = smul.addr %s170, 2
        %s172 = smul.addr %s168, 2
        %s173 = sadd.s32 %s171, %s172
        %s174 = smul.addr %s173, 4
        %s175 = scalar_lea.vmem %s0, %s174
      $region28: #{egan_generator_64_forward.7} parent=23 // pred_fallthru
        _
      // Predicated region
      $region29: #{egan_generator_64_forward.7} parent=23 // pred_check
        %p176 = pneg %p70
      $region30: #{egan_generator_64_forward.7} parent=23 // pred_check_branch
        %178 = sbr.rel (%p176) target = $region32
      $region31: #{egan_generator_64_forward.7} parent=23 // pred_region
        %p179 = scmp.lt.s32.totalorder %s17, 3
        %s180 = scalar_select %p179, %s17, 3
        %s181 = smul.addr %s180, 32
        %s182 = smul.addr %s181, 4
        %s183 = scalar_lea.vmem %s1, %s182
      $region32: #{egan_generator_64_forward.7} parent=23 // pred_fallthru
        _
    $region24: #{egan_generator_64_forward.7} parent=5 // pred_fallthru
      _
    %p184 = scmp.le.s32.totalorder 1, %s10
    %p185 = scmp.lt.s32.totalorder %s10, 5
    %p186 = pnand %p184, %p185
    %p187 = pneg %p186
    // Predicated region
    $region33: #{egan_generator_64_forward.7} parent=5 // pred_check
      _
    $region34: #{egan_generator_64_forward.7} parent=5 // pred_check_branch
      %189 = sbr.rel (%p186) target = $region36
    $region35: #{egan_generator_64_forward.7} parent=5 // pred_region
      %s190 = ssub.s32 %s10, 1
      %p191 = scmp.lt.s32.totalorder %s19, 3
      %s192 = scalar_select %p191, %s19, 3
      %p193 = scmp.lt.s32.totalorder %s20, 0
      %s194 = scalar_select %p193, %s20, 0
      %s195 = smul.addr %s194, 2
      %s196 = smul.addr %s192, 2
      %s197 = sadd.s32 %s195, %s196
      %s198 = smul.addr %s197, 4
      %s199 = scalar_lea.vmem %s0, %s198
      %p200 = pneg %p50
      %p201 = pneg %p47
      %p202 = scmp.lt.s32.totalorder %s19, 3
      %s203 = scalar_select %p202, %s19, 3
      %s204 = smul.addr %s203, 32
      %s205 = smul.addr %s204, 4
      %s206 = scalar_lea.vmem %s1, %s205
      %p207 = pneg %p76
      %p208 = pneg %p73
      %p209 = pneg %p97
      %p210 = pneg %p94
      %p211 = pneg %p118
      %p212 = pneg %p115
      %p213 = pneg %p139
      %p214 = pneg %p136
      %p215 = scmp.lt.s32.totalorder %s19, 3
      %s216 = scalar_select %p215, %s19, 3
      %p217 = scmp.lt.s32.totalorder %s20, 0
      %s218 = scalar_select %p217, %s20, 0
      %s219 = smul.addr %s218, 2
      %s220 = smul.addr %s216, 2
      %s221 = sadd.s32 %s219, %s220
      %s222 = smul.addr %s221, 4
      %s223 = scalar_lea.vmem %s0, %s222
      %p224 = scmp.lt.s32.totalorder %s19, 3
      %s225 = scalar_select %p224, %s19, 3
      %s226 = smul.addr %s225, 32
      %s227 = smul.addr %s226, 4
      %s228 = scalar_lea.vmem %s1, %s227
      %p230 = scmp.eq.s32.totalorder %s19, 0
      %p231 = scmp.eq.s32.totalorder %s20, 0
      %p232 = pnand %p230, %p231
      %p233 = pneg %p232
      // Predicated region
      $region37: #{egan_generator_64_forward.7} parent=35 // pred_check
        _
      $region38: #{egan_generator_64_forward.7} parent=35 // pred_check_branch
        %235 = sbr.rel (%p232) target = $region40
      $region39: #{egan_generator_64_forward.7} parent=35 // pred_region
        %236 = vst [vmem:[#allocation3] sm:$0x1] 0.0
        %237 = vst [vmem:[#allocation4] sm:$0x1] 0.0
      $region40: #{egan_generator_64_forward.7} parent=35 // pred_fallthru
        _
      %v238 = vld [vmem:[%s223] sm:$0xff]
      %v239 = vld [vmem:[%s228] sm:$0xf]
      %v240 = vld [vmem:[%s228 + $0x4] sm:$0xf]
      %v241 = vld [vmem:[%s228 + $0x8] sm:$0xf]
      %v242 = vld [vmem:[%s228 + $0xc] sm:$0xf]
      %v243 = vld [vmem:[%s228 + $0x10] sm:$0xf]
      %v244 = vld [vmem:[%s228 + $0x14] sm:$0xf]
      %v245 = vld [vmem:[%s228 + $0x18] sm:$0xf]
      %v246 = vld [vmem:[%s228 + $0x1c] sm:$0xf]
      %v247 = vld [vmem:[%s228 + $0x20] sm:$0xf]
      %v248 = vld [vmem:[%s228 + $0x24] sm:$0xf]
      %v249 = vld [vmem:[%s228 + $0x28] sm:$0xf]
      %v250 = vld [vmem:[%s228 + $0x2c] sm:$0xf]
      %v251 = vld [vmem:[%s228 + $0x30] sm:$0xf]
      %v252 = vld [vmem:[%s228 + $0x34] sm:$0xf]
      %v253 = vld [vmem:[%s228 + $0x38] sm:$0xf]
      %v254 = vld [vmem:[%s228 + $0x3c] sm:$0xf]
      %v255 = vld [vmem:[%s228 + $0x40] sm:$0xf]
      %v256 = vld [vmem:[%s228 + $0x44] sm:$0xf]
      %v257 = vld [vmem:[%s228 + $0x48] sm:$0xf]
      %v258 = vld [vmem:[%s228 + $0x4c] sm:$0xf]
      %v259 = vld [vmem:[%s228 + $0x50] sm:$0xf]
      %v260 = vld [vmem:[%s228 + $0x54] sm:$0xf]
      %v261 = vld [vmem:[%s228 + $0x58] sm:$0xf]
      %v262 = vld [vmem:[%s228 + $0x5c] sm:$0xf]
      %v263 = vld [vmem:[%s228 + $0x60] sm:$0xf]
      %v264 = vld [vmem:[%s228 + $0x64] sm:$0xf]
      %v265 = vld [vmem:[%s228 + $0x68] sm:$0xf]
      %v266 = vld [vmem:[%s228 + $0x6c] sm:$0xf]
      %v267 = vld [vmem:[%s228 + $0x70] sm:$0xf]
      %v268 = vld [vmem:[%s228 + $0x74] sm:$0xf]
      %v269 = vld [vmem:[%s228 + $0x78] sm:$0xf]
      %v270 = vld [vmem:[%s228 + $0x7c] sm:$0xf]
      %v272 = vunpack.c.l.b16 %v238
      %v273 = vunpack.c.h.b16 %v238
      %v274 = vpack.c.b16 %v272, %v272
      %v275 = vpack.c.b16 %v273, %v273
      %v310 = vunpack.c.l.b16 %v239
      %v311 = vunpack.c.l.b16 %v240
      %v312 = vunpack.c.l.b16 %v241
      %v313 = vunpack.c.l.b16 %v242
      %v314 = vunpack.c.l.b16 %v243
      %v315 = vunpack.c.l.b16 %v244
      %v316 = vunpack.c.l.b16 %v245
      %v317 = vunpack.c.l.b16 %v246
      %v318 = vunpack.c.l.b16 %v247
      %v319 = vunpack.c.l.b16 %v248
      %v320 = vunpack.c.l.b16 %v249
      %v321 = vunpack.c.l.b16 %v250
      %v322 = vunpack.c.l.b16 %v251
      %v323 = vunpack.c.l.b16 %v252
      %v324 = vunpack.c.l.b16 %v253
      %v325 = vunpack.c.l.b16 %v254
      %v326 = vunpack.c.l.b16 %v255
      %v327 = vunpack.c.l.b16 %v256
      %v328 = vunpack.c.l.b16 %v257
      %v329 = vunpack.c.l.b16 %v258
      %v330 = vunpack.c.l.b16 %v259
      %v331 = vunpack.c.l.b16 %v260
      %v332 = vunpack.c.l.b16 %v261
      %v333 = vunpack.c.l.b16 %v262
      %v334 = vunpack.c.l.b16 %v263
      %v335 = vunpack.c.l.b16 %v264
      %v336 = vunpack.c.l.b16 %v265
      %v337 = vunpack.c.l.b16 %v266
      %v338 = vunpack.c.l.b16 %v267
      %v339 = vunpack.c.l.b16 %v268
      %v340 = vunpack.c.l.b16 %v269
      %v341 = vunpack.c.l.b16 %v270
      %v342 = vpack.c.b16 %v311, %v310
      %v343 = vpack.c.b16 %v313, %v312
      %v344 = vpack.c.b16 %v315, %v314
      %v345 = vpack.c.b16 %v317, %v316
      %v346 = vpack.c.b16 %v319, %v318
      %v347 = vpack.c.b16 %v321, %v320
      %v348 = vpack.c.b16 %v323, %v322
      %v349 = vpack.c.b16 %v325, %v324
      %v350 = vpack.c.b16 %v327, %v326
      %v351 = vpack.c.b16 %v329, %v328
      %v352 = vpack.c.b16 %v331, %v330
      %v353 = vpack.c.b16 %v333, %v332
      %v354 = vpack.c.b16 %v335, %v334
      %v355 = vpack.c.b16 %v337, %v336
      %v356 = vpack.c.b16 %v339, %v338
      %v357 = vpack.c.b16 %v341, %v340
      %374 = vmatprep.subr.bf16.mxu0 0
      %375 = vmatpush1.bf16.msra.mxu0 %v342
      %376 = vmatprep.subr.bf16.mxu0 0
      %377 = vmatpush1.bf16.msra.mxu0 %v343
      %378 = vmatprep.subr.bf16.mxu0 0
      %379 = vmatpush1.bf16.msra.mxu0 %v344
      %380 = vmatprep.subr.bf16.mxu0 0
      %381 = vmatpush1.bf16.msra.mxu0 %v345
      %382 = vmatprep.subr.bf16.mxu0 0
      %383 = vmatpush1.bf16.msra.mxu0 %v346
      %384 = vmatprep.subr.bf16.mxu0 0
      %385 = vmatpush1.bf16.msra.mxu0 %v347
      %386 = vmatprep.subr.bf16.mxu0 0
      %387 = vmatpush1.bf16.msra.mxu0 %v348
      %388 = vmatprep.subr.bf16.mxu0 0
      %389 = vmatpush1.bf16.msra.mxu0 %v349
      %390 = vmatprep.subr.bf16.mxu0 0
      %391 = vmatpush1.bf16.msra.mxu0 %v350
      %392 = vmatprep.subr.bf16.mxu0 0
      %393 = vmatpush1.bf16.msra.mxu0 %v351
      %394 = vmatprep.subr.bf16.mxu0 0
      %395 = vmatpush1.bf16.msra.mxu0 %v352
      %396 = vmatprep.subr.bf16.mxu0 0
      %397 = vmatpush1.bf16.msra.mxu0 %v353
      %398 = vmatprep.subr.bf16.mxu0 0
      %399 = vmatpush1.bf16.msra.mxu0 %v354
      %400 = vmatprep.subr.bf16.mxu0 0
      %401 = vmatpush1.bf16.msra.mxu0 %v355
      %402 = vmatprep.subr.bf16.mxu0 0
      %403 = vmatpush1.bf16.msra.mxu0 %v356
      %404 = vmatprep.subr.bf16.mxu0 0
      %405 = vmatpush1.bf16.msra.mxu0 %v357
      %406 = vmatprep.mubr.bf16.mxu0 %v275
      %407 = vmatmul.mubr.bf16.gmra.mrb[0].mxu0 %v274
      %v408 = vpop.f32.mrb[0].mxu0
      %v409 = vadd.f32 0.0, %v408
      %v410 = vpop.f32.mrb[0].mxu0
      %v411 = vpop.f32.mrb[0].mxu0
      %v412 = vpop.f32.mrb[0].mxu0
      %413 = vdwg.mxu0
      %s414 = sadd.s32 %s19, %s20
      %s415 = smul.u32 %s414, 8
      %s416 = scalar_lea.vmem [#allocation2], %s415
      %417 = vst [vmem:[%s416] sm:$0xff] %v409
      %v418 = vld [vmem:[#allocation3] sm:$0x1]
      %v419 = vrot.slane %v409, 4
      %v420 = vadd.f32 %v409, %v419
      %v421 = vrot.slane %v420, 2
      %v422 = vadd.f32 %v420, %v421
      %v423 = vrot.slane %v422, 1
      %v424 = vadd.f32 %v422, %v423
      %v425 = vadd.f32 %v418, %v424
      %426 = vst [vmem:[#allocation3] sm:$0x1] %v425
      %v427 = vld [vmem:[#allocation4] sm:$0x1]
      %v428 = vmul.f32 %v409, %v409
      %v429 = vrot.slane %v428, 4
      %v430 = vadd.f32 %v428, %v429
      %v431 = vrot.slane %v430, 2
      %v432 = vadd.f32 %v430, %v431
      %v433 = vrot.slane %v432, 1
      %v434 = vadd.f32 %v432, %v433
      %v435 = vadd.f32 %v427, %v434
      %436 = vst [vmem:[#allocation4] sm:$0x1] %v435
      %p437 = scmp.eq.s32.totalorder %s19, 3
      %p438 = pnand %p437, %p231
      %p439 = pneg %p438
      // Predicated region
      $region41: #{egan_generator_64_forward.7} parent=35 // pred_check
        _
      $region42: #{egan_generator_64_forward.7} parent=35 // pred_check_branch
        %441 = sbr.rel (%p438) target = $region44
      $region43: #{egan_generator_64_forward.7} parent=35 // pred_region
        %v442 = vld [vmem:[#allocation3] sm:$0x1]
        %v443 = vmul.f32 %v442, 0.03125
        %v444 = vld [vmem:[#allocation4] sm:$0x1]
        %v445 = vmul.f32 %v444, 0.03125
        %v446 = vmul.f32 %v443, %v443
        %v447 = vsub.f32 %v445, %v446
        %v448 = vmax.f32 %v447, 0.0
        %v449 = vld [vmem:[%s2] sm:$0x1]
        %v450 = vadd.f32 %v448, 1e-05
        %v451 = vrsqrt.pop %v450
        %v452 = vmul.f32 %v449, %v451
        %v453 = vld [vmem:[%s3] sm:$0x1]
        %v454 = vmul.f32 %v443, %v452
        %v455 = vsub.f32 %v453, %v454
        %v456 = vld [vmem:[#allocation2] sm:$0xff]
        %v457 = vld [vmem:[#allocation2 + $0x8] sm:$0xff]
        %v458 = vld [vmem:[#allocation2 + $0x10] sm:$0xff]
        %v459 = vld [vmem:[#allocation2 + $0x18] sm:$0xff]
        %v461 = vlaneseq
        %v462 = vshrl.u32 %v461, 7
        %v463 = vsub.s32 0, %v462
        %v464 = vrot.slane %v452, %v463
        %v466 = vmul.f32 %v456, %v464
        %v467 = vmul.f32 %v457, %v464
        %v468 = vmul.f32 %v458, %v464
        %v469 = vmul.f32 %v459, %v464
        %v471 = vlaneseq
        %v472 = vshrl.u32 %v471, 7
        %v473 = vsub.s32 0, %v472
        %v474 = vrot.slane %v455, %v473
        %v476 = vadd.f32 %v466, %v474
        %v477 = vadd.f32 %v467, %v474
        %v478 = vadd.f32 %v468, %v474
        %v479 = vadd.f32 %v469, %v474
        %v480 = vmax.f32 %v476, 0.0
        %v481 = vmax.f32 %v477, 0.0
        %v482 = vmax.f32 %v478, 0.0
        %v483 = vmax.f32 %v479, 0.0
        %v484 = vpack.c.bf16 %v481, %v480
        %v485 = vpack.c.bf16 %v483, %v482
        %v488 = vunpack.c.l.b16 %v484
        %v489 = vunpack.c.h.b16 %v484
        %v490 = vunpack.c.l.b16 %v485
        %v491 = vunpack.c.h.b16 %v485
        %v492 = vpack.c.b16 %v488, %v488
        %v493 = vpack.c.b16 %v489, %v489
        %v494 = vpack.c.b16 %v490, %v490
        %v495 = vpack.c.b16 %v491, %v491
        %500 = vst [vmem:[%s4] sm:$0xf] %v492
        %501 = vst [vmem:[%s4 + $0x4] sm:$0xf] %v493
        %502 = vst [vmem:[%s4 + $0x8] sm:$0xf] %v494
        %503 = vst [vmem:[%s4 + $0xc] sm:$0xf] %v495
      $region44: #{egan_generator_64_forward.7} parent=35 // pred_fallthru
        _
      // Predicated region
      $region45: #{egan_generator_64_forward.7} parent=35 // pred_check
        %p504 = pneg %p136
      $region46: #{egan_generator_64_forward.7} parent=35 // pred_check_branch
        %506 = sbr.rel (%p504) target = $region48
      $region47: #{egan_generator_64_forward.7} parent=35 // pred_region
        _
      $region48: #{egan_generator_64_forward.7} parent=35 // pred_fallthru
        _
      // Predicated region
      $region49: #{egan_generator_64_forward.7} parent=35 // pred_check
        %p507 = pneg %p136
      $region50: #{egan_generator_64_forward.7} parent=35 // pred_check_branch
        %509 = sbr.rel (%p507) target = $region52
      $region51: #{egan_generator_64_forward.7} parent=35 // pred_region
        _
      $region52: #{egan_generator_64_forward.7} parent=35 // pred_fallthru
        _
    $region36: #{egan_generator_64_forward.7} parent=5 // pred_fallthru
      _
    %p510 = scmp.le.s32.totalorder 2, %s10
    // Predicated region
    $region53: #{egan_generator_64_forward.7} parent=5 // pred_check
      %p511 = pneg %p510
    $region54: #{egan_generator_64_forward.7} parent=5 // pred_check_branch
      %513 = sbr.rel (%p511) target = $region56
    $region55: #{egan_generator_64_forward.7} parent=5 // pred_region
      %s514 = ssub.s32 %s10, 2
    $region56: #{egan_generator_64_forward.7} parent=5 // pred_fallthru
      _
  $region6: #{egan_generator_64_forward.7} parent=0 // loop_footer
    %s14 = sadd.s32 1, %s10
  $region7: #{egan_generator_64_forward.7} parent=0 // loop_footer_branch
    %9 = sbr.rel target = $region3
  $region8: #{egan_generator_64_forward.7} parent=0 // loop_exit
    _

// kernel: egan_generator_64_forward.6
$region0: #{egan_generator_64_forward.6}
  #allocation0 [shape = 'u32[]', space=smem, size = 0x4, offset = 0x4, fixed_abs, tag = 'smem constant byte address 0x4 - core index']
  #allocation1 [shape = 'u32[144,128]{1,0:T(1,128)}', space=vmem, size = 0x12000, scoped, tag = 'internal scratch']
  #allocation2 [shape = 'f32[32,128]{1,0:T(8,128)}', space=vmem, size = 0x4000, scoped, tag = 'scratch operand']
  #allocation3 [shape = 'f32[1,128]{1,0:T(1,128)}', space=vmem, size = 0x200, scoped, tag = 'scratch operand']
  #allocation4 [shape = 'f32[1,128]{1,0:T(1,128)}', space=vmem, size = 0x200, scoped, tag = 'scratch operand']
  %s0 = inlined_call_operand.vmem [shape: bf16[4,8,32], index: 0, kind: input, shape index: {}]
  %s1 = inlined_call_operand.vmem [shape: bf16[4,32,128], index: 1, kind: input, shape index: {}]
  %s2 = inlined_call_operand.vmem [shape: f32[1,128], index: 2, kind: input, shape index: {}]
  %s3 = inlined_call_operand.vmem [shape: f32[1,128], index: 3, kind: input, shape index: {}]
  %s4 = inlined_call_operand.vmem [shape: bf16[32,128], index: 4, kind: output, shape index: {}]
  %s5 = sld [smem:[#allocation0]]
  $region57: #{egan_generator_64_forward.6} parent=0
    _
  %s7 = ssub.s32 1, %s5
  %s8 = scalar_select 0, %s7, %s5
  loop: start=0, step=1, limit=6
  $region2: #{egan_generator_64_forward.6} parent=0 // loop_pre_header
    _
  $region3: #{egan_generator_64_forward.6} parent=0 // loop_header
    %s10 = sphi 0, %s14
    %p11 = scmp.ge.s32.totalorder %s10, 6
    %s17 = sphi 0, %s29
    %s18 = sphi 0, %s25
    %s19 = sphi 0, %s17
    %s20 = sphi 0, %s18
    %s21 = sphi 0, %s19
    %s22 = sphi 0, %s20
    %s34 = sphi 0, %s36
    %s37 = sphi 0, %s34
    %s38 = sphi 0, %s37
    %s54 = sphi 0, %s38
    %s60 = sphi 0, %s62
    %s63 = sphi 0, %s60
    %s64 = sphi 0, %s63
    %s80 = sphi 0, %s64
    %s84 = sphi 0, %s84
    %s86 = sphi 0, %s84
    %s87 = sphi 0, %s86
    %s101 = sphi 0, %s87
    %s105 = sphi 0, %s105
    %s107 = sphi 0, %s105
    %s108 = sphi 0, %s107
    %s122 = sphi 0, %s108
    %s126 = sphi 0, %s126
    %s128 = sphi 0, %s126
    %s129 = sphi 0, %s128
    %s143 = sphi 0, %s129
  $region4: #{egan_generator_64_forward.6} parent=0 // loop_header_branch
    %13 = sbr.rel (%p11) target = $region8
  $region5: #{egan_generator_64_forward.6} parent=0 // loop_body
    %s15 = ssub.s32 %s10, 1
    %s16 = ssub.s32 %s10, 2
    %s23 = sadd.s32 1, %s18
    %p24 = scmp.ge.s32.totalorder %s23, 1
    %s25 = scalar_select %p24, 0, %s23
    %s26 = sadd.s32 1, %s17
    %s27 = scalar_select %p24, %s26, %s17
    %p28 = scmp.ge.s32.totalorder %s27, 4
    %s29 = scalar_select %p28, 0, %s27
    %s30 = ssub.s32 %s17, %s29
    %s31 = ssub.s32 %s18, %s25
    %s32 = sor.u32 %s30, %s31
    %p33 = scmp.eq.s32.totalorder %s32, 0
    %s35 = sadd.s32 %s34, 1
    %s36 = scalar_select %p33, %s34, %s35
    %p39 = pneg %p33
    %p40 = scmp.eq.s32.totalorder %s10, 3
    %p41 = por %p39, %p40
    %p42 = scmp.ne.s32.totalorder %s34, %s37
    %p43 = scmp.eq.s32.totalorder %s10, 0
    %p44 = por %p42, %p43
    %p45 = scmp.ne.s32.totalorder %s34, %s37
    %p46 = scmp.eq.s32.totalorder %s15, 3
    %p47 = por %p45, %p46
    %p48 = scmp.ne.s32.totalorder %s37, %s38
    %p49 = scmp.eq.s32.totalorder %s15, 0
    %p50 = por %p48, %p49
    %p51 = scmp.ne.s32.totalorder %s37, %s38
    %p52 = scmp.eq.s32.totalorder %s16, 3
    %p53 = por %p51, %p52
    %p55 = scmp.ne.s32.totalorder %s38, %s54
    %p56 = scmp.eq.s32.totalorder %s16, 0
    %p57 = por %p55, %p56
    %s58 = ssub.s32 %s17, %s29
    %p59 = scmp.eq.s32.totalorder %s58, 0
    %s61 = sadd.s32 %s60, 1
    %s62 = scalar_select %p59, %s60, %s61
    %p65 = pneg %p59
    %p66 = scmp.eq.s32.totalorder %s10, 3
    %p67 = por %p65, %p66
    %p68 = scmp.ne.s32.totalorder %s60, %s63
    %p69 = scmp.eq.s32.totalorder %s10, 0
    %p70 = por %p68, %p69
    %p71 = scmp.ne.s32.totalorder %s60, %s63
    %p72 = scmp.eq.s32.totalorder %s15, 3
    %p73 = por %p71, %p72
    %p74 = scmp.ne.s32.totalorder %s63, %s64
    %p75 = scmp.eq.s32.totalorder %s15, 0
    %p76 = por %p74, %p75
    %p77 = scmp.ne.s32.totalorder %s63, %s64
    %p78 = scmp.eq.s32.totalorder %s16, 3
    %p79 = por %p77, %p78
    %p81 = scmp.ne.s32.totalorder %s64, %s80
    %p82 = scmp.eq.s32.totalorder %s16, 0
    %p83 = por %p81, %p82
    %s85 = sadd.s32 %s84, 1
    %p88 = scmp.eq.s32.totalorder %s10, 3
    %p89 = scmp.ne.s32.totalorder %s84, %s86
    %p90 = scmp.eq.s32.totalorder %s10, 0
    %p91 = por %p89, %p90
    %p92 = scmp.ne.s32.totalorder %s84, %s86
    %p93 = scmp.eq.s32.totalorder %s15, 3
    %p94 = por %p92, %p93
    %p95 = scmp.ne.s32.totalorder %s86, %s87
    %p96 = scmp.eq.s32.totalorder %s15, 0
    %p97 = por %p95, %p96
    %p98 = scmp.ne.s32.totalorder %s86, %s87
    %p99 = scmp.eq.s32.totalorder %s16, 3
    %p100 = por %p98, %p99
    %p102 = scmp.ne.s32.totalorder %s87, %s101
    %p103 = scmp.eq.s32.totalorder %s16, 0
    %p104 = por %p102, %p103
    %s106 = sadd.s32 %s105, 1
    %p109 = scmp.eq.s32.totalorder %s10, 3
    %p110 = scmp.ne.s32.totalorder %s105, %s107
    %p111 = scmp.eq.s32.totalorder %s10, 0
    %p112 = por %p110, %p111
    %p113 = scmp.ne.s32.totalorder %s105, %s107
    %p114 = scmp.eq.s32.totalorder %s15, 3
    %p115 = por %p113, %p114
    %p116 = scmp.ne.s32.totalorder %s107, %s108
    %p117 = scmp.eq.s32.totalorder %s15, 0
    %p118 = por %p116, %p117
    %p119 = scmp.ne.s32.totalorder %s107, %s108
    %p120 = scmp.eq.s32.totalorder %s16, 3
    %p121 = por %p119, %p120
    %p123 = scmp.ne.s32.totalorder %s108, %s122
    %p124 = scmp.eq.s32.totalorder %s16, 0
    %p125 = por %p123, %p124
    %s127 = sadd.s32 %s126, 1
    %p130 = scmp.eq.s32.totalorder %s10, 3
    %p131 = scmp.ne.s32.totalorder %s126, %s128
    %p132 = scmp.eq.s32.totalorder %s10, 0
    %p133 = por %p131, %p132
    %p134 = scmp.ne.s32.totalorder %s126, %s128
    %p135 = scmp.eq.s32.totalorder %s15, 3
    %p136 = por %p134, %p135
    %p137 = scmp.ne.s32.totalorder %s128, %s129
    %p138 = scmp.eq.s32.totalorder %s15, 0
    %p139 = por %p137, %p138
    %p140 = scmp.ne.s32.totalorder %s128, %s129
    %p141 = scmp.eq.s32.totalorder %s16, 3
    %p142 = por %p140, %p141
    %p144 = scmp.ne.s32.totalorder %s129, %s143
    %p145 = scmp.eq.s32.totalorder %s16, 0
    %p146 = por %p144, %p145
    %p147 = scmp.le.s32.totalorder 1, %s10
    %p148 = scmp.lt.s32.totalorder %s10, 5
    %p149 = pnand %p147, %p148
    %p150 = pneg %p149
    // Predicated region
    $region9: #{egan_generator_64_forward.6} parent=5 // pred_check
      _
    $region10: #{egan_generator_64_forward.6} parent=5 // pred_check_branch
      %152 = sbr.rel (%p149) target = $region12
    $region11: #{egan_generator_64_forward.6} parent=5 // pred_region
      %s153 = ssub.s32 %s10, 1
      // Predicated region
      $region13: #{egan_generator_64_forward.6} parent=11 // pred_check
        %p154 = pneg %p97
      $region14: #{egan_generator_64_forward.6} parent=11 // pred_check_branch
        %156 = sbr.rel (%p154) target = $region16
      $region15: #{egan_generator_64_forward.6} parent=11 // pred_region
        _
      $region16: #{egan_generator_64_forward.6} parent=11 // pred_fallthru
        _
      // Predicated region
      $region17: #{egan_generator_64_forward.6} parent=11 // pred_check
        %p157 = pneg %p118
      $region18: #{egan_generator_64_forward.6} parent=11 // pred_check_branch
        %159 = sbr.rel (%p157) target = $region20
      $region19: #{egan_generator_64_forward.6} parent=11 // pred_region
        _
      $region20: #{egan_generator_64_forward.6} parent=11 // pred_fallthru
        _
    $region12: #{egan_generator_64_forward.6} parent=5 // pred_fallthru
      _
    %p160 = scmp.lt.s32.totalorder %s10, 4
    // Predicated region
    $region21: #{egan_generator_64_forward.6} parent=5 // pred_check
      %p161 = pneg %p160
    $region22: #{egan_generator_64_forward.6} parent=5 // pred_check_branch
      %163 = sbr.rel (%p161) target = $region24
    $region23: #{egan_generator_64_forward.6} parent=5 // pred_region
      // Predicated region
      $region25: #{egan_generator_64_forward.6} parent=23 // pred_check
        %p164 = pneg %p44
      $region26: #{egan_generator_64_forward.6} parent=23 // pred_check_branch
        %166 = sbr.rel (%p164) target = $region28
      $region27: #{egan_generator_64_forward.6} parent=23 // pred_region
        %p167 = scmp.lt.s32.totalorder %s17, 3
        %s168 = scalar_select %p167, %s17, 3
        %p169 = scmp.lt.s32.totalorder %s18, 0
        %s170 = scalar_select %p169, %s18, 0
        %s171 = sadd.s32 %s170, %s168
        %s172 = smul.addr %s171, 4
        %s173 = scalar_lea.vmem %s0, %s172
      $region28: #{egan_generator_64_forward.6} parent=23 // pred_fallthru
        _
      // Predicated region
      $region29: #{egan_generator_64_forward.6} parent=23 // pred_check
        %p174 = pneg %p70
      $region30: #{egan_generator_64_forward.6} parent=23 // pred_check_branch
        %176 = sbr.rel (%p174) target = $region32
      $region31: #{egan_generator_64_forward.6} parent=23 // pred_region
        %p177 = scmp.lt.s32.totalorder %s17, 3
        %s178 = scalar_select %p177, %s17, 3
        %s179 = smul.addr %s178, 4
        %s180 = smul.addr %s179, 4
        %s181 = scalar_lea.vmem %s1, %s180
      $region32: #{egan_generator_64_forward.6} parent=23 // pred_fallthru
        _
    $region24: #{egan_generator_64_forward.6} parent=5 // pred_fallthru
      _
    %p182 = scmp.le.s32.totalorder 1, %s10
    %p183 = scmp.lt.s32.totalorder %s10, 5
    %p184 = pnand %p182, %p183
    %p185 = pneg %p184
    // Predicated region
    $region33: #{egan_generator_64_forward.6} parent=5 // pred_check
      _
    $region34: #{egan_generator_64_forward.6} parent=5 // pred_check_branch
      %187 = sbr.rel (%p184) target = $region36
    $region35: #{egan_generator_64_forward.6} parent=5 // pred_region
      %s188 = ssub.s32 %s10, 1
      %p189 = scmp.lt.s32.totalorder %s19, 3
      %s190 = scalar_select %p189, %s19, 3
      %p191 = scmp.lt.s32.totalorder %s20, 0
      %s192 = scalar_select %p191, %s20, 0
      %s193 = sadd.s32 %s192, %s190
      %s194 = smul.addr %s193, 4
      %s195 = scalar_lea.vmem %s0, %s194
      %p196 = pneg %p50
      %p197 = pneg %p47
      %p198 = scmp.lt.s32.totalorder %s19, 3
      %s199 = scalar_select %p198, %s19, 3
      %s200 = smul.addr %s199, 4
      %s201 = smul.addr %s200, 4
      %s202 = scalar_lea.vmem %s1, %s201
      %p203 = pneg %p76
      %p204 = pneg %p73
      %p205 = pneg %p97
      %p206 = pneg %p94
      %p207 = pneg %p118
      %p208 = pneg %p115
      %p209 = pneg %p139
      %p210 = pneg %p136
      %p211 = scmp.lt.s32.totalorder %s19, 3
      %s212 = scalar_select %p211, %s19, 3
      %p213 = scmp.lt.s32.totalorder %s20, 0
      %s214 = scalar_select %p213, %s20, 0
      %s215 = sadd.s32 %s214, %s212
      %s216 = smul.addr %s215, 4
      %s217 = scalar_lea.vmem %s0, %s216
      %p218 = scmp.lt.s32.totalorder %s19, 3
      %s219 = scalar_select %p218, %s19, 3
      %s220 = smul.addr %s219, 4
      %s221 = smul.addr %s220, 4
      %s222 = scalar_lea.vmem %s1, %s221
      %p224 = scmp.eq.s32.totalorder %s19, 0
      %p225 = scmp.eq.s32.totalorder %s20, 0
      %p226 = pnand %p224, %p225
      %p227 = pneg %p226
      // Predicated region
      $region37: #{egan_generator_64_forward.6} parent=35 // pred_check
        _
      $region38: #{egan_generator_64_forward.6} parent=35 // pred_check_branch
        %229 = sbr.rel (%p226) target = $region40
      $region39: #{egan_generator_64_forward.6} parent=35 // pred_region
        %230 = vst [vmem:[#allocation3] sm:$0x1] 0.0
        %231 = vst [vmem:[#allocation4] sm:$0x1] 0.0
      $region40: #{egan_generator_64_forward.6} parent=35 // pred_fallthru
        _
      %v232 = vld [vmem:[%s217] sm:$0xf]
      %v233 = vld [vmem:[%s222] sm:$0xf]
      %v234 = vld [vmem:[%s222 + $0x4] sm:$0xf]
      %v235 = vld [vmem:[%s222 + $0x8] sm:$0xf]
      %v236 = vld [vmem:[%s222 + $0xc] sm:$0xf]
      %v241 = vunpack.c.l.b16 %v233
      %v242 = vunpack.c.l.b16 %v234
      %v243 = vunpack.c.l.b16 %v235
      %v244 = vunpack.c.l.b16 %v236
      %v245 = vpack.c.b16 %v242, %v241
      %v246 = vpack.c.b16 %v244, %v243
      %vm249 = vcmask 261120
      %v251 = vsel %vm249, %v232, 0
      %253 = vmatprep.subr.bf16.mxu0 0
      %254 = vmatpush1.bf16.msra.mxu0 %v245
      %255 = vmatprep.subr.bf16.mxu0 0
      %256 = vmatpush1.bf16.msra.mxu0 %v246
      %257 = vmatprep.subr.bf16.mxu0 0
      %258 = vmatpush1.bf16.msra.mxu0 0
      %259 = vmatprep.subr.bf16.mxu0 0
      %260 = vmatpush1.bf16.msra.mxu0 0
      %261 = vmatprep.subr.bf16.mxu0 0
      %262 = vmatpush1.bf16.msra.mxu0 0
      %263 = vmatprep.subr.bf16.mxu0 0
      %264 = vmatpush1.bf16.msra.mxu0 0
      %265 = vmatprep.subr.bf16.mxu0 0
      %266 = vmatpush1.bf16.msra.mxu0 0
      %267 = vmatprep.subr.bf16.mxu0 0
      %268 = vmatpush1.bf16.msra.mxu0 0
      %269 = vmatprep.subr.bf16.mxu0 0
      %270 = vmatpush1.bf16.msra.mxu0 0
      %271 = vmatprep.subr.bf16.mxu0 0
      %272 = vmatpush1.bf16.msra.mxu0 0
      %273 = vmatprep.subr.bf16.mxu0 0
      %274 = vmatpush1.bf16.msra.mxu0 0
      %275 = vmatprep.subr.bf16.mxu0 0
      %276 = vmatpush1.bf16.msra.mxu0 0
      %277 = vmatprep.subr.bf16.mxu0 0
      %278 = vmatpush1.bf16.msra.mxu0 0
      %279 = vmatprep.subr.bf16.mxu0 0
      %280 = vmatpush1.bf16.msra.mxu0 0
      %281 = vmatprep.subr.bf16.mxu0 0
      %282 = vmatpush1.bf16.msra.mxu0 0
      %283 = vmatprep.subr.bf16.mxu0 0
      %284 = vmatpush1.bf16.msra.mxu0 0
      %285 = vmatprep.mubr.bf16.mxu0 0
      %286 = vmatmul.mubr.bf16.gmra.mrb[0].mxu0 %v251
      %v287 = vpop.f32.mrb[0].mxu0
      %v288 = vadd.f32 0.0, %v287
      %v289 = vpop.f32.mrb[0].mxu0
      %v290 = vpop.f32.mrb[0].mxu0
      %v291 = vpop.f32.mrb[0].mxu0
      %292 = vdwg.mxu0
      %s293 = sadd.s32 %s19, %s20
      %s294 = smul.u32 %s293, 8
      %s295 = scalar_lea.vmem [#allocation2], %s294
      %296 = vst [vmem:[%s295] sm:$0xff] %v288
      %v297 = vld [vmem:[#allocation3] sm:$0x1]
      %v298 = vrot.slane %v288, 4
      %v299 = vadd.f32 %v288, %v298
      %v300 = vrot.slane %v299, 2
      %v301 = vadd.f32 %v299, %v300
      %v302 = vrot.slane %v301, 1
      %v303 = vadd.f32 %v301, %v302
      %v304 = vadd.f32 %v297, %v303
      %305 = vst [vmem:[#allocation3] sm:$0x1] %v304
      %v306 = vld [vmem:[#allocation4] sm:$0x1]
      %v307 = vmul.f32 %v288, %v288
      %v308 = vrot.slane %v307, 4
      %v309 = vadd.f32 %v307, %v308
      %v310 = vrot.slane %v309, 2
      %v311 = vadd.f32 %v309, %v310
      %v312 = vrot.slane %v311, 1
      %v313 = vadd.f32 %v311, %v312
      %v314 = vadd.f32 %v306, %v313
      %315 = vst [vmem:[#allocation4] sm:$0x1] %v314
      %p316 = scmp.eq.s32.totalorder %s19, 3
      %p317 = pnand %p316, %p225
      %p318 = pneg %p317
      // Predicated region
      $region41: #{egan_generator_64_forward.6} parent=35 // pred_check
        _
      $region42: #{egan_generator_64_forward.6} parent=35 // pred_check_branch
        %320 = sbr.rel (%p317) target = $region44
      $region43: #{egan_generator_64_forward.6} parent=35 // pred_region
        %v321 = vld [vmem:[#allocation3] sm:$0x1]
        %v322 = vmul.f32 %v321, 0.125
        %v323 = vld [vmem:[#allocation4] sm:$0x1]
        %v324 = vmul.f32 %v323, 0.125
        %v325 = vmul.f32 %v322, %v322
        %v326 = vsub.f32 %v324, %v325
        %v327 = vmax.f32 %v326, 0.0
        %v328 = vld [vmem:[%s2] sm:$0x1]
        %v329 = vadd.f32 %v327, 1e-05
        %v330 = vrsqrt.pop %v329
        %v331 = vmul.f32 %v328, %v330
        %v332 = vld [vmem:[%s3] sm:$0x1]
        %v333 = vmul.f32 %v322, %v331
        %v334 = vsub.f32 %v332, %v333
        %v335 = vld [vmem:[#allocation2] sm:$0xff]
        %v336 = vld [vmem:[#allocation2 + $0x8] sm:$0xff]
        %v337 = vld [vmem:[#allocation2 + $0x10] sm:$0xff]
        %v338 = vld [vmem:[#allocation2 + $0x18] sm:$0xff]
        %v340 = vlaneseq
        %v341 = vshrl.u32 %v340, 7
        %v342 = vsub.s32 0, %v341
        %v343 = vrot.slane %v331, %v342
        %v345 = vmul.f32 %v335, %v343
        %v346 = vmul.f32 %v336, %v343
        %v347 = vmul.f32 %v337, %v343
        %v348 = vmul.f32 %v338, %v343
        %v350 = vlaneseq
        %v351 = vshrl.u32 %v350, 7
        %v352 = vsub.s32 0, %v351
        %v353 = vrot.slane %v334, %v352
        %v355 = vadd.f32 %v345, %v353
        %v356 = vadd.f32 %v346, %v353
        %v357 = vadd.f32 %v347, %v353
        %v358 = vadd.f32 %v348, %v353
        %v359 = vmax.f32 %v355, 0.0
        %v360 = vmax.f32 %v356, 0.0
        %v361 = vmax.f32 %v357, 0.0
        %v362 = vmax.f32 %v358, 0.0
        %v363 = vpack.c.bf16 %v360, %v359
        %v364 = vpack.c.bf16 %v362, %v361
        %v367 = vunpack.c.l.b16 %v363
        %v368 = vunpack.c.h.b16 %v363
        %v369 = vunpack.c.l.b16 %v364
        %v370 = vunpack.c.h.b16 %v364
        %v371 = vpack.c.b16 %v367, %v367
        %v372 = vpack.c.b16 %v368, %v368
        %v373 = vpack.c.b16 %v369, %v369
        %v374 = vpack.c.b16 %v370, %v370
        %379 = vst [vmem:[%s4] sm:$0xf] %v371
        %380 = vst [vmem:[%s4 + $0x4] sm:$0xf] %v372
        %381 = vst [vmem:[%s4 + $0x8] sm:$0xf] %v373
        %382 = vst [vmem:[%s4 + $0xc] sm:$0xf] %v374
      $region44: #{egan_generator_64_forward.6} parent=35 // pred_fallthru
        _
      // Predicated region
      $region45: #{egan_generator_64_forward.6} parent=35 // pred_check
        %p383 = pneg %p136
      $region46: #{egan_generator_64_forward.6} parent=35 // pred_check_branch
        %385 = sbr.rel (%p383) target = $region48
      $region47: #{egan_generator_64_forward.6} parent=35 // pred_region
        _
      $region48: #{egan_generator_64_forward.6} parent=35 // pred_fallthru
        _
      // Predicated region
      $region49: #{egan_generator_64_forward.6} parent=35 // pred_check
        %p386 = pneg %p136
      $region50: #{egan_generator_64_forward.6} parent=35 // pred_check_branch
        %388 = sbr.rel (%p386) target = $region52
      $region51: #{egan_generator_64_forward.6} parent=35 // pred_region
        _
      $region52: #{egan_generator_64_forward.6} parent=35 // pred_fallthru
        _
    $region36: #{egan_generator_64_forward.6} parent=5 // pred_fallthru
      _
    %p389 = scmp.le.s32.totalorder 2, %s10
    // Predicated region
    $region53: #{egan_generator_64_forward.6} parent=5 // pred_check
      %p390 = pneg %p389
    $region54: #{egan_generator_64_forward.6} parent=5 // pred_check_branch
      %392 = sbr.rel (%p390) target = $region56
    $region55: #{egan_generator_64_forward.6} parent=5 // pred_region
      %s393 = ssub.s32 %s10, 2
    $region56: #{egan_generator_64_forward.6} parent=5 // pred_fallthru
      _
  $region6: #{egan_generator_64_forward.6} parent=0 // loop_footer
    %s14 = sadd.s32 1, %s10
  $region7: #{egan_generator_64_forward.6} parent=0 // loop_footer_branch
    %9 = sbr.rel target = $region3
  $region8: #{egan_generator_64_forward.6} parent=0 // loop_exit
    _

// kernel: egan_generator_64_forward.8
$region0: #{egan_generator_64_forward.8}
  #allocation0 [shape = 'u32[]', space=smem, size = 0x4, offset = 0x4, fixed_abs, tag = 'smem constant byte address 0x4 - core index']
  #allocation1 [shape = 'u32[144,128]{1,0:T(1,128)}', space=vmem, size = 0x12000, scoped, tag = 'internal scratch']
  #allocation2 [shape = 'f32[128,128]{1,0:T(8,128)}', space=vmem, size = 0x10000, scoped, tag = 'scratch operand']
  #allocation3 [shape = 'f32[1,128]{1,0:T(1,128)}', space=vmem, size = 0x200, scoped, tag = 'scratch operand']
  #allocation4 [shape = 'f32[1,128]{1,0:T(1,128)}', space=vmem, size = 0x200, scoped, tag = 'scratch operand']
  %s0 = inlined_call_operand.vmem [shape: bf16[4,32,256], index: 0, kind: input, shape index: {}]
  %s1 = inlined_call_operand.vmem [shape: bf16[4,256,128], index: 1, kind: input, shape index: {}]
  %s2 = inlined_call_operand.vmem [shape: f32[1,128], index: 2, kind: input, shape index: {}]
  %s3 = inlined_call_operand.vmem [shape: f32[1,128], index: 3, kind: input, shape index: {}]
  %s4 = inlined_call_operand.vmem [shape: bf16[128,128], index: 4, kind: output, shape index: {}]
  %s5 = sld [smem:[#allocation0]]
  $region57: #{egan_generator_64_forward.8} parent=0
    _
  %s7 = ssub.s32 1, %s5
  %s8 = scalar_select 0, %s7, %s5
  loop: start=0, step=1, limit=6
  $region2: #{egan_generator_64_forward.8} parent=0 // loop_pre_header
    _
  $region3: #{egan_generator_64_forward.8} parent=0 // loop_header
    %s10 = sphi 0, %s14
    %p11 = scmp.ge.s32.totalorder %s10, 6
    %s17 = sphi 0, %s29
    %s18 = sphi 0, %s25
    %s19 = sphi 0, %s17
    %s20 = sphi 0, %s18
    %s21 = sphi 0, %s19
    %s22 = sphi 0, %s20
    %s34 = sphi 0, %s36
    %s37 = sphi 0, %s34
    %s38 = sphi 0, %s37
    %s54 = sphi 0, %s38
    %s60 = sphi 0, %s62
    %s63 = sphi 0, %s60
    %s64 = sphi 0, %s63
    %s80 = sphi 0, %s64
    %s84 = sphi 0, %s84
    %s86 = sphi 0, %s84
    %s87 = sphi 0, %s86
    %s101 = sphi 0, %s87
    %s105 = sphi 0, %s105
    %s107 = sphi 0, %s105
    %s108 = sphi 0, %s107
    %s122 = sphi 0, %s108
    %s126 = sphi 0, %s126
    %s128 = sphi 0, %s126
    %s129 = sphi 0, %s128
    %s143 = sphi 0, %s129
  $region4: #{egan_generator_64_forward.8} parent=0 // loop_header_branch
    %13 = sbr.rel (%p11) target = $region8
  $region5: #{egan_generator_64_forward.8} parent=0 // loop_body
    %s15 = ssub.s32 %s10, 1
    %s16 = ssub.s32 %s10, 2
    %s23 = sadd.s32 1, %s18
    %p24 = scmp.ge.s32.totalorder %s23, 1
    %s25 = scalar_select %p24, 0, %s23
    %s26 = sadd.s32 1, %s17
    %s27 = scalar_select %p24, %s26, %s17
    %p28 = scmp.ge.s32.totalorder %s27, 4
    %s29 = scalar_select %p28, 0, %s27
    %s30 = ssub.s32 %s17, %s29
    %s31 = ssub.s32 %s18, %s25
    %s32 = sor.u32 %s30, %s31
    %p33 = scmp.eq.s32.totalorder %s32, 0
    %s35 = sadd.s32 %s34, 1
    %s36 = scalar_select %p33, %s34, %s35
    %p39 = pneg %p33
    %p40 = scmp.eq.s32.totalorder %s10, 3
    %p41 = por %p39, %p40
    %p42 = scmp.ne.s32.totalorder %s34, %s37
    %p43 = scmp.eq.s32.totalorder %s10, 0
    %p44 = por %p42, %p43
    %p45 = scmp.ne.s32.totalorder %s34, %s37
    %p46 = scmp.eq.s32.totalorder %s15, 3
    %p47 = por %p45, %p46
    %p48 = scmp.ne.s32.totalorder %s37, %s38
    %p49 = scmp.eq.s32.totalorder %s15, 0
    %p50 = por %p48, %p49
    %p51 = scmp.ne.s32.totalorder %s37, %s38
    %p52 = scmp.eq.s32.totalorder %s16, 3
    %p53 = por %p51, %p52
    %p55 = scmp.ne.s32.totalorder %s38, %s54
    %p56 = scmp.eq.s32.totalorder %s16, 0
    %p57 = por %p55, %p56
    %s58 = ssub.s32 %s17, %s29
    %p59 = scmp.eq.s32.totalorder %s58, 0
    %s61 = sadd.s32 %s60, 1
    %s62 = scalar_select %p59, %s60, %s61
    %p65 = pneg %p59
    %p66 = scmp.eq.s32.totalorder %s10, 3
    %p67 = por %p65, %p66
    %p68 = scmp.ne.s32.totalorder %s60, %s63
    %p69 = scmp.eq.s32.totalorder %s10, 0
    %p70 = por %p68, %p69
    %p71 = scmp.ne.s32.totalorder %s60, %s63
    %p72 = scmp.eq.s32.totalorder %s15, 3
    %p73 = por %p71, %p72
    %p74 = scmp.ne.s32.totalorder %s63, %s64
    %p75 = scmp.eq.s32.totalorder %s15, 0
    %p76 = por %p74, %p75
    %p77 = scmp.ne.s32.totalorder %s63, %s64
    %p78 = scmp.eq.s32.totalorder %s16, 3
    %p79 = por %p77, %p78
    %p81 = scmp.ne.s32.totalorder %s64, %s80
    %p82 = scmp.eq.s32.totalorder %s16, 0
    %p83 = por %p81, %p82
    %s85 = sadd.s32 %s84, 1
    %p88 = scmp.eq.s32.totalorder %s10, 3
    %p89 = scmp.ne.s32.totalorder %s84, %s86
    %p90 = scmp.eq.s32.totalorder %s10, 0
    %p91 = por %p89, %p90
    %p92 = scmp.ne.s32.totalorder %s84, %s86
    %p93 = scmp.eq.s32.totalorder %s15, 3
    %p94 = por %p92, %p93
    %p95 = scmp.ne.s32.totalorder %s86, %s87
    %p96 = scmp.eq.s32.totalorder %s15, 0
    %p97 = por %p95, %p96
    %p98 = scmp.ne.s32.totalorder %s86, %s87
    %p99 = scmp.eq.s32.totalorder %s16, 3
    %p100 = por %p98, %p99
    %p102 = scmp.ne.s32.totalorder %s87, %s101
    %p103 = scmp.eq.s32.totalorder %s16, 0
    %p104 = por %p102, %p103
    %s106 = sadd.s32 %s105, 1
    %p109 = scmp.eq.s32.totalorder %s10, 3
    %p110 = scmp.ne.s32.totalorder %s105, %s107
    %p111 = scmp.eq.s32.totalorder %s10, 0
    %p112 = por %p110, %p111
    %p113 = scmp.ne.s32.totalorder %s105, %s107
    %p114 = scmp.eq.s32.totalorder %s15, 3
    %p115 = por %p113, %p114
    %p116 = scmp.ne.s32.totalorder %s107, %s108
    %p117 = scmp.eq.s32.totalorder %s15, 0
    %p118 = por %p116, %p117
    %p119 = scmp.ne.s32.totalorder %s107, %s108
    %p120 = scmp.eq.s32.totalorder %s16, 3
    %p121 = por %p119, %p120
    %p123 = scmp.ne.s32.totalorder %s108, %s122
    %p124 = scmp.eq.s32.totalorder %s16, 0
    %p125 = por %p123, %p124
    %s127 = sadd.s32 %s126, 1
    %p130 = scmp.eq.s32.totalorder %s10, 3
    %p131 = scmp.ne.s32.totalorder %s126, %s128
    %p132 = scmp.eq.s32.totalorder %s10, 0
    %p133 = por %p131, %p132
    %p134 = scmp.ne.s32.totalorder %s126, %s128
    %p135 = scmp.eq.s32.totalorder %s15, 3
    %p136 = por %p134, %p135
    %p137 = scmp.ne.s32.totalorder %s128, %s129
    %p138 = scmp.eq.s32.totalorder %s15, 0
    %p139 = por %p137, %p138
    %p140 = scmp.ne.s32.totalorder %s128, %s129
    %p141 = scmp.eq.s32.totalorder %s16, 3
    %p142 = por %p140, %p141
    %p144 = scmp.ne.s32.totalorder %s129, %s143
    %p145 = scmp.eq.s32.totalorder %s16, 0
    %p146 = por %p144, %p145
    %p147 = scmp.le.s32.totalorder 1, %s10
    %p148 = scmp.lt.s32.totalorder %s10, 5
    %p149 = pnand %p147, %p148
    %p150 = pneg %p149
    // Predicated region
    $region9: #{egan_generator_64_forward.8} parent=5 // pred_check
      _
    $region10: #{egan_generator_64_forward.8} parent=5 // pred_check_branch
      %152 = sbr.rel (%p149) target = $region12
    $region11: #{egan_generator_64_forward.8} parent=5 // pred_region
      %s153 = ssub.s32 %s10, 1
      // Predicated region
      $region13: #{egan_generator_64_forward.8} parent=11 // pred_check
        %p154 = pneg %p97
      $region14: #{egan_generator_64_forward.8} parent=11 // pred_check_branch
        %156 = sbr.rel (%p154) target = $region16
      $region15: #{egan_generator_64_forward.8} parent=11 // pred_region
        _
      $region16: #{egan_generator_64_forward.8} parent=11 // pred_fallthru
        _
      // Predicated region
      $region17: #{egan_generator_64_forward.8} parent=11 // pred_check
        %p157 = pneg %p118
      $region18: #{egan_generator_64_forward.8} parent=11 // pred_check_branch
        %159 = sbr.rel (%p157) target = $region20
      $region19: #{egan_generator_64_forward.8} parent=11 // pred_region
        _
      $region20: #{egan_generator_64_forward.8} parent=11 // pred_fallthru
        _
    $region12: #{egan_generator_64_forward.8} parent=5 // pred_fallthru
      _
    %p160 = scmp.lt.s32.totalorder %s10, 4
    // Predicated region
    $region21: #{egan_generator_64_forward.8} parent=5 // pred_check
      %p161 = pneg %p160
    $region22: #{egan_generator_64_forward.8} parent=5 // pred_check_branch
      %163 = sbr.rel (%p161) target = $region24
    $region23: #{egan_generator_64_forward.8} parent=5 // pred_region
      // Predicated region
      $region25: #{egan_generator_64_forward.8} parent=23 // pred_check
        %p164 = pneg %p44
      $region26: #{egan_generator_64_forward.8} parent=23 // pred_check_branch
        %166 = sbr.rel (%p164) target = $region28
      $region27: #{egan_generator_64_forward.8} parent=23 // pred_region
        %s167 = smul.u32 4, %s18
        %p168 = scmp.lt.s32.totalorder %s17, 3
        %s169 = scalar_select %p168, %s17, 3
        %p170 = scmp.lt.s32.totalorder %s167, 3
        %s171 = scalar_select %p170, %s167, 3
        %s172 = smul.addr %s171, 2
        %s173 = smul.addr %s169, 8
        %s174 = sadd.s32 %s172, %s173
        %s175 = smul.addr %s174, 4
        %s176 = scalar_lea.vmem %s0, %s175
        %s177 = smul.u32 4, %s18
      $region28: #{egan_generator_64_forward.8} parent=23 // pred_fallthru
        _
      // Predicated region
      $region29: #{egan_generator_64_forward.8} parent=23 // pred_check
        %p178 = pneg %p70
      $region30: #{egan_generator_64_forward.8} parent=23 // pred_check_branch
        %180 = sbr.rel (%p178) target = $region32
      $region31: #{egan_generator_64_forward.8} parent=23 // pred_region
        %p181 = scmp.lt.s32.totalorder %s17, 3
        %s182 = scalar_select %p181, %s17, 3
        %s183 = smul.addr %s182, 32
        %s184 = smul.addr %s183, 4
        %s185 = scalar_lea.vmem %s1, %s184
      $region32: #{egan_generator_64_forward.8} parent=23 // pred_fallthru
        _
    $region24: #{egan_generator_64_forward.8} parent=5 // pred_fallthru
      _
    %p186 = scmp.le.s32.totalorder 1, %s10
    %p187 = scmp.lt.s32.totalorder %s10, 5
    %p188 = pnand %p186, %p187
    %p189 = pneg %p188
    // Predicated region
    $region33: #{egan_generator_64_forward.8} parent=5 // pred_check
      _
    $region34: #{egan_generator_64_forward.8} parent=5 // pred_check_branch
      %191 = sbr.rel (%p188) target = $region36
    $region35: #{egan_generator_64_forward.8} parent=5 // pred_region
      %s192 = ssub.s32 %s10, 1
      %s193 = smul.u32 4, %s20
      %p194 = scmp.lt.s32.totalorder %s19, 3
      %s195 = scalar_select %p194, %s19, 3
      %p196 = scmp.lt.s32.totalorder %s193, 3
      %s197 = scalar_select %p196, %s193, 3
      %s198 = smul.addr %s197, 2
      %s199 = smul.addr %s195, 8
      %s200 = sadd.s32 %s198, %s199
      %s201 = smul.addr %s200, 4
      %s202 = scalar_lea.vmem %s0, %s201
      %p203 = pneg %p50
      %p204 = pneg %p47
      %p205 = scmp.lt.s32.totalorder %s19, 3
      %s206 = scalar_select %p205, %s19, 3
      %s207 = smul.addr %s206, 32
      %s208 = smul.addr %s207, 4
      %s209 = scalar_lea.vmem %s1, %s208
      %p210 = pneg %p76
      %p211 = pneg %p73
      %p212 = pneg %p97
      %p213 = pneg %p94
      %p214 = pneg %p118
      %p215 = pneg %p115
      %p216 = pneg %p139
      %p217 = pneg %p136
      %s218 = smul.u32 4, %s20
      %p219 = scmp.lt.s32.totalorder %s19, 3
      %s220 = scalar_select %p219, %s19, 3
      %p221 = scmp.lt.s32.totalorder %s218, 3
      %s222 = scalar_select %p221, %s218, 3
      %s223 = smul.addr %s222, 2
      %s224 = smul.addr %s220, 8
      %s225 = sadd.s32 %s223, %s224
      %s226 = smul.addr %s225, 4
      %s227 = scalar_lea.vmem %s0, %s226
      %s228 = smul.u32 4, %s20
      %p229 = scmp.lt.s32.totalorder %s19, 3
      %s230 = scalar_select %p229, %s19, 3
      %s231 = smul.addr %s230, 32
      %s232 = smul.addr %s231, 4
      %s233 = scalar_lea.vmem %s1, %s232
      %p235 = scmp.eq.s32.totalorder %s19, 0
      %p236 = scmp.eq.s32.totalorder %s20, 0
      %p237 = pnand %p235, %p236
      %p238 = pneg %p237
      // Predicated region
      $region37: #{egan_generator_64_forward.8} parent=35 // pred_check
        _
      $region38: #{egan_generator_64_forward.8} parent=35 // pred_check_branch
        %240 = sbr.rel (%p237) target = $region40
      $region39: #{egan_generator_64_forward.8} parent=35 // pred_region
        %241 = vst [vmem:[#allocation3] sm:$0x1] 0.0
        %242 = vst [vmem:[#allocation4] sm:$0x1] 0.0
      $region40: #{egan_generator_64_forward.8} parent=35 // pred_fallthru
        _
      %v243 = vld [vmem:[%s227] sm:$0xff]
      %v244 = vld [vmem:[%s227 + $0x8] sm:$0xff]
      %v245 = vld [vmem:[%s227 + $0x10] sm:$0xff]
      %v246 = vld [vmem:[%s227 + $0x18] sm:$0xff]
      %v247 = vld [vmem:[%s233] sm:$0xf]
      %v248 = vld [vmem:[%s233 + $0x4] sm:$0xf]
      %v249 = vld [vmem:[%s233 + $0x8] sm:$0xf]
      %v250 = vld [vmem:[%s233 + $0xc] sm:$0xf]
      %v251 = vld [vmem:[%s233 + $0x10] sm:$0xf]
      %v252 = vld [vmem:[%s233 + $0x14] sm:$0xf]
      %v253 = vld [vmem:[%s233 + $0x18] sm:$0xf]
      %v254 = vld [vmem:[%s233 + $0x1c] sm:$0xf]
      %v255 = vld [vmem:[%s233 + $0x20] sm:$0xf]
      %v256 = vld [vmem:[%s233 + $0x24] sm:$0xf]
      %v257 = vld [vmem:[%s233 + $0x28] sm:$0xf]
      %v258 = vld [vmem:[%s233 + $0x2c] sm:$0xf]
      %v259 = vld [vmem:[%s233 + $0x30] sm:$0xf]
      %v260 = vld [vmem:[%s233 + $0x34] sm:$0xf]
      %v261 = vld [vmem:[%s233 + $0x38] sm:$0xf]
      %v262 = vld [vmem:[%s233 + $0x3c] sm:$0xf]
      %v263 = vld [vmem:[%s233 + $0x40] sm:$0xf]
      %v264 = vld [vmem:[%s233 + $0x44] sm:$0xf]
      %v265 = vld [vmem:[%s233 + $0x48] sm:$0xf]
      %v266 = vld [vmem:[%s233 + $0x4c] sm:$0xf]
      %v267 = vld [vmem:[%s233 + $0x50] sm:$0xf]
      %v268 = vld [vmem:[%s233 + $0x54] sm:$0xf]
      %v269 = vld [vmem:[%s233 + $0x58] sm:$0xf]
      %v270 = vld [vmem:[%s233 + $0x5c] sm:$0xf]
      %v271 = vld [vmem:[%s233 + $0x60] sm:$0xf]
      %v272 = vld [vmem:[%s233 + $0x64] sm:$0xf]
      %v273 = vld [vmem:[%s233 + $0x68] sm:$0xf]
      %v274 = vld [vmem:[%s233 + $0x6c] sm:$0xf]
      %v275 = vld [vmem:[%s233 + $0x70] sm:$0xf]
      %v276 = vld [vmem:[%s233 + $0x74] sm:$0xf]
      %v277 = vld [vmem:[%s233 + $0x78] sm:$0xf]
      %v278 = vld [vmem:[%s233 + $0x7c] sm:$0xf]
      %v283 = vunpack.c.l.b16 %v243
      %v284 = vunpack.c.h.b16 %v243
      %v285 = vunpack.c.l.b16 %v244
      %v286 = vunpack.c.h.b16 %v244
      %v287 = vunpack.c.l.b16 %v245
      %v288 = vunpack.c.h.b16 %v245
      %v289 = vunpack.c.l.b16 %v246
      %v290 = vunpack.c.h.b16 %v246
      %v291 = vpack.c.b16 %v285, %v283
      %v292 = vpack.c.b16 %v286, %v284
      %v293 = vpack.c.b16 %v289, %v287
      %v294 = vpack.c.b16 %v290, %v288
      %v331 = vunpack.c.l.b16 %v247
      %v332 = vunpack.c.l.b16 %v248
      %v333 = vunpack.c.l.b16 %v249
      %v334 = vunpack.c.l.b16 %v250
      %v335 = vunpack.c.l.b16 %v251
      %v336 = vunpack.c.l.b16 %v252
      %v337 = vunpack.c.l.b16 %v253
      %v338 = vunpack.c.l.b16 %v254
      %v339 = vunpack.c.l.b16 %v255
      %v340 = vunpack.c.l.b16 %v256
      %v341 = vunpack.c.l.b16 %v257
      %v342 = vunpack.c.l.b16 %v258
      %v343 = vunpack.c.l.b16 %v259
      %v344 = vunpack.c.l.b16 %v260
      %v345 = vunpack.c.l.b16 %v261
      %v346 = vunpack.c.l.b16 %v262
      %v347 = vunpack.c.l.b16 %v263
      %v348 = vunpack.c.l.b16 %v264
      %v349 = vunpack.c.l.b16 %v265
      %v350 = vunpack.c.l.b16 %v266
      %v351 = vunpack.c.l.b16 %v267
      %v352 = vunpack.c.l.b16 %v268
      %v353 = vunpack.c.l.b16 %v269
      %v354 = vunpack.c.l.b16 %v270
      %v355 = vunpack.c.l.b16 %v271
      %v356 = vunpack.c.l.b16 %v272
      %v357 = vunpack.c.l.b16 %v273
      %v358 = vunpack.c.l.b16 %v274
      %v359 = vunpack.c.l.b16 %v275
      %v360 = vunpack.c.l.b16 %v276
      %v361 = vunpack.c.l.b16 %v277
      %v362 = vunpack.c.l.b16 %v278
      %v363 = vpack.c.b16 %v332, %v331
      %v364 = vpack.c.b16 %v334, %v333
      %v365 = vpack.c.b16 %v336, %v335
      %v366 = vpack.c.b16 %v338, %v337
      %v367 = vpack.c.b16 %v340, %v339
      %v368 = vpack.c.b16 %v342, %v341
      %v369 = vpack.c.b16 %v344, %v343
      %v370 = vpack.c.b16 %v346, %v345
      %v371 = vpack.c.b16 %v348, %v347
      %v372 = vpack.c.b16 %v350, %v349
      %v373 = vpack.c.b16 %v352, %v351
      %v374 = vpack.c.b16 %v354, %v353
      %v375 = vpack.c.b16 %v356, %v355
      %v376 = vpack.c.b16 %v358, %v357
      %v377 = vpack.c.b16 %v360, %v359
      %v378 = vpack.c.b16 %v362, %v361
      %395 = vmatprep.subr.bf16.mxu0 0
      %396 = vmatpush1.bf16.msra.mxu0 %v363
      %397 = vmatprep.subr.bf16.mxu0 0
      %398 = vmatpush1.bf16.msra.mxu0 %v364
      %399 = vmatprep.subr.bf16.mxu0 0
      %400 = vmatpush1.bf16.msra.mxu0 %v365
      %401 = vmatprep.subr.bf16.mxu0 0
      %402 = vmatpush1.bf16.msra.mxu0 %v366
      %403 = vmatprep.subr.bf16.mxu0 0
      %404 = vmatpush1.bf16.msra.mxu0 %v367
      %405 = vmatprep.subr.bf16.mxu0 0
      %406 = vmatpush1.bf16.msra.mxu0 %v368
      %407 = vmatprep.subr.bf16.mxu0 0
      %408 = vmatpush1.bf16.msra.mxu0 %v369
      %409 = vmatprep.subr.bf16.mxu0 0
      %410 = vmatpush1.bf16.msra.mxu0 %v370
      %411 = vmatprep.subr.bf16.mxu0 0
      %412 = vmatpush1.bf16.msra.mxu0 %v371
      %413 = vmatprep.subr.bf16.mxu0 0
      %414 = vmatpush1.bf16.msra.mxu0 %v372
      %415 = vmatprep.subr.bf16.mxu0 0
      %416 = vmatpush1.bf16.msra.mxu0 %v373
      %417 = vmatprep.subr.bf16.mxu0 0
      %418 = vmatpush1.bf16.msra.mxu0 %v374
      %419 = vmatprep.subr.bf16.mxu0 0
      %420 = vmatpush1.bf16.msra.mxu0 %v375
      %421 = vmatprep.subr.bf16.mxu0 0
      %422 = vmatpush1.bf16.msra.mxu0 %v376
      %423 = vmatprep.subr.bf16.mxu0 0
      %424 = vmatpush1.bf16.msra.mxu0 %v377
      %425 = vmatprep.subr.bf16.mxu0 0
      %426 = vmatpush1.bf16.msra.mxu0 %v378
      %427 = vmatprep.mubr.bf16.mxu0 %v292
      %428 = vmatmul.mubr.bf16.gmra.mrb[0].mxu0 %v291
      %v429 = vpop.f32.mrb[0].mxu0
      %v430 = vadd.f32 0.0, %v429
      %v431 = vpop.f32.mrb[0].mxu0
      %v432 = vpop.f32.mrb[0].mxu0
      %v433 = vadd.f32 0.0, %v432
      %v434 = vpop.f32.mrb[0].mxu0
      %435 = vmatprep.mubr.bf16.mxu0 %v294
      %436 = vmatmul.mubr.bf16.gmra.mrb[0].mxu0 %v293
      %v437 = vpop.f32.mrb[0].mxu0
      %v438 = vadd.f32 0.0, %v437
      %v439 = vpop.f32.mrb[0].mxu0
      %v440 = vpop.f32.mrb[0].mxu0
      %v441 = vadd.f32 0.0, %v440
      %v442 = vpop.f32.mrb[0].mxu0
      %443 = vdwg.mxu0
      %s444 = sadd.s32 %s19, %s20
      %s445 = smul.u32 %s444, 32
      %s446 = scalar_lea.vmem [#allocation2], %s445
      %447 = vst [vmem:[%s446] sm:$0xff] %v430
      %448 = vst [vmem:[%s446 + $0x8] sm:$0xff] %v433
      %449 = vst [vmem:[%s446 + $0x10] sm:$0xff] %v438
      %450 = vst [vmem:[%s446 + $0x18] sm:$0xff] %v441
      %v451 = vld [vmem:[#allocation3] sm:$0x1]
      %v452 = vadd.f32 %v430, %v433
      %v453 = vadd.f32 %v452, %v438
      %v454 = vadd.f32 %v453, %v441
      %v455 = vrot.slane %v454, 4
      %v456 = vadd.f32 %v454, %v455
      %v457 = vrot.slane %v456, 2
      %v458 = vadd.f32 %v456, %v457
      %v459 = vrot.slane %v458, 1
      %v460 = vadd.f32 %v458, %v459
      %v461 = vadd.f32 %v451, %v460
      %462 = vst [vmem:[#allocation3] sm:$0x1] %v461
      %v463 = vld [vmem:[#allocation4] sm:$0x1]
      %v464 = vmul.f32 %v430, %v430
      %v465 = vmul.f32 %v433, %v433
      %v466 = vmul.f32 %v438, %v438
      %v467 = vmul.f32 %v441, %v441
      %v468 = vadd.f32 %v464, %v465
      %v469 = vadd.f32 %v468, %v466
      %v470 = vadd.f32 %v469, %v467
      %v471 = vrot.slane %v470, 4
      %v472 = vadd.f32 %v470, %v471
      %v473 = vrot.slane %v472, 2
      %v474 = vadd.f32 %v472, %v473
      %v475 = vrot.slane %v474, 1
      %v476 = vadd.f32 %v474, %v475
      %v477 = vadd.f32 %v463, %v476
      %478 = vst [vmem:[#allocation4] sm:$0x1] %v477
      %p479 = scmp.eq.s32.totalorder %s19, 3
      %p480 = pnand %p479, %p236
      %p481 = pneg %p480
      // Predicated region
      $region41: #{egan_generator_64_forward.8} parent=35 // pred_check
        _
      $region42: #{egan_generator_64_forward.8} parent=35 // pred_check_branch
        %483 = sbr.rel (%p480) target = $region44
      $region43: #{egan_generator_64_forward.8} parent=35 // pred_region
        %v484 = vld [vmem:[#allocation3] sm:$0x1]
        %v485 = vmul.f32 %v484, 0.0078125
        %v486 = vld [vmem:[#allocation4] sm:$0x1]
        %v487 = vmul.f32 %v486, 0.0078125
        %v488 = vmul.f32 %v485, %v485
        %v489 = vsub.f32 %v487, %v488
        %v490 = vmax.f32 %v489, 0.0
        %v491 = vld [vmem:[%s2] sm:$0x1]
        %v492 = vadd.f32 %v490, 1e-05
        %v493 = vrsqrt.pop %v492
        %v494 = vmul.f32 %v491, %v493
        %v495 = vld [vmem:[%s3] sm:$0x1]
        %v496 = vmul.f32 %v485, %v494
        %v497 = vsub.f32 %v495, %v496
        %v498 = vld [vmem:[#allocation2] sm:$0xff]
        %v499 = vld [vmem:[#allocation2 + $0x8] sm:$0xff]
        %v500 = vld [vmem:[#allocation2 + $0x10] sm:$0xff]
        %v501 = vld [vmem:[#allocation2 + $0x18] sm:$0xff]
        %v502 = vld [vmem:[#allocation2 + $0x20] sm:$0xff]
        %v503 = vld [vmem:[#allocation2 + $0x28] sm:$0xff]
        %v504 = vld [vmem:[#allocation2 + $0x30] sm:$0xff]
        %v505 = vld [vmem:[#allocation2 + $0x38] sm:$0xff]
        %v506 = vld [vmem:[#allocation2 + $0x40] sm:$0xff]
        %v507 = vld [vmem:[#allocation2 + $0x48] sm:$0xff]
        %v508 = vld [vmem:[#allocation2 + $0x50] sm:$0xff]
        %v509 = vld [vmem:[#allocation2 + $0x58] sm:$0xff]
        %v510 = vld [vmem:[#allocation2 + $0x60] sm:$0xff]
        %v511 = vld [vmem:[#allocation2 + $0x68] sm:$0xff]
        %v512 = vld [vmem:[#allocation2 + $0x70] sm:$0xff]
        %v513 = vld [vmem:[#allocation2 + $0x78] sm:$0xff]
        %v515 = vlaneseq
        %v516 = vshrl.u32 %v515, 7
        %v517 = vsub.s32 0, %v516
        %v518 = vrot.slane %v494, %v517
        %v520 = vmul.f32 %v498, %v518
        %v521 = vmul.f32 %v499, %v518
        %v522 = vmul.f32 %v500, %v518
        %v523 = vmul.f32 %v501, %v518
        %v524 = vmul.f32 %v502, %v518
        %v525 = vmul.f32 %v503, %v518
        %v526 = vmul.f32 %v504, %v518
        %v527 = vmul.f32 %v505, %v518
        %v528 = vmul.f32 %v506, %v518
        %v529 = vmul.f32 %v507, %v518
        %v530 = vmul.f32 %v508, %v518
        %v531 = vmul.f32 %v509, %v518
        %v532 = vmul.f32 %v510, %v518
        %v533 = vmul.f32 %v511, %v518
        %v534 = vmul.f32 %v512, %v518
        %v535 = vmul.f32 %v513, %v518
        %v537 = vlaneseq
        %v538 = vshrl.u32 %v537, 7
        %v539 = vsub.s32 0, %v538
        %v540 = vrot.slane %v497, %v539
        %v542 = vadd.f32 %v520, %v540
        %v543 = vadd.f32 %v521, %v540
        %v544 = vadd.f32 %v522, %v540
        %v545 = vadd.f32 %v523, %v540
        %v546 = vadd.f32 %v524, %v540
        %v547 = vadd.f32 %v525, %v540
        %v548 = vadd.f32 %v526, %v540
        %v549 = vadd.f32 %v527, %v540
        %v550 = vadd.f32 %v528, %v540
        %v551 = vadd.f32 %v529, %v540
        %v552 = vadd.f32 %v530, %v540
        %v553 = vadd.f32 %v531, %v540
        %v554 = vadd.f32 %v532, %v540
        %v555 = vadd.f32 %v533, %v540
        %v556 = vadd.f32 %v534, %v540
        %v557 = vadd.f32 %v535, %v540
        %v558 = vmax.f32 %v542, 0.0
        %v559 = vmax.f32 %v543, 0.0
        %v560 = vmax.f32 %v544, 0.0
        %v561 = vmax.f32 %v545, 0.0
        %v562 = vmax.f32 %v546, 0.0
        %v563 = vmax.f32 %v547, 0.0
        %v564 = vmax.f32 %v548, 0.0
        %v565 = vmax.f32 %v549, 0.0
        %v566 = vmax.f32 %v550, 0.0
        %v567 = vmax.f32 %v551, 0.0
        %v568 = vmax.f32 %v552, 0.0
        %v569 = vmax.f32 %v553, 0.0
        %v570 = vmax.f32 %v554, 0.0
        %v571 = vmax.f32 %v555, 0.0
        %v572 = vmax.f32 %v556, 0.0
        %v573 = vmax.f32 %v557, 0.0
        %v574 = vpack.c.bf16 %v559, %v558
        %v575 = vpack.c.bf16 %v561, %v560
        %v576 = vpack.c.bf16 %v563, %v562
        %v577 = vpack.c.bf16 %v565, %v564
        %v578 = vpack.c.bf16 %v567, %v566
        %v579 = vpack.c.bf16 %v569, %v568
        %v580 = vpack.c.bf16 %v571, %v570
        %v581 = vpack.c.bf16 %v573, %v572
        %v590 = vunpack.c.l.b16 %v574
        %v591 = vunpack.c.h.b16 %v574
        %v592 = vunpack.c.l.b16 %v575
        %v593 = vunpack.c.h.b16 %v575
        %v594 = vunpack.c.l.b16 %v576
        %v595 = vunpack.c.h.b16 %v576
        %v596 = vunpack.c.l.b16 %v577
        %v597 = vunpack.c.h.b16 %v577
        %v598 = vunpack.c.l.b16 %v578
        %v599 = vunpack.c.h.b16 %v578
        %v600 = vunpack.c.l.b16 %v579
        %v601 = vunpack.c.h.b16 %v579
        %v602 = vunpack.c.l.b16 %v580
        %v603 = vunpack.c.h.b16 %v580
        %v604 = vunpack.c.l.b16 %v581
        %v605 = vunpack.c.h.b16 %v581
        %v606 = vpack.c.b16 %v590, %v590
        %v607 = vpack.c.b16 %v591, %v591
        %v608 = vpack.c.b16 %v592, %v592
        %v609 = vpack.c.b16 %v593, %v593
        %v610 = vpack.c.b16 %v594, %v594
        %v611 = vpack.c.b16 %v595, %v595
        %v612 = vpack.c.b16 %v596, %v596
        %v613 = vpack.c.b16 %v597, %v597
        %v614 = vpack.c.b16 %v598, %v598
        %v615 = vpack.c.b16 %v599, %v599
        %v616 = vpack.c.b16 %v600, %v600
        %v617 = vpack.c.b16 %v601, %v601
        %v618 = vpack.c.b16 %v602, %v602
        %v619 = vpack.c.b16 %v603, %v603
        %v620 = vpack.c.b16 %v604, %v604
        %v621 = vpack.c.b16 %v605, %v605
        %638 = vst [vmem:[%s4] sm:$0xf] %v606
        %639 = vst [vmem:[%s4 + $0x4] sm:$0xf] %v607
        %640 = vst [vmem:[%s4 + $0x8] sm:$0xf] %v608
        %641 = vst [vmem:[%s4 + $0xc] sm:$0xf] %v609
        %642 = vst [vmem:[%s4 + $0x10] sm:$0xf] %v610
        %643 = vst [vmem:[%s4 + $0x14] sm:$0xf] %v611
        %644 = vst [vmem:[%s4 + $0x18] sm:$0xf] %v612
        %645 = vst [vmem:[%s4 + $0x1c] sm:$0xf] %v613
        %646 = vst [vmem:[%s4 + $0x20] sm:$0xf] %v614
        %647 = vst [vmem:[%s4 + $0x24] sm:$0xf] %v615
        %648 = vst [vmem:[%s4 + $0x28] sm:$0xf] %v616
        %649 = vst [vmem:[%s4 + $0x2c] sm:$0xf] %v617
        %650 = vst [vmem:[%s4 + $0x30] sm:$0xf] %v618
        %651 = vst [vmem:[%s4 + $0x34] sm:$0xf] %v619
        %652 = vst [vmem:[%s4 + $0x38] sm:$0xf] %v620
        %653 = vst [vmem:[%s4 + $0x3c] sm:$0xf] %v621
      $region44: #{egan_generator_64_forward.8} parent=35 // pred_fallthru
        _
      // Predicated region
      $region45: #{egan_generator_64_forward.8} parent=35 // pred_check
        %p654 = pneg %p136
      $region46: #{egan_generator_64_forward.8} parent=35 // pred_check_branch
        %656 = sbr.rel (%p654) target = $region48
      $region47: #{egan_generator_64_forward.8} parent=35 // pred_region
        _
      $region48: #{egan_generator_64_forward.8} parent=35 // pred_fallthru
        _
      // Predicated region
      $region49: #{egan_generator_64_forward.8} parent=35 // pred_check
        %p657 = pneg %p136
      $region50: #{egan_generator_64_forward.8} parent=35 // pred_check_branch
        %659 = sbr.rel (%p657) target = $region52
      $region51: #{egan_generator_64_forward.8} parent=35 // pred_region
        _
      $region52: #{egan_generator_64_forward.8} parent=35 // pred_fallthru
        _
    $region36: #{egan_generator_64_forward.8} parent=5 // pred_fallthru
      _
    %p660 = scmp.le.s32.totalorder 2, %s10
    // Predicated region
    $region53: #{egan_generator_64_forward.8} parent=5 // pred_check
      %p661 = pneg %p660
    $region54: #{egan_generator_64_forward.8} parent=5 // pred_check_branch
      %663 = sbr.rel (%p661) target = $region56
    $region55: #{egan_generator_64_forward.8} parent=5 // pred_region
      %s664 = ssub.s32 %s10, 2
    $region56: #{egan_generator_64_forward.8} parent=5 // pred_fallthru
      _
  $region6: #{egan_generator_64_forward.8} parent=0 // loop_footer
    %s14 = sadd.s32 1, %s10
  $region7: #{egan_generator_64_forward.8} parent=0 // loop_footer_branch
    %9 = sbr.rel target = $region3
  $region8: #{egan_generator_64_forward.8} parent=0 // loop_exit
    _

// kernel: egan_generator_64_forward.9
$region0: #{egan_generator_64_forward.9}
  #allocation0 [shape = 'u32[]', space=smem, size = 0x4, offset = 0x4, fixed_abs, tag = 'smem constant byte address 0x4 - core index']
  #allocation1 [shape = 'u32[144,128]{1,0:T(1,128)}', space=vmem, size = 0x12000, scoped, tag = 'internal scratch']
  #allocation2 [shape = 'f32[512,128]{1,0:T(8,128)}', space=vmem, size = 0x40000, scoped, tag = 'scratch operand']
  #allocation3 [shape = 'f32[1,128]{1,0:T(1,128)}', space=vmem, size = 0x200, scoped, tag = 'scratch operand']
  #allocation4 [shape = 'f32[1,128]{1,0:T(1,128)}', space=vmem, size = 0x200, scoped, tag = 'scratch operand']
  %s0 = inlined_call_operand.vmem [shape: bf16[4,128,128], index: 0, kind: input, shape index: {}]
  %s1 = inlined_call_operand.vmem [shape: bf16[4,128,128], index: 1, kind: input, shape index: {}]
  %s2 = inlined_call_operand.vmem [shape: f32[1,128], index: 2, kind: input, shape index: {}]
  %s3 = inlined_call_operand.vmem [shape: f32[1,128], index: 3, kind: input, shape index: {}]
  %s4 = inlined_call_operand.vmem [shape: bf16[512,128], index: 4, kind: output, shape index: {}]
  %s5 = sld [smem:[#allocation0]]
  $region57: #{egan_generator_64_forward.9} parent=0
    _
  %s7 = ssub.s32 1, %s5
  %s8 = scalar_select 0, %s7, %s5
  loop: start=0, step=1, limit=6
  $region2: #{egan_generator_64_forward.9} parent=0 // loop_pre_header
    _
  $region3: #{egan_generator_64_forward.9} parent=0 // loop_header
    %s10 = sphi 0, %s14
    %p11 = scmp.ge.s32.totalorder %s10, 6
    %s17 = sphi 0, %s29
    %s18 = sphi 0, %s25
    %s19 = sphi 0, %s17
    %s20 = sphi 0, %s18
    %s21 = sphi 0, %s19
    %s22 = sphi 0, %s20
    %s34 = sphi 0, %s36
    %s37 = sphi 0, %s34
    %s38 = sphi 0, %s37
    %s54 = sphi 0, %s38
    %s60 = sphi 0, %s62
    %s63 = sphi 0, %s60
    %s64 = sphi 0, %s63
    %s80 = sphi 0, %s64
    %s84 = sphi 0, %s84
    %s86 = sphi 0, %s84
    %s87 = sphi 0, %s86
    %s101 = sphi 0, %s87
    %s105 = sphi 0, %s105
    %s107 = sphi 0, %s105
    %s108 = sphi 0, %s107
    %s122 = sphi 0, %s108
    %s126 = sphi 0, %s126
    %s128 = sphi 0, %s126
    %s129 = sphi 0, %s128
    %s143 = sphi 0, %s129
  $region4: #{egan_generator_64_forward.9} parent=0 // loop_header_branch
    %13 = sbr.rel (%p11) target = $region8
  $region5: #{egan_generator_64_forward.9} parent=0 // loop_body
    %s15 = ssub.s32 %s10, 1
    %s16 = ssub.s32 %s10, 2
    %s23 = sadd.s32 1, %s18
    %p24 = scmp.ge.s32.totalorder %s23, 1
    %s25 = scalar_select %p24, 0, %s23
    %s26 = sadd.s32 1, %s17
    %s27 = scalar_select %p24, %s26, %s17
    %p28 = scmp.ge.s32.totalorder %s27, 4
    %s29 = scalar_select %p28, 0, %s27
    %s30 = ssub.s32 %s17, %s29
    %s31 = ssub.s32 %s18, %s25
    %s32 = sor.u32 %s30, %s31
    %p33 = scmp.eq.s32.totalorder %s32, 0
    %s35 = sadd.s32 %s34, 1
    %s36 = scalar_select %p33, %s34, %s35
    %p39 = pneg %p33
    %p40 = scmp.eq.s32.totalorder %s10, 3
    %p41 = por %p39, %p40
    %p42 = scmp.ne.s32.totalorder %s34, %s37
    %p43 = scmp.eq.s32.totalorder %s10, 0
    %p44 = por %p42, %p43
    %p45 = scmp.ne.s32.totalorder %s34, %s37
    %p46 = scmp.eq.s32.totalorder %s15, 3
    %p47 = por %p45, %p46
    %p48 = scmp.ne.s32.totalorder %s37, %s38
    %p49 = scmp.eq.s32.totalorder %s15, 0
    %p50 = por %p48, %p49
    %p51 = scmp.ne.s32.totalorder %s37, %s38
    %p52 = scmp.eq.s32.totalorder %s16, 3
    %p53 = por %p51, %p52
    %p55 = scmp.ne.s32.totalorder %s38, %s54
    %p56 = scmp.eq.s32.totalorder %s16, 0
    %p57 = por %p55, %p56
    %s58 = ssub.s32 %s17, %s29
    %p59 = scmp.eq.s32.totalorder %s58, 0
    %s61 = sadd.s32 %s60, 1
    %s62 = scalar_select %p59, %s60, %s61
    %p65 = pneg %p59
    %p66 = scmp.eq.s32.totalorder %s10, 3
    %p67 = por %p65, %p66
    %p68 = scmp.ne.s32.totalorder %s60, %s63
    %p69 = scmp.eq.s32.totalorder %s10, 0
    %p70 = por %p68, %p69
    %p71 = scmp.ne.s32.totalorder %s60, %s63
    %p72 = scmp.eq.s32.totalorder %s15, 3
    %p73 = por %p71, %p72
    %p74 = scmp.ne.s32.totalorder %s63, %s64
    %p75 = scmp.eq.s32.totalorder %s15, 0
    %p76 = por %p74, %p75
    %p77 = scmp.ne.s32.totalorder %s63, %s64
    %p78 = scmp.eq.s32.totalorder %s16, 3
    %p79 = por %p77, %p78
    %p81 = scmp.ne.s32.totalorder %s64, %s80
    %p82 = scmp.eq.s32.totalorder %s16, 0
    %p83 = por %p81, %p82
    %s85 = sadd.s32 %s84, 1
    %p88 = scmp.eq.s32.totalorder %s10, 3
    %p89 = scmp.ne.s32.totalorder %s84, %s86
    %p90 = scmp.eq.s32.totalorder %s10, 0
    %p91 = por %p89, %p90
    %p92 = scmp.ne.s32.totalorder %s84, %s86
    %p93 = scmp.eq.s32.totalorder %s15, 3
    %p94 = por %p92, %p93
    %p95 = scmp.ne.s32.totalorder %s86, %s87
    %p96 = scmp.eq.s32.totalorder %s15, 0
    %p97 = por %p95, %p96
    %p98 = scmp.ne.s32.totalorder %s86, %s87
    %p99 = scmp.eq.s32.totalorder %s16, 3
    %p100 = por %p98, %p99
    %p102 = scmp.ne.s32.totalorder %s87, %s101
    %p103 = scmp.eq.s32.totalorder %s16, 0
    %p104 = por %p102, %p103
    %s106 = sadd.s32 %s105, 1
    %p109 = scmp.eq.s32.totalorder %s10, 3
    %p110 = scmp.ne.s32.totalorder %s105, %s107
    %p111 = scmp.eq.s32.totalorder %s10, 0
    %p112 = por %p110, %p111
    %p113 = scmp.ne.s32.totalorder %s105, %s107
    %p114 = scmp.eq.s32.totalorder %s15, 3
    %p115 = por %p113, %p114
    %p116 = scmp.ne.s32.totalorder %s107, %s108
    %p117 = scmp.eq.s32.totalorder %s15, 0
    %p118 = por %p116, %p117
    %p119 = scmp.ne.s32.totalorder %s107, %s108
    %p120 = scmp.eq.s32.totalorder %s16, 3
    %p121 = por %p119, %p120
    %p123 = scmp.ne.s32.totalorder %s108, %s122
    %p124 = scmp.eq.s32.totalorder %s16, 0
    %p125 = por %p123, %p124
    %s127 = sadd.s32 %s126, 1
    %p130 = scmp.eq.s32.totalorder %s10, 3
    %p131 = scmp.ne.s32.totalorder %s126, %s128
    %p132 = scmp.eq.s32.totalorder %s10, 0
    %p133 = por %p131, %p132
    %p134 = scmp.ne.s32.totalorder %s126, %s128
    %p135 = scmp.eq.s32.totalorder %s15, 3
    %p136 = por %p134, %p135
    %p137 = scmp.ne.s32.totalorder %s128, %s129
    %p138 = scmp.eq.s32.totalorder %s15, 0
    %p139 = por %p137, %p138
    %p140 = scmp.ne.s32.totalorder %s128, %s129
    %p141 = scmp.eq.s32.totalorder %s16, 3
    %p142 = por %p140, %p141
    %p144 = scmp.ne.s32.totalorder %s129, %s143
    %p145 = scmp.eq.s32.totalorder %s16, 0
    %p146 = por %p144, %p145
    %p147 = scmp.le.s32.totalorder 1, %s10
    %p148 = scmp.lt.s32.totalorder %s10, 5
    %p149 = pnand %p147, %p148
    %p150 = pneg %p149
    // Predicated region
    $region9: #{egan_generator_64_forward.9} parent=5 // pred_check
      _
    $region10: #{egan_generator_64_forward.9} parent=5 // pred_check_branch
      %152 = sbr.rel (%p149) target = $region12
    $region11: #{egan_generator_64_forward.9} parent=5 // pred_region
      %s153 = ssub.s32 %s10, 1
      // Predicated region
      $region13: #{egan_generator_64_forward.9} parent=11 // pred_check
        %p154 = pneg %p97
      $region14: #{egan_generator_64_forward.9} parent=11 // pred_check_branch
        %156 = sbr.rel (%p154) target = $region16
      $region15: #{egan_generator_64_forward.9} parent=11 // pred_region
        _
      $region16: #{egan_generator_64_forward.9} parent=11 // pred_fallthru
        _
      // Predicated region
      $region17: #{egan_generator_64_forward.9} parent=11 // pred_check
        %p157 = pneg %p118
      $region18: #{egan_generator_64_forward.9} parent=11 // pred_check_branch
        %159 = sbr.rel (%p157) target = $region20
      $region19: #{egan_generator_64_forward.9} parent=11 // pred_region
        _
      $region20: #{egan_generator_64_forward.9} parent=11 // pred_fallthru
        _
    $region12: #{egan_generator_64_forward.9} parent=5 // pred_fallthru
      _
    %p160 = scmp.lt.s32.totalorder %s10, 4
    // Predicated region
    $region21: #{egan_generator_64_forward.9} parent=5 // pred_check
      %p161 = pneg %p160
    $region22: #{egan_generator_64_forward.9} parent=5 // pred_check_branch
      %163 = sbr.rel (%p161) target = $region24
    $region23: #{egan_generator_64_forward.9} parent=5 // pred_region
      // Predicated region
      $region25: #{egan_generator_64_forward.9} parent=23 // pred_check
        %p164 = pneg %p44
      $region26: #{egan_generator_64_forward.9} parent=23 // pred_check_branch
        %166 = sbr.rel (%p164) target = $region28
      $region27: #{egan_generator_64_forward.9} parent=23 // pred_region
        %s167 = smul.u32 16, %s18
        %p168 = scmp.lt.s32.totalorder %s17, 3
        %s169 = scalar_select %p168, %s17, 3
        %p170 = scmp.lt.s32.totalorder %s167, 15
        %s171 = scalar_select %p170, %s167, 15
        %s172 = smul.addr %s169, 16
        %s173 = sadd.s32 %s171, %s172
        %s174 = smul.addr %s173, 4
        %s175 = scalar_lea.vmem %s0, %s174
        %s176 = smul.u32 16, %s18
      $region28: #{egan_generator_64_forward.9} parent=23 // pred_fallthru
        _
      // Predicated region
      $region29: #{egan_generator_64_forward.9} parent=23 // pred_check
        %p177 = pneg %p70
      $region30: #{egan_generator_64_forward.9} parent=23 // pred_check_branch
        %179 = sbr.rel (%p177) target = $region32
      $region31: #{egan_generator_64_forward.9} parent=23 // pred_region
        %p180 = scmp.lt.s32.totalorder %s17, 3
        %s181 = scalar_select %p180, %s17, 3
        %s182 = smul.addr %s181, 16
        %s183 = smul.addr %s182, 4
        %s184 = scalar_lea.vmem %s1, %s183
      $region32: #{egan_generator_64_forward.9} parent=23 // pred_fallthru
        _
    $region24: #{egan_generator_64_forward.9} parent=5 // pred_fallthru
      _
    %p185 = scmp.le.s32.totalorder 1, %s10
    %p186 = scmp.lt.s32.totalorder %s10, 5
    %p187 = pnand %p185, %p186
    %p188 = pneg %p187
    // Predicated region
    $region33: #{egan_generator_64_forward.9} parent=5 // pred_check
      _
    $region34: #{egan_generator_64_forward.9} parent=5 // pred_check_branch
      %190 = sbr.rel (%p187) target = $region36
    $region35: #{egan_generator_64_forward.9} parent=5 // pred_region
      %s191 = ssub.s32 %s10, 1
      %s192 = smul.u32 16, %s20
      %p193 = scmp.lt.s32.totalorder %s19, 3
      %s194 = scalar_select %p193, %s19, 3
      %p195 = scmp.lt.s32.totalorder %s192, 15
      %s196 = scalar_select %p195, %s192, 15
      %s197 = smul.addr %s194, 16
      %s198 = sadd.s32 %s196, %s197
      %s199 = smul.addr %s198, 4
      %s200 = scalar_lea.vmem %s0, %s199
      %p201 = pneg %p50
      %p202 = pneg %p47
      %p203 = scmp.lt.s32.totalorder %s19, 3
      %s204 = scalar_select %p203, %s19, 3
      %s205 = smul.addr %s204, 16
      %s206 = smul.addr %s205, 4
      %s207 = scalar_lea.vmem %s1, %s206
      %p208 = pneg %p76
      %p209 = pneg %p73
      %p210 = pneg %p97
      %p211 = pneg %p94
      %p212 = pneg %p118
      %p213 = pneg %p115
      %p214 = pneg %p139
      %p215 = pneg %p136
      %s216 = smul.u32 16, %s20
      %p217 = scmp.lt.s32.totalorder %s19, 3
      %s218 = scalar_select %p217, %s19, 3
      %p219 = scmp.lt.s32.totalorder %s216, 15
      %s220 = scalar_select %p219, %s216, 15
      %s221 = smul.addr %s218, 16
      %s222 = sadd.s32 %s220, %s221
      %s223 = smul.addr %s222, 4
      %s224 = scalar_lea.vmem %s0, %s223
      %s225 = smul.u32 16, %s20
      %p226 = scmp.lt.s32.totalorder %s19, 3
      %s227 = scalar_select %p226, %s19, 3
      %s228 = smul.addr %s227, 16
      %s229 = smul.addr %s228, 4
      %s230 = scalar_lea.vmem %s1, %s229
      %p232 = scmp.eq.s32.totalorder %s19, 0
      %p233 = scmp.eq.s32.totalorder %s20, 0
      %p234 = pnand %p232, %p233
      %p235 = pneg %p234
      // Predicated region
      $region37: #{egan_generator_64_forward.9} parent=35 // pred_check
        _
      $region38: #{egan_generator_64_forward.9} parent=35 // pred_check_branch
        %237 = sbr.rel (%p234) target = $region40
      $region39: #{egan_generator_64_forward.9} parent=35 // pred_region
        %238 = vst [vmem:[#allocation3] sm:$0x1] 0.0
        %239 = vst [vmem:[#allocation4] sm:$0x1] 0.0
      $region40: #{egan_generator_64_forward.9} parent=35 // pred_fallthru
        _
      %v240 = vld [vmem:[%s224] sm:$0xf]
      %v241 = vld [vmem:[%s224 + $0x4] sm:$0xf]
      %v242 = vld [vmem:[%s224 + $0x8] sm:$0xf]
      %v243 = vld [vmem:[%s224 + $0xc] sm:$0xf]
      %v244 = vld [vmem:[%s224 + $0x10] sm:$0xf]
      %v245 = vld [vmem:[%s224 + $0x14] sm:$0xf]
      %v246 = vld [vmem:[%s224 + $0x18] sm:$0xf]
      %v247 = vld [vmem:[%s224 + $0x1c] sm:$0xf]
      %v248 = vld [vmem:[%s224 + $0x20] sm:$0xf]
      %v249 = vld [vmem:[%s224 + $0x24] sm:$0xf]
      %v250 = vld [vmem:[%s224 + $0x28] sm:$0xf]
      %v251 = vld [vmem:[%s224 + $0x2c] sm:$0xf]
      %v252 = vld [vmem:[%s224 + $0x30] sm:$0xf]
      %v253 = vld [vmem:[%s224 + $0x34] sm:$0xf]
      %v254 = vld [vmem:[%s224 + $0x38] sm:$0xf]
      %v255 = vld [vmem:[%s224 + $0x3c] sm:$0xf]
      %v256 = vld [vmem:[%s230] sm:$0xf]
      %v257 = vld [vmem:[%s230 + $0x4] sm:$0xf]
      %v258 = vld [vmem:[%s230 + $0x8] sm:$0xf]
      %v259 = vld [vmem:[%s230 + $0xc] sm:$0xf]
      %v260 = vld [vmem:[%s230 + $0x10] sm:$0xf]
      %v261 = vld [vmem:[%s230 + $0x14] sm:$0xf]
      %v262 = vld [vmem:[%s230 + $0x18] sm:$0xf]
      %v263 = vld [vmem:[%s230 + $0x1c] sm:$0xf]
      %v264 = vld [vmem:[%s230 + $0x20] sm:$0xf]
      %v265 = vld [vmem:[%s230 + $0x24] sm:$0xf]
      %v266 = vld [vmem:[%s230 + $0x28] sm:$0xf]
      %v267 = vld [vmem:[%s230 + $0x2c] sm:$0xf]
      %v268 = vld [vmem:[%s230 + $0x30] sm:$0xf]
      %v269 = vld [vmem:[%s230 + $0x34] sm:$0xf]
      %v270 = vld [vmem:[%s230 + $0x38] sm:$0xf]
      %v271 = vld [vmem:[%s230 + $0x3c] sm:$0xf]
      %v288 = vunpack.c.l.b16 %v240
      %v289 = vunpack.c.l.b16 %v241
      %v290 = vunpack.c.l.b16 %v242
      %v291 = vunpack.c.l.b16 %v243
      %v292 = vunpack.c.l.b16 %v244
      %v293 = vunpack.c.l.b16 %v245
      %v294 = vunpack.c.l.b16 %v246
      %v295 = vunpack.c.l.b16 %v247
      %v296 = vunpack.c.l.b16 %v248
      %v297 = vunpack.c.l.b16 %v249
      %v298 = vunpack.c.l.b16 %v250
      %v299 = vunpack.c.l.b16 %v251
      %v300 = vunpack.c.l.b16 %v252
      %v301 = vunpack.c.l.b16 %v253
      %v302 = vunpack.c.l.b16 %v254
      %v303 = vunpack.c.l.b16 %v255
      %v304 = vpack.c.b16 %v289, %v288
      %v305 = vpack.c.b16 %v291, %v290
      %v306 = vpack.c.b16 %v293, %v292
      %v307 = vpack.c.b16 %v295, %v294
      %v308 = vpack.c.b16 %v297, %v296
      %v309 = vpack.c.b16 %v299, %v298
      %v310 = vpack.c.b16 %v301, %v300
      %v311 = vpack.c.b16 %v303, %v302
      %v336 = vunpack.c.l.b16 %v256
      %v337 = vunpack.c.l.b16 %v257
      %v338 = vunpack.c.l.b16 %v258
      %v339 = vunpack.c.l.b16 %v259
      %v340 = vunpack.c.l.b16 %v260
      %v341 = vunpack.c.l.b16 %v261
      %v342 = vunpack.c.l.b16 %v262
      %v343 = vunpack.c.l.b16 %v263
      %v344 = vunpack.c.l.b16 %v264
      %v345 = vunpack.c.l.b16 %v265
      %v346 = vunpack.c.l.b16 %v266
      %v347 = vunpack.c.l.b16 %v267
      %v348 = vunpack.c.l.b16 %v268
      %v349 = vunpack.c.l.b16 %v269
      %v350 = vunpack.c.l.b16 %v270
      %v351 = vunpack.c.l.b16 %v271
      %v352 = vpack.c.b16 %v337, %v336
      %v353 = vpack.c.b16 %v339, %v338
      %v354 = vpack.c.b16 %v341, %v340
      %v355 = vpack.c.b16 %v343, %v342
      %v356 = vpack.c.b16 %v345, %v344
      %v357 = vpack.c.b16 %v347, %v346
      %v358 = vpack.c.b16 %v349, %v348
      %v359 = vpack.c.b16 %v351, %v350
      %368 = vmatprep.subr.bf16.mxu0 0
      %369 = vmatpush1.bf16.msra.mxu0 %v352
      %370 = vmatprep.subr.bf16.mxu0 0
      %371 = vmatpush1.bf16.msra.mxu0 %v353
      %372 = vmatprep.subr.bf16.mxu0 0
      %373 = vmatpush1.bf16.msra.mxu0 %v354
      %374 = vmatprep.subr.bf16.mxu0 0
      %375 = vmatpush1.bf16.msra.mxu0 %v355
      %376 = vmatprep.subr.bf16.mxu0 0
      %377 = vmatpush1.bf16.msra.mxu0 %v356
      %378 = vmatprep.subr.bf16.mxu0 0
      %379 = vmatpush1.bf16.msra.mxu0 %v357
      %380 = vmatprep.subr.bf16.mxu0 0
      %381 = vmatpush1.bf16.msra.mxu0 %v358
      %382 = vmatprep.subr.bf16.mxu0 0
      %383 = vmatpush1.bf16.msra.mxu0 %v359
      %384 = vmatprep.subr.bf16.mxu0 0
      %385 = vmatpush1.bf16.msra.mxu0 0
      %386 = vmatprep.subr.bf16.mxu0 0
      %387 = vmatpush1.bf16.msra.mxu0 0
      %388 = vmatprep.subr.bf16.mxu0 0
      %389 = vmatpush1.bf16.msra.mxu0 0
      %390 = vmatprep.subr.bf16.mxu0 0
      %391 = vmatpush1.bf16.msra.mxu0 0
      %392 = vmatprep.subr.bf16.mxu0 0
      %393 = vmatpush1.bf16.msra.mxu0 0
      %394 = vmatprep.subr.bf16.mxu0 0
      %395 = vmatpush1.bf16.msra.mxu0 0
      %396 = vmatprep.subr.bf16.mxu0 0
      %397 = vmatpush1.bf16.msra.mxu0 0
      %398 = vmatprep.subr.bf16.mxu0 0
      %399 = vmatpush1.bf16.msra.mxu0 0
      %400 = vmatprep.mubr.bf16.mxu0 0
      %401 = vmatmul.mubr.bf16.gmra.mrb[0].mxu0 %v304
      %v402 = vpop.f32.mrb[0].mxu0
      %v403 = vadd.f32 0.0, %v402
      %v404 = vpop.f32.mrb[0].mxu0
      %v405 = vpop.f32.mrb[0].mxu0
      %v406 = vadd.f32 0.0, %v405
      %v407 = vpop.f32.mrb[0].mxu0
      %408 = vmatprep.mubr.bf16.mxu0 0
      %409 = vmatmul.mubr.bf16.gmra.mrb[0].mxu0 %v305
      %v410 = vpop.f32.mrb[0].mxu0
      %v411 = vadd.f32 0.0, %v410
      %v412 = vpop.f32.mrb[0].mxu0
      %v413 = vpop.f32.mrb[0].mxu0
      %v414 = vadd.f32 0.0, %v413
      %v415 = vpop.f32.mrb[0].mxu0
      %416 = vmatprep.mubr.bf16.mxu0 0
      %417 = vmatmul.mubr.bf16.gmra.mrb[0].mxu0 %v306
      %v418 = vpop.f32.mrb[0].mxu0
      %v419 = vadd.f32 0.0, %v418
      %v420 = vpop.f32.mrb[0].mxu0
      %v421 = vpop.f32.mrb[0].mxu0
      %v422 = vadd.f32 0.0, %v421
      %v423 = vpop.f32.mrb[0].mxu0
      %424 = vmatprep.mubr.bf16.mxu0 0
      %425 = vmatmul.mubr.bf16.gmra.mrb[0].mxu0 %v307
      %v426 = vpop.f32.mrb[0].mxu0
      %v427 = vadd.f32 0.0, %v426
      %v428 = vpop.f32.mrb[0].mxu0
      %v429 = vpop.f32.mrb[0].mxu0
      %v430 = vadd.f32 0.0, %v429
      %v431 = vpop.f32.mrb[0].mxu0
      %432 = vmatprep.mubr.bf16.mxu0 0
      %433 = vmatmul.mubr.bf16.gmra.mrb[0].mxu0 %v308
      %v434 = vpop.f32.mrb[0].mxu0
      %v435 = vadd.f32 0.0, %v434
      %v436 = vpop.f32.mrb[0].mxu0
      %v437 = vpop.f32.mrb[0].mxu0
      %v438 = vadd.f32 0.0, %v437
      %v439 = vpop.f32.mrb[0].mxu0
      %440 = vmatprep.mubr.bf16.mxu0 0
      %441 = vmatmul.mubr.bf16.gmra.mrb[0].mxu0 %v309
      %v442 = vpop.f32.mrb[0].mxu0
      %v443 = vadd.f32 0.0, %v442
      %v444 = vpop.f32.mrb[0].mxu0
      %v445 = vpop.f32.mrb[0].mxu0
      %v446 = vadd.f32 0.0, %v445
      %v447 = vpop.f32.mrb[0].mxu0
      %448 = vmatprep.mubr.bf16.mxu0 0
      %449 = vmatmul.mubr.bf16.gmra.mrb[0].mxu0 %v310
      %v450 = vpop.f32.mrb[0].mxu0
      %v451 = vadd.f32 0.0, %v450
      %v452 = vpop.f32.mrb[0].mxu0
      %v453 = vpop.f32.mrb[0].mxu0
      %v454 = vadd.f32 0.0, %v453
      %v455 = vpop.f32.mrb[0].mxu0
      %456 = vmatprep.mubr.bf16.mxu0 0
      %457 = vmatmul.mubr.bf16.gmra.mrb[0].mxu0 %v311
      %v458 = vpop.f32.mrb[0].mxu0
      %v459 = vadd.f32 0.0, %v458
      %v460 = vpop.f32.mrb[0].mxu0
      %v461 = vpop.f32.mrb[0].mxu0
      %v462 = vadd.f32 0.0, %v461
      %v463 = vpop.f32.mrb[0].mxu0
      %464 = vdwg.mxu0
      %s465 = sadd.s32 %s19, %s20
      %s466 = smul.u32 %s465, 128
      %s467 = scalar_lea.vmem [#allocation2], %s466
      %468 = vst [vmem:[%s467] sm:$0xff] %v403
      %469 = vst [vmem:[%s467 + $0x8] sm:$0xff] %v406
      %470 = vst [vmem:[%s467 + $0x10] sm:$0xff] %v411
      %471 = vst [vmem:[%s467 + $0x18] sm:$0xff] %v414
      %472 = vst [vmem:[%s467 + $0x20] sm:$0xff] %v419
      %473 = vst [vmem:[%s467 + $0x28] sm:$0xff] %v422
      %474 = vst [vmem:[%s467 + $0x30] sm:$0xff] %v427
      %475 = vst [vmem:[%s467 + $0x38] sm:$0xff] %v430
      %476 = vst [vmem:[%s467 + $0x40] sm:$0xff] %v435
      %477 = vst [vmem:[%s467 + $0x48] sm:$0xff] %v438
      %478 = vst [vmem:[%s467 + $0x50] sm:$0xff] %v443
      %479 = vst [vmem:[%s467 + $0x58] sm:$0xff] %v446
      %480 = vst [vmem:[%s467 + $0x60] sm:$0xff] %v451
      %481 = vst [vmem:[%s467 + $0x68] sm:$0xff] %v454
      %482 = vst [vmem:[%s467 + $0x70] sm:$0xff] %v459
      %483 = vst [vmem:[%s467 + $0x78] sm:$0xff] %v462
      %v484 = vld [vmem:[#allocation3] sm:$0x1]
      %v485 = vadd.f32 %v403, %v406
      %v486 = vadd.f32 %v485, %v411
      %v487 = vadd.f32 %v486, %v414
      %v488 = vadd.f32 %v487, %v419
      %v489 = vadd.f32 %v488, %v422
      %v490 = vadd.f32 %v489, %v427
      %v491 = vadd.f32 %v490, %v430
      %v492 = vadd.f32 %v491, %v435
      %v493 = vadd.f32 %v492, %v438
      %v494 = vadd.f32 %v493, %v443
      %v495 = vadd.f32 %v494, %v446
      %v496 = vadd.f32 %v495, %v451
      %v497 = vadd.f32 %v496, %v454
      %v498 = vadd.f32 %v497, %v459
      %v499 = vadd.f32 %v498, %v462
      %v500 = vrot.slane %v499, 4
      %v501 = vadd.f32 %v499, %v500
      %v502 = vrot.slane %v501, 2
      %v503 = vadd.f32 %v501, %v502
      %v504 = vrot.slane %v503, 1
      %v505 = vadd.f32 %v503, %v504
      %v506 = vadd.f32 %v484, %v505
      %507 = vst [vmem:[#allocation3] sm:$0x1] %v506
      %v508 = vld [vmem:[#allocation4] sm:$0x1]
      %v509 = vmul.f32 %v403, %v403
      %v510 = vmul.f32 %v406, %v406
      %v511 = vmul.f32 %v411, %v411
      %v512 = vmul.f32 %v414, %v414
      %v513 = vmul.f32 %v419, %v419
      %v514 = vmul.f32 %v422, %v422
      %v515 = vmul.f32 %v427, %v427
      %v516 = vmul.f32 %v430, %v430
      %v517 = vmul.f32 %v435, %v435
      %v518 = vmul.f32 %v438, %v438
      %v519 = vmul.f32 %v443, %v443
      %v520 = vmul.f32 %v446, %v446
      %v521 = vmul.f32 %v451, %v451
      %v522 = vmul.f32 %v454, %v454
      %v523 = vmul.f32 %v459, %v459
      %v524 = vmul.f32 %v462, %v462
      %v525 = vadd.f32 %v509, %v510
      %v526 = vadd.f32 %v525, %v511
      %v527 = vadd.f32 %v526, %v512
      %v528 = vadd.f32 %v527, %v513
      %v529 = vadd.f32 %v528, %v514
      %v530 = vadd.f32 %v529, %v515
      %v531 = vadd.f32 %v530, %v516
      %v532 = vadd.f32 %v531, %v517
      %v533 = vadd.f32 %v532, %v518
      %v534 = vadd.f32 %v533, %v519
      %v535 = vadd.f32 %v534, %v520
      %v536 = vadd.f32 %v535, %v521
      %v537 = vadd.f32 %v536, %v522
      %v538 = vadd.f32 %v537, %v523
      %v539 = vadd.f32 %v538, %v524
      %v540 = vrot.slane %v539, 4
      %v541 = vadd.f32 %v539, %v540
      %v542 = vrot.slane %v541, 2
      %v543 = vadd.f32 %v541, %v542
      %v544 = vrot.slane %v543, 1
      %v545 = vadd.f32 %v543, %v544
      %v546 = vadd.f32 %v508, %v545
      %547 = vst [vmem:[#allocation4] sm:$0x1] %v546
      %p548 = scmp.eq.s32.totalorder %s19, 3
      %p549 = pnand %p548, %p233
      %p550 = pneg %p549
      // Predicated region
      $region41: #{egan_generator_64_forward.9} parent=35 // pred_check
        _
      $region42: #{egan_generator_64_forward.9} parent=35 // pred_check_branch
        %552 = sbr.rel (%p549) target = $region44
      $region43: #{egan_generator_64_forward.9} parent=35 // pred_region
        %v553 = vld [vmem:[#allocation3] sm:$0x1]
        %v554 = vmul.f32 %v553, 0.001953125
        %v555 = vld [vmem:[#allocation4] sm:$0x1]
        %v556 = vmul.f32 %v555, 0.001953125
        %v557 = vmul.f32 %v554, %v554
        %v558 = vsub.f32 %v556, %v557
        %v559 = vmax.f32 %v558, 0.0
        %v560 = vld [vmem:[%s2] sm:$0x1]
        %v561 = vadd.f32 %v559, 1e-05
        %v562 = vrsqrt.pop %v561
        %v563 = vmul.f32 %v560, %v562
        %v564 = vld [vmem:[%s3] sm:$0x1]
        %v565 = vmul.f32 %v554, %v563
        %v566 = vsub.f32 %v564, %v565
        %v567 = vld [vmem:[#allocation2] sm:$0xff]
        %v568 = vld [vmem:[#allocation2 + $0x8] sm:$0xff]
        %v569 = vld [vmem:[#allocation2 + $0x10] sm:$0xff]
        %v570 = vld [vmem:[#allocation2 + $0x18] sm:$0xff]
        %v571 = vld [vmem:[#allocation2 + $0x20] sm:$0xff]
        %v572 = vld [vmem:[#allocation2 + $0x28] sm:$0xff]
        %v573 = vld [vmem:[#allocation2 + $0x30] sm:$0xff]
        %v574 = vld [vmem:[#allocation2 + $0x38] sm:$0xff]
        %v575 = vld [vmem:[#allocation2 + $0x40] sm:$0xff]
        %v576 = vld [vmem:[#allocation2 + $0x48] sm:$0xff]
        %v577 = vld [vmem:[#allocation2 + $0x50] sm:$0xff]
        %v578 = vld [vmem:[#allocation2 + $0x58] sm:$0xff]
        %v579 = vld [vmem:[#allocation2 + $0x60] sm:$0xff]
        %v580 = vld [vmem:[#allocation2 + $0x68] sm:$0xff]
        %v581 = vld [vmem:[#allocation2 + $0x70] sm:$0xff]
        %v582 = vld [vmem:[#allocation2 + $0x78] sm:$0xff]
        %v583 = vld [vmem:[#allocation2 + $0x80] sm:$0xff]
        %v584 = vld [vmem:[#allocation2 + $0x88] sm:$0xff]
        %v585 = vld [vmem:[#allocation2 + $0x90] sm:$0xff]
        %v586 = vld [vmem:[#allocation2 + $0x98] sm:$0xff]
        %v587 = vld [vmem:[#allocation2 + $0xa0] sm:$0xff]
        %v588 = vld [vmem:[#allocation2 + $0xa8] sm:$0xff]
        %v589 = vld [vmem:[#allocation2 + $0xb0] sm:$0xff]
        %v590 = vld [vmem:[#allocation2 + $0xb8] sm:$0xff]
        %v591 = vld [vmem:[#allocation2 + $0xc0] sm:$0xff]
        %v592 = vld [vmem:[#allocation2 + $0xc8] sm:$0xff]
        %v593 = vld [vmem:[#allocation2 + $0xd0] sm:$0xff]
        %v594 = vld [vmem:[#allocation2 + $0xd8] sm:$0xff]
        %v595 = vld [vmem:[#allocation2 + $0xe0] sm:$0xff]
        %v596 = vld [vmem:[#allocation2 + $0xe8] sm:$0xff]
        %v597 = vld [vmem:[#allocation2 + $0xf0] sm:$0xff]
        %v598 = vld [vmem:[#allocation2 + $0xf8] sm:$0xff]
        %v599 = vld [vmem:[#allocation2 + $0x100] sm:$0xff]
        %v600 = vld [vmem:[#allocation2 + $0x108] sm:$0xff]
        %v601 = vld [vmem:[#allocation2 + $0x110] sm:$0xff]
        %v602 = vld [vmem:[#allocation2 + $0x118] sm:$0xff]
        %v603 = vld [vmem:[#allocation2 + $0x120] sm:$0xff]
        %v604 = vld [vmem:[#allocation2 + $0x128] sm:$0xff]
        %v605 = vld [vmem:[#allocation2 + $0x130] sm:$0xff]
        %v606 = vld [vmem:[#allocation2 + $0x138] sm:$0xff]
        %v607 = vld [vmem:[#allocation2 + $0x140] sm:$0xff]
        %v608 = vld [vmem:[#allocation2 + $0x148] sm:$0xff]
        %v609 = vld [vmem:[#allocation2 + $0x150] sm:$0xff]
        %v610 = vld [vmem:[#allocation2 + $0x158] sm:$0xff]
        %v611 = vld [vmem:[#allocation2 + $0x160] sm:$0xff]
        %v612 = vld [vmem:[#allocation2 + $0x168] sm:$0xff]
        %v613 = vld [vmem:[#allocation2 + $0x170] sm:$0xff]
        %v614 = vld [vmem:[#allocation2 + $0x178] sm:$0xff]
        %v615 = vld [vmem:[#allocation2 + $0x180] sm:$0xff]
        %v616 = vld [vmem:[#allocation2 + $0x188] sm:$0xff]
        %v617 = vld [vmem:[#allocation2 + $0x190] sm:$0xff]
        %v618 = vld [vmem:[#allocation2 + $0x198] sm:$0xff]
        %v619 = vld [vmem:[#allocation2 + $0x1a0] sm:$0xff]
        %v620 = vld [vmem:[#allocation2 + $0x1a8] sm:$0xff]
        %v621 = vld [vmem:[#allocation2 + $0x1b0] sm:$0xff]
        %v622 = vld [vmem:[#allocation2 + $0x1b8] sm:$0xff]
        %v623 = vld [vmem:[#allocation2 + $0x1c0] sm:$0xff]
        %v624 = vld [vmem:[#allocation2 + $0x1c8] sm:$0xff]
        %v625 = vld [vmem:[#allocation2 + $0x1d0] sm:$0xff]
        %v626 = vld [vmem:[#allocation2 + $0x1d8] sm:$0xff]
        %v627 = vld [vmem:[#allocation2 + $0x1e0] sm:$0xff]
        %v628 = vld [vmem:[#allocation2 + $0x1e8] sm:$0xff]
        %v629 = vld [vmem:[#allocation2 + $0x1f0] sm:$0xff]
        %v630 = vld [vmem:[#allocation2 + $0x1f8] sm:$0xff]
        %v632 = vlaneseq
        %v633 = vshrl.u32 %v632, 7
        %v634 = vsub.s32 0, %v633
        %v635 = vrot.slane %v563, %v634
        %v637 = vmul.f32 %v567, %v635
        %v638 = vmul.f32 %v568, %v635
        %v639 = vmul.f32 %v569, %v635
        %v640 = vmul.f32 %v570, %v635
        %v641 = vmul.f32 %v571, %v635
        %v642 = vmul.f32 %v572, %v635
        %v643 = vmul.f32 %v573, %v635
        %v644 = vmul.f32 %v574, %v635
        %v645 = vmul.f32 %v575, %v635
        %v646 = vmul.f32 %v576, %v635
        %v647 = vmul.f32 %v577, %v635
        %v648 = vmul.f32 %v578, %v635
        %v649 = vmul.f32 %v579, %v635
        %v650 = vmul.f32 %v580, %v635
        %v651 = vmul.f32 %v581, %v635
        %v652 = vmul.f32 %v582, %v635
        %v653 = vmul.f32 %v583, %v635
        %v654 = vmul.f32 %v584, %v635
        %v655 = vmul.f32 %v585, %v635
        %v656 = vmul.f32 %v586, %v635
        %v657 = vmul.f32 %v587, %v635
        %v658 = vmul.f32 %v588, %v635
        %v659 = vmul.f32 %v589, %v635
        %v660 = vmul.f32 %v590, %v635
        %v661 = vmul.f32 %v591, %v635
        %v662 = vmul.f32 %v592, %v635
        %v663 = vmul.f32 %v593, %v635
        %v664 = vmul.f32 %v594, %v635
        %v665 = vmul.f32 %v595, %v635
        %v666 = vmul.f32 %v596, %v635
        %v667 = vmul.f32 %v597, %v635
        %v668 = vmul.f32 %v598, %v635
        %v669 = vmul.f32 %v599, %v635
        %v670 = vmul.f32 %v600, %v635
        %v671 = vmul.f32 %v601, %v635
        %v672 = vmul.f32 %v602, %v635
        %v673 = vmul.f32 %v603, %v635
        %v674 = vmul.f32 %v604, %v635
        %v675 = vmul.f32 %v605, %v635
        %v676 = vmul.f32 %v606, %v635
        %v677 = vmul.f32 %v607, %v635
        %v678 = vmul.f32 %v608, %v635
        %v679 = vmul.f32 %v609, %v635
        %v680 = vmul.f32 %v610, %v635
        %v681 = vmul.f32 %v611, %v635
        %v682 = vmul.f32 %v612, %v635
        %v683 = vmul.f32 %v613, %v635
        %v684 = vmul.f32 %v614, %v635
        %v685 = vmul.f32 %v615, %v635
        %v686 = vmul.f32 %v616, %v635
        %v687 = vmul.f32 %v617, %v635
        %v688 = vmul.f32 %v618, %v635
        %v689 = vmul.f32 %v619, %v635
        %v690 = vmul.f32 %v620, %v635
        %v691 = vmul.f32 %v621, %v635
        %v692 = vmul.f32 %v622, %v635
        %v693 = vmul.f32 %v623, %v635
        %v694 = vmul.f32 %v624, %v635
        %v695 = vmul.f32 %v625, %v635
        %v696 = vmul.f32 %v626, %v635
        %v697 = vmul.f32 %v627, %v635
        %v698 = vmul.f32 %v628, %v635
        %v699 = vmul.f32 %v629, %v635
        %v700 = vmul.f32 %v630, %v635
        %v702 = vlaneseq
        %v703 = vshrl.u32 %v702, 7
        %v704 = vsub.s32 0, %v703
        %v705 = vrot.slane %v566, %v704
        %v707 = vadd.f32 %v637, %v705
        %v708 = vadd.f32 %v638, %v705
        %v709 = vadd.f32 %v639, %v705
        %v710 = vadd.f32 %v640, %v705
        %v711 = vadd.f32 %v641, %v705
        %v712 = vadd.f32 %v642, %v705
        %v713 = vadd.f32 %v643, %v705
        %v714 = vadd.f32 %v644, %v705
        %v715 = vadd.f32 %v645, %v705
        %v716 = vadd.f32 %v646, %v705
        %v717 = vadd.f32 %v647, %v705
        %v718 = vadd.f32 %v648, %v705
        %v719 = vadd.f32 %v649, %v705
        %v720 = vadd.f32 %v650, %v705
        %v721 = vadd.f32 %v651, %v705
        %v722 = vadd.f32 %v652, %v705
        %v723 = vadd.f32 %v653, %v705
        %v724 = vadd.f32 %v654, %v705
        %v725 = vadd.f32 %v655, %v705
        %v726 = vadd.f32 %v656, %v705
        %v727 = vadd.f32 %v657, %v705
        %v728 = vadd.f32 %v658, %v705
        %v729 = vadd.f32 %v659, %v705
        %v730 = vadd.f32 %v660, %v705
        %v731 = vadd.f32 %v661, %v705
        %v732 = vadd.f32 %v662, %v705
        %v733 = vadd.f32 %v663, %v705
        %v734 = vadd.f32 %v664, %v705
        %v735 = vadd.f32 %v665, %v705
        %v736 = vadd.f32 %v666, %v705
        %v737 = vadd.f32 %v667, %v705
        %v738 = vadd.f32 %v668, %v705
        %v739 = vadd.f32 %v669, %v705
        %v740 = vadd.f32 %v670, %v705
        %v741 = vadd.f32 %v671, %v705
        %v742 = vadd.f32 %v672, %v705
        %v743 = vadd.f32 %v673, %v705
        %v744 = vadd.f32 %v674, %v705
        %v745 = vadd.f32 %v675, %v705
        %v746 = vadd.f32 %v676, %v705
        %v747 = vadd.f32 %v677, %v705
        %v748 = vadd.f32 %v678, %v705
        %v749 = vadd.f32 %v679, %v705
        %v750 = vadd.f32 %v680, %v705
        %v751 = vadd.f32 %v681, %v705
        %v752 = vadd.f32 %v682, %v705
        %v753 = vadd.f32 %v683, %v705
        %v754 = vadd.f32 %v684, %v705
        %v755 = vadd.f32 %v685, %v705
        %v756 = vadd.f32 %v686, %v705
        %v757 = vadd.f32 %v687, %v705
        %v758 = vadd.f32 %v688, %v705
        %v759 = vadd.f32 %v689, %v705
        %v760 = vadd.f32 %v690, %v705
        %v761 = vadd.f32 %v691, %v705
        %v762 = vadd.f32 %v692, %v705
        %v763 = vadd.f32 %v693, %v705
        %v764 = vadd.f32 %v694, %v705
        %v765 = vadd.f32 %v695, %v705
        %v766 = vadd.f32 %v696, %v705
        %v767 = vadd.f32 %v697, %v705
        %v768 = vadd.f32 %v698, %v705
        %v769 = vadd.f32 %v699, %v705
        %v770 = vadd.f32 %v700, %v705
        %v771 = vmax.f32 %v707, 0.0
        %v772 = vmax.f32 %v708, 0.0
        %v773 = vmax.f32 %v709, 0.0
        %v774 = vmax.f32 %v710, 0.0
        %v775 = vmax.f32 %v711, 0.0
        %v776 = vmax.f32 %v712, 0.0
        %v777 = vmax.f32 %v713, 0.0
        %v778 = vmax.f32 %v714, 0.0
        %v779 = vmax.f32 %v715, 0.0
        %v780 = vmax.f32 %v716, 0.0
        %v781 = vmax.f32 %v717, 0.0
        %v782 = vmax.f32 %v718, 0.0
        %v783 = vmax.f32 %v719, 0.0
        %v784 = vmax.f32 %v720, 0.0
        %v785 = vmax.f32 %v721, 0.0
        %v786 = vmax.f32 %v722, 0.0
        %v787 = vmax.f32 %v723, 0.0
        %v788 = vmax.f32 %v724, 0.0
        %v789 = vmax.f32 %v725, 0.0
        %v790 = vmax.f32 %v726, 0.0
        %v791 = vmax.f32 %v727, 0.0
        %v792 = vmax.f32 %v728, 0.0
        %v793 = vmax.f32 %v729, 0.0
        %v794 = vmax.f32 %v730, 0.0
        %v795 = vmax.f32 %v731, 0.0
        %v796 = vmax.f32 %v732, 0.0
        %v797 = vmax.f32 %v733, 0.0
        %v798 = vmax.f32 %v734, 0.0
        %v799 = vmax.f32 %v735, 0.0
        %v800 = vmax.f32 %v736, 0.0
        %v801 = vmax.f32 %v737, 0.0
        %v802 = vmax.f32 %v738, 0.0
        %v803 = vmax.f32 %v739, 0.0
        %v804 = vmax.f32 %v740, 0.0
        %v805 = vmax.f32 %v741, 0.0
        %v806 = vmax.f32 %v742, 0.0
        %v807 = vmax.f32 %v743, 0.0
        %v808 = vmax.f32 %v744, 0.0
        %v809 = vmax.f32 %v745, 0.0
        %v810 = vmax.f32 %v746, 0.0
        %v811 = vmax.f32 %v747, 0.0
        %v812 = vmax.f32 %v748, 0.0
        %v813 = vmax.f32 %v749, 0.0
        %v814 = vmax.f32 %v750, 0.0
        %v815 = vmax.f32 %v751, 0.0
        %v816 = vmax.f32 %v752, 0.0
        %v817 = vmax.f32 %v753, 0.0
        %v818 = vmax.f32 %v754, 0.0
        %v819 = vmax.f32 %v755, 0.0
        %v820 = vmax.f32 %v756, 0.0
        %v821 = vmax.f32 %v757, 0.0
        %v822 = vmax.f32 %v758, 0.0
        %v823 = vmax.f32 %v759, 0.0
        %v824 = vmax.f32 %v760, 0.0
        %v825 = vmax.f32 %v761, 0.0
        %v826 = vmax.f32 %v762, 0.0
        %v827 = vmax.f32 %v763, 0.0
        %v828 = vmax.f32 %v764, 0.0
        %v829 = vmax.f32 %v765, 0.0
        %v830 = vmax.f32 %v766, 0.0
        %v831 = vmax.f32 %v767, 0.0
        %v832 = vmax.f32 %v768, 0.0
        %v833 = vmax.f32 %v769, 0.0
        %v834 = vmax.f32 %v770, 0.0
        %v835 = vpack.c.bf16 %v772, %v771
        %v836 = vpack.c.bf16 %v774, %v773
        %v837 = vpack.c.bf16 %v776, %v775
        %v838 = vpack.c.bf16 %v778, %v777
        %v839 = vpack.c.bf16 %v780, %v779
        %v840 = vpack.c.bf16 %v782, %v781
        %v841 = vpack.c.bf16 %v784, %v783
        %v842 = vpack.c.bf16 %v786, %v785
        %v843 = vpack.c.bf16 %v788, %v787
        %v844 = vpack.c.bf16 %v790, %v789
        %v845 = vpack.c.bf16 %v792, %v791
        %v846 = vpack.c.bf16 %v794, %v793
        %v847 = vpack.c.bf16 %v796, %v795
        %v848 = vpack.c.bf16 %v798, %v797
        %v849 = vpack.c.bf16 %v800, %v799
        %v850 = vpack.c.bf16 %v802, %v801
        %v851 = vpack.c.bf16 %v804, %v803
        %v852 = vpack.c.bf16 %v806, %v805
        %v853 = vpack.c.bf16 %v808, %v807
        %v854 = vpack.c.bf16 %v810, %v809
        %v855 = vpack.c.bf16 %v812, %v811
        %v856 = vpack.c.bf16 %v814, %v813
        %v857 = vpack.c.bf16 %v816, %v815
        %v858 = vpack.c.bf16 %v818, %v817
        %v859 = vpack.c.bf16 %v820, %v819
        %v860 = vpack.c.bf16 %v822, %v821
        %v861 = vpack.c.bf16 %v824, %v823
        %v862 = vpack.c.bf16 %v826, %v825
        %v863 = vpack.c.bf16 %v828, %v827
        %v864 = vpack.c.bf16 %v830, %v829
        %v865 = vpack.c.bf16 %v832, %v831
        %v866 = vpack.c.bf16 %v834, %v833
        %v899 = vunpack.c.l.b16 %v835
        %v900 = vunpack.c.h.b16 %v835
        %v901 = vunpack.c.l.b16 %v836
        %v902 = vunpack.c.h.b16 %v836
        %v903 = vunpack.c.l.b16 %v837
        %v904 = vunpack.c.h.b16 %v837
        %v905 = vunpack.c.l.b16 %v838
        %v906 = vunpack.c.h.b16 %v838
        %v907 = vunpack.c.l.b16 %v839
        %v908 = vunpack.c.h.b16 %v839
        %v909 = vunpack.c.l.b16 %v840
        %v910 = vunpack.c.h.b16 %v840
        %v911 = vunpack.c.l.b16 %v841
        %v912 = vunpack.c.h.b16 %v841
        %v913 = vunpack.c.l.b16 %v842
        %v914 = vunpack.c.h.b16 %v842
        %v915 = vunpack.c.l.b16 %v843
        %v916 = vunpack.c.h.b16 %v843
        %v917 = vunpack.c.l.b16 %v844
        %v918 = vunpack.c.h.b16 %v844
        %v919 = vunpack.c.l.b16 %v845
        %v920 = vunpack.c.h.b16 %v845
        %v921 = vunpack.c.l.b16 %v846
        %v922 = vunpack.c.h.b16 %v846
        %v923 = vunpack.c.l.b16 %v847
        %v924 = vunpack.c.h.b16 %v847
        %v925 = vunpack.c.l.b16 %v848
        %v926 = vunpack.c.h.b16 %v848
        %v927 = vunpack.c.l.b16 %v849
        %v928 = vunpack.c.h.b16 %v849
        %v929 = vunpack.c.l.b16 %v850
        %v930 = vunpack.c.h.b16 %v850
        %v931 = vunpack.c.l.b16 %v851
        %v932 = vunpack.c.h.b16 %v851
        %v933 = vunpack.c.l.b16 %v852
        %v934 = vunpack.c.h.b16 %v852
        %v935 = vunpack.c.l.b16 %v853
        %v936 = vunpack.c.h.b16 %v853
        %v937 = vunpack.c.l.b16 %v854
        %v938 = vunpack.c.h.b16 %v854
        %v939 = vunpack.c.l.b16 %v855
        %v940 = vunpack.c.h.b16 %v855
        %v941 = vunpack.c.l.b16 %v856
        %v942 = vunpack.c.h.b16 %v856
        %v943 = vunpack.c.l.b16 %v857
        %v944 = vunpack.c.h.b16 %v857
        %v945 = vunpack.c.l.b16 %v858
        %v946 = vunpack.c.h.b16 %v858
        %v947 = vunpack.c.l.b16 %v859
        %v948 = vunpack.c.h.b16 %v859
        %v949 = vunpack.c.l.b16 %v860
        %v950 = vunpack.c.h.b16 %v860
        %v951 = vunpack.c.l.b16 %v861
        %v952 = vunpack.c.h.b16 %v861
        %v953 = vunpack.c.l.b16 %v862
        %v954 = vunpack.c.h.b16 %v862
        %v955 = vunpack.c.l.b16 %v863
        %v956 = vunpack.c.h.b16 %v863
        %v957 = vunpack.c.l.b16 %v864
        %v958 = vunpack.c.h.b16 %v864
        %v959 = vunpack.c.l.b16 %v865
        %v960 = vunpack.c.h.b16 %v865
        %v961 = vunpack.c.l.b16 %v866
        %v962 = vunpack.c.h.b16 %v866
        %v963 = vpack.c.b16 %v899, %v899
        %v964 = vpack.c.b16 %v900, %v900
        %v965 = vpack.c.b16 %v901, %v901
        %v966 = vpack.c.b16 %v902, %v902
        %v967 = vpack.c.b16 %v903, %v903
        %v968 = vpack.c.b16 %v904, %v904
        %v969 = vpack.c.b16 %v905, %v905
        %v970 = vpack.c.b16 %v906, %v906
        %v971 = vpack.c.b16 %v907, %v907
        %v972 = vpack.c.b16 %v908, %v908
        %v973 = vpack.c.b16 %v909, %v909
        %v974 = vpack.c.b16 %v910, %v910
        %v975 = vpack.c.b16 %v911, %v911
        %v976 = vpack.c.b16 %v912, %v912
        %v977 = vpack.c.b16 %v913, %v913
        %v978 = vpack.c.b16 %v914, %v914
        %v979 = vpack.c.b16 %v915, %v915
        %v980 = vpack.c.b16 %v916, %v916
        %v981 = vpack.c.b16 %v917, %v917
        %v982 = vpack.c.b16 %v918, %v918
        %v983 = vpack.c.b16 %v919, %v919
        %v984 = vpack.c.b16 %v920, %v920
        %v985 = vpack.c.b16 %v921, %v921
        %v986 = vpack.c.b16 %v922, %v922
        %v987 = vpack.c.b16 %v923, %v923
        %v988 = vpack.c.b16 %v924, %v924
        %v989 = vpack.c.b16 %v925, %v925
        %v990 = vpack.c.b16 %v926, %v926
        %v991 = vpack.c.b16 %v927, %v927
        %v992 = vpack.c.b16 %v928, %v928
        %v993 = vpack.c.b16 %v929, %v929
        %v994 = vpack.c.b16 %v930, %v930
        %v995 = vpack.c.b16 %v931, %v931
        %v996 = vpack.c.b16 %v932, %v932
        %v997 = vpack.c.b16 %v933, %v933
        %v998 = vpack.c.b16 %v934, %v934
        %v999 = vpack.c.b16 %v935, %v935
        %v1000 = vpack.c.b16 %v936, %v936
        %v1001 = vpack.c.b16 %v937, %v937
        %v1002 = vpack.c.b16 %v938, %v938
        %v1003 = vpack.c.b16 %v939, %v939
        %v1004 = vpack.c.b16 %v940, %v940
        %v1005 = vpack.c.b16 %v941, %v941
        %v1006 = vpack.c.b16 %v942, %v942
        %v1007 = vpack.c.b16 %v943, %v943
        %v1008 = vpack.c.b16 %v944, %v944
        %v1009 = vpack.c.b16 %v945, %v945
        %v1010 = vpack.c.b16 %v946, %v946
        %v1011 = vpack.c.b16 %v947, %v947
        %v1012 = vpack.c.b16 %v948, %v948
        %v1013 = vpack.c.b16 %v949, %v949
        %v1014 = vpack.c.b16 %v950, %v950
        %v1015 = vpack.c.b16 %v951, %v951
        %v1016 = vpack.c.b16 %v952, %v952
        %v1017 = vpack.c.b16 %v953, %v953
        %v1018 = vpack.c.b16 %v954, %v954
        %v1019 = vpack.c.b16 %v955, %v955
        %v1020 = vpack.c.b16 %v956, %v956
        %v1021 = vpack.c.b16 %v957, %v957
        %v1022 = vpack.c.b16 %v958, %v958
        %v1023 = vpack.c.b16 %v959, %v959
        %v1024 = vpack.c.b16 %v960, %v960
        %v1025 = vpack.c.b16 %v961, %v961
        %v1026 = vpack.c.b16 %v962, %v962
        %1091 = vst [vmem:[%s4] sm:$0xf] %v963
        %1092 = vst [vmem:[%s4 + $0x4] sm:$0xf] %v964
        %1093 = vst [vmem:[%s4 + $0x8] sm:$0xf] %v965
        %1094 = vst [vmem:[%s4 + $0xc] sm:$0xf] %v966
        %1095 = vst [vmem:[%s4 + $0x10] sm:$0xf] %v967
        %1096 = vst [vmem:[%s4 + $0x14] sm:$0xf] %v968
        %1097 = vst [vmem:[%s4 + $0x18] sm:$0xf] %v969
        %1098 = vst [vmem:[%s4 + $0x1c] sm:$0xf] %v970
        %1099 = vst [vmem:[%s4 + $0x20] sm:$0xf] %v971
        %1100 = vst [vmem:[%s4 + $0x24] sm:$0xf] %v972
        %1101 = vst [vmem:[%s4 + $0x28] sm:$0xf] %v973
        %1102 = vst [vmem:[%s4 + $0x2c] sm:$0xf] %v974
        %1103 = vst [vmem:[%s4 + $0x30] sm:$0xf] %v975
        %1104 = vst [vmem:[%s4 + $0x34] sm:$0xf] %v976
        %1105 = vst [vmem:[%s4 + $0x38] sm:$0xf] %v977
        %1106 = vst [vmem:[%s4 + $0x3c] sm:$0xf] %v978
        %1107 = vst [vmem:[%s4 + $0x40] sm:$0xf] %v979
        %1108 = vst [vmem:[%s4 + $0x44] sm:$0xf] %v980
        %1109 = vst [vmem:[%s4 + $0x48] sm:$0xf] %v981
        %1110 = vst [vmem:[%s4 + $0x4c] sm:$0xf] %v982
        %1111 = vst [vmem:[%s4 + $0x50] sm:$0xf] %v983
        %1112 = vst [vmem:[%s4 + $0x54] sm:$0xf] %v984
        %1113 = vst [vmem:[%s4 + $0x58] sm:$0xf] %v985
        %1114 = vst [vmem:[%s4 + $0x5c] sm:$0xf] %v986
        %1115 = vst [vmem:[%s4 + $0x60] sm:$0xf] %v987
        %1116 = vst [vmem:[%s4 + $0x64] sm:$0xf] %v988
        %1117 = vst [vmem:[%s4 + $0x68] sm:$0xf] %v989
        %1118 = vst [vmem:[%s4 + $0x6c] sm:$0xf] %v990
        %1119 = vst [vmem:[%s4 + $0x70] sm:$0xf] %v991
        %1120 = vst [vmem:[%s4 + $0x74] sm:$0xf] %v992
        %1121 = vst [vmem:[%s4 + $0x78] sm:$0xf] %v993
        %1122 = vst [vmem:[%s4 + $0x7c] sm:$0xf] %v994
        %1123 = vst [vmem:[%s4 + $0x80] sm:$0xf] %v995
        %1124 = vst [vmem:[%s4 + $0x84] sm:$0xf] %v996
        %1125 = vst [vmem:[%s4 + $0x88] sm:$0xf] %v997
        %1126 = vst [vmem:[%s4 + $0x8c] sm:$0xf] %v998
        %1127 = vst [vmem:[%s4 + $0x90] sm:$0xf] %v999
        %1128 = vst [vmem:[%s4 + $0x94] sm:$0xf] %v1000
        %1129 = vst [vmem:[%s4 + $0x98] sm:$0xf] %v1001
        %1130 = vst [vmem:[%s4 + $0x9c] sm:$0xf] %v1002
        %1131 = vst [vmem:[%s4 + $0xa0] sm:$0xf] %v1003
        %1132 = vst [vmem:[%s4 + $0xa4] sm:$0xf] %v1004
        %1133 = vst [vmem:[%s4 + $0xa8] sm:$0xf] %v1005
        %1134 = vst [vmem:[%s4 + $0xac] sm:$0xf] %v1006
        %1135 = vst [vmem:[%s4 + $0xb0] sm:$0xf] %v1007
        %1136 = vst [vmem:[%s4 + $0xb4] sm:$0xf] %v1008
        %1137 = vst [vmem:[%s4 + $0xb8] sm:$0xf] %v1009
        %1138 = vst [vmem:[%s4 + $0xbc] sm:$0xf] %v1010
        %1139 = vst [vmem:[%s4 + $0xc0] sm:$0xf] %v1011
        %1140 = vst [vmem:[%s4 + $0xc4] sm:$0xf] %v1012
        %1141 = vst [vmem:[%s4 + $0xc8] sm:$0xf] %v1013
        %1142 = vst [vmem:[%s4 + $0xcc] sm:$0xf] %v1014
        %1143 = vst [vmem:[%s4 + $0xd0] sm:$0xf] %v1015
        %1144 = vst [vmem:[%s4 + $0xd4] sm:$0xf] %v1016
        %1145 = vst [vmem:[%s4 + $0xd8] sm:$0xf] %v1017
        %1146 = vst [vmem:[%s4 + $0xdc] sm:$0xf] %v1018
        %1147 = vst [vmem:[%s4 + $0xe0] sm:$0xf] %v1019
        %1148 = vst [vmem:[%s4 + $0xe4] sm:$0xf] %v1020
        %1149 = vst [vmem:[%s4 + $0xe8] sm:$0xf] %v1021
        %1150 = vst [vmem:[%s4 + $0xec] sm:$0xf] %v1022
        %1151 = vst [vmem:[%s4 + $0xf0] sm:$0xf] %v1023
        %1152 = vst [vmem:[%s4 + $0xf4] sm:$0xf] %v1024
        %1153 = vst [vmem:[%s4 + $0xf8] sm:$0xf] %v1025
        %1154 = vst [vmem:[%s4 + $0xfc] sm:$0xf] %v1026
      $region44: #{egan_generator_64_forward.9} parent=35 // pred_fallthru
        _
      // Predicated region
      $region45: #{egan_generator_64_forward.9} parent=35 // pred_check
        %p1155 = pneg %p136
      $region46: #{egan_generator_64_forward.9} parent=35 // pred_check_branch
        %1157 = sbr.rel (%p1155) target = $region48
      $region47: #{egan_generator_64_forward.9} parent=35 // pred_region
        _
      $region48: #{egan_generator_64_forward.9} parent=35 // pred_fallthru
        _
      // Predicated region
      $region49: #{egan_generator_64_forward.9} parent=35 // pred_check
        %p1158 = pneg %p136
      $region50: #{egan_generator_64_forward.9} parent=35 // pred_check_branch
        %1160 = sbr.rel (%p1158) target = $region52
      $region51: #{egan_generator_64_forward.9} parent=35 // pred_region
        _
      $region52: #{egan_generator_64_forward.9} parent=35 // pred_fallthru
        _
    $region36: #{egan_generator_64_forward.9} parent=5 // pred_fallthru
      _
    %p1161 = scmp.le.s32.totalorder 2, %s10
    // Predicated region
    $region53: #{egan_generator_64_forward.9} parent=5 // pred_check
      %p1162 = pneg %p1161
    $region54: #{egan_generator_64_forward.9} parent=5 // pred_check_branch
      %1164 = sbr.rel (%p1162) target = $region56
    $region55: #{egan_generator_64_forward.9} parent=5 // pred_region
      %s1165 = ssub.s32 %s10, 2
    $region56: #{egan_generator_64_forward.9} parent=5 // pred_fallthru
      _
  $region6: #{egan_generator_64_forward.9} parent=0 // loop_footer
    %s14 = sadd.s32 1, %s10
  $region7: #{egan_generator_64_forward.9} parent=0 // loop_footer_branch
    %9 = sbr.rel target = $region3
  $region8: #{egan_generator_64_forward.9} parent=0 // loop_exit
    _

// kernel: egan_generator_64_forward.10
$region0: #{egan_generator_64_forward.10}
  #allocation0 [shape = 'u32[]', space=smem, size = 0x4, offset = 0x4, fixed_abs, tag = 'smem constant byte address 0x4 - core index']
  #allocation1 [shape = 'u32[144,128]{1,0:T(1,128)}', space=vmem, size = 0x12000, scoped, tag = 'internal scratch']
  #allocation2 [shape = 'f32[2048,128]{1,0:T(8,128)}', space=vmem, size = 0x100000, scoped, tag = 'scratch operand']
  #allocation3 [shape = 'f32[1,128]{1,0:T(1,128)}', space=vmem, size = 0x200, scoped, tag = 'scratch operand']
  #allocation4 [shape = 'f32[1,128]{1,0:T(1,128)}', space=vmem, size = 0x200, scoped, tag = 'scratch operand']
  %s0 = inlined_call_operand.vmem [shape: bf16[4,512,128], index: 0, kind: input, shape index: {}]
  %s1 = inlined_call_operand.vmem [shape: bf16[4,128,128], index: 1, kind: input, shape index: {}]
  %s2 = inlined_call_operand.vmem [shape: f32[1,128], index: 2, kind: input, shape index: {}]
  %s3 = inlined_call_operand.vmem [shape: f32[1,128], index: 3, kind: input, shape index: {}]
  %s4 = inlined_call_operand.vmem [shape: bf16[2048,128], index: 4, kind: output, shape index: {}]
  %s5 = sld [smem:[#allocation0]]
  $region57: #{egan_generator_64_forward.10} parent=0
    _
  %s7 = ssub.s32 1, %s5
  %s8 = scalar_select 0, %s7, %s5
  loop: start=0, step=1, limit=6
  $region2: #{egan_generator_64_forward.10} parent=0 // loop_pre_header
    _
  $region3: #{egan_generator_64_forward.10} parent=0 // loop_header
    %s10 = sphi 0, %s14
    %p11 = scmp.ge.s32.totalorder %s10, 6
    %s17 = sphi 0, %s29
    %s18 = sphi 0, %s25
    %s19 = sphi 0, %s17
    %s20 = sphi 0, %s18
    %s21 = sphi 0, %s19
    %s22 = sphi 0, %s20
    %s34 = sphi 0, %s36
    %s37 = sphi 0, %s34
    %s38 = sphi 0, %s37
    %s54 = sphi 0, %s38
    %s60 = sphi 0, %s62
    %s63 = sphi 0, %s60
    %s64 = sphi 0, %s63
    %s80 = sphi 0, %s64
    %s84 = sphi 0, %s84
    %s86 = sphi 0, %s84
    %s87 = sphi 0, %s86
    %s101 = sphi 0, %s87
    %s105 = sphi 0, %s105
    %s107 = sphi 0, %s105
    %s108 = sphi 0, %s107
    %s122 = sphi 0, %s108
    %s126 = sphi 0, %s126
    %s128 = sphi 0, %s126
    %s129 = sphi 0, %s128
    %s143 = sphi 0, %s129
  $region4: #{egan_generator_64_forward.10} parent=0 // loop_header_branch
    %13 = sbr.rel (%p11) target = $region8
  $region5: #{egan_generator_64_forward.10} parent=0 // loop_body
    %s15 = ssub.s32 %s10, 1
    %s16 = ssub.s32 %s10, 2
    %s23 = sadd.s32 1, %s18
    %p24 = scmp.ge.s32.totalorder %s23, 1
    %s25 = scalar_select %p24, 0, %s23
    %s26 = sadd.s32 1, %s17
    %s27 = scalar_select %p24, %s26, %s17
    %p28 = scmp.ge.s32.totalorder %s27, 4
    %s29 = scalar_select %p28, 0, %s27
    %s30 = ssub.s32 %s17, %s29
    %s31 = ssub.s32 %s18, %s25
    %s32 = sor.u32 %s30, %s31
    %p33 = scmp.eq.s32.totalorder %s32, 0
    %s35 = sadd.s32 %s34, 1
    %s36 = scalar_select %p33, %s34, %s35
    %p39 = pneg %p33
    %p40 = scmp.eq.s32.totalorder %s10, 3
    %p41 = por %p39, %p40
    %p42 = scmp.ne.s32.totalorder %s34, %s37
    %p43 = scmp.eq.s32.totalorder %s10, 0
    %p44 = por %p42, %p43
    %p45 = scmp.ne.s32.totalorder %s34, %s37
    %p46 = scmp.eq.s32.totalorder %s15, 3
    %p47 = por %p45, %p46
    %p48 = scmp.ne.s32.totalorder %s37, %s38
    %p49 = scmp.eq.s32.totalorder %s15, 0
    %p50 = por %p48, %p49
    %p51 = scmp.ne.s32.totalorder %s37, %s38
    %p52 = scmp.eq.s32.totalorder %s16, 3
    %p53 = por %p51, %p52
    %p55 = scmp.ne.s32.totalorder %s38, %s54
    %p56 = scmp.eq.s32.totalorder %s16, 0
    %p57 = por %p55, %p56
    %s58 = ssub.s32 %s17, %s29
    %p59 = scmp.eq.s32.totalorder %s58, 0
    %s61 = sadd.s32 %s60, 1
    %s62 = scalar_select %p59, %s60, %s61
    %p65 = pneg %p59
    %p66 = scmp.eq.s32.totalorder %s10, 3
    %p67 = por %p65, %p66
    %p68 = scmp.ne.s32.totalorder %s60, %s63
    %p69 = scmp.eq.s32.totalorder %s10, 0
    %p70 = por %p68, %p69
    %p71 = scmp.ne.s32.totalorder %s60, %s63
    %p72 = scmp.eq.s32.totalorder %s15, 3
    %p73 = por %p71, %p72
    %p74 = scmp.ne.s32.totalorder %s63, %s64
    %p75 = scmp.eq.s32.totalorder %s15, 0
    %p76 = por %p74, %p75
    %p77 = scmp.ne.s32.totalorder %s63, %s64
    %p78 = scmp.eq.s32.totalorder %s16, 3
    %p79 = por %p77, %p78
    %p81 = scmp.ne.s32.totalorder %s64, %s80
    %p82 = scmp.eq.s32.totalorder %s16, 0
    %p83 = por %p81, %p82
    %s85 = sadd.s32 %s84, 1
    %p88 = scmp.eq.s32.totalorder %s10, 3
    %p89 = scmp.ne.s32.totalorder %s84, %s86
    %p90 = scmp.eq.s32.totalorder %s10, 0
    %p91 = por %p89, %p90
    %p92 = scmp.ne.s32.totalorder %s84, %s86
    %p93 = scmp.eq.s32.totalorder %s15, 3
    %p94 = por %p92, %p93
    %p95 = scmp.ne.s32.totalorder %s86, %s87
    %p96 = scmp.eq.s32.totalorder %s15, 0
    %p97 = por %p95, %p96
    %p98 = scmp.ne.s32.totalorder %s86, %s87
    %p99 = scmp.eq.s32.totalorder %s16, 3
    %p100 = por %p98, %p99
    %p102 = scmp.ne.s32.totalorder %s87, %s101
    %p103 = scmp.eq.s32.totalorder %s16, 0
    %p104 = por %p102, %p103
    %s106 = sadd.s32 %s105, 1
    %p109 = scmp.eq.s32.totalorder %s10, 3
    %p110 = scmp.ne.s32.totalorder %s105, %s107
    %p111 = scmp.eq.s32.totalorder %s10, 0
    %p112 = por %p110, %p111
    %p113 = scmp.ne.s32.totalorder %s105, %s107
    %p114 = scmp.eq.s32.totalorder %s15, 3
    %p115 = por %p113, %p114
    %p116 = scmp.ne.s32.totalorder %s107, %s108
    %p117 = scmp.eq.s32.totalorder %s15, 0
    %p118 = por %p116, %p117
    %p119 = scmp.ne.s32.totalorder %s107, %s108
    %p120 = scmp.eq.s32.totalorder %s16, 3
    %p121 = por %p119, %p120
    %p123 = scmp.ne.s32.totalorder %s108, %s122
    %p124 = scmp.eq.s32.totalorder %s16, 0
    %p125 = por %p123, %p124
    %s127 = sadd.s32 %s126, 1
    %p130 = scmp.eq.s32.totalorder %s10, 3
    %p131 = scmp.ne.s32.totalorder %s126, %s128
    %p132 = scmp.eq.s32.totalorder %s10, 0
    %p133 = por %p131, %p132
    %p134 = scmp.ne.s32.totalorder %s126, %s128
    %p135 = scmp.eq.s32.totalorder %s15, 3
    %p136 = por %p134, %p135
    %p137 = scmp.ne.s32.totalorder %s128, %s129
    %p138 = scmp.eq.s32.totalorder %s15, 0
    %p139 = por %p137, %p138
    %p140 = scmp.ne.s32.totalorder %s128, %s129
    %p141 = scmp.eq.s32.totalorder %s16, 3
    %p142 = por %p140, %p141
    %p144 = scmp.ne.s32.totalorder %s129, %s143
    %p145 = scmp.eq.s32.totalorder %s16, 0
    %p146 = por %p144, %p145
    %p147 = scmp.le.s32.totalorder 1, %s10
    %p148 = scmp.lt.s32.totalorder %s10, 5
    %p149 = pnand %p147, %p148
    %p150 = pneg %p149
    // Predicated region
    $region9: #{egan_generator_64_forward.10} parent=5 // pred_check
      _
    $region10: #{egan_generator_64_forward.10} parent=5 // pred_check_branch
      %152 = sbr.rel (%p149) target = $region12
    $region11: #{egan_generator_64_forward.10} parent=5 // pred_region
      %s153 = ssub.s32 %s10, 1
      // Predicated region
      $region13: #{egan_generator_64_forward.10} parent=11 // pred_check
        %p154 = pneg %p97
      $region14: #{egan_generator_64_forward.10} parent=11 // pred_check_branch
        %156 = sbr.rel (%p154) target = $region16
      $region15: #{egan_generator_64_forward.10} parent=11 // pred_region
        _
      $region16: #{egan_generator_64_forward.10} parent=11 // pred_fallthru
        _
      // Predicated region
      $region17: #{egan_generator_64_forward.10} parent=11 // pred_check
        %p157 = pneg %p118
      $region18: #{egan_generator_64_forward.10} parent=11 // pred_check_branch
        %159 = sbr.rel (%p157) target = $region20
      $region19: #{egan_generator_64_forward.10} parent=11 // pred_region
        _
      $region20: #{egan_generator_64_forward.10} parent=11 // pred_fallthru
        _
    $region12: #{egan_generator_64_forward.10} parent=5 // pred_fallthru
      _
    %p160 = scmp.lt.s32.totalorder %s10, 4
    // Predicated region
    $region21: #{egan_generator_64_forward.10} parent=5 // pred_check
      %p161 = pneg %p160
    $region22: #{egan_generator_64_forward.10} parent=5 // pred_check_branch
      %163 = sbr.rel (%p161) target = $region24
    $region23: #{egan_generator_64_forward.10} parent=5 // pred_region
      // Predicated region
      $region25: #{egan_generator_64_forward.10} parent=23 // pred_check
        %p164 = pneg %p44
      $region26: #{egan_generator_64_forward.10} parent=23 // pred_check_branch
        %166 = sbr.rel (%p164) target = $region28
      $region27: #{egan_generator_64_forward.10} parent=23 // pred_region
        %s167 = smul.u32 64, %s18
        %p168 = scmp.lt.s32.totalorder %s17, 3
        %s169 = scalar_select %p168, %s17, 3
        %p170 = scmp.lt.s32.totalorder %s167, 63
        %s171 = scalar_select %p170, %s167, 63
        %s172 = smul.addr %s169, 64
        %s173 = sadd.s32 %s171, %s172
        %s174 = smul.addr %s173, 4
        %s175 = scalar_lea.vmem %s0, %s174
        %s176 = smul.u32 64, %s18
      $region28: #{egan_generator_64_forward.10} parent=23 // pred_fallthru
        _
      // Predicated region
      $region29: #{egan_generator_64_forward.10} parent=23 // pred_check
        %p177 = pneg %p70
      $region30: #{egan_generator_64_forward.10} parent=23 // pred_check_branch
        %179 = sbr.rel (%p177) target = $region32
      $region31: #{egan_generator_64_forward.10} parent=23 // pred_region
        %p180 = scmp.lt.s32.totalorder %s17, 3
        %s181 = scalar_select %p180, %s17, 3
        %s182 = smul.addr %s181, 16
        %s183 = smul.addr %s182, 4
        %s184 = scalar_lea.vmem %s1, %s183
      $region32: #{egan_generator_64_forward.10} parent=23 // pred_fallthru
        _
    $region24: #{egan_generator_64_forward.10} parent=5 // pred_fallthru
      _
    %p185 = scmp.le.s32.totalorder 1, %s10
    %p186 = scmp.lt.s32.totalorder %s10, 5
    %p187 = pnand %p185, %p186
    %p188 = pneg %p187
    // Predicated region
    $region33: #{egan_generator_64_forward.10} parent=5 // pred_check
      _
    $region34: #{egan_generator_64_forward.10} parent=5 // pred_check_branch
      %190 = sbr.rel (%p187) target = $region36
    $region35: #{egan_generator_64_forward.10} parent=5 // pred_region
      %s191 = ssub.s32 %s10, 1
      %s192 = smul.u32 64, %s20
      %p193 = scmp.lt.s32.totalorder %s19, 3
      %s194 = scalar_select %p193, %s19, 3
      %p195 = scmp.lt.s32.totalorder %s192, 63
      %s196 = scalar_select %p195, %s192, 63
      %s197 = smul.addr %s194, 64
      %s198 = sadd.s32 %s196, %s197
      %s199 = smul.addr %s198, 4
      %s200 = scalar_lea.vmem %s0, %s199
      %p201 = pneg %p50
      %p202 = pneg %p47
      %p203 = scmp.lt.s32.totalorder %s19, 3
      %s204 = scalar_select %p203, %s19, 3
      %s205 = smul.addr %s204, 16
      %s206 = smul.addr %s205, 4
      %s207 = scalar_lea.vmem %s1, %s206
      %p208 = pneg %p76
      %p209 = pneg %p73
      %p210 = pneg %p97
      %p211 = pneg %p94
      %p212 = pneg %p118
      %p213 = pneg %p115
      %p214 = pneg %p139
      %p215 = pneg %p136
      %s216 = smul.u32 64, %s20
      %p217 = scmp.lt.s32.totalorder %s19, 3
      %s218 = scalar_select %p217, %s19, 3
      %p219 = scmp.lt.s32.totalorder %s216, 63
      %s220 = scalar_select %p219, %s216, 63
      %s221 = smul.addr %s218, 64
      %s222 = sadd.s32 %s220, %s221
      %s223 = smul.addr %s222, 4
      %s224 = scalar_lea.vmem %s0, %s223
      %s225 = smul.u32 64, %s20
      %p226 = scmp.lt.s32.totalorder %s19, 3
      %s227 = scalar_select %p226, %s19, 3
      %s228 = smul.addr %s227, 16
      %s229 = smul.addr %s228, 4
      %s230 = scalar_lea.vmem %s1, %s229
      %p232 = scmp.eq.s32.totalorder %s19, 0
      %p233 = scmp.eq.s32.totalorder %s20, 0
      %p234 = pnand %p232, %p233
      %p235 = pneg %p234
      // Predicated region
      $region37: #{egan_generator_64_forward.10} parent=35 // pred_check
        _
      $region38: #{egan_generator_64_forward.10} parent=35 // pred_check_branch
        %237 = sbr.rel (%p234) target = $region40
      $region39: #{egan_generator_64_forward.10} parent=35 // pred_region
        %238 = vst [vmem:[#allocation3] sm:$0x1] 0.0
        %239 = vst [vmem:[#allocation4] sm:$0x1] 0.0
      $region40: #{egan_generator_64_forward.10} parent=35 // pred_fallthru
        _
      %v240 = vld [vmem:[%s224] sm:$0xf]
      %v241 = vld [vmem:[%s224 + $0x4] sm:$0xf]
      %v242 = vld [vmem:[%s224 + $0x8] sm:$0xf]
      %v243 = vld [vmem:[%s224 + $0xc] sm:$0xf]
      %v244 = vld [vmem:[%s224 + $0x10] sm:$0xf]
      %v245 = vld [vmem:[%s224 + $0x14] sm:$0xf]
      %v246 = vld [vmem:[%s224 + $0x18] sm:$0xf]
      %v247 = vld [vmem:[%s224 + $0x1c] sm:$0xf]
      %v248 = vld [vmem:[%s224 + $0x20] sm:$0xf]
      %v249 = vld [vmem:[%s224 + $0x24] sm:$0xf]
      %v250 = vld [vmem:[%s224 + $0x28] sm:$0xf]
      %v251 = vld [vmem:[%s224 + $0x2c] sm:$0xf]
      %v252 = vld [vmem:[%s224 + $0x30] sm:$0xf]
      %v253 = vld [vmem:[%s224 + $0x34] sm:$0xf]
      %v254 = vld [vmem:[%s224 + $0x38] sm:$0xf]
      %v255 = vld [vmem:[%s224 + $0x3c] sm:$0xf]
      %v256 = vld [vmem:[%s224 + $0x40] sm:$0xf]
      %v257 = vld [vmem:[%s224 + $0x44] sm:$0xf]
      %v258 = vld [vmem:[%s224 + $0x48] sm:$0xf]
      %v259 = vld [vmem:[%s224 + $0x4c] sm:$0xf]
      %v260 = vld [vmem:[%s224 + $0x50] sm:$0xf]
      %v261 = vld [vmem:[%s224 + $0x54] sm:$0xf]
      %v262 = vld [vmem:[%s224 + $0x58] sm:$0xf]
      %v263 = vld [vmem:[%s224 + $0x5c] sm:$0xf]
      %v264 = vld [vmem:[%s224 + $0x60] sm:$0xf]
      %v265 = vld [vmem:[%s224 + $0x64] sm:$0xf]
      %v266 = vld [vmem:[%s224 + $0x68] sm:$0xf]
      %v267 = vld [vmem:[%s224 + $0x6c] sm:$0xf]
      %v268 = vld [vmem:[%s224 + $0x70] sm:$0xf]
      %v269 = vld [vmem:[%s224 + $0x74] sm:$0xf]
      %v270 = vld [vmem:[%s224 + $0x78] sm:$0xf]
      %v271 = vld [vmem:[%s224 + $0x7c] sm:$0xf]
      %v272 = vld [vmem:[%s224 + $0x80] sm:$0xf]
      %v273 = vld [vmem:[%s224 + $0x84] sm:$0xf]
      %v274 = vld [vmem:[%s224 + $0x88] sm:$0xf]
      %v275 = vld [vmem:[%s224 + $0x8c] sm:$0xf]
      %v276 = vld [vmem:[%s224 + $0x90] sm:$0xf]
      %v277 = vld [vmem:[%s224 + $0x94] sm:$0xf]
      %v278 = vld [vmem:[%s224 + $0x98] sm:$0xf]
      %v279 = vld [vmem:[%s224 + $0x9c] sm:$0xf]
      %v280 = vld [vmem:[%s224 + $0xa0] sm:$0xf]
      %v281 = vld [vmem:[%s224 + $0xa4] sm:$0xf]
      %v282 = vld [vmem:[%s224 + $0xa8] sm:$0xf]
      %v283 = vld [vmem:[%s224 + $0xac] sm:$0xf]
      %v284 = vld [vmem:[%s224 + $0xb0] sm:$0xf]
      %v285 = vld [vmem:[%s224 + $0xb4] sm:$0xf]
      %v286 = vld [vmem:[%s224 + $0xb8] sm:$0xf]
      %v287 = vld [vmem:[%s224 + $0xbc] sm:$0xf]
      %v288 = vld [vmem:[%s224 + $0xc0] sm:$0xf]
      %v289 = vld [vmem:[%s224 + $0xc4] sm:$0xf]
      %v290 = vld [vmem:[%s224 + $0xc8] sm:$0xf]
      %v291 = vld [vmem:[%s224 + $0xcc] sm:$0xf]
      %v292 = vld [vmem:[%s224 + $0xd0] sm:$0xf]
      %v293 = vld [vmem:[%s224 + $0xd4] sm:$0xf]
      %v294 = vld [vmem:[%s224 + $0xd8] sm:$0xf]
      %v295 = vld [vmem:[%s224 + $0xdc] sm:$0xf]
      %v296 = vld [vmem:[%s224 + $0xe0] sm:$0xf]
      %v297 = vld [vmem:[%s224 + $0xe4] sm:$0xf]
      %v298 = vld [vmem:[%s224 + $0xe8] sm:$0xf]
      %v299 = vld [vmem:[%s224 + $0xec] sm:$0xf]
      %v300 = vld [vmem:[%s224 + $0xf0] sm:$0xf]
      %v301 = vld [vmem:[%s224 + $0xf4] sm:$0xf]
      %v302 = vld [vmem:[%s224 + $0xf8] sm:$0xf]
      %v303 = vld [vmem:[%s224 + $0xfc] sm:$0xf]
      %v304 = vld [vmem:[%s230] sm:$0xf]
      %v305 = vld [vmem:[%s230 + $0x4] sm:$0xf]
      %v306 = vld [vmem:[%s230 + $0x8] sm:$0xf]
      %v307 = vld [vmem:[%s230 + $0xc] sm:$0xf]
      %v308 = vld [vmem:[%s230 + $0x10] sm:$0xf]
      %v309 = vld [vmem:[%s230 + $0x14] sm:$0xf]
      %v310 = vld [vmem:[%s230 + $0x18] sm:$0xf]
      %v311 = vld [vmem:[%s230 + $0x1c] sm:$0xf]
      %v312 = vld [vmem:[%s230 + $0x20] sm:$0xf]
      %v313 = vld [vmem:[%s230 + $0x24] sm:$0xf]
      %v314 = vld [vmem:[%s230 + $0x28] sm:$0xf]
      %v315 = vld [vmem:[%s230 + $0x2c] sm:$0xf]
      %v316 = vld [vmem:[%s230 + $0x30] sm:$0xf]
      %v317 = vld [vmem:[%s230 + $0x34] sm:$0xf]
      %v318 = vld [vmem:[%s230 + $0x38] sm:$0xf]
      %v319 = vld [vmem:[%s230 + $0x3c] sm:$0xf]
      %v384 = vunpack.c.l.b16 %v240
      %v385 = vunpack.c.l.b16 %v241
      %v386 = vunpack.c.l.b16 %v242
      %v387 = vunpack.c.l.b16 %v243
      %v388 = vunpack.c.l.b16 %v244
      %v389 = vunpack.c.l.b16 %v245
      %v390 = vunpack.c.l.b16 %v246
      %v391 = vunpack.c.l.b16 %v247
      %v392 = vunpack.c.l.b16 %v248
      %v393 = vunpack.c.l.b16 %v249
      %v394 = vunpack.c.l.b16 %v250
      %v395 = vunpack.c.l.b16 %v251
      %v396 = vunpack.c.l.b16 %v252
      %v397 = vunpack.c.l.b16 %v253
      %v398 = vunpack.c.l.b16 %v254
      %v399 = vunpack.c.l.b16 %v255
      %v400 = vunpack.c.l.b16 %v256
      %v401 = vunpack.c.l.b16 %v257
      %v402 = vunpack.c.l.b16 %v258
      %v403 = vunpack.c.l.b16 %v259
      %v404 = vunpack.c.l.b16 %v260
      %v405 = vunpack.c.l.b16 %v261
      %v406 = vunpack.c.l.b16 %v262
      %v407 = vunpack.c.l.b16 %v263
      %v408 = vunpack.c.l.b16 %v264
      %v409 = vunpack.c.l.b16 %v265
      %v410 = vunpack.c.l.b16 %v266
      %v411 = vunpack.c.l.b16 %v267
      %v412 = vunpack.c.l.b16 %v268
      %v413 = vunpack.c.l.b16 %v269
      %v414 = vunpack.c.l.b16 %v270
      %v415 = vunpack.c.l.b16 %v271
      %v416 = vunpack.c.l.b16 %v272
      %v417 = vunpack.c.l.b16 %v273
      %v418 = vunpack.c.l.b16 %v274
      %v419 = vunpack.c.l.b16 %v275
      %v420 = vunpack.c.l.b16 %v276
      %v421 = vunpack.c.l.b16 %v277
      %v422 = vunpack.c.l.b16 %v278
      %v423 = vunpack.c.l.b16 %v279
      %v424 = vunpack.c.l.b16 %v280
      %v425 = vunpack.c.l.b16 %v281
      %v426 = vunpack.c.l.b16 %v282
      %v427 = vunpack.c.l.b16 %v283
      %v428 = vunpack.c.l.b16 %v284
      %v429 = vunpack.c.l.b16 %v285
      %v430 = vunpack.c.l.b16 %v286
      %v431 = vunpack.c.l.b16 %v287
      %v432 = vunpack.c.l.b16 %v288
      %v433 = vunpack.c.l.b16 %v289
      %v434 = vunpack.c.l.b16 %v290
      %v435 = vunpack.c.l.b16 %v291
      %v436 = vunpack.c.l.b16 %v292
      %v437 = vunpack.c.l.b16 %v293
      %v438 = vunpack.c.l.b16 %v294
      %v439 = vunpack.c.l.b16 %v295
      %v440 = vunpack.c.l.b16 %v296
      %v441 = vunpack.c.l.b16 %v297
      %v442 = vunpack.c.l.b16 %v298
      %v443 = vunpack.c.l.b16 %v299
      %v444 = vunpack.c.l.b16 %v300
      %v445 = vunpack.c.l.b16 %v301
      %v446 = vunpack.c.l.b16 %v302
      %v447 = vunpack.c.l.b16 %v303
      %v448 = vpack.c.b16 %v385, %v384
      %v449 = vpack.c.b16 %v387, %v386
      %v450 = vpack.c.b16 %v389, %v388
      %v451 = vpack.c.b16 %v391, %v390
      %v452 = vpack.c.b16 %v393, %v392
      %v453 = vpack.c.b16 %v395, %v394
      %v454 = vpack.c.b16 %v397, %v396
      %v455 = vpack.c.b16 %v399, %v398
      %v456 = vpack.c.b16 %v401, %v400
      %v457 = vpack.c.b16 %v403, %v402
      %v458 = vpack.c.b16 %v405, %v404
      %v459 = vpack.c.b16 %v407, %v406
      %v460 = vpack.c.b16 %v409, %v408
      %v461 = vpack.c.b16 %v411, %v410
      %v462 = vpack.c.b16 %v413, %v412
      %v463 = vpack.c.b16 %v415, %v414
      %v464 = vpack.c.b16 %v417, %v416
      %v465 = vpack.c.b16 %v419, %v418
      %v466 = vpack.c.b16 %v421, %v420
      %v467 = vpack.c.b16 %v423, %v422
      %v468 = vpack.c.b16 %v425, %v424
      %v469 = vpack.c.b16 %v427, %v426
      %v470 = vpack.c.b16 %v429, %v428
      %v471 = vpack.c.b16 %v431, %v430
      %v472 = vpack.c.b16 %v433, %v432
      %v473 = vpack.c.b16 %v435, %v434
      %v474 = vpack.c.b16 %v437, %v436
      %v475 = vpack.c.b16 %v439, %v438
      %v476 = vpack.c.b16 %v441, %v440
      %v477 = vpack.c.b16 %v443, %v442
      %v478 = vpack.c.b16 %v445, %v444
      %v479 = vpack.c.b16 %v447, %v446
      %v528 = vunpack.c.l.b16 %v304
      %v529 = vunpack.c.l.b16 %v305
      %v530 = vunpack.c.l.b16 %v306
      %v531 = vunpack.c.l.b16 %v307
      %v532 = vunpack.c.l.b16 %v308
      %v533 = vunpack.c.l.b16 %v309
      %v534 = vunpack.c.l.b16 %v310
      %v535 = vunpack.c.l.b16 %v311
      %v536 = vunpack.c.l.b16 %v312
      %v537 = vunpack.c.l.b16 %v313
      %v538 = vunpack.c.l.b16 %v314
      %v539 = vunpack.c.l.b16 %v315
      %v540 = vunpack.c.l.b16 %v316
      %v541 = vunpack.c.l.b16 %v317
      %v542 = vunpack.c.l.b16 %v318
      %v543 = vunpack.c.l.b16 %v319
      %v544 = vpack.c.b16 %v529, %v528
      %v545 = vpack.c.b16 %v531, %v530
      %v546 = vpack.c.b16 %v533, %v532
      %v547 = vpack.c.b16 %v535, %v534
      %v548 = vpack.c.b16 %v537, %v536
      %v549 = vpack.c.b16 %v539, %v538
      %v550 = vpack.c.b16 %v541, %v540
      %v551 = vpack.c.b16 %v543, %v542
      %560 = vmatprep.subr.bf16.mxu0 0
      %561 = vmatpush1.bf16.msra.mxu0 %v544
      %562 = vmatprep.subr.bf16.mxu0 0
      %563 = vmatpush1.bf16.msra.mxu0 %v545
      %564 = vmatprep.subr.bf16.mxu0 0
      %565 = vmatpush1.bf16.msra.mxu0 %v546
      %566 = vmatprep.subr.bf16.mxu0 0
      %567 = vmatpush1.bf16.msra.mxu0 %v547
      %568 = vmatprep.subr.bf16.mxu0 0
      %569 = vmatpush1.bf16.msra.mxu0 %v548
      %570 = vmatprep.subr.bf16.mxu0 0
      %571 = vmatpush1.bf16.msra.mxu0 %v549
      %572 = vmatprep.subr.bf16.mxu0 0
      %573 = vmatpush1.bf16.msra.mxu0 %v550
      %574 = vmatprep.subr.bf16.mxu0 0
      %575 = vmatpush1.bf16.msra.mxu0 %v551
      %576 = vmatprep.subr.bf16.mxu0 0
      %577 = vmatpush1.bf16.msra.mxu0 0
      %578 = vmatprep.subr.bf16.mxu0 0
      %579 = vmatpush1.bf16.msra.mxu0 0
      %580 = vmatprep.subr.bf16.mxu0 0
      %581 = vmatpush1.bf16.msra.mxu0 0
      %582 = vmatprep.subr.bf16.mxu0 0
      %583 = vmatpush1.bf16.msra.mxu0 0
      %584 = vmatprep.subr.bf16.mxu0 0
      %585 = vmatpush1.bf16.msra.mxu0 0
      %586 = vmatprep.subr.bf16.mxu0 0
      %587 = vmatpush1.bf16.msra.mxu0 0
      %588 = vmatprep.subr.bf16.mxu0 0
      %589 = vmatpush1.bf16.msra.mxu0 0
      %590 = vmatprep.subr.bf16.mxu0 0
      %591 = vmatpush1.bf16.msra.mxu0 0
      %592 = vmatprep.mubr.bf16.mxu0 0
      %593 = vmatmul.mubr.bf16.gmra.mrb[0].mxu0 %v448
      %v594 = vpop.f32.mrb[0].mxu0
      %v595 = vadd.f32 0.0, %v594
      %v596 = vpop.f32.mrb[0].mxu0
      %v597 = vpop.f32.mrb[0].mxu0
      %v598 = vadd.f32 0.0, %v597
      %v599 = vpop.f32.mrb[0].mxu0
      %600 = vmatprep.mubr.bf16.mxu0 0
      %601 = vmatmul.mubr.bf16.gmra.mrb[0].mxu0 %v449
      %v602 = vpop.f32.mrb[0].mxu0
      %v603 = vadd.f32 0.0, %v602
      %v604 = vpop.f32.mrb[0].mxu0
      %v605 = vpop.f32.mrb[0].mxu0
      %v606 = vadd.f32 0.0, %v605
      %v607 = vpop.f32.mrb[0].mxu0
      %608 = vmatprep.mubr.bf16.mxu0 0
      %609 = vmatmul.mubr.bf16.gmra.mrb[0].mxu0 %v450
      %v610 = vpop.f32.mrb[0].mxu0
      %v611 = vadd.f32 0.0, %v610
      %v612 = vpop.f32.mrb[0].mxu0
      %v613 = vpop.f32.mrb[0].mxu0
      %v614 = vadd.f32 0.0, %v613
      %v615 = vpop.f32.mrb[0].mxu0
      %616 = vmatprep.mubr.bf16.mxu0 0
      %617 = vmatmul.mubr.bf16.gmra.mrb[0].mxu0 %v451
      %v618 = vpop.f32.mrb[0].mxu0
      %v619 = vadd.f32 0.0, %v618
      %v620 = vpop.f32.mrb[0].mxu0
      %v621 = vpop.f32.mrb[0].mxu0
      %v622 = vadd.f32 0.0, %v621
      %v623 = vpop.f32.mrb[0].mxu0
      %624 = vmatprep.mubr.bf16.mxu0 0
      %625 = vmatmul.mubr.bf16.gmra.mrb[0].mxu0 %v452
      %v626 = vpop.f32.mrb[0].mxu0
      %v627 = vadd.f32 0.0, %v626
      %v628 = vpop.f32.mrb[0].mxu0
      %v629 = vpop.f32.mrb[0].mxu0
      %v630 = vadd.f32 0.0, %v629
      %v631 = vpop.f32.mrb[0].mxu0
      %632 = vmatprep.mubr.bf16.mxu0 0
      %633 = vmatmul.mubr.bf16.gmra.mrb[0].mxu0 %v453
      %v634 = vpop.f32.mrb[0].mxu0
      %v635 = vadd.f32 0.0, %v634
      %v636 = vpop.f32.mrb[0].mxu0
      %v637 = vpop.f32.mrb[0].mxu0
      %v638 = vadd.f32 0.0, %v637
      %v639 = vpop.f32.mrb[0].mxu0
      %640 = vmatprep.mubr.bf16.mxu0 0
      %641 = vmatmul.mubr.bf16.gmra.mrb[0].mxu0 %v454
      %v642 = vpop.f32.mrb[0].mxu0
      %v643 = vadd.f32 0.0, %v642
      %v644 = vpop.f32.mrb[0].mxu0
      %v645 = vpop.f32.mrb[0].mxu0
      %v646 = vadd.f32 0.0, %v645
      %v647 = vpop.f32.mrb[0].mxu0
      %648 = vmatprep.mubr.bf16.mxu0 0
      %649 = vmatmul.mubr.bf16.gmra.mrb[0].mxu0 %v455
      %v650 = vpop.f32.mrb[0].mxu0
      %v651 = vadd.f32 0.0, %v650
      %v652 = vpop.f32.mrb[0].mxu0
      %v653 = vpop.f32.mrb[0].mxu0
      %v654 = vadd.f32 0.0, %v653
      %v655 = vpop.f32.mrb[0].mxu0
      %656 = vmatprep.mubr.bf16.mxu0 0
      %657 = vmatmul.mubr.bf16.gmra.mrb[0].mxu0 %v456
      %v658 = vpop.f32.mrb[0].mxu0
      %v659 = vadd.f32 0.0, %v658
      %v660 = vpop.f32.mrb[0].mxu0
      %v661 = vpop.f32.mrb[0].mxu0
      %v662 = vadd.f32 0.0, %v661
      %v663 = vpop.f32.mrb[0].mxu0
      %664 = vmatprep.mubr.bf16.mxu0 0
      %665 = vmatmul.mubr.bf16.gmra.mrb[0].mxu0 %v457
      %v666 = vpop.f32.mrb[0].mxu0
      %v667 = vadd.f32 0.0, %v666
      %v668 = vpop.f32.mrb[0].mxu0
      %v669 = vpop.f32.mrb[0].mxu0
      %v670 = vadd.f32 0.0, %v669
      %v671 = vpop.f32.mrb[0].mxu0
      %672 = vmatprep.mubr.bf16.mxu0 0
      %673 = vmatmul.mubr.bf16.gmra.mrb[0].mxu0 %v458
      %v674 = vpop.f32.mrb[0].mxu0
      %v675 = vadd.f32 0.0, %v674
      %v676 = vpop.f32.mrb[0].mxu0
      %v677 = vpop.f32.mrb[0].mxu0
      %v678 = vadd.f32 0.0, %v677
      %v679 = vpop.f32.mrb[0].mxu0
      %680 = vmatprep.mubr.bf16.mxu0 0
      %681 = vmatmul.mubr.bf16.gmra.mrb[0].mxu0 %v459
      %v682 = vpop.f32.mrb[0].mxu0
      %v683 = vadd.f32 0.0, %v682
      %v684 = vpop.f32.mrb[0].mxu0
      %v685 = vpop.f32.mrb[0].mxu0
      %v686 = vadd.f32 0.0, %v685
      %v687 = vpop.f32.mrb[0].mxu0
      %688 = vmatprep.mubr.bf16.mxu0 0
      %689 = vmatmul.mubr.bf16.gmra.mrb[0].mxu0 %v460
      %v690 = vpop.f32.mrb[0].mxu0
      %v691 = vadd.f32 0.0, %v690
      %v692 = vpop.f32.mrb[0].mxu0
      %v693 = vpop.f32.mrb[0].mxu0
      %v694 = vadd.f32 0.0, %v693
      %v695 = vpop.f32.mrb[0].mxu0
      %696 = vmatprep.mubr.bf16.mxu0 0
      %697 = vmatmul.mubr.bf16.gmra.mrb[0].mxu0 %v461
      %v698 = vpop.f32.mrb[0].mxu0
      %v699 = vadd.f32 0.0, %v698
      %v700 = vpop.f32.mrb[0].mxu0
      %v701 = vpop.f32.mrb[0].mxu0
      %v702 = vadd.f32 0.0, %v701
      %v703 = vpop.f32.mrb[0].mxu0
      %704 = vmatprep.mubr.bf16.mxu0 0
      %705 = vmatmul.mubr.bf16.gmra.mrb[0].mxu0 %v462
      %v706 = vpop.f32.mrb[0].mxu0
      %v707 = vadd.f32 0.0, %v706
      %v708 = vpop.f32.mrb[0].mxu0
      %v709 = vpop.f32.mrb[0].mxu0
      %v710 = vadd.f32 0.0, %v709
      %v711 = vpop.f32.mrb[0].mxu0
      %712 = vmatprep.mubr.bf16.mxu0 0
      %713 = vmatmul.mubr.bf16.gmra.mrb[0].mxu0 %v463
      %v714 = vpop.f32.mrb[0].mxu0
      %v715 = vadd.f32 0.0, %v714
      %v716 = vpop.f32.mrb[0].mxu0
      %v717 = vpop.f32.mrb[0].mxu0
      %v718 = vadd.f32 0.0, %v717
      %v719 = vpop.f32.mrb[0].mxu0
      %720 = vmatprep.mubr.bf16.mxu0 0
      %721 = vmatmul.mubr.bf16.gmra.mrb[0].mxu0 %v464
      %v722 = vpop.f32.mrb[0].mxu0
      %v723 = vadd.f32 0.0, %v722
      %v724 = vpop.f32.mrb[0].mxu0
      %v725 = vpop.f32.mrb[0].mxu0
      %v726 = vadd.f32 0.0, %v725
      %v727 = vpop.f32.mrb[0].mxu0
      %728 = vmatprep.mubr.bf16.mxu0 0
      %729 = vmatmul.mubr.bf16.gmra.mrb[0].mxu0 %v465
      %v730 = vpop.f32.mrb[0].mxu0
      %v731 = vadd.f32 0.0, %v730
      %v732 = vpop.f32.mrb[0].mxu0
      %v733 = vpop.f32.mrb[0].mxu0
      %v734 = vadd.f32 0.0, %v733
      %v735 = vpop.f32.mrb[0].mxu0
      %736 = vmatprep.mubr.bf16.mxu0 0
      %737 = vmatmul.mubr.bf16.gmra.mrb[0].mxu0 %v466
      %v738 = vpop.f32.mrb[0].mxu0
      %v739 = vadd.f32 0.0, %v738
      %v740 = vpop.f32.mrb[0].mxu0
      %v741 = vpop.f32.mrb[0].mxu0
      %v742 = vadd.f32 0.0, %v741
      %v743 = vpop.f32.mrb[0].mxu0
      %744 = vmatprep.mubr.bf16.mxu0 0
      %745 = vmatmul.mubr.bf16.gmra.mrb[0].mxu0 %v467
      %v746 = vpop.f32.mrb[0].mxu0
      %v747 = vadd.f32 0.0, %v746
      %v748 = vpop.f32.mrb[0].mxu0
      %v749 = vpop.f32.mrb[0].mxu0
      %v750 = vadd.f32 0.0, %v749
      %v751 = vpop.f32.mrb[0].mxu0
      %752 = vmatprep.mubr.bf16.mxu0 0
      %753 = vmatmul.mubr.bf16.gmra.mrb[0].mxu0 %v468
      %v754 = vpop.f32.mrb[0].mxu0
      %v755 = vadd.f32 0.0, %v754
      %v756 = vpop.f32.mrb[0].mxu0
      %v757 = vpop.f32.mrb[0].mxu0
      %v758 = vadd.f32 0.0, %v757
      %v759 = vpop.f32.mrb[0].mxu0
      %760 = vmatprep.mubr.bf16.mxu0 0
      %761 = vmatmul.mubr.bf16.gmra.mrb[0].mxu0 %v469
      %v762 = vpop.f32.mrb[0].mxu0
      %v763 = vadd.f32 0.0, %v762
      %v764 = vpop.f32.mrb[0].mxu0
      %v765 = vpop.f32.mrb[0].mxu0
      %v766 = vadd.f32 0.0, %v765
      %v767 = vpop.f32.mrb[0].mxu0
      %768 = vmatprep.mubr.bf16.mxu0 0
      %769 = vmatmul.mubr.bf16.gmra.mrb[0].mxu0 %v470
      %v770 = vpop.f32.mrb[0].mxu0
      %v771 = vadd.f32 0.0, %v770
      %v772 = vpop.f32.mrb[0].mxu0
      %v773 = vpop.f32.mrb[0].mxu0
      %v774 = vadd.f32 0.0, %v773
      %v775 = vpop.f32.mrb[0].mxu0
      %776 = vmatprep.mubr.bf16.mxu0 0
      %777 = vmatmul.mubr.bf16.gmra.mrb[0].mxu0 %v471
      %v778 = vpop.f32.mrb[0].mxu0
      %v779 = vadd.f32 0.0, %v778
      %v780 = vpop.f32.mrb[0].mxu0
      %v781 = vpop.f32.mrb[0].mxu0
      %v782 = vadd.f32 0.0, %v781
      %v783 = vpop.f32.mrb[0].mxu0
      %784 = vmatprep.mubr.bf16.mxu0 0
      %785 = vmatmul.mubr.bf16.gmra.mrb[0].mxu0 %v472
      %v786 = vpop.f32.mrb[0].mxu0
      %v787 = vadd.f32 0.0, %v786
      %v788 = vpop.f32.mrb[0].mxu0
      %v789 = vpop.f32.mrb[0].mxu0
      %v790 = vadd.f32 0.0, %v789
      %v791 = vpop.f32.mrb[0].mxu0
      %792 = vmatprep.mubr.bf16.mxu0 0
      %793 = vmatmul.mubr.bf16.gmra.mrb[0].mxu0 %v473
      %v794 = vpop.f32.mrb[0].mxu0
      %v795 = vadd.f32 0.0, %v794
      %v796 = vpop.f32.mrb[0].mxu0
      %v797 = vpop.f32.mrb[0].mxu0
      %v798 = vadd.f32 0.0, %v797
      %v799 = vpop.f32.mrb[0].mxu0
      %800 = vmatprep.mubr.bf16.mxu0 0
      %801 = vmatmul.mubr.bf16.gmra.mrb[0].mxu0 %v474
      %v802 = vpop.f32.mrb[0].mxu0
      %v803 = vadd.f32 0.0, %v802
      %v804 = vpop.f32.mrb[0].mxu0
      %v805 = vpop.f32.mrb[0].mxu0
      %v806 = vadd.f32 0.0, %v805
      %v807 = vpop.f32.mrb[0].mxu0
      %808 = vmatprep.mubr.bf16.mxu0 0
      %809 = vmatmul.mubr.bf16.gmra.mrb[0].mxu0 %v475
      %v810 = vpop.f32.mrb[0].mxu0
      %v811 = vadd.f32 0.0, %v810
      %v812 = vpop.f32.mrb[0].mxu0
      %v813 = vpop.f32.mrb[0].mxu0
      %v814 = vadd.f32 0.0, %v813
      %v815 = vpop.f32.mrb[0].mxu0
      %816 = vmatprep.mubr.bf16.mxu0 0
      %817 = vmatmul.mubr.bf16.gmra.mrb[0].mxu0 %v476
      %v818 = vpop.f32.mrb[0].mxu0
      %v819 = vadd.f32 0.0, %v818
      %v820 = vpop.f32.mrb[0].mxu0
      %v821 = vpop.f32.mrb[0].mxu0
      %v822 = vadd.f32 0.0, %v821
      %v823 = vpop.f32.mrb[0].mxu0
      %824 = vmatprep.mubr.bf16.mxu0 0
      %825 = vmatmul.mubr.bf16.gmra.mrb[0].mxu0 %v477
      %v826 = vpop.f32.mrb[0].mxu0
      %v827 = vadd.f32 0.0, %v826
      %v828 = vpop.f32.mrb[0].mxu0
      %v829 = vpop.f32.mrb[0].mxu0
      %v830 = vadd.f32 0.0, %v829
      %v831 = vpop.f32.mrb[0].mxu0
      %832 = vmatprep.mubr.bf16.mxu0 0
      %833 = vmatmul.mubr.bf16.gmra.mrb[0].mxu0 %v478
      %v834 = vpop.f32.mrb[0].mxu0
      %v835 = vadd.f32 0.0, %v834
      %v836 = vpop.f32.mrb[0].mxu0
      %v837 = vpop.f32.mrb[0].mxu0
      %v838 = vadd.f32 0.0, %v837
      %v839 = vpop.f32.mrb[0].mxu0
      %840 = vmatprep.mubr.bf16.mxu0 0
      %841 = vmatmul.mubr.bf16.gmra.mrb[0].mxu0 %v479
      %v842 = vpop.f32.mrb[0].mxu0
      %v843 = vadd.f32 0.0, %v842
      %v844 = vpop.f32.mrb[0].mxu0
      %v845 = vpop.f32.mrb[0].mxu0
      %v846 = vadd.f32 0.0, %v845
      %v847 = vpop.f32.mrb[0].mxu0
      %848 = vdwg.mxu0
      %s849 = sadd.s32 %s19, %s20
      %s850 = smul.u32 %s849, 512
      %s851 = scalar_lea.vmem [#allocation2], %s850
      %852 = vst [vmem:[%s851] sm:$0xff] %v595
      %853 = vst [vmem:[%s851 + $0x8] sm:$0xff] %v598
      %854 = vst [vmem:[%s851 + $0x10] sm:$0xff] %v603
      %855 = vst [vmem:[%s851 + $0x18] sm:$0xff] %v606
      %856 = vst [vmem:[%s851 + $0x20] sm:$0xff] %v611
      %857 = vst [vmem:[%s851 + $0x28] sm:$0xff] %v614
      %858 = vst [vmem:[%s851 + $0x30] sm:$0xff] %v619
      %859 = vst [vmem:[%s851 + $0x38] sm:$0xff] %v622
      %860 = vst [vmem:[%s851 + $0x40] sm:$0xff] %v627
      %861 = vst [vmem:[%s851 + $0x48] sm:$0xff] %v630
      %862 = vst [vmem:[%s851 + $0x50] sm:$0xff] %v635
      %863 = vst [vmem:[%s851 + $0x58] sm:$0xff] %v638
      %864 = vst [vmem:[%s851 + $0x60] sm:$0xff] %v643
      %865 = vst [vmem:[%s851 + $0x68] sm:$0xff] %v646
      %866 = vst [vmem:[%s851 + $0x70] sm:$0xff] %v651
      %867 = vst [vmem:[%s851 + $0x78] sm:$0xff] %v654
      %868 = vst [vmem:[%s851 + $0x80] sm:$0xff] %v659
      %869 = vst [vmem:[%s851 + $0x88] sm:$0xff] %v662
      %870 = vst [vmem:[%s851 + $0x90] sm:$0xff] %v667
      %871 = vst [vmem:[%s851 + $0x98] sm:$0xff] %v670
      %872 = vst [vmem:[%s851 + $0xa0] sm:$0xff] %v675
      %873 = vst [vmem:[%s851 + $0xa8] sm:$0xff] %v678
      %874 = vst [vmem:[%s851 + $0xb0] sm:$0xff] %v683
      %875 = vst [vmem:[%s851 + $0xb8] sm:$0xff] %v686
      %876 = vst [vmem:[%s851 + $0xc0] sm:$0xff] %v691
      %877 = vst [vmem:[%s851 + $0xc8] sm:$0xff] %v694
      %878 = vst [vmem:[%s851 + $0xd0] sm:$0xff] %v699
      %879 = vst [vmem:[%s851 + $0xd8] sm:$0xff] %v702
      %880 = vst [vmem:[%s851 + $0xe0] sm:$0xff] %v707
      %881 = vst [vmem:[%s851 + $0xe8] sm:$0xff] %v710
      %882 = vst [vmem:[%s851 + $0xf0] sm:$0xff] %v715
      %883 = vst [vmem:[%s851 + $0xf8] sm:$0xff] %v718
      %884 = vst [vmem:[%s851 + $0x100] sm:$0xff] %v723
      %885 = vst [vmem:[%s851 + $0x108] sm:$0xff] %v726
      %886 = vst [vmem:[%s851 + $0x110] sm:$0xff] %v731
      %887 = vst [vmem:[%s851 + $0x118] sm:$0xff] %v734
      %888 = vst [vmem:[%s851 + $0x120] sm:$0xff] %v739
      %889 = vst [vmem:[%s851 + $0x128] sm:$0xff] %v742
      %890 = vst [vmem:[%s851 + $0x130] sm:$0xff] %v747
      %891 = vst [vmem:[%s851 + $0x138] sm:$0xff] %v750
      %892 = vst [vmem:[%s851 + $0x140] sm:$0xff] %v755
      %893 = vst [vmem:[%s851 + $0x148] sm:$0xff] %v758
      %894 = vst [vmem:[%s851 + $0x150] sm:$0xff] %v763
      %895 = vst [vmem:[%s851 + $0x158] sm:$0xff] %v766
      %896 = vst [vmem:[%s851 + $0x160] sm:$0xff] %v771
      %897 = vst [vmem:[%s851 + $0x168] sm:$0xff] %v774
      %898 = vst [vmem:[%s851 + $0x170] sm:$0xff] %v779
      %899 = vst [vmem:[%s851 + $0x178] sm:$0xff] %v782
      %900 = vst [vmem:[%s851 + $0x180] sm:$0xff] %v787
      %901 = vst [vmem:[%s851 + $0x188] sm:$0xff] %v790
      %902 = vst [vmem:[%s851 + $0x190] sm:$0xff] %v795
      %903 = vst [vmem:[%s851 + $0x198] sm:$0xff] %v798
      %904 = vst [vmem:[%s851 + $0x1a0] sm:$0xff] %v803
      %905 = vst [vmem:[%s851 + $0x1a8] sm:$0xff] %v806
      %906 = vst [vmem:[%s851 + $0x1b0] sm:$0xff] %v811
      %907 = vst [vmem:[%s851 + $0x1b8] sm:$0xff] %v814
      %908 = vst [vmem:[%s851 + $0x1c0] sm:$0xff] %v819
      %909 = vst [vmem:[%s851 + $0x1c8] sm:$0xff] %v822
      %910 = vst [vmem:[%s851 + $0x1d0] sm:$0xff] %v827
      %911 = vst [vmem:[%s851 + $0x1d8] sm:$0xff] %v830
      %912 = vst [vmem:[%s851 + $0x1e0] sm:$0xff] %v835
      %913 = vst [vmem:[%s851 + $0x1e8] sm:$0xff] %v838
      %914 = vst [vmem:[%s851 + $0x1f0] sm:$0xff] %v843
      %915 = vst [vmem:[%s851 + $0x1f8] sm:$0xff] %v846
      %v916 = vld [vmem:[#allocation3] sm:$0x1]
      %v917 = vadd.f32 %v595, %v598
      %v918 = vadd.f32 %v917, %v603
      %v919 = vadd.f32 %v918, %v606
      %v920 = vadd.f32 %v919, %v611
      %v921 = vadd.f32 %v920, %v614
      %v922 = vadd.f32 %v921, %v619
      %v923 = vadd.f32 %v922, %v622
      %v924 = vadd.f32 %v923, %v627
      %v925 = vadd.f32 %v924, %v630
      %v926 = vadd.f32 %v925, %v635
      %v927 = vadd.f32 %v926, %v638
      %v928 = vadd.f32 %v927, %v643
      %v929 = vadd.f32 %v928, %v646
      %v930 = vadd.f32 %v929, %v651
      %v931 = vadd.f32 %v930, %v654
      %v932 = vadd.f32 %v931, %v659
      %v933 = vadd.f32 %v932, %v662
      %v934 = vadd.f32 %v933, %v667
      %v935 = vadd.f32 %v934, %v670
      %v936 = vadd.f32 %v935, %v675
      %v937 = vadd.f32 %v936, %v678
      %v938 = vadd.f32 %v937, %v683
      %v939 = vadd.f32 %v938, %v686
      %v940 = vadd.f32 %v939, %v691
      %v941 = vadd.f32 %v940, %v694
      %v942 = vadd.f32 %v941, %v699
      %v943 = vadd.f32 %v942, %v702
      %v944 = vadd.f32 %v943, %v707
      %v945 = vadd.f32 %v944, %v710
      %v946 = vadd.f32 %v945, %v715
      %v947 = vadd.f32 %v946, %v718
      %v948 = vadd.f32 %v947, %v723
      %v949 = vadd.f32 %v948, %v726
      %v950 = vadd.f32 %v949, %v731
      %v951 = vadd.f32 %v950, %v734
      %v952 = vadd.f32 %v951, %v739
      %v953 = vadd.f32 %v952, %v742
      %v954 = vadd.f32 %v953, %v747
      %v955 = vadd.f32 %v954, %v750
      %v956 = vadd.f32 %v955, %v755
      %v957 = vadd.f32 %v956, %v758
      %v958 = vadd.f32 %v957, %v763
      %v959 = vadd.f32 %v958, %v766
      %v960 = vadd.f32 %v959, %v771
      %v961 = vadd.f32 %v960, %v774
      %v962 = vadd.f32 %v961, %v779
      %v963 = vadd.f32 %v962, %v782
      %v964 = vadd.f32 %v963, %v787
      %v965 = vadd.f32 %v964, %v790
      %v966 = vadd.f32 %v965, %v795
      %v967 = vadd.f32 %v966, %v798
      %v968 = vadd.f32 %v967, %v803
      %v969 = vadd.f32 %v968, %v806
      %v970 = vadd.f32 %v969, %v811
      %v971 = vadd.f32 %v970, %v814
      %v972 = vadd.f32 %v971, %v819
      %v973 = vadd.f32 %v972, %v822
      %v974 = vadd.f32 %v973, %v827
      %v975 = vadd.f32 %v974, %v830
      %v976 = vadd.f32 %v975, %v835
      %v977 = vadd.f32 %v976, %v838
      %v978 = vadd.f32 %v977, %v843
      %v979 = vadd.f32 %v978, %v846
      %v980 = vrot.slane %v979, 4
      %v981 = vadd.f32 %v979, %v980
      %v982 = vrot.slane %v981, 2
      %v983 = vadd.f32 %v981, %v982
      %v984 = vrot.slane %v983, 1
      %v985 = vadd.f32 %v983, %v984
      %v986 = vadd.f32 %v916, %v985
      %987 = vst [vmem:[#allocation3] sm:$0x1] %v986
      %v988 = vld [vmem:[#allocation4] sm:$0x1]
      %v989 = vmul.f32 %v595, %v595
      %v990 = vmul.f32 %v598, %v598
      %v991 = vmul.f32 %v603, %v603
      %v992 = vmul.f32 %v606, %v606
      %v993 = vmul.f32 %v611, %v611
      %v994 = vmul.f32 %v614, %v614
      %v995 = vmul.f32 %v619, %v619
      %v996 = vmul.f32 %v622, %v622
      %v997 = vmul.f32 %v627, %v627
      %v998 = vmul.f32 %v630, %v630
      %v999 = vmul.f32 %v635, %v635
      %v1000 = vmul.f32 %v638, %v638
      %v1001 = vmul.f32 %v643, %v643
      %v1002 = vmul.f32 %v646, %v646
      %v1003 = vmul.f32 %v651, %v651
      %v1004 = vmul.f32 %v654, %v654
      %v1005 = vmul.f32 %v659, %v659
      %v1006 = vmul.f32 %v662, %v662
      %v1007 = vmul.f32 %v667, %v667
      %v1008 = vmul.f32 %v670, %v670
      %v1009 = vmul.f32 %v675, %v675
      %v1010 = vmul.f32 %v678, %v678
      %v1011 = vmul.f32 %v683, %v683
      %v1012 = vmul.f32 %v686, %v686
      %v1013 = vmul.f32 %v691, %v691
      %v1014 = vmul.f32 %v694, %v694
      %v1015 = vmul.f32 %v699, %v699
      %v1016 = vmul.f32 %v702, %v702
      %v1017 = vmul.f32 %v707, %v707
      %v1018 = vmul.f32 %v710, %v710
      %v1019 = vmul.f32 %v715, %v715
      %v1020 = vmul.f32 %v718, %v718
      %v1021 = vmul.f32 %v723, %v723
      %v1022 = vmul.f32 %v726, %v726
      %v1023 = vmul.f32 %v731, %v731
      %v1024 = vmul.f32 %v734, %v734
      %v1025 = vmul.f32 %v739, %v739
      %v1026 = vmul.f32 %v742, %v742
      %v1027 = vmul.f32 %v747, %v747
      %v1028 = vmul.f32 %v750, %v750
      %v1029 = vmul.f32 %v755, %v755
      %v1030 = vmul.f32 %v758, %v758
      %v1031 = vmul.f32 %v763, %v763
      %v1032 = vmul.f32 %v766, %v766
      %v1033 = vmul.f32 %v771, %v771
      %v1034 = vmul.f32 %v774, %v774
      %v1035 = vmul.f32 %v779, %v779
      %v1036 = vmul.f32 %v782, %v782
      %v1037 = vmul.f32 %v787, %v787
      %v1038 = vmul.f32 %v790, %v790
      %v1039 = vmul.f32 %v795, %v795
      %v1040 = vmul.f32 %v798, %v798
      %v1041 = vmul.f32 %v803, %v803
      %v1042 = vmul.f32 %v806, %v806
      %v1043 = vmul.f32 %v811, %v811
      %v1044 = vmul.f32 %v814, %v814
      %v1045 = vmul.f32 %v819, %v819
      %v1046 = vmul.f32 %v822, %v822
      %v1047 = vmul.f32 %v827, %v827
      %v1048 = vmul.f32 %v830, %v830
      %v1049 = vmul.f32 %v835, %v835
      %v1050 = vmul.f32 %v838, %v838
      %v1051 = vmul.f32 %v843, %v843
      %v1052 = vmul.f32 %v846, %v846
      %v1053 = vadd.f32 %v989, %v990
      %v1054 = vadd.f32 %v1053, %v991
      %v1055 = vadd.f32 %v1054, %v992
      %v1056 = vadd.f32 %v1055, %v993
      %v1057 = vadd.f32 %v1056, %v994
      %v1058 = vadd.f32 %v1057, %v995
      %v1059 = vadd.f32 %v1058, %v996
      %v1060 = vadd.f32 %v1059, %v997
      %v1061 = vadd.f32 %v1060, %v998
      %v1062 = vadd.f32 %v1061, %v999
      %v1063 = vadd.f32 %v1062, %v1000
      %v1064 = vadd.f32 %v1063, %v1001
      %v1065 = vadd.f32 %v1064, %v1002
      %v1066 = vadd.f32 %v1065, %v1003
      %v1067 = vadd.f32 %v1066, %v1004
      %v1068 = vadd.f32 %v1067, %v1005
      %v1069 = vadd.f32 %v1068, %v1006
      %v1070 = vadd.f32 %v1069, %v1007
      %v1071 = vadd.f32 %v1070, %v1008
      %v1072 = vadd.f32 %v1071, %v1009
      %v1073 = vadd.f32 %v1072, %v1010
      %v1074 = vadd.f32 %v1073, %v1011
      %v1075 = vadd.f32 %v1074, %v1012
      %v1076 = vadd.f32 %v1075, %v1013
      %v1077 = vadd.f32 %v1076, %v1014
      %v1078 = vadd.f32 %v1077, %v1015
      %v1079 = vadd.f32 %v1078, %v1016
      %v1080 = vadd.f32 %v1079, %v1017
      %v1081 = vadd.f32 %v1080, %v1018
      %v1082 = vadd.f32 %v1081, %v1019
      %v1083 = vadd.f32 %v1082, %v1020
      %v1084 = vadd.f32 %v1083, %v1021
      %v1085 = vadd.f32 %v1084, %v1022
      %v1086 = vadd.f32 %v1085, %v1023
      %v1087 = vadd.f32 %v1086, %v1024
      %v1088 = vadd.f32 %v1087, %v1025
      %v1089 = vadd.f32 %v1088, %v1026
      %v1090 = vadd.f32 %v1089, %v1027
      %v1091 = vadd.f32 %v1090, %v1028
      %v1092 = vadd.f32 %v1091, %v1029
      %v1093 = vadd.f32 %v1092, %v1030
      %v1094 = vadd.f32 %v1093, %v1031
      %v1095 = vadd.f32 %v1094, %v1032
      %v1096 = vadd.f32 %v1095, %v1033
      %v1097 = vadd.f32 %v1096, %v1034
      %v1098 = vadd.f32 %v1097, %v1035
      %v1099 = vadd.f32 %v1098, %v1036
      %v1100 = vadd.f32 %v1099, %v1037
      %v1101 = vadd.f32 %v1100, %v1038
      %v1102 = vadd.f32 %v1101, %v1039
      %v1103 = vadd.f32 %v1102, %v1040
      %v1104 = vadd.f32 %v1103, %v1041
      %v1105 = vadd.f32 %v1104, %v1042
      %v1106 = vadd.f32 %v1105, %v1043
      %v1107 = vadd.f32 %v1106, %v1044
      %v1108 = vadd.f32 %v1107, %v1045
      %v1109 = vadd.f32 %v1108, %v1046
      %v1110 = vadd.f32 %v1109, %v1047
      %v1111 = vadd.f32 %v1110, %v1048
      %v1112 = vadd.f32 %v1111, %v1049
      %v1113 = vadd.f32 %v1112, %v1050
      %v1114 = vadd.f32 %v1113, %v1051
      %v1115 = vadd.f32 %v1114, %v1052
      %v1116 = vrot.slane %v1115, 4
      %v1117 = vadd.f32 %v1115, %v1116
      %v1118 = vrot.slane %v1117, 2
      %v1119 = vadd.f32 %v1117, %v1118
      %v1120 = vrot.slane %v1119, 1
      %v1121 = vadd.f32 %v1119, %v1120
      %v1122 = vadd.f32 %v988, %v1121
      %1123 = vst [vmem:[#allocation4] sm:$0x1] %v1122
      %p1124 = scmp.eq.s32.totalorder %s19, 3
      %p1125 = pnand %p1124, %p233
      %p1126 = pneg %p1125
      // Predicated region
      $region41: #{egan_generator_64_forward.10} parent=35 // pred_check
        _
      $region42: #{egan_generator_64_forward.10} parent=35 // pred_check_branch
        %1128 = sbr.rel (%p1125) target = $region44
      $region43: #{egan_generator_64_forward.10} parent=35 // pred_region
        %v1129 = vld [vmem:[#allocation3] sm:$0x1]
        %v1130 = vmul.f32 %v1129, 0.00048828125
        %v1131 = vld [vmem:[#allocation4] sm:$0x1]
        %v1132 = vmul.f32 %v1131, 0.00048828125
        %v1133 = vmul.f32 %v1130, %v1130
        %v1134 = vsub.f32 %v1132, %v1133
        %v1135 = vmax.f32 %v1134, 0.0
        %v1136 = vld [vmem:[%s2] sm:$0x1]
        %v1137 = vadd.f32 %v1135, 1e-05
        %v1138 = vrsqrt.pop %v1137
        %v1139 = vmul.f32 %v1136, %v1138
        %v1140 = vld [vmem:[%s3] sm:$0x1]
        %v1141 = vmul.f32 %v1130, %v1139
        %v1142 = vsub.f32 %v1140, %v1141
        %v1143 = vld [vmem:[#allocation2] sm:$0xff]
        %v1144 = vld [vmem:[#allocation2 + $0x8] sm:$0xff]
        %v1145 = vld [vmem:[#allocation2 + $0x10] sm:$0xff]
        %v1146 = vld [vmem:[#allocation2 + $0x18] sm:$0xff]
        %v1147 = vld [vmem:[#allocation2 + $0x20] sm:$0xff]
        %v1148 = vld [vmem:[#allocation2 + $0x28] sm:$0xff]
        %v1149 = vld [vmem:[#allocation2 + $0x30] sm:$0xff]
        %v1150 = vld [vmem:[#allocation2 + $0x38] sm:$0xff]
        %v1151 = vld [vmem:[#allocation2 + $0x40] sm:$0xff]
        %v1152 = vld [vmem:[#allocation2 + $0x48] sm:$0xff]
        %v1153 = vld [vmem:[#allocation2 + $0x50] sm:$0xff]
        %v1154 = vld [vmem:[#allocation2 + $0x58] sm:$0xff]
        %v1155 = vld [vmem:[#allocation2 + $0x60] sm:$0xff]
        %v1156 = vld [vmem:[#allocation2 + $0x68] sm:$0xff]
        %v1157 = vld [vmem:[#allocation2 + $0x70] sm:$0xff]
        %v1158 = vld [vmem:[#allocation2 + $0x78] sm:$0xff]
        %v1159 = vld [vmem:[#allocation2 + $0x80] sm:$0xff]
        %v1160 = vld [vmem:[#allocation2 + $0x88] sm:$0xff]
        %v1161 = vld [vmem:[#allocation2 + $0x90] sm:$0xff]
        %v1162 = vld [vmem:[#allocation2 + $0x98] sm:$0xff]
        %v1163 = vld [vmem:[#allocation2 + $0xa0] sm:$0xff]
        %v1164 = vld [vmem:[#allocation2 + $0xa8] sm:$0xff]
        %v1165 = vld [vmem:[#allocation2 + $0xb0] sm:$0xff]
        %v1166 = vld [vmem:[#allocation2 + $0xb8] sm:$0xff]
        %v1167 = vld [vmem:[#allocation2 + $0xc0] sm:$0xff]
        %v1168 = vld [vmem:[#allocation2 + $0xc8] sm:$0xff]
        %v1169 = vld [vmem:[#allocation2 + $0xd0] sm:$0xff]
        %v1170 = vld [vmem:[#allocation2 + $0xd8] sm:$0xff]
        %v1171 = vld [vmem:[#allocation2 + $0xe0] sm:$0xff]
        %v1172 = vld [vmem:[#allocation2 + $0xe8] sm:$0xff]
        %v1173 = vld [vmem:[#allocation2 + $0xf0] sm:$0xff]
        %v1174 = vld [vmem:[#allocation2 + $0xf8] sm:$0xff]
        %v1175 = vld [vmem:[#allocation2 + $0x100] sm:$0xff]
        %v1176 = vld [vmem:[#allocation2 + $0x108] sm:$0xff]
        %v1177 = vld [vmem:[#allocation2 + $0x110] sm:$0xff]
        %v1178 = vld [vmem:[#allocation2 + $0x118] sm:$0xff]
        %v1179 = vld [vmem:[#allocation2 + $0x120] sm:$0xff]
        %v1180 = vld [vmem:[#allocation2 + $0x128] sm:$0xff]
        %v1181 = vld [vmem:[#allocation2 + $0x130] sm:$0xff]
        %v1182 = vld [vmem:[#allocation2 + $0x138] sm:$0xff]
        %v1183 = vld [vmem:[#allocation2 + $0x140] sm:$0xff]
        %v1184 = vld [vmem:[#allocation2 + $0x148] sm:$0xff]
        %v1185 = vld [vmem:[#allocation2 + $0x150] sm:$0xff]
        %v1186 = vld [vmem:[#allocation2 + $0x158] sm:$0xff]
        %v1187 = vld [vmem:[#allocation2 + $0x160] sm:$0xff]
        %v1188 = vld [vmem:[#allocation2 + $0x168] sm:$0xff]
        %v1189 = vld [vmem:[#allocation2 + $0x170] sm:$0xff]
        %v1190 = vld [vmem:[#allocation2 + $0x178] sm:$0xff]
        %v1191 = vld [vmem:[#allocation2 + $0x180] sm:$0xff]
        %v1192 = vld [vmem:[#allocation2 + $0x188] sm:$0xff]
        %v1193 = vld [vmem:[#allocation2 + $0x190] sm:$0xff]
        %v1194 = vld [vmem:[#allocation2 + $0x198] sm:$0xff]
        %v1195 = vld [vmem:[#allocation2 + $0x1a0] sm:$0xff]
        %v1196 = vld [vmem:[#allocation2 + $0x1a8] sm:$0xff]
        %v1197 = vld [vmem:[#allocation2 + $0x1b0] sm:$0xff]
        %v1198 = vld [vmem:[#allocation2 + $0x1b8] sm:$0xff]
        %v1199 = vld [vmem:[#allocation2 + $0x1c0] sm:$0xff]
        %v1200 = vld [vmem:[#allocation2 + $0x1c8] sm:$0xff]
        %v1201 = vld [vmem:[#allocation2 + $0x1d0] sm:$0xff]
        %v1202 = vld [vmem:[#allocation2 + $0x1d8] sm:$0xff]
        %v1203 = vld [vmem:[#allocation2 + $0x1e0] sm:$0xff]
        %v1204 = vld [vmem:[#allocation2 + $0x1e8] sm:$0xff]
        %v1205 = vld [vmem:[#allocation2 + $0x1f0] sm:$0xff]
        %v1206 = vld [vmem:[#allocation2 + $0x1f8] sm:$0xff]
        %v1207 = vld [vmem:[#allocation2 + $0x200] sm:$0xff]
        %v1208 = vld [vmem:[#allocation2 + $0x208] sm:$0xff]
        %v1209 = vld [vmem:[#allocation2 + $0x210] sm:$0xff]
        %v1210 = vld [vmem:[#allocation2 + $0x218] sm:$0xff]
        %v1211 = vld [vmem:[#allocation2 + $0x220] sm:$0xff]
        %v1212 = vld [vmem:[#allocation2 + $0x228] sm:$0xff]
        %v1213 = vld [vmem:[#allocation2 + $0x230] sm:$0xff]
        %v1214 = vld [vmem:[#allocation2 + $0x238] sm:$0xff]
        %v1215 = vld [vmem:[#allocation2 + $0x240] sm:$0xff]
        %v1216 = vld [vmem:[#allocation2 + $0x248] sm:$0xff]
        %v1217 = vld [vmem:[#allocation2 + $0x250] sm:$0xff]
        %v1218 = vld [vmem:[#allocation2 + $0x258] sm:$0xff]
        %v1219 = vld [vmem:[#allocation2 + $0x260] sm:$0xff]
        %v1220 = vld [vmem:[#allocation2 + $0x268] sm:$0xff]
        %v1221 = vld [vmem:[#allocation2 + $0x270] sm:$0xff]
        %v1222 = vld [vmem:[#allocation2 + $0x278] sm:$0xff]
        %v1223 = vld [vmem:[#allocation2 + $0x280] sm:$0xff]
        %v1224 = vld [vmem:[#allocation2 + $0x288] sm:$0xff]
        %v1225 = vld [vmem:[#allocation2 + $0x290] sm:$0xff]
        %v1226 = vld [vmem:[#allocation2 + $0x298] sm:$0xff]
        %v1227 = vld [vmem:[#allocation2 + $0x2a0] sm:$0xff]
        %v1228 = vld [vmem:[#allocation2 + $0x2a8] sm:$0xff]
        %v1229 = vld [vmem:[#allocation2 + $0x2b0] sm:$0xff]
        %v1230 = vld [vmem:[#allocation2 + $0x2b8] sm:$0xff]
        %v1231 = vld [vmem:[#allocation2 + $0x2c0] sm:$0xff]
        %v1232 = vld [vmem:[#allocation2 + $0x2c8] sm:$0xff]
        %v1233 = vld [vmem:[#allocation2 + $0x2d0] sm:$0xff]
        %v1234 = vld [vmem:[#allocation2 + $0x2d8] sm:$0xff]
        %v1235 = vld [vmem:[#allocation2 + $0x2e0] sm:$0xff]
        %v1236 = vld [vmem:[#allocation2 + $0x2e8] sm:$0xff]
        %v1237 = vld [vmem:[#allocation2 + $0x2f0] sm:$0xff]
        %v1238 = vld [vmem:[#allocation2 + $0x2f8] sm:$0xff]
        %v1239 = vld [vmem:[#allocation2 + $0x300] sm:$0xff]
        %v1240 = vld [vmem:[#allocation2 + $0x308] sm:$0xff]
        %v1241 = vld [vmem:[#allocation2 + $0x310] sm:$0xff]
        %v1242 = vld [vmem:[#allocation2 + $0x318] sm:$0xff]
        %v1243 = vld [vmem:[#allocation2 + $0x320] sm:$0xff]
        %v1244 = vld [vmem:[#allocation2 + $0x328] sm:$0xff]
        %v1245 = vld [vmem:[#allocation2 + $0x330] sm:$0xff]
        %v1246 = vld [vmem:[#allocation2 + $0x338] sm:$0xff]
        %v1247 = vld [vmem:[#allocation2 + $0x340] sm:$0xff]
        %v1248 = vld [vmem:[#allocation2 + $0x348] sm:$0xff]
        %v1249 = vld [vmem:[#allocation2 + $0x350] sm:$0xff]
        %v1250 = vld [vmem:[#allocation2 + $0x358] sm:$0xff]
        %v1251 = vld [vmem:[#allocation2 + $0x360] sm:$0xff]
        %v1252 = vld [vmem:[#allocation2 + $0x368] sm:$0xff]
        %v1253 = vld [vmem:[#allocation2 + $0x370] sm:$0xff]
        %v1254 = vld [vmem:[#allocation2 + $0x378] sm:$0xff]
        %v1255 = vld [vmem:[#allocation2 + $0x380] sm:$0xff]
        %v1256 = vld [vmem:[#allocation2 + $0x388] sm:$0xff]
        %v1257 = vld [vmem:[#allocation2 + $0x390] sm:$0xff]
        %v1258 = vld [vmem:[#allocation2 + $0x398] sm:$0xff]
        %v1259 = vld [vmem:[#allocation2 + $0x3a0] sm:$0xff]
        %v1260 = vld [vmem:[#allocation2 + $0x3a8] sm:$0xff]
        %v1261 = vld [vmem:[#allocation2 + $0x3b0] sm:$0xff]
        %v1262 = vld [vmem:[#allocation2 + $0x3b8] sm:$0xff]
        %v1263 = vld [vmem:[#allocation2 + $0x3c0] sm:$0xff]
        %v1264 = vld [vmem:[#allocation2 + $0x3c8] sm:$0xff]
        %v1265 = vld [vmem:[#allocation2 + $0x3d0] sm:$0xff]
        %v1266 = vld [vmem:[#allocation2 + $0x3d8] sm:$0xff]
        %v1267 = vld [vmem:[#allocation2 + $0x3e0] sm:$0xff]
        %v1268 = vld [vmem:[#allocation2 + $0x3e8] sm:$0xff]
        %v1269 = vld [vmem:[#allocation2 + $0x3f0] sm:$0xff]
        %v1270 = vld [vmem:[#allocation2 + $0x3f8] sm:$0xff]
        %v1271 = vld [vmem:[#allocation2 + $0x400] sm:$0xff]
        %v1272 = vld [vmem:[#allocation2 + $0x408] sm:$0xff]
        %v1273 = vld [vmem:[#allocation2 + $0x410] sm:$0xff]
        %v1274 = vld [vmem:[#allocation2 + $0x418] sm:$0xff]
        %v1275 = vld [vmem:[#allocation2 + $0x420] sm:$0xff]
        %v1276 = vld [vmem:[#allocation2 + $0x428] sm:$0xff]
        %v1277 = vld [vmem:[#allocation2 + $0x430] sm:$0xff]
        %v1278 = vld [vmem:[#allocation2 + $0x438] sm:$0xff]
        %v1279 = vld [vmem:[#allocation2 + $0x440] sm:$0xff]
        %v1280 = vld [vmem:[#allocation2 + $0x448] sm:$0xff]
        %v1281 = vld [vmem:[#allocation2 + $0x450] sm:$0xff]
        %v1282 = vld [vmem:[#allocation2 + $0x458] sm:$0xff]
        %v1283 = vld [vmem:[#allocation2 + $0x460] sm:$0xff]
        %v1284 = vld [vmem:[#allocation2 + $0x468] sm:$0xff]
        %v1285 = vld [vmem:[#allocation2 + $0x470] sm:$0xff]
        %v1286 = vld [vmem:[#allocation2 + $0x478] sm:$0xff]
        %v1287 = vld [vmem:[#allocation2 + $0x480] sm:$0xff]
        %v1288 = vld [vmem:[#allocation2 + $0x488] sm:$0xff]
        %v1289 = vld [vmem:[#allocation2 + $0x490] sm:$0xff]
        %v1290 = vld [vmem:[#allocation2 + $0x498] sm:$0xff]
        %v1291 = vld [vmem:[#allocation2 + $0x4a0] sm:$0xff]
        %v1292 = vld [vmem:[#allocation2 + $0x4a8] sm:$0xff]
        %v1293 = vld [vmem:[#allocation2 + $0x4b0] sm:$0xff]
        %v1294 = vld [vmem:[#allocation2 + $0x4b8] sm:$0xff]
        %v1295 = vld [vmem:[#allocation2 + $0x4c0] sm:$0xff]
        %v1296 = vld [vmem:[#allocation2 + $0x4c8] sm:$0xff]
        %v1297 = vld [vmem:[#allocation2 + $0x4d0] sm:$0xff]
        %v1298 = vld [vmem:[#allocation2 + $0x4d8] sm:$0xff]
        %v1299 = vld [vmem:[#allocation2 + $0x4e0] sm:$0xff]
        %v1300 = vld [vmem:[#allocation2 + $0x4e8] sm:$0xff]
        %v1301 = vld [vmem:[#allocation2 + $0x4f0] sm:$0xff]
        %v1302 = vld [vmem:[#allocation2 + $0x4f8] sm:$0xff]
        %v1303 = vld [vmem:[#allocation2 + $0x500] sm:$0xff]
        %v1304 = vld [vmem:[#allocation2 + $0x508] sm:$0xff]
        %v1305 = vld [vmem:[#allocation2 + $0x510] sm:$0xff]
        %v1306 = vld [vmem:[#allocation2 + $0x518] sm:$0xff]
        %v1307 = vld [vmem:[#allocation2 + $0x520] sm:$0xff]
        %v1308 = vld [vmem:[#allocation2 + $0x528] sm:$0xff]
        %v1309 = vld [vmem:[#allocation2 + $0x530] sm:$0xff]
        %v1310 = vld [vmem:[#allocation2 + $0x538] sm:$0xff]
        %v1311 = vld [vmem:[#allocation2 + $0x540] sm:$0xff]
        %v1312 = vld [vmem:[#allocation2 + $0x548] sm:$0xff]
        %v1313 = vld [vmem:[#allocation2 + $0x550] sm:$0xff]
        %v1314 = vld [vmem:[#allocation2 + $0x558] sm:$0xff]
        %v1315 = vld [vmem:[#allocation2 + $0x560] sm:$0xff]
        %v1316 = vld [vmem:[#allocation2 + $0x568] sm:$0xff]
        %v1317 = vld [vmem:[#allocation2 + $0x570] sm:$0xff]
        %v1318 = vld [vmem:[#allocation2 + $0x578] sm:$0xff]
        %v1319 = vld [vmem:[#allocation2 + $0x580] sm:$0xff]
        %v1320 = vld [vmem:[#allocation2 + $0x588] sm:$0xff]
        %v1321 = vld [vmem:[#allocation2 + $0x590] sm:$0xff]
        %v1322 = vld [vmem:[#allocation2 + $0x598] sm:$0xff]
        %v1323 = vld [vmem:[#allocation2 + $0x5a0] sm:$0xff]
        %v1324 = vld [vmem:[#allocation2 + $0x5a8] sm:$0xff]
        %v1325 = vld [vmem:[#allocation2 + $0x5b0] sm:$0xff]
        %v1326 = vld [vmem:[#allocation2 + $0x5b8] sm:$0xff]
        %v1327 = vld [vmem:[#allocation2 + $0x5c0] sm:$0xff]
        %v1328 = vld [vmem:[#allocation2 + $0x5c8] sm:$0xff]
        %v1329 = vld [vmem:[#allocation2 + $0x5d0] sm:$0xff]
        %v1330 = vld [vmem:[#allocation2 + $0x5d8] sm:$0xff]
        %v1331 = vld [vmem:[#allocation2 + $0x5e0] sm:$0xff]
        %v1332 = vld [vmem:[#allocation2 + $0x5e8] sm:$0xff]
        %v1333 = vld [vmem:[#allocation2 + $0x5f0] sm:$0xff]
        %v1334 = vld [vmem:[#allocation2 + $0x5f8] sm:$0xff]
        %v1335 = vld [vmem:[#allocation2 + $0x600] sm:$0xff]
        %v1336 = vld [vmem:[#allocation2 + $0x608] sm:$0xff]
        %v1337 = vld [vmem:[#allocation2 + $0x610] sm:$0xff]
        %v1338 = vld [vmem:[#allocation2 + $0x618] sm:$0xff]
        %v1339 = vld [vmem:[#allocation2 + $0x620] sm:$0xff]
        %v1340 = vld [vmem:[#allocation2 + $0x628] sm:$0xff]
        %v1341 = vld [vmem:[#allocation2 + $0x630] sm:$0xff]
        %v1342 = vld [vmem:[#allocation2 + $0x638] sm:$0xff]
        %v1343 = vld [vmem:[#allocation2 + $0x640] sm:$0xff]
        %v1344 = vld [vmem:[#allocation2 + $0x648] sm:$0xff]
        %v1345 = vld [vmem:[#allocation2 + $0x650] sm:$0xff]
        %v1346 = vld [vmem:[#allocation2 + $0x658] sm:$0xff]
        %v1347 = vld [vmem:[#allocation2 + $0x660] sm:$0xff]
        %v1348 = vld [vmem:[#allocation2 + $0x668] sm:$0xff]
        %v1349 = vld [vmem:[#allocation2 + $0x670] sm:$0xff]
        %v1350 = vld [vmem:[#allocation2 + $0x678] sm:$0xff]
        %v1351 = vld [vmem:[#allocation2 + $0x680] sm:$0xff]
        %v1352 = vld [vmem:[#allocation2 + $0x688] sm:$0xff]
        %v1353 = vld [vmem:[#allocation2 + $0x690] sm:$0xff]
        %v1354 = vld [vmem:[#allocation2 + $0x698] sm:$0xff]
        %v1355 = vld [vmem:[#allocation2 + $0x6a0] sm:$0xff]
        %v1356 = vld [vmem:[#allocation2 + $0x6a8] sm:$0xff]
        %v1357 = vld [vmem:[#allocation2 + $0x6b0] sm:$0xff]
        %v1358 = vld [vmem:[#allocation2 + $0x6b8] sm:$0xff]
        %v1359 = vld [vmem:[#allocation2 + $0x6c0] sm:$0xff]
        %v1360 = vld [vmem:[#allocation2 + $0x6c8] sm:$0xff]
        %v1361 = vld [vmem:[#allocation2 + $0x6d0] sm:$0xff]
        %v1362 = vld [vmem:[#allocation2 + $0x6d8] sm:$0xff]
        %v1363 = vld [vmem:[#allocation2 + $0x6e0] sm:$0xff]
        %v1364 = vld [vmem:[#allocation2 + $0x6e8] sm:$0xff]
        %v1365 = vld [vmem:[#allocation2 + $0x6f0] sm:$0xff]
        %v1366 = vld [vmem:[#allocation2 + $0x6f8] sm:$0xff]
        %v1367 = vld [vmem:[#allocation2 + $0x700] sm:$0xff]
        %v1368 = vld [vmem:[#allocation2 + $0x708] sm:$0xff]
        %v1369 = vld [vmem:[#allocation2 + $0x710] sm:$0xff]
        %v1370 = vld [vmem:[#allocation2 + $0x718] sm:$0xff]
        %v1371 = vld [vmem:[#allocation2 + $0x720] sm:$0xff]
        %v1372 = vld [vmem:[#allocation2 + $0x728] sm:$0xff]
        %v1373 = vld [vmem:[#allocation2 + $0x730] sm:$0xff]
        %v1374 = vld [vmem:[#allocation2 + $0x738] sm:$0xff]
        %v1375 = vld [vmem:[#allocation2 + $0x740] sm:$0xff]
        %v1376 = vld [vmem:[#allocation2 + $0x748] sm:$0xff]
        %v1377 = vld [vmem:[#allocation2 + $0x750] sm:$0xff]
        %v1378 = vld [vmem:[#allocation2 + $0x758] sm:$0xff]
        %v1379 = vld [vmem:[#allocation2 + $0x760] sm:$0xff]
        %v1380 = vld [vmem:[#allocation2 + $0x768] sm:$0xff]
        %v1381 = vld [vmem:[#allocation2 + $0x770] sm:$0xff]
        %v1382 = vld [vmem:[#allocation2 + $0x778] sm:$0xff]
        %v1383 = vld [vmem:[#allocation2 + $0x780] sm:$0xff]
        %v1384 = vld [vmem:[#allocation2 + $0x788] sm:$0xff]
        %v1385 = vld [vmem:[#allocation2 + $0x790] sm:$0xff]
        %v1386 = vld [vmem:[#allocation2 + $0x798] sm:$0xff]
        %v1387 = vld [vmem:[#allocation2 + $0x7a0] sm:$0xff]
        %v1388 = vld [vmem:[#allocation2 + $0x7a8] sm:$0xff]
        %v1389 = vld [vmem:[#allocation2 + $0x7b0] sm:$0xff]
        %v1390 = vld [vmem:[#allocation2 + $0x7b8] sm:$0xff]
        %v1391 = vld [vmem:[#allocation2 + $0x7c0] sm:$0xff]
        %v1392 = vld [vmem:[#allocation2 + $0x7c8] sm:$0xff]
        %v1393 = vld [vmem:[#allocation2 + $0x7d0] sm:$0xff]
        %v1394 = vld [vmem:[#allocation2 + $0x7d8] sm:$0xff]
        %v1395 = vld [vmem:[#allocation2 + $0x7e0] sm:$0xff]
        %v1396 = vld [vmem:[#allocation2 + $0x7e8] sm:$0xff]
        %v1397 = vld [vmem:[#allocation2 + $0x7f0] sm:$0xff]
        %v1398 = vld [vmem:[#allocation2 + $0x7f8] sm:$0xff]
        %v1400 = vlaneseq
        %v1401 = vshrl.u32 %v1400, 7
        %v1402 = vsub.s32 0, %v1401
        %v1403 = vrot.slane %v1139, %v1402
        %v1405 = vmul.f32 %v1143, %v1403
        %v1406 = vmul.f32 %v1144, %v1403
        %v1407 = vmul.f32 %v1145, %v1403
        %v1408 = vmul.f32 %v1146, %v1403
        %v1409 = vmul.f32 %v1147, %v1403
        %v1410 = vmul.f32 %v1148, %v1403
        %v1411 = vmul.f32 %v1149, %v1403
        %v1412 = vmul.f32 %v1150, %v1403
        %v1413 = vmul.f32 %v1151, %v1403
        %v1414 = vmul.f32 %v1152, %v1403
        %v1415 = vmul.f32 %v1153, %v1403
        %v1416 = vmul.f32 %v1154, %v1403
        %v1417 = vmul.f32 %v1155, %v1403
        %v1418 = vmul.f32 %v1156, %v1403
        %v1419 = vmul.f32 %v1157, %v1403
        %v1420 = vmul.f32 %v1158, %v1403
        %v1421 = vmul.f32 %v1159, %v1403
        %v1422 = vmul.f32 %v1160, %v1403
        %v1423 = vmul.f32 %v1161, %v1403
        %v1424 = vmul.f32 %v1162, %v1403
        %v1425 = vmul.f32 %v1163, %v1403
        %v1426 = vmul.f32 %v1164, %v1403
        %v1427 = vmul.f32 %v1165, %v1403
        %v1428 = vmul.f32 %v1166, %v1403
        %v1429 = vmul.f32 %v1167, %v1403
        %v1430 = vmul.f32 %v1168, %v1403
        %v1431 = vmul.f32 %v1169, %v1403
        %v1432 = vmul.f32 %v1170, %v1403
        %v1433 = vmul.f32 %v1171, %v1403
        %v1434 = vmul.f32 %v1172, %v1403
        %v1435 = vmul.f32 %v1173, %v1403
        %v1436 = vmul.f32 %v1174, %v1403
        %v1437 = vmul.f32 %v1175, %v1403
        %v1438 = vmul.f32 %v1176, %v1403
        %v1439 = vmul.f32 %v1177, %v1403
        %v1440 = vmul.f32 %v1178, %v1403
        %v1441 = vmul.f32 %v1179, %v1403
        %v1442 = vmul.f32 %v1180, %v1403
        %v1443 = vmul.f32 %v1181, %v1403
        %v1444 = vmul.f32 %v1182, %v1403
        %v1445 = vmul.f32 %v1183, %v1403
        %v1446 = vmul.f32 %v1184, %v1403
        %v1447 = vmul.f32 %v1185, %v1403
        %v1448 = vmul.f32 %v1186, %v1403
        %v1449 = vmul.f32 %v1187, %v1403
        %v1450 = vmul.f32 %v1188, %v1403
        %v1451 = vmul.f32 %v1189, %v1403
        %v1452 = vmul.f32 %v1190, %v1403
        %v1453 = vmul.f32 %v1191, %v1403
        %v1454 = vmul.f32 %v1192, %v1403
        %v1455 = vmul.f32 %v1193, %v1403
        %v1456 = vmul.f32 %v1194, %v1403
        %v1457 = vmul.f32 %v1195, %v1403
        %v1458 = vmul.f32 %v1196, %v1403
        %v1459 = vmul.f32 %v1197, %v1403
        %v1460 = vmul.f32 %v1198, %v1403
        %v1461 = vmul.f32 %v1199, %v1403
        %v1462 = vmul.f32 %v1200, %v1403
        %v1463 = vmul.f32 %v1201, %v1403
        %v1464 = vmul.f32 %v1202, %v1403
        %v1465 = vmul.f32 %v1203, %v1403
        %v1466 = vmul.f32 %v1204, %v1403
        %v1467 = vmul.f32 %v1205, %v1403
        %v1468 = vmul.f32 %v1206, %v1403
        %v1469 = vmul.f32 %v1207, %v1403
        %v1470 = vmul.f32 %v1208, %v1403
        %v1471 = vmul.f32 %v1209, %v1403
        %v1472 = vmul.f32 %v1210, %v1403
        %v1473 = vmul.f32 %v1211, %v1403
        %v1474 = vmul.f32 %v1212, %v1403
        %v1475 = vmul.f32 %v1213, %v1403
        %v1476 = vmul.f32 %v1214, %v1403
        %v1477 = vmul.f32 %v1215, %v1403
        %v1478 = vmul.f32 %v1216, %v1403
        %v1479 = vmul.f32 %v1217, %v1403
        %v1480 = vmul.f32 %v1218, %v1403
        %v1481 = vmul.f32 %v1219, %v1403
        %v1482 = vmul.f32 %v1220, %v1403
        %v1483 = vmul.f32 %v1221, %v1403
        %v1484 = vmul.f32 %v1222, %v1403
        %v1485 = vmul.f32 %v1223, %v1403
        %v1486 = vmul.f32 %v1224, %v1403
        %v1487 = vmul.f32 %v1225, %v1403
        %v1488 = vmul.f32 %v1226, %v1403
        %v1489 = vmul.f32 %v1227, %v1403
        %v1490 = vmul.f32 %v1228, %v1403
        %v1491 = vmul.f32 %v1229, %v1403
        %v1492 = vmul.f32 %v1230, %v1403
        %v1493 = vmul.f32 %v1231, %v1403
        %v1494 = vmul.f32 %v1232, %v1403
        %v1495 = vmul.f32 %v1233, %v1403
        %v1496 = vmul.f32 %v1234, %v1403
        %v1497 = vmul.f32 %v1235, %v1403
        %v1498 = vmul.f32 %v1236, %v1403
        %v1499 = vmul.f32 %v1237, %v1403
        %v1500 = vmul.f32 %v1238, %v1403
        %v1501 = vmul.f32 %v1239, %v1403
        %v1502 = vmul.f32 %v1240, %v1403
        %v1503 = vmul.f32 %v1241, %v1403
        %v1504 = vmul.f32 %v1242, %v1403
        %v1505 = vmul.f32 %v1243, %v1403
        %v1506 = vmul.f32 %v1244, %v1403
        %v1507 = vmul.f32 %v1245, %v1403
        %v1508 = vmul.f32 %v1246, %v1403
        %v1509 = vmul.f32 %v1247, %v1403
        %v1510 = vmul.f32 %v1248, %v1403
        %v1511 = vmul.f32 %v1249, %v1403
        %v1512 = vmul.f32 %v1250, %v1403
        %v1513 = vmul.f32 %v1251, %v1403
        %v1514 = vmul.f32 %v1252, %v1403
        %v1515 = vmul.f32 %v1253, %v1403
        %v1516 = vmul.f32 %v1254, %v1403
        %v1517 = vmul.f32 %v1255, %v1403
        %v1518 = vmul.f32 %v1256, %v1403
        %v1519 = vmul.f32 %v1257, %v1403
        %v1520 = vmul.f32 %v1258, %v1403
        %v1521 = vmul.f32 %v1259, %v1403
        %v1522 = vmul.f32 %v1260, %v1403
        %v1523 = vmul.f32 %v1261, %v1403
        %v1524 = vmul.f32 %v1262, %v1403
        %v1525 = vmul.f32 %v1263, %v1403
        %v1526 = vmul.f32 %v1264, %v1403
        %v1527 = vmul.f32 %v1265, %v1403
        %v1528 = vmul.f32 %v1266, %v1403
        %v1529 = vmul.f32 %v1267, %v1403
        %v1530 = vmul.f32 %v1268, %v1403
        %v1531 = vmul.f32 %v1269, %v1403
        %v1532 = vmul.f32 %v1270, %v1403
        %v1533 = vmul.f32 %v1271, %v1403
        %v1534 = vmul.f32 %v1272, %v1403
        %v1535 = vmul.f32 %v1273, %v1403
        %v1536 = vmul.f32 %v1274, %v1403
        %v1537 = vmul.f32 %v1275, %v1403
        %v1538 = vmul.f32 %v1276, %v1403
        %v1539 = vmul.f32 %v1277, %v1403
        %v1540 = vmul.f32 %v1278, %v1403
        %v1541 = vmul.f32 %v1279, %v1403
        %v1542 = vmul.f32 %v1280, %v1403
        %v1543 = vmul.f32 %v1281, %v1403
        %v1544 = vmul.f32 %v1282, %v1403
        %v1545 = vmul.f32 %v1283, %v1403
        %v1546 = vmul.f32 %v1284, %v1403
        %v1547 = vmul.f32 %v1285, %v1403
        %v1548 = vmul.f32 %v1286, %v1403
        %v1549 = vmul.f32 %v1287, %v1403
        %v1550 = vmul.f32 %v1288, %v1403
        %v1551 = vmul.f32 %v1289, %v1403
        %v1552 = vmul.f32 %v1290, %v1403
        %v1553 = vmul.f32 %v1291, %v1403
        %v1554 = vmul.f32 %v1292, %v1403
        %v1555 = vmul.f32 %v1293, %v1403
        %v1556 = vmul.f32 %v1294, %v1403
        %v1557 = vmul.f32 %v1295, %v1403
        %v1558 = vmul.f32 %v1296, %v1403
        %v1559 = vmul.f32 %v1297, %v1403
        %v1560 = vmul.f32 %v1298, %v1403
        %v1561 = vmul.f32 %v1299, %v1403
        %v1562 = vmul.f32 %v1300, %v1403
        %v1563 = vmul.f32 %v1301, %v1403
        %v1564 = vmul.f32 %v1302, %v1403
        %v1565 = vmul.f32 %v1303, %v1403
        %v1566 = vmul.f32 %v1304, %v1403
        %v1567 = vmul.f32 %v1305, %v1403
        %v1568 = vmul.f32 %v1306, %v1403
        %v1569 = vmul.f32 %v1307, %v1403
        %v1570 = vmul.f32 %v1308, %v1403
        %v1571 = vmul.f32 %v1309, %v1403
        %v1572 = vmul.f32 %v1310, %v1403
        %v1573 = vmul.f32 %v1311, %v1403
        %v1574 = vmul.f32 %v1312, %v1403
        %v1575 = vmul.f32 %v1313, %v1403
        %v1576 = vmul.f32 %v1314, %v1403
        %v1577 = vmul.f32 %v1315, %v1403
        %v1578 = vmul.f32 %v1316, %v1403
        %v1579 = vmul.f32 %v1317, %v1403
        %v1580 = vmul.f32 %v1318, %v1403
        %v1581 = vmul.f32 %v1319, %v1403
        %v1582 = vmul.f32 %v1320, %v1403
        %v1583 = vmul.f32 %v1321, %v1403
        %v1584 = vmul.f32 %v1322, %v1403
        %v1585 = vmul.f32 %v1323, %v1403
        %v1586 = vmul.f32 %v1324, %v1403
        %v1587 = vmul.f32 %v1325, %v1403
        %v1588 = vmul.f32 %v1326, %v1403
        %v1589 = vmul.f32 %v1327, %v1403
        %v1590 = vmul.f32 %v1328, %v1403
        %v1591 = vmul.f32 %v1329, %v1403
        %v1592 = vmul.f32 %v1330, %v1403
        %v1593 = vmul.f32 %v1331, %v1403
        %v1594 = vmul.f32 %v1332, %v1403
        %v1595 = vmul.f32 %v1333, %v1403
        %v1596 = vmul.f32 %v1334, %v1403
        %v1597 = vmul.f32 %v1335, %v1403
        %v1598 = vmul.f32 %v1336, %v1403
        %v1599 = vmul.f32 %v1337, %v1403
        %v1600 = vmul.f32 %v1338, %v1403
        %v1601 = vmul.f32 %v1339, %v1403
        %v1602 = vmul.f32 %v1340, %v1403
        %v1603 = vmul.f32 %v1341, %v1403
        %v1604 = vmul.f32 %v1342, %v1403
        %v1605 = vmul.f32 %v1343, %v1403
        %v1606 = vmul.f32 %v1344, %v1403
        %v1607 = vmul.f32 %v1345, %v1403
        %v1608 = vmul.f32 %v1346, %v1403
        %v1609 = vmul.f32 %v1347, %v1403
        %v1610 = vmul.f32 %v1348, %v1403
        %v1611 = vmul.f32 %v1349, %v1403
        %v1612 = vmul.f32 %v1350, %v1403
        %v1613 = vmul.f32 %v1351, %v1403
        %v1614 = vmul.f32 %v1352, %v1403
        %v1615 = vmul.f32 %v1353, %v1403
        %v1616 = vmul.f32 %v1354, %v1403
        %v1617 = vmul.f32 %v1355, %v1403
        %v1618 = vmul.f32 %v1356, %v1403
        %v1619 = vmul.f32 %v1357, %v1403
        %v1620 = vmul.f32 %v1358, %v1403
        %v1621 = vmul.f32 %v1359, %v1403
        %v1622 = vmul.f32 %v1360, %v1403
        %v1623 = vmul.f32 %v1361, %v1403
        %v1624 = vmul.f32 %v1362, %v1403
        %v1625 = vmul.f32 %v1363, %v1403
        %v1626 = vmul.f32 %v1364, %v1403
        %v1627 = vmul.f32 %v1365, %v1403
        %v1628 = vmul.f32 %v1366, %v1403
        %v1629 = vmul.f32 %v1367, %v1403
        %v1630 = vmul.f32 %v1368, %v1403
        %v1631 = vmul.f32 %v1369, %v1403
        %v1632 = vmul.f32 %v1370, %v1403
        %v1633 = vmul.f32 %v1371, %v1403
        %v1634 = vmul.f32 %v1372, %v1403
        %v1635 = vmul.f32 %v1373, %v1403
        %v1636 = vmul.f32 %v1374, %v1403
        %v1637 = vmul.f32 %v1375, %v1403
        %v1638 = vmul.f32 %v1376, %v1403
        %v1639 = vmul.f32 %v1377, %v1403
        %v1640 = vmul.f32 %v1378, %v1403
        %v1641 = vmul.f32 %v1379, %v1403
        %v1642 = vmul.f32 %v1380, %v1403
        %v1643 = vmul.f32 %v1381, %v1403
        %v1644 = vmul.f32 %v1382, %v1403
        %v1645 = vmul.f32 %v1383, %v1403
        %v1646 = vmul.f32 %v1384, %v1403
        %v1647 = vmul.f32 %v1385, %v1403
        %v1648 = vmul.f32 %v1386, %v1403
        %v1649 = vmul.f32 %v1387, %v1403
        %v1650 = vmul.f32 %v1388, %v1403
        %v1651 = vmul.f32 %v1389, %v1403
        %v1652 = vmul.f32 %v1390, %v1403
        %v1653 = vmul.f32 %v1391, %v1403
        %v1654 = vmul.f32 %v1392, %v1403
        %v1655 = vmul.f32 %v1393, %v1403
        %v1656 = vmul.f32 %v1394, %v1403
        %v1657 = vmul.f32 %v1395, %v1403
        %v1658 = vmul.f32 %v1396, %v1403
        %v1659 = vmul.f32 %v1397, %v1403
        %v1660 = vmul.f32 %v1398, %v1403
        %v1662 = vlaneseq
        %v1663 = vshrl.u32 %v1662, 7
        %v1664 = vsub.s32 0, %v1663
        %v1665 = vrot.slane %v1142, %v1664
        %v1667 = vadd.f32 %v1405, %v1665
        %v1668 = vadd.f32 %v1406, %v1665
        %v1669 = vadd.f32 %v1407, %v1665
        %v1670 = vadd.f32 %v1408, %v1665
        %v1671 = vadd.f32 %v1409, %v1665
        %v1672 = vadd.f32 %v1410, %v1665
        %v1673 = vadd.f32 %v1411, %v1665
        %v1674 = vadd.f32 %v1412, %v1665
        %v1675 = vadd.f32 %v1413, %v1665
        %v1676 = vadd.f32 %v1414, %v1665
        %v1677 = vadd.f32 %v1415, %v1665
        %v1678 = vadd.f32 %v1416, %v1665
        %v1679 = vadd.f32 %v1417, %v1665
        %v1680 = vadd.f32 %v1418, %v1665
        %v1681 = vadd.f32 %v1419, %v1665
        %v1682 = vadd.f32 %v1420, %v1665
        %v1683 = vadd.f32 %v1421, %v1665
        %v1684 = vadd.f32 %v1422, %v1665
        %v1685 = vadd.f32 %v1423, %v1665
        %v1686 = vadd.f32 %v1424, %v1665
        %v1687 = vadd.f32 %v1425, %v1665
        %v1688 = vadd.f32 %v1426, %v1665
        %v1689 = vadd.f32 %v1427, %v1665
        %v1690 = vadd.f32 %v1428, %v1665
        %v1691 = vadd.f32 %v1429, %v1665
        %v1692 = vadd.f32 %v1430, %v1665
        %v1693 = vadd.f32 %v1431, %v1665
        %v1694 = vadd.f32 %v1432, %v1665
        %v1695 = vadd.f32 %v1433, %v1665
        %v1696 = vadd.f32 %v1434, %v1665
        %v1697 = vadd.f32 %v1435, %v1665
        %v1698 = vadd.f32 %v1436, %v1665
        %v1699 = vadd.f32 %v1437, %v1665
        %v1700 = vadd.f32 %v1438, %v1665
        %v1701 = vadd.f32 %v1439, %v1665
        %v1702 = vadd.f32 %v1440, %v1665
        %v1703 = vadd.f32 %v1441, %v1665
        %v1704 = vadd.f32 %v1442, %v1665
        %v1705 = vadd.f32 %v1443, %v1665
        %v1706 = vadd.f32 %v1444, %v1665
        %v1707 = vadd.f32 %v1445, %v1665
        %v1708 = vadd.f32 %v1446, %v1665
        %v1709 = vadd.f32 %v1447, %v1665
        %v1710 = vadd.f32 %v1448, %v1665
        %v1711 = vadd.f32 %v1449, %v1665
        %v1712 = vadd.f32 %v1450, %v1665
        %v1713 = vadd.f32 %v1451, %v1665
        %v1714 = vadd.f32 %v1452, %v1665
        %v1715 = vadd.f32 %v1453, %v1665
        %v1716 = vadd.f32 %v1454, %v1665
        %v1717 = vadd.f32 %v1455, %v1665
        %v1718 = vadd.f32 %v1456, %v1665
        %v1719 = vadd.f32 %v1457, %v1665
        %v1720 = vadd.f32 %v1458, %v1665
        %v1721 = vadd.f32 %v1459, %v1665
        %v1722 = vadd.f32 %v1460, %v1665
        %v1723 = vadd.f32 %v1461, %v1665
        %v1724 = vadd.f32 %v1462, %v1665
        %v1725 = vadd.f32 %v1463, %v1665
        %v1726 = vadd.f32 %v1464, %v1665
        %v1727 = vadd.f32 %v1465, %v1665
        %v1728 = vadd.f32 %v1466, %v1665
        %v1729 = vadd.f32 %v1467, %v1665
        %v1730 = vadd.f32 %v1468, %v1665
        %v1731 = vadd.f32 %v1469, %v1665
        %v1732 = vadd.f32 %v1470, %v1665
        %v1733 = vadd.f32 %v1471, %v1665
        %v1734 = vadd.f32 %v1472, %v1665
        %v1735 = vadd.f32 %v1473, %v1665
        %v1736 = vadd.f32 %v1474, %v1665
        %v1737 = vadd.f32 %v1475, %v1665
        %v1738 = vadd.f32 %v1476, %v1665
        %v1739 = vadd.f32 %v1477, %v1665
        %v1740 = vadd.f32 %v1478, %v1665
        %v1741 = vadd.f32 %v1479, %v1665
        %v1742 = vadd.f32 %v1480, %v1665
        %v1743 = vadd.f32 %v1481, %v1665
        %v1744 = vadd.f32 %v1482, %v1665
        %v1745 = vadd.f32 %v1483, %v1665
        %v1746 = vadd.f32 %v1484, %v1665
        %v1747 = vadd.f32 %v1485, %v1665
        %v1748 = vadd.f32 %v1486, %v1665
        %v1749 = vadd.f32 %v1487, %v1665
        %v1750 = vadd.f32 %v1488, %v1665
        %v1751 = vadd.f32 %v1489, %v1665
        %v1752 = vadd.f32 %v1490, %v1665
        %v1753 = vadd.f32 %v1491, %v1665
        %v1754 = vadd.f32 %v1492, %v1665
        %v1755 = vadd.f32 %v1493, %v1665
        %v1756 = vadd.f32 %v1494, %v1665
        %v1757 = vadd.f32 %v1495, %v1665
        %v1758 = vadd.f32 %v1496, %v1665
        %v1759 = vadd.f32 %v1497, %v1665
        %v1760 = vadd.f32 %v1498, %v1665
        %v1761 = vadd.f32 %v1499, %v1665
        %v1762 = vadd.f32 %v1500, %v1665
        %v1763 = vadd.f32 %v1501, %v1665
        %v1764 = vadd.f32 %v1502, %v1665
        %v1765 = vadd.f32 %v1503, %v1665
        %v1766 = vadd.f32 %v1504, %v1665
        %v1767 = vadd.f32 %v1505, %v1665
        %v1768 = vadd.f32 %v1506, %v1665
        %v1769 = vadd.f32 %v1507, %v1665
        %v1770 = vadd.f32 %v1508, %v1665
        %v1771 = vadd.f32 %v1509, %v1665
        %v1772 = vadd.f32 %v1510, %v1665
        %v1773 = vadd.f32 %v1511, %v1665
        %v1774 = vadd.f32 %v1512, %v1665
        %v1775 = vadd.f32 %v1513, %v1665
        %v1776 = vadd.f32 %v1514, %v1665
        %v1777 = vadd.f32 %v1515, %v1665
        %v1778 = vadd.f32 %v1516, %v1665
        %v1779 = vadd.f32 %v1517, %v1665
        %v1780 = vadd.f32 %v1518, %v1665
        %v1781 = vadd.f32 %v1519, %v1665
        %v1782 = vadd.f32 %v1520, %v1665
        %v1783 = vadd.f32 %v1521, %v1665
        %v1784 = vadd.f32 %v1522, %v1665
        %v1785 = vadd.f32 %v1523, %v1665
        %v1786 = vadd.f32 %v1524, %v1665
        %v1787 = vadd.f32 %v1525, %v1665
        %v1788 = vadd.f32 %v1526, %v1665
        %v1789 = vadd.f32 %v1527, %v1665
        %v1790 = vadd.f32 %v1528, %v1665
        %v1791 = vadd.f32 %v1529, %v1665
        %v1792 = vadd.f32 %v1530, %v1665
        %v1793 = vadd.f32 %v1531, %v1665
        %v1794 = vadd.f32 %v1532, %v1665
        %v1795 = vadd.f32 %v1533, %v1665
        %v1796 = vadd.f32 %v1534, %v1665
        %v1797 = vadd.f32 %v1535, %v1665
        %v1798 = vadd.f32 %v1536, %v1665
        %v1799 = vadd.f32 %v1537, %v1665
        %v1800 = vadd.f32 %v1538, %v1665
        %v1801 = vadd.f32 %v1539, %v1665
        %v1802 = vadd.f32 %v1540, %v1665
        %v1803 = vadd.f32 %v1541, %v1665
        %v1804 = vadd.f32 %v1542, %v1665
        %v1805 = vadd.f32 %v1543, %v1665
        %v1806 = vadd.f32 %v1544, %v1665
        %v1807 = vadd.f32 %v1545, %v1665
        %v1808 = vadd.f32 %v1546, %v1665
        %v1809 = vadd.f32 %v1547, %v1665
        %v1810 = vadd.f32 %v1548, %v1665
        %v1811 = vadd.f32 %v1549, %v1665
        %v1812 = vadd.f32 %v1550, %v1665
        %v1813 = vadd.f32 %v1551, %v1665
        %v1814 = vadd.f32 %v1552, %v1665
        %v1815 = vadd.f32 %v1553, %v1665
        %v1816 = vadd.f32 %v1554, %v1665
        %v1817 = vadd.f32 %v1555, %v1665
        %v1818 = vadd.f32 %v1556, %v1665
        %v1819 = vadd.f32 %v1557, %v1665
        %v1820 = vadd.f32 %v1558, %v1665
        %v1821 = vadd.f32 %v1559, %v1665
        %v1822 = vadd.f32 %v1560, %v1665
        %v1823 = vadd.f32 %v1561, %v1665
        %v1824 = vadd.f32 %v1562, %v1665
        %v1825 = vadd.f32 %v1563, %v1665
        %v1826 = vadd.f32 %v1564, %v1665
        %v1827 = vadd.f32 %v1565, %v1665
        %v1828 = vadd.f32 %v1566, %v1665
        %v1829 = vadd.f32 %v1567, %v1665
        %v1830 = vadd.f32 %v1568, %v1665
        %v1831 = vadd.f32 %v1569, %v1665
        %v1832 = vadd.f32 %v1570, %v1665
        %v1833 = vadd.f32 %v1571, %v1665
        %v1834 = vadd.f32 %v1572, %v1665
        %v1835 = vadd.f32 %v1573, %v1665
        %v1836 = vadd.f32 %v1574, %v1665
        %v1837 = vadd.f32 %v1575, %v1665
        %v1838 = vadd.f32 %v1576, %v1665
        %v1839 = vadd.f32 %v1577, %v1665
        %v1840 = vadd.f32 %v1578, %v1665
        %v1841 = vadd.f32 %v1579, %v1665
        %v1842 = vadd.f32 %v1580, %v1665
        %v1843 = vadd.f32 %v1581, %v1665
        %v1844 = vadd.f32 %v1582, %v1665
        %v1845 = vadd.f32 %v1583, %v1665
        %v1846 = vadd.f32 %v1584, %v1665
        %v1847 = vadd.f32 %v1585, %v1665
        %v1848 = vadd.f32 %v1586, %v1665
        %v1849 = vadd.f32 %v1587, %v1665
        %v1850 = vadd.f32 %v1588, %v1665
        %v1851 = vadd.f32 %v1589, %v1665
        %v1852 = vadd.f32 %v1590, %v1665
        %v1853 = vadd.f32 %v1591, %v1665
        %v1854 = vadd.f32 %v1592, %v1665
        %v1855 = vadd.f32 %v1593, %v1665
        %v1856 = vadd.f32 %v1594, %v1665
        %v1857 = vadd.f32 %v1595, %v1665
        %v1858 = vadd.f32 %v1596, %v1665
        %v1859 = vadd.f32 %v1597, %v1665
        %v1860 = vadd.f32 %v1598, %v1665
        %v1861 = vadd.f32 %v1599, %v1665
        %v1862 = vadd.f32 %v1600, %v1665
        %v1863 = vadd.f32 %v1601, %v1665
        %v1864 = vadd.f32 %v1602, %v1665
        %v1865 = vadd.f32 %v1603, %v1665
        %v1866 = vadd.f32 %v1604, %v1665
        %v1867 = vadd.f32 %v1605, %v1665
        %v1868 = vadd.f32 %v1606, %v1665
        %v1869 = vadd.f32 %v1607, %v1665
        %v1870 = vadd.f32 %v1608, %v1665
        %v1871 = vadd.f32 %v1609, %v1665
        %v1872 = vadd.f32 %v1610, %v1665
        %v1873 = vadd.f32 %v1611, %v1665
        %v1874 = vadd.f32 %v1612, %v1665
        %v1875 = vadd.f32 %v1613, %v1665
        %v1876 = vadd.f32 %v1614, %v1665
        %v1877 = vadd.f32 %v1615, %v1665
        %v1878 = vadd.f32 %v1616, %v1665
        %v1879 = vadd.f32 %v1617, %v1665
        %v1880 = vadd.f32 %v1618, %v1665
        %v1881 = vadd.f32 %v1619, %v1665
        %v1882 = vadd.f32 %v1620, %v1665
        %v1883 = vadd.f32 %v1621, %v1665
        %v1884 = vadd.f32 %v1622, %v1665
        %v1885 = vadd.f32 %v1623, %v1665
        %v1886 = vadd.f32 %v1624, %v1665
        %v1887 = vadd.f32 %v1625, %v1665
        %v1888 = vadd.f32 %v1626, %v1665
        %v1889 = vadd.f32 %v1627, %v1665
        %v1890 = vadd.f32 %v1628, %v1665
        %v1891 = vadd.f32 %v1629, %v1665
        %v1892 = vadd.f32 %v1630, %v1665
        %v1893 = vadd.f32 %v1631, %v1665
        %v1894 = vadd.f32 %v1632, %v1665
        %v1895 = vadd.f32 %v1633, %v1665
        %v1896 = vadd.f32 %v1634, %v1665
        %v1897 = vadd.f32 %v1635, %v1665
        %v1898 = vadd.f32 %v1636, %v1665
        %v1899 = vadd.f32 %v1637, %v1665
        %v1900 = vadd.f32 %v1638, %v1665
        %v1901 = vadd.f32 %v1639, %v1665
        %v1902 = vadd.f32 %v1640, %v1665
        %v1903 = vadd.f32 %v1641, %v1665
        %v1904 = vadd.f32 %v1642, %v1665
        %v1905 = vadd.f32 %v1643, %v1665
        %v1906 = vadd.f32 %v1644, %v1665
        %v1907 = vadd.f32 %v1645, %v1665
        %v1908 = vadd.f32 %v1646, %v1665
        %v1909 = vadd.f32 %v1647, %v1665
        %v1910 = vadd.f32 %v1648, %v1665
        %v1911 = vadd.f32 %v1649, %v1665
        %v1912 = vadd.f32 %v1650, %v1665
        %v1913 = vadd.f32 %v1651, %v1665
        %v1914 = vadd.f32 %v1652, %v1665
        %v1915 = vadd.f32 %v1653, %v1665
        %v1916 = vadd.f32 %v1654, %v1665
        %v1917 = vadd.f32 %v1655, %v1665
        %v1918 = vadd.f32 %v1656, %v1665
        %v1919 = vadd.f32 %v1657, %v1665
        %v1920 = vadd.f32 %v1658, %v1665
        %v1921 = vadd.f32 %v1659, %v1665
        %v1922 = vadd.f32 %v1660, %v1665
        %v1923 = vmax.f32 %v1667, 0.0
        %v1924 = vmax.f32 %v1668, 0.0
        %v1925 = vmax.f32 %v1669, 0.0
        %v1926 = vmax.f32 %v1670, 0.0
        %v1927 = vmax.f32 %v1671, 0.0
        %v1928 = vmax.f32 %v1672, 0.0
        %v1929 = vmax.f32 %v1673, 0.0
        %v1930 = vmax.f32 %v1674, 0.0
        %v1931 = vmax.f32 %v1675, 0.0
        %v1932 = vmax.f32 %v1676, 0.0
        %v1933 = vmax.f32 %v1677, 0.0
        %v1934 = vmax.f32 %v1678, 0.0
        %v1935 = vmax.f32 %v1679, 0.0
        %v1936 = vmax.f32 %v1680, 0.0
        %v1937 = vmax.f32 %v1681, 0.0
        %v1938 = vmax.f32 %v1682, 0.0
        %v1939 = vmax.f32 %v1683, 0.0
        %v1940 = vmax.f32 %v1684, 0.0
        %v1941 = vmax.f32 %v1685, 0.0
        %v1942 = vmax.f32 %v1686, 0.0
        %v1943 = vmax.f32 %v1687, 0.0
        %v1944 = vmax.f32 %v1688, 0.0
        %v1945 = vmax.f32 %v1689, 0.0
        %v1946 = vmax.f32 %v1690, 0.0
        %v1947 = vmax.f32 %v1691, 0.0
        %v1948 = vmax.f32 %v1692, 0.0
        %v1949 = vmax.f32 %v1693, 0.0
        %v1950 = vmax.f32 %v1694, 0.0
        %v1951 = vmax.f32 %v1695, 0.0
        %v1952 = vmax.f32 %v1696, 0.0
        %v1953 = vmax.f32 %v1697, 0.0
        %v1954 = vmax.f32 %v1698, 0.0
        %v1955 = vmax.f32 %v1699, 0.0
        %v1956 = vmax.f32 %v1700, 0.0
        %v1957 = vmax.f32 %v1701, 0.0
        %v1958 = vmax.f32 %v1702, 0.0
        %v1959 = vmax.f32 %v1703, 0.0
        %v1960 = vmax.f32 %v1704, 0.0
        %v1961 = vmax.f32 %v1705, 0.0
        %v1962 = vmax.f32 %v1706, 0.0
        %v1963 = vmax.f32 %v1707, 0.0
        %v1964 = vmax.f32 %v1708, 0.0
        %v1965 = vmax.f32 %v1709, 0.0
        %v1966 = vmax.f32 %v1710, 0.0
        %v1967 = vmax.f32 %v1711, 0.0
        %v1968 = vmax.f32 %v1712, 0.0
        %v1969 = vmax.f32 %v1713, 0.0
        %v1970 = vmax.f32 %v1714, 0.0
        %v1971 = vmax.f32 %v1715, 0.0
        %v1972 = vmax.f32 %v1716, 0.0
        %v1973 = vmax.f32 %v1717, 0.0
        %v1974 = vmax.f32 %v1718, 0.0
        %v1975 = vmax.f32 %v1719, 0.0
        %v1976 = vmax.f32 %v1720, 0.0
        %v1977 = vmax.f32 %v1721, 0.0
        %v1978 = vmax.f32 %v1722, 0.0
        %v1979 = vmax.f32 %v1723, 0.0
        %v1980 = vmax.f32 %v1724, 0.0
        %v1981 = vmax.f32 %v1725, 0.0
        %v1982 = vmax.f32 %v1726, 0.0
        %v1983 = vmax.f32 %v1727, 0.0
        %v1984 = vmax.f32 %v1728, 0.0
        %v1985 = vmax.f32 %v1729, 0.0
        %v1986 = vmax.f32 %v1730, 0.0
        %v1987 = vmax.f32 %v1731, 0.0
        %v1988 = vmax.f32 %v1732, 0.0
        %v1989 = vmax.f32 %v1733, 0.0
        %v1990 = vmax.f32 %v1734, 0.0
        %v1991 = vmax.f32 %v1735, 0.0
        %v1992 = vmax.f32 %v1736, 0.0
        %v1993 = vmax.f32 %v1737, 0.0
        %v1994 = vmax.f32 %v1738, 0.0
        %v1995 = vmax.f32 %v1739, 0.0
        %v1996 = vmax.f32 %v1740, 0.0
        %v1997 = vmax.f32 %v1741, 0.0
        %v1998 = vmax.f32 %v1742, 0.0
        %v1999 = vmax.f32 %v1743, 0.0
        %v2000 = vmax.f32 %v1744, 0.0
        %v2001 = vmax.f32 %v1745, 0.0
        %v2002 = vmax.f32 %v1746, 0.0
        %v2003 = vmax.f32 %v1747, 0.0
        %v2004 = vmax.f32 %v1748, 0.0
        %v2005 = vmax.f32 %v1749, 0.0
        %v2006 = vmax.f32 %v1750, 0.0
        %v2007 = vmax.f32 %v1751, 0.0
        %v2008 = vmax.f32 %v1752, 0.0
        %v2009 = vmax.f32 %v1753, 0.0
        %v2010 = vmax.f32 %v1754, 0.0
        %v2011 = vmax.f32 %v1755, 0.0
        %v2012 = vmax.f32 %v1756, 0.0
        %v2013 = vmax.f32 %v1757, 0.0
        %v2014 = vmax.f32 %v1758, 0.0
        %v2015 = vmax.f32 %v1759, 0.0
        %v2016 = vmax.f32 %v1760, 0.0
        %v2017 = vmax.f32 %v1761, 0.0
        %v2018 = vmax.f32 %v1762, 0.0
        %v2019 = vmax.f32 %v1763, 0.0
        %v2020 = vmax.f32 %v1764, 0.0
        %v2021 = vmax.f32 %v1765, 0.0
        %v2022 = vmax.f32 %v1766, 0.0
        %v2023 = vmax.f32 %v1767, 0.0
        %v2024 = vmax.f32 %v1768, 0.0
        %v2025 = vmax.f32 %v1769, 0.0
        %v2026 = vmax.f32 %v1770, 0.0
        %v2027 = vmax.f32 %v1771, 0.0
        %v2028 = vmax.f32 %v1772, 0.0
        %v2029 = vmax.f32 %v1773, 0.0
        %v2030 = vmax.f32 %v1774, 0.0
        %v2031 = vmax.f32 %v1775, 0.0
        %v2032 = vmax.f32 %v1776, 0.0
        %v2033 = vmax.f32 %v1777, 0.0
        %v2034 = vmax.f32 %v1778, 0.0
        %v2035 = vmax.f32 %v1779, 0.0
        %v2036 = vmax.f32 %v1780, 0.0
        %v2037 = vmax.f32 %v1781, 0.0
        %v2038 = vmax.f32 %v1782, 0.0
        %v2039 = vmax.f32 %v1783, 0.0
        %v2040 = vmax.f32 %v1784, 0.0
        %v2041 = vmax.f32 %v1785, 0.0
        %v2042 = vmax.f32 %v1786, 0.0
        %v2043 = vmax.f32 %v1787, 0.0
        %v2044 = vmax.f32 %v1788, 0.0
        %v2045 = vmax.f32 %v1789, 0.0
        %v2046 = vmax.f32 %v1790, 0.0
        %v2047 = vmax.f32 %v1791, 0.0
        %v2048 = vmax.f32 %v1792, 0.0
        %v2049 = vmax.f32 %v1793, 0.0
        %v2050 = vmax.f32 %v1794, 0.0
        %v2051 = vmax.f32 %v1795, 0.0
        %v2052 = vmax.f32 %v1796, 0.0
        %v2053 = vmax.f32 %v1797, 0.0
        %v2054 = vmax.f32 %v1798, 0.0
        %v2055 = vmax.f32 %v1799, 0.0
        %v2056 = vmax.f32 %v1800, 0.0
        %v2057 = vmax.f32 %v1801, 0.0
        %v2058 = vmax.f32 %v1802, 0.0
        %v2059 = vmax.f32 %v1803, 0.0
        %v2060 = vmax.f32 %v1804, 0.0
        %v2061 = vmax.f32 %v1805, 0.0
        %v2062 = vmax.f32 %v1806, 0.0
        %v2063 = vmax.f32 %v1807, 0.0
        %v2064 = vmax.f32 %v1808, 0.0
        %v2065 = vmax.f32 %v1809, 0.0
        %v2066 = vmax.f32 %v1810, 0.0
        %v2067 = vmax.f32 %v1811, 0.0
        %v2068 = vmax.f32 %v1812, 0.0
        %v2069 = vmax.f32 %v1813, 0.0
        %v2070 = vmax.f32 %v1814, 0.0
        %v2071 = vmax.f32 %v1815, 0.0
        %v2072 = vmax.f32 %v1816, 0.0
        %v2073 = vmax.f32 %v1817, 0.0
        %v2074 = vmax.f32 %v1818, 0.0
        %v2075 = vmax.f32 %v1819, 0.0
        %v2076 = vmax.f32 %v1820, 0.0
        %v2077 = vmax.f32 %v1821, 0.0
        %v2078 = vmax.f32 %v1822, 0.0
        %v2079 = vmax.f32 %v1823, 0.0
        %v2080 = vmax.f32 %v1824, 0.0
        %v2081 = vmax.f32 %v1825, 0.0
        %v2082 = vmax.f32 %v1826, 0.0
        %v2083 = vmax.f32 %v1827, 0.0
        %v2084 = vmax.f32 %v1828, 0.0
        %v2085 = vmax.f32 %v1829, 0.0
        %v2086 = vmax.f32 %v1830, 0.0
        %v2087 = vmax.f32 %v1831, 0.0
        %v2088 = vmax.f32 %v1832, 0.0
        %v2089 = vmax.f32 %v1833, 0.0
        %v2090 = vmax.f32 %v1834, 0.0
        %v2091 = vmax.f32 %v1835, 0.0
        %v2092 = vmax.f32 %v1836, 0.0
        %v2093 = vmax.f32 %v1837, 0.0
        %v2094 = vmax.f32 %v1838, 0.0
        %v2095 = vmax.f32 %v1839, 0.0
        %v2096 = vmax.f32 %v1840, 0.0
        %v2097 = vmax.f32 %v1841, 0.0
        %v2098 = vmax.f32 %v1842, 0.0
        %v2099 = vmax.f32 %v1843, 0.0
        %v2100 = vmax.f32 %v1844, 0.0
        %v2101 = vmax.f32 %v1845, 0.0
        %v2102 = vmax.f32 %v1846, 0.0
        %v2103 = vmax.f32 %v1847, 0.0
        %v2104 = vmax.f32 %v1848, 0.0
        %v2105 = vmax.f32 %v1849, 0.0
        %v2106 = vmax.f32 %v1850, 0.0
        %v2107 = vmax.f32 %v1851, 0.0
        %v2108 = vmax.f32 %v1852, 0.0
        %v2109 = vmax.f32 %v1853, 0.0
        %v2110 = vmax.f32 %v1854, 0.0
        %v2111 = vmax.f32 %v1855, 0.0
        %v2112 = vmax.f32 %v1856, 0.0
        %v2113 = vmax.f32 %v1857, 0.0
        %v2114 = vmax.f32 %v1858, 0.0
        %v2115 = vmax.f32 %v1859, 0.0
        %v2116 = vmax.f32 %v1860, 0.0
        %v2117 = vmax.f32 %v1861, 0.0
        %v2118 = vmax.f32 %v1862, 0.0
        %v2119 = vmax.f32 %v1863, 0.0
        %v2120 = vmax.f32 %v1864, 0.0
        %v2121 = vmax.f32 %v1865, 0.0
        %v2122 = vmax.f32 %v1866, 0.0
        %v2123 = vmax.f32 %v1867, 0.0
        %v2124 = vmax.f32 %v1868, 0.0
        %v2125 = vmax.f32 %v1869, 0.0
        %v2126 = vmax.f32 %v1870, 0.0
        %v2127 = vmax.f32 %v1871, 0.0
        %v2128 = vmax.f32 %v1872, 0.0
        %v2129 = vmax.f32 %v1873, 0.0
        %v2130 = vmax.f32 %v1874, 0.0
        %v2131 = vmax.f32 %v1875, 0.0
        %v2132 = vmax.f32 %v1876, 0.0
        %v2133 = vmax.f32 %v1877, 0.0
        %v2134 = vmax.f32 %v1878, 0.0
        %v2135 = vmax.f32 %v1879, 0.0
        %v2136 = vmax.f32 %v1880, 0.0
        %v2137 = vmax.f32 %v1881, 0.0
        %v2138 = vmax.f32 %v1882, 0.0
        %v2139 = vmax.f32 %v1883, 0.0
        %v2140 = vmax.f32 %v1884, 0.0
        %v2141 = vmax.f32 %v1885, 0.0
        %v2142 = vmax.f32 %v1886, 0.0
        %v2143 = vmax.f32 %v1887, 0.0
        %v2144 = vmax.f32 %v1888, 0.0
        %v2145 = vmax.f32 %v1889, 0.0
        %v2146 = vmax.f32 %v1890, 0.0
        %v2147 = vmax.f32 %v1891, 0.0
        %v2148 = vmax.f32 %v1892, 0.0
        %v2149 = vmax.f32 %v1893, 0.0
        %v2150 = vmax.f32 %v1894, 0.0
        %v2151 = vmax.f32 %v1895, 0.0
        %v2152 = vmax.f32 %v1896, 0.0
        %v2153 = vmax.f32 %v1897, 0.0
        %v2154 = vmax.f32 %v1898, 0.0
        %v2155 = vmax.f32 %v1899, 0.0
        %v2156 = vmax.f32 %v1900, 0.0
        %v2157 = vmax.f32 %v1901, 0.0
        %v2158 = vmax.f32 %v1902, 0.0
        %v2159 = vmax.f32 %v1903, 0.0
        %v2160 = vmax.f32 %v1904, 0.0
        %v2161 = vmax.f32 %v1905, 0.0
        %v2162 = vmax.f32 %v1906, 0.0
        %v2163 = vmax.f32 %v1907, 0.0
        %v2164 = vmax.f32 %v1908, 0.0
        %v2165 = vmax.f32 %v1909, 0.0
        %v2166 = vmax.f32 %v1910, 0.0
        %v2167 = vmax.f32 %v1911, 0.0
        %v2168 = vmax.f32 %v1912, 0.0
        %v2169 = vmax.f32 %v1913, 0.0
        %v2170 = vmax.f32 %v1914, 0.0
        %v2171 = vmax.f32 %v1915, 0.0
        %v2172 = vmax.f32 %v1916, 0.0
        %v2173 = vmax.f32 %v1917, 0.0
        %v2174 = vmax.f32 %v1918, 0.0
        %v2175 = vmax.f32 %v1919, 0.0
        %v2176 = vmax.f32 %v1920, 0.0
        %v2177 = vmax.f32 %v1921, 0.0
        %v2178 = vmax.f32 %v1922, 0.0
        %v2179 = vpack.c.bf16 %v1924, %v1923
        %v2180 = vpack.c.bf16 %v1926, %v1925
        %v2181 = vpack.c.bf16 %v1928, %v1927
        %v2182 = vpack.c.bf16 %v1930, %v1929
        %v2183 = vpack.c.bf16 %v1932, %v1931
        %v2184 = vpack.c.bf16 %v1934, %v1933
        %v2185 = vpack.c.bf16 %v1936, %v1935
        %v2186 = vpack.c.bf16 %v1938, %v1937
        %v2187 = vpack.c.bf16 %v1940, %v1939
        %v2188 = vpack.c.bf16 %v1942, %v1941
        %v2189 = vpack.c.bf16 %v1944, %v1943
        %v2190 = vpack.c.bf16 %v1946, %v1945
        %v2191 = vpack.c.bf16 %v1948, %v1947
        %v2192 = vpack.c.bf16 %v1950, %v1949
        %v2193 = vpack.c.bf16 %v1952, %v1951
        %v2194 = vpack.c.bf16 %v1954, %v1953
        %v2195 = vpack.c.bf16 %v1956, %v1955
        %v2196 = vpack.c.bf16 %v1958, %v1957
        %v2197 = vpack.c.bf16 %v1960, %v1959
        %v2198 = vpack.c.bf16 %v1962, %v1961
        %v2199 = vpack.c.bf16 %v1964, %v1963
        %v2200 = vpack.c.bf16 %v1966, %v1965
        %v2201 = vpack.c.bf16 %v1968, %v1967
        %v2202 = vpack.c.bf16 %v1970, %v1969
        %v2203 = vpack.c.bf16 %v1972, %v1971
        %v2204 = vpack.c.bf16 %v1974, %v1973
        %v2205 = vpack.c.bf16 %v1976, %v1975
        %v2206 = vpack.c.bf16 %v1978, %v1977
        %v2207 = vpack.c.bf16 %v1980, %v1979
        %v2208 = vpack.c.bf16 %v1982, %v1981
        %v2209 = vpack.c.bf16 %v1984, %v1983
        %v2210 = vpack.c.bf16 %v1986, %v1985
        %v2211 = vpack.c.bf16 %v1988, %v1987
        %v2212 = vpack.c.bf16 %v1990, %v1989
        %v2213 = vpack.c.bf16 %v1992, %v1991
        %v2214 = vpack.c.bf16 %v1994, %v1993
        %v2215 = vpack.c.bf16 %v1996, %v1995
        %v2216 = vpack.c.bf16 %v1998, %v1997
        %v2217 = vpack.c.bf16 %v2000, %v1999
        %v2218 = vpack.c.bf16 %v2002, %v2001
        %v2219 = vpack.c.bf16 %v2004, %v2003
        %v2220 = vpack.c.bf16 %v2006, %v2005
        %v2221 = vpack.c.bf16 %v2008, %v2007
        %v2222 = vpack.c.bf16 %v2010, %v2009
        %v2223 = vpack.c.bf16 %v2012, %v2011
        %v2224 = vpack.c.bf16 %v2014, %v2013
        %v2225 = vpack.c.bf16 %v2016, %v2015
        %v2226 = vpack.c.bf16 %v2018, %v2017
        %v2227 = vpack.c.bf16 %v2020, %v2019
        %v2228 = vpack.c.bf16 %v2022, %v2021
        %v2229 = vpack.c.bf16 %v2024, %v2023
        %v2230 = vpack.c.bf16 %v2026, %v2025
        %v2231 = vpack.c.bf16 %v2028, %v2027
        %v2232 = vpack.c.bf16 %v2030, %v2029
        %v2233 = vpack.c.bf16 %v2032, %v2031
        %v2234 = vpack.c.bf16 %v2034, %v2033
        %v2235 = vpack.c.bf16 %v2036, %v2035
        %v2236 = vpack.c.bf16 %v2038, %v2037
        %v2237 = vpack.c.bf16 %v2040, %v2039
        %v2238 = vpack.c.bf16 %v2042, %v2041
        %v2239 = vpack.c.bf16 %v2044, %v2043
        %v2240 = vpack.c.bf16 %v2046, %v2045
        %v2241 = vpack.c.bf16 %v2048, %v2047
        %v2242 = vpack.c.bf16 %v2050, %v2049
        %v2243 = vpack.c.bf16 %v2052, %v2051
        %v2244 = vpack.c.bf16 %v2054, %v2053
        %v2245 = vpack.c.bf16 %v2056, %v2055
        %v2246 = vpack.c.bf16 %v2058, %v2057
        %v2247 = vpack.c.bf16 %v2060, %v2059
        %v2248 = vpack.c.bf16 %v2062, %v2061
        %v2249 = vpack.c.bf16 %v2064, %v2063
        %v2250 = vpack.c.bf16 %v2066, %v2065
        %v2251 = vpack.c.bf16 %v2068, %v2067
        %v2252 = vpack.c.bf16 %v2070, %v2069
        %v2253 = vpack.c.bf16 %v2072, %v2071
        %v2254 = vpack.c.bf16 %v2074, %v2073
        %v2255 = vpack.c.bf16 %v2076, %v2075
        %v2256 = vpack.c.bf16 %v2078, %v2077
        %v2257 = vpack.c.bf16 %v2080, %v2079
        %v2258 = vpack.c.bf16 %v2082, %v2081
        %v2259 = vpack.c.bf16 %v2084, %v2083
        %v2260 = vpack.c.bf16 %v2086, %v2085
        %v2261 = vpack.c.bf16 %v2088, %v2087
        %v2262 = vpack.c.bf16 %v2090, %v2089
        %v2263 = vpack.c.bf16 %v2092, %v2091
        %v2264 = vpack.c.bf16 %v2094, %v2093
        %v2265 = vpack.c.bf16 %v2096, %v2095
        %v2266 = vpack.c.bf16 %v2098, %v2097
        %v2267 = vpack.c.bf16 %v2100, %v2099
        %v2268 = vpack.c.bf16 %v2102, %v2101
        %v2269 = vpack.c.bf16 %v2104, %v2103
        %v2270 = vpack.c.bf16 %v2106, %v2105
        %v2271 = vpack.c.bf16 %v2108, %v2107
        %v2272 = vpack.c.bf16 %v2110, %v2109
        %v2273 = vpack.c.bf16 %v2112, %v2111
        %v2274 = vpack.c.bf16 %v2114, %v2113
        %v2275 = vpack.c.bf16 %v2116, %v2115
        %v2276 = vpack.c.bf16 %v2118, %v2117
        %v2277 = vpack.c.bf16 %v2120, %v2119
        %v2278 = vpack.c.bf16 %v2122, %v2121
        %v2279 = vpack.c.bf16 %v2124, %v2123
        %v2280 = vpack.c.bf16 %v2126, %v2125
        %v2281 = vpack.c.bf16 %v2128, %v2127
        %v2282 = vpack.c.bf16 %v2130, %v2129
        %v2283 = vpack.c.bf16 %v2132, %v2131
        %v2284 = vpack.c.bf16 %v2134, %v2133
        %v2285 = vpack.c.bf16 %v2136, %v2135
        %v2286 = vpack.c.bf16 %v2138, %v2137
        %v2287 = vpack.c.bf16 %v2140, %v2139
        %v2288 = vpack.c.bf16 %v2142, %v2141
        %v2289 = vpack.c.bf16 %v2144, %v2143
        %v2290 = vpack.c.bf16 %v2146, %v2145
        %v2291 = vpack.c.bf16 %v2148, %v2147
        %v2292 = vpack.c.bf16 %v2150, %v2149
        %v2293 = vpack.c.bf16 %v2152, %v2151
        %v2294 = vpack.c.bf16 %v2154, %v2153
        %v2295 = vpack.c.bf16 %v2156, %v2155
        %v2296 = vpack.c.bf16 %v2158, %v2157
        %v2297 = vpack.c.bf16 %v2160, %v2159
        %v2298 = vpack.c.bf16 %v2162, %v2161
        %v2299 = vpack.c.bf16 %v2164, %v2163
        %v2300 = vpack.c.bf16 %v2166, %v2165
        %v2301 = vpack.c.bf16 %v2168, %v2167
        %v2302 = vpack.c.bf16 %v2170, %v2169
        %v2303 = vpack.c.bf16 %v2172, %v2171
        %v2304 = vpack.c.bf16 %v2174, %v2173
        %v2305 = vpack.c.bf16 %v2176, %v2175
        %v2306 = vpack.c.bf16 %v2178, %v2177
        %v2435 = vunpack.c.l.b16 %v2179
        %v2436 = vunpack.c.h.b16 %v2179
        %v2437 = vunpack.c.l.b16 %v2180
        %v2438 = vunpack.c.h.b16 %v2180
        %v2439 = vunpack.c.l.b16 %v2181
        %v2440 = vunpack.c.h.b16 %v2181
        %v2441 = vunpack.c.l.b16 %v2182
        %v2442 = vunpack.c.h.b16 %v2182
        %v2443 = vunpack.c.l.b16 %v2183
        %v2444 = vunpack.c.h.b16 %v2183
        %v2445 = vunpack.c.l.b16 %v2184
        %v2446 = vunpack.c.h.b16 %v2184
        %v2447 = vunpack.c.l.b16 %v2185
        %v2448 = vunpack.c.h.b16 %v2185
        %v2449 = vunpack.c.l.b16 %v2186
        %v2450 = vunpack.c.h.b16 %v2186
        %v2451 = vunpack.c.l.b16 %v2187
        %v2452 = vunpack.c.h.b16 %v2187
        %v2453 = vunpack.c.l.b16 %v2188
        %v2454 = vunpack.c.h.b16 %v2188
        %v2455 = vunpack.c.l.b16 %v2189
        %v2456 = vunpack.c.h.b16 %v2189
        %v2457 = vunpack.c.l.b16 %v2190
        %v2458 = vunpack.c.h.b16 %v2190
        %v2459 = vunpack.c.l.b16 %v2191
        %v2460 = vunpack.c.h.b16 %v2191
        %v2461 = vunpack.c.l.b16 %v2192
        %v2462 = vunpack.c.h.b16 %v2192
        %v2463 = vunpack.c.l.b16 %v2193
        %v2464 = vunpack.c.h.b16 %v2193
        %v2465 = vunpack.c.l.b16 %v2194
        %v2466 = vunpack.c.h.b16 %v2194
        %v2467 = vunpack.c.l.b16 %v2195
        %v2468 = vunpack.c.h.b16 %v2195
        %v2469 = vunpack.c.l.b16 %v2196
        %v2470 = vunpack.c.h.b16 %v2196
        %v2471 = vunpack.c.l.b16 %v2197
        %v2472 = vunpack.c.h.b16 %v2197
        %v2473 = vunpack.c.l.b16 %v2198
        %v2474 = vunpack.c.h.b16 %v2198
        %v2475 = vunpack.c.l.b16 %v2199
        %v2476 = vunpack.c.h.b16 %v2199
        %v2477 = vunpack.c.l.b16 %v2200
        %v2478 = vunpack.c.h.b16 %v2200
        %v2479 = vunpack.c.l.b16 %v2201
        %v2480 = vunpack.c.h.b16 %v2201
        %v2481 = vunpack.c.l.b16 %v2202
        %v2482 = vunpack.c.h.b16 %v2202
        %v2483 = vunpack.c.l.b16 %v2203
        %v2484 = vunpack.c.h.b16 %v2203
        %v2485 = vunpack.c.l.b16 %v2204
        %v2486 = vunpack.c.h.b16 %v2204
        %v2487 = vunpack.c.l.b16 %v2205
        %v2488 = vunpack.c.h.b16 %v2205
        %v2489 = vunpack.c.l.b16 %v2206
        %v2490 = vunpack.c.h.b16 %v2206
        %v2491 = vunpack.c.l.b16 %v2207
        %v2492 = vunpack.c.h.b16 %v2207
        %v2493 = vunpack.c.l.b16 %v2208
        %v2494 = vunpack.c.h.b16 %v2208
        %v2495 = vunpack.c.l.b16 %v2209
        %v2496 = vunpack.c.h.b16 %v2209
        %v2497 = vunpack.c.l.b16 %v2210
        %v2498 = vunpack.c.h.b16 %v2210
        %v2499 = vunpack.c.l.b16 %v2211
        %v2500 = vunpack.c.h.b16 %v2211
        %v2501 = vunpack.c.l.b16 %v2212
        %v2502 = vunpack.c.h.b16 %v2212
        %v2503 = vunpack.c.l.b16 %v2213
        %v2504 = vunpack.c.h.b16 %v2213
        %v2505 = vunpack.c.l.b16 %v2214
        %v2506 = vunpack.c.h.b16 %v2214
        %v2507 = vunpack.c.l.b16 %v2215
        %v2508 = vunpack.c.h.b16 %v2215
        %v2509 = vunpack.c.l.b16 %v2216
        %v2510 = vunpack.c.h.b16 %v2216
        %v2511 = vunpack.c.l.b16 %v2217
        %v2512 = vunpack.c.h.b16 %v2217
        %v2513 = vunpack.c.l.b16 %v2218
        %v2514 = vunpack.c.h.b16 %v2218
        %v2515 = vunpack.c.l.b16 %v2219
        %v2516 = vunpack.c.h.b16 %v2219
        %v2517 = vunpack.c.l.b16 %v2220
        %v2518 = vunpack.c.h.b16 %v2220
        %v2519 = vunpack.c.l.b16 %v2221
        %v2520 = vunpack.c.h.b16 %v2221
        %v2521 = vunpack.c.l.b16 %v2222
        %v2522 = vunpack.c.h.b16 %v2222
        %v2523 = vunpack.c.l.b16 %v2223
        %v2524 = vunpack.c.h.b16 %v2223
        %v2525 = vunpack.c.l.b16 %v2224
        %v2526 = vunpack.c.h.b16 %v2224
        %v2527 = vunpack.c.l.b16 %v2225
        %v2528 = vunpack.c.h.b16 %v2225
        %v2529 = vunpack.c.l.b16 %v2226
        %v2530 = vunpack.c.h.b16 %v2226
        %v2531 = vunpack.c.l.b16 %v2227
        %v2532 = vunpack.c.h.b16 %v2227
        %v2533 = vunpack.c.l.b16 %v2228
        %v2534 = vunpack.c.h.b16 %v2228
        %v2535 = vunpack.c.l.b16 %v2229
        %v2536 = vunpack.c.h.b16 %v2229
        %v2537 = vunpack.c.l.b16 %v2230
        %v2538 = vunpack.c.h.b16 %v2230
        %v2539 = vunpack.c.l.b16 %v2231
        %v2540 = vunpack.c.h.b16 %v2231
        %v2541 = vunpack.c.l.b16 %v2232
        %v2542 = vunpack.c.h.b16 %v2232
        %v2543 = vunpack.c.l.b16 %v2233
        %v2544 = vunpack.c.h.b16 %v2233
        %v2545 = vunpack.c.l.b16 %v2234
        %v2546 = vunpack.c.h.b16 %v2234
        %v2547 = vunpack.c.l.b16 %v2235
        %v2548 = vunpack.c.h.b16 %v2235
        %v2549 = vunpack.c.l.b16 %v2236
        %v2550 = vunpack.c.h.b16 %v2236
        %v2551 = vunpack.c.l.b16 %v2237
        %v2552 = vunpack.c.h.b16 %v2237
        %v2553 = vunpack.c.l.b16 %v2238
        %v2554 = vunpack.c.h.b16 %v2238
        %v2555 = vunpack.c.l.b16 %v2239
        %v2556 = vunpack.c.h.b16 %v2239
        %v2557 = vunpack.c.l.b16 %v2240
        %v2558 = vunpack.c.h.b16 %v2240
        %v2559 = vunpack.c.l.b16 %v2241
        %v2560 = vunpack.c.h.b16 %v2241
        %v2561 = vunpack.c.l.b16 %v2242
        %v2562 = vunpack.c.h.b16 %v2242
        %v2563 = vunpack.c.l.b16 %v2243
        %v2564 = vunpack.c.h.b16 %v2243
        %v2565 = vunpack.c.l.b16 %v2244
        %v2566 = vunpack.c.h.b16 %v2244
        %v2567 = vunpack.c.l.b16 %v2245
        %v2568 = vunpack.c.h.b16 %v2245
        %v2569 = vunpack.c.l.b16 %v2246
        %v2570 = vunpack.c.h.b16 %v2246
        %v2571 = vunpack.c.l.b16 %v2247
        %v2572 = vunpack.c.h.b16 %v2247
        %v2573 = vunpack.c.l.b16 %v2248
        %v2574 = vunpack.c.h.b16 %v2248
        %v2575 = vunpack.c.l.b16 %v2249
        %v2576 = vunpack.c.h.b16 %v2249
        %v2577 = vunpack.c.l.b16 %v2250
        %v2578 = vunpack.c.h.b16 %v2250
        %v2579 = vunpack.c.l.b16 %v2251
        %v2580 = vunpack.c.h.b16 %v2251
        %v2581 = vunpack.c.l.b16 %v2252
        %v2582 = vunpack.c.h.b16 %v2252
        %v2583 = vunpack.c.l.b16 %v2253
        %v2584 = vunpack.c.h.b16 %v2253
        %v2585 = vunpack.c.l.b16 %v2254
        %v2586 = vunpack.c.h.b16 %v2254
        %v2587 = vunpack.c.l.b16 %v2255
        %v2588 = vunpack.c.h.b16 %v2255
        %v2589 = vunpack.c.l.b16 %v2256
        %v2590 = vunpack.c.h.b16 %v2256
        %v2591 = vunpack.c.l.b16 %v2257
        %v2592 = vunpack.c.h.b16 %v2257
        %v2593 = vunpack.c.l.b16 %v2258
        %v2594 = vunpack.c.h.b16 %v2258
        %v2595 = vunpack.c.l.b16 %v2259
        %v2596 = vunpack.c.h.b16 %v2259
        %v2597 = vunpack.c.l.b16 %v2260
        %v2598 = vunpack.c.h.b16 %v2260
        %v2599 = vunpack.c.l.b16 %v2261
        %v2600 = vunpack.c.h.b16 %v2261
        %v2601 = vunpack.c.l.b16 %v2262
        %v2602 = vunpack.c.h.b16 %v2262
        %v2603 = vunpack.c.l.b16 %v2263
        %v2604 = vunpack.c.h.b16 %v2263
        %v2605 = vunpack.c.l.b16 %v2264
        %v2606 = vunpack.c.h.b16 %v2264
        %v2607 = vunpack.c.l.b16 %v2265
        %v2608 = vunpack.c.h.b16 %v2265
        %v2609 = vunpack.c.l.b16 %v2266
        %v2610 = vunpack.c.h.b16 %v2266
        %v2611 = vunpack.c.l.b16 %v2267
        %v2612 = vunpack.c.h.b16 %v2267
        %v2613 = vunpack.c.l.b16 %v2268
        %v2614 = vunpack.c.h.b16 %v2268
        %v2615 = vunpack.c.l.b16 %v2269
        %v2616 = vunpack.c.h.b16 %v2269
        %v2617 = vunpack.c.l.b16 %v2270
        %v2618 = vunpack.c.h.b16 %v2270
        %v2619 = vunpack.c.l.b16 %v2271
        %v2620 = vunpack.c.h.b16 %v2271
        %v2621 = vunpack.c.l.b16 %v2272
        %v2622 = vunpack.c.h.b16 %v2272
        %v2623 = vunpack.c.l.b16 %v2273
        %v2624 = vunpack.c.h.b16 %v2273
        %v2625 = vunpack.c.l.b16 %v2274
        %v2626 = vunpack.c.h.b16 %v2274
        %v2627 = vunpack.c.l.b16 %v2275
        %v2628 = vunpack.c.h.b16 %v2275
        %v2629 = vunpack.c.l.b16 %v2276
        %v2630 = vunpack.c.h.b16 %v2276
        %v2631 = vunpack.c.l.b16 %v2277
        %v2632 = vunpack.c.h.b16 %v2277
        %v2633 = vunpack.c.l.b16 %v2278
        %v2634 = vunpack.c.h.b16 %v2278
        %v2635 = vunpack.c.l.b16 %v2279
        %v2636 = vunpack.c.h.b16 %v2279
        %v2637 = vunpack.c.l.b16 %v2280
        %v2638 = vunpack.c.h.b16 %v2280
        %v2639 = vunpack.c.l.b16 %v2281
        %v2640 = vunpack.c.h.b16 %v2281
        %v2641 = vunpack.c.l.b16 %v2282
        %v2642 = vunpack.c.h.b16 %v2282
        %v2643 = vunpack.c.l.b16 %v2283
        %v2644 = vunpack.c.h.b16 %v2283
        %v2645 = vunpack.c.l.b16 %v2284
        %v2646 = vunpack.c.h.b16 %v2284
        %v2647 = vunpack.c.l.b16 %v2285
        %v2648 = vunpack.c.h.b16 %v2285
        %v2649 = vunpack.c.l.b16 %v2286
        %v2650 = vunpack.c.h.b16 %v2286
        %v2651 = vunpack.c.l.b16 %v2287
        %v2652 = vunpack.c.h.b16 %v2287
        %v2653 = vunpack.c.l.b16 %v2288
        %v2654 = vunpack.c.h.b16 %v2288
        %v2655 = vunpack.c.l.b16 %v2289
        %v2656 = vunpack.c.h.b16 %v2289
        %v2657 = vunpack.c.l.b16 %v2290
        %v2658 = vunpack.c.h.b16 %v2290
        %v2659 = vunpack.c.l.b16 %v2291
        %v2660 = vunpack.c.h.b16 %v2291
        %v2661 = vunpack.c.l.b16 %v2292
        %v2662 = vunpack.c.h.b16 %v2292
        %v2663 = vunpack.c.l.b16 %v2293
        %v2664 = vunpack.c.h.b16 %v2293
        %v2665 = vunpack.c.l.b16 %v2294
        %v2666 = vunpack.c.h.b16 %v2294
        %v2667 = vunpack.c.l.b16 %v2295
        %v2668 = vunpack.c.h.b16 %v2295
        %v2669 = vunpack.c.l.b16 %v2296
        %v2670 = vunpack.c.h.b16 %v2296
        %v2671 = vunpack.c.l.b16 %v2297
        %v2672 = vunpack.c.h.b16 %v2297
        %v2673 = vunpack.c.l.b16 %v2298
        %v2674 = vunpack.c.h.b16 %v2298
        %v2675 = vunpack.c.l.b16 %v2299
        %v2676 = vunpack.c.h.b16 %v2299
        %v2677 = vunpack.c.l.b16 %v2300
        %v2678 = vunpack.c.h.b16 %v2300
        %v2679 = vunpack.c.l.b16 %v2301
        %v2680 = vunpack.c.h.b16 %v2301
        %v2681 = vunpack.c.l.b16 %v2302
        %v2682 = vunpack.c.h.b16 %v2302
        %v2683 = vunpack.c.l.b16 %v2303
        %v2684 = vunpack.c.h.b16 %v2303
        %v2685 = vunpack.c.l.b16 %v2304
        %v2686 = vunpack.c.h.b16 %v2304
        %v2687 = vunpack.c.l.b16 %v2305
        %v2688 = vunpack.c.h.b16 %v2305
        %v2689 = vunpack.c.l.b16 %v2306
        %v2690 = vunpack.c.h.b16 %v2306
        %v2691 = vpack.c.b16 %v2435, %v2435
        %v2692 = vpack.c.b16 %v2436, %v2436
        %v2693 = vpack.c.b16 %v2437, %v2437
        %v2694 = vpack.c.b16 %v2438, %v2438
        %v2695 = vpack.c.b16 %v2439, %v2439
        %v2696 = vpack.c.b16 %v2440, %v2440
        %v2697 = vpack.c.b16 %v2441, %v2441
        %v2698 = vpack.c.b16 %v2442, %v2442
        %v2699 = vpack.c.b16 %v2443, %v2443
        %v2700 = vpack.c.b16 %v2444, %v2444
        %v2701 = vpack.c.b16 %v2445, %v2445
        %v2702 = vpack.c.b16 %v2446, %v2446
        %v2703 = vpack.c.b16 %v2447, %v2447
        %v2704 = vpack.c.b16 %v2448, %v2448
        %v2705 = vpack.c.b16 %v2449, %v2449
        %v2706 = vpack.c.b16 %v2450, %v2450
        %v2707 = vpack.c.b16 %v2451, %v2451
        %v2708 = vpack.c.b16 %v2452, %v2452
        %v2709 = vpack.c.b16 %v2453, %v2453
        %v2710 = vpack.c.b16 %v2454, %v2454
        %v2711 = vpack.c.b16 %v2455, %v2455
        %v2712 = vpack.c.b16 %v2456, %v2456
        %v2713 = vpack.c.b16 %v2457, %v2457
        %v2714 = vpack.c.b16 %v2458, %v2458
        %v2715 = vpack.c.b16 %v2459, %v2459
        %v2716 = vpack.c.b16 %v2460, %v2460
        %v2717 = vpack.c.b16 %v2461, %v2461
        %v2718 = vpack.c.b16 %v2462, %v2462
        %v2719 = vpack.c.b16 %v2463, %v2463
        %v2720 = vpack.c.b16 %v2464, %v2464
        %v2721 = vpack.c.b16 %v2465, %v2465
        %v2722 = vpack.c.b16 %v2466, %v2466
        %v2723 = vpack.c.b16 %v2467, %v2467
        %v2724 = vpack.c.b16 %v2468, %v2468
        %v2725 = vpack.c.b16 %v2469, %v2469
        %v2726 = vpack.c.b16 %v2470, %v2470
        %v2727 = vpack.c.b16 %v2471, %v2471
        %v2728 = vpack.c.b16 %v2472, %v2472
        %v2729 = vpack.c.b16 %v2473, %v2473
        %v2730 = vpack.c.b16 %v2474, %v2474
        %v2731 = vpack.c.b16 %v2475, %v2475
        %v2732 = vpack.c.b16 %v2476, %v2476
        %v2733 = vpack.c.b16 %v2477, %v2477
        %v2734 = vpack.c.b16 %v2478, %v2478
        %v2735 = vpack.c.b16 %v2479, %v2479
        %v2736 = vpack.c.b16 %v2480, %v2480
        %v2737 = vpack.c.b16 %v2481, %v2481
        %v2738 = vpack.c.b16 %v2482, %v2482
        %v2739 = vpack.c.b16 %v2483, %v2483
        %v2740 = vpack.c.b16 %v2484, %v2484
        %v2741 = vpack.c.b16 %v2485, %v2485
        %v2742 = vpack.c.b16 %v2486, %v2486
        %v2743 = vpack.c.b16 %v2487, %v2487
        %v2744 = vpack.c.b16 %v2488, %v2488
        %v2745 = vpack.c.b16 %v2489, %v2489
        %v2746 = vpack.c.b16 %v2490, %v2490
        %v2747 = vpack.c.b16 %v2491, %v2491
        %v2748 = vpack.c.b16 %v2492, %v2492
        %v2749 = vpack.c.b16 %v2493, %v2493
        %v2750 = vpack.c.b16 %v2494, %v2494
        %v2751 = vpack.c.b16 %v2495, %v2495
        %v2752 = vpack.c.b16 %v2496, %v2496
        %v2753 = vpack.c.b16 %v2497, %v2497
        %v2754 = vpack.c.b16 %v2498, %v2498
        %v2755 = vpack.c.b16 %v2499, %v2499
        %v2756 = vpack.c.b16 %v2500, %v2500
        %v2757 = vpack.c.b16 %v2501, %v2501
        %v2758 = vpack.c.b16 %v2502, %v2502
        %v2759 = vpack.c.b16 %v2503, %v2503
        %v2760 = vpack.c.b16 %v2504, %v2504
        %v2761 = vpack.c.b16 %v2505, %v2505
        %v2762 = vpack.c.b16 %v2506, %v2506
        %v2763 = vpack.c.b16 %v2507, %v2507
        %v2764 = vpack.c.b16 %v2508, %v2508
        %v2765 = vpack.c.b16 %v2509, %v2509
        %v2766 = vpack.c.b16 %v2510, %v2510
        %v2767 = vpack.c.b16 %v2511, %v2511
        %v2768 = vpack.c.b16 %v2512, %v2512
        %v2769 = vpack.c.b16 %v2513, %v2513
        %v2770 = vpack.c.b16 %v2514, %v2514
        %v2771 = vpack.c.b16 %v2515, %v2515
        %v2772 = vpack.c.b16 %v2516, %v2516
        %v2773 = vpack.c.b16 %v2517, %v2517
        %v2774 = vpack.c.b16 %v2518, %v2518
        %v2775 = vpack.c.b16 %v2519, %v2519
        %v2776 = vpack.c.b16 %v2520, %v2520
        %v2777 = vpack.c.b16 %v2521, %v2521
        %v2778 = vpack.c.b16 %v2522, %v2522
        %v2779 = vpack.c.b16 %v2523, %v2523
        %v2780 = vpack.c.b16 %v2524, %v2524
        %v2781 = vpack.c.b16 %v2525, %v2525
        %v2782 = vpack.c.b16 %v2526, %v2526
        %v2783 = vpack.c.b16 %v2527, %v2527
        %v2784 = vpack.c.b16 %v2528, %v2528
        %v2785 = vpack.c.b16 %v2529, %v2529
        %v2786 = vpack.c.b16 %v2530, %v2530
        %v2787 = vpack.c.b16 %v2531, %v2531
        %v2788 = vpack.c.b16 %v2532, %v2532
        %v2789 = vpack.c.b16 %v2533, %v2533
        %v2790 = vpack.c.b16 %v2534, %v2534
        %v2791 = vpack.c.b16 %v2535, %v2535
        %v2792 = vpack.c.b16 %v2536, %v2536
        %v2793 = vpack.c.b16 %v2537, %v2537
        %v2794 = vpack.c.b16 %v2538, %v2538
        %v2795 = vpack.c.b16 %v2539, %v2539
        %v2796 = vpack.c.b16 %v2540, %v2540
        %v2797 = vpack.c.b16 %v2541, %v2541
        %v2798 = vpack.c.b16 %v2542, %v2542
        %v2799 = vpack.c.b16 %v2543, %v2543
        %v2800 = vpack.c.b16 %v2544, %v2544
        %v2801 = vpack.c.b16 %v2545, %v2545
        %v2802 = vpack.c.b16 %v2546, %v2546
        %v2803 = vpack.c.b16 %v2547, %v2547
        %v2804 = vpack.c.b16 %v2548, %v2548
        %v2805 = vpack.c.b16 %v2549, %v2549
        %v2806 = vpack.c.b16 %v2550, %v2550
        %v2807 = vpack.c.b16 %v2551, %v2551
        %v2808 = vpack.c.b16 %v2552, %v2552
        %v2809 = vpack.c.b16 %v2553, %v2553
        %v2810 = vpack.c.b16 %v2554, %v2554
        %v2811 = vpack.c.b16 %v2555, %v2555
        %v2812 = vpack.c.b16 %v2556, %v2556
        %v2813 = vpack.c.b16 %v2557, %v2557
        %v2814 = vpack.c.b16 %v2558, %v2558
        %v2815 = vpack.c.b16 %v2559, %v2559
        %v2816 = vpack.c.b16 %v2560, %v2560
        %v2817 = vpack.c.b16 %v2561, %v2561
        %v2818 = vpack.c.b16 %v2562, %v2562
        %v2819 = vpack.c.b16 %v2563, %v2563
        %v2820 = vpack.c.b16 %v2564, %v2564
        %v2821 = vpack.c.b16 %v2565, %v2565
        %v2822 = vpack.c.b16 %v2566, %v2566
        %v2823 = vpack.c.b16 %v2567, %v2567
        %v2824 = vpack.c.b16 %v2568, %v2568
        %v2825 = vpack.c.b16 %v2569, %v2569
        %v2826 = vpack.c.b16 %v2570, %v2570
        %v2827 = vpack.c.b16 %v2571, %v2571
        %v2828 = vpack.c.b16 %v2572, %v2572
        %v2829 = vpack.c.b16 %v2573, %v2573
        %v2830 = vpack.c.b16 %v2574, %v2574
        %v2831 = vpack.c.b16 %v2575, %v2575
        %v2832 = vpack.c.b16 %v2576, %v2576
        %v2833 = vpack.c.b16 %v2577, %v2577
        %v2834 = vpack.c.b16 %v2578, %v2578
        %v2835 = vpack.c.b16 %v2579, %v2579
        %v2836 = vpack.c.b16 %v2580, %v2580
        %v2837 = vpack.c.b16 %v2581, %v2581
        %v2838 = vpack.c.b16 %v2582, %v2582
        %v2839 = vpack.c.b16 %v2583, %v2583
        %v2840 = vpack.c.b16 %v2584, %v2584
        %v2841 = vpack.c.b16 %v2585, %v2585
        %v2842 = vpack.c.b16 %v2586, %v2586
        %v2843 = vpack.c.b16 %v2587, %v2587
        %v2844 = vpack.c.b16 %v2588, %v2588
        %v2845 = vpack.c.b16 %v2589, %v2589
        %v2846 = vpack.c.b16 %v2590, %v2590
        %v2847 = vpack.c.b16 %v2591, %v2591
        %v2848 = vpack.c.b16 %v2592, %v2592
        %v2849 = vpack.c.b16 %v2593, %v2593
        %v2850 = vpack.c.b16 %v2594, %v2594
        %v2851 = vpack.c.b16 %v2595, %v2595
        %v2852 = vpack.c.b16 %v2596, %v2596
        %v2853 = vpack.c.b16 %v2597, %v2597
        %v2854 = vpack.c.b16 %v2598, %v2598
        %v2855 = vpack.c.b16 %v2599, %v2599
        %v2856 = vpack.c.b16 %v2600, %v2600
        %v2857 = vpack.c.b16 %v2601, %v2601
        %v2858 = vpack.c.b16 %v2602, %v2602
        %v2859 = vpack.c.b16 %v2603, %v2603
        %v2860 = vpack.c.b16 %v2604, %v2604
        %v2861 = vpack.c.b16 %v2605, %v2605
        %v2862 = vpack.c.b16 %v2606, %v2606
        %v2863 = vpack.c.b16 %v2607, %v2607
        %v2864 = vpack.c.b16 %v2608, %v2608
        %v2865 = vpack.c.b16 %v2609, %v2609
        %v2866 = vpack.c.b16 %v2610, %v2610
        %v2867 = vpack.c.b16 %v2611, %v2611
        %v2868 = vpack.c.b16 %v2612, %v2612
        %v2869 = vpack.c.b16 %v2613, %v2613
        %v2870 = vpack.c.b16 %v2614, %v2614
        %v2871 = vpack.c.b16 %v2615, %v2615
        %v2872 = vpack.c.b16 %v2616, %v2616
        %v2873 = vpack.c.b16 %v2617, %v2617
        %v2874 = vpack.c.b16 %v2618, %v2618
        %v2875 = vpack.c.b16 %v2619, %v2619
        %v2876 = vpack.c.b16 %v2620, %v2620
        %v2877 = vpack.c.b16 %v2621, %v2621
        %v2878 = vpack.c.b16 %v2622, %v2622
        %v2879 = vpack.c.b16 %v2623, %v2623
        %v2880 = vpack.c.b16 %v2624, %v2624
        %v2881 = vpack.c.b16 %v2625, %v2625
        %v2882 = vpack.c.b16 %v2626, %v2626
        %v2883 = vpack.c.b16 %v2627, %v2627
        %v2884 = vpack.c.b16 %v2628, %v2628
        %v2885 = vpack.c.b16 %v2629, %v2629
        %v2886 = vpack.c.b16 %v2630, %v2630
        %v2887 = vpack.c.b16 %v2631, %v2631
        %v2888 = vpack.c.b16 %v2632, %v2632
        %v2889 = vpack.c.b16 %v2633, %v2633
        %v2890 = vpack.c.b16 %v2634, %v2634
        %v2891 = vpack.c.b16 %v2635, %v2635
        %v2892 = vpack.c.b16 %v2636, %v2636
        %v2893 = vpack.c.b16 %v2637, %v2637
        %v2894 = vpack.c.b16 %v2638, %v2638
        %v2895 = vpack.c.b16 %v2639, %v2639
        %v2896 = vpack.c.b16 %v2640, %v2640
        %v2897 = vpack.c.b16 %v2641, %v2641
        %v2898 = vpack.c.b16 %v2642, %v2642
        %v2899 = vpack.c.b16 %v2643, %v2643
        %v2900 = vpack.c.b16 %v2644, %v2644
        %v2901 = vpack.c.b16 %v2645, %v2645
        %v2902 = vpack.c.b16 %v2646, %v2646
        %v2903 = vpack.c.b16 %v2647, %v2647
        %v2904 = vpack.c.b16 %v2648, %v2648
        %v2905 = vpack.c.b16 %v2649, %v2649
        %v2906 = vpack.c.b16 %v2650, %v2650
        %v2907 = vpack.c.b16 %v2651, %v2651
        %v2908 = vpack.c.b16 %v2652, %v2652
        %v2909 = vpack.c.b16 %v2653, %v2653
        %v2910 = vpack.c.b16 %v2654, %v2654
        %v2911 = vpack.c.b16 %v2655, %v2655
        %v2912 = vpack.c.b16 %v2656, %v2656
        %v2913 = vpack.c.b16 %v2657, %v2657
        %v2914 = vpack.c.b16 %v2658, %v2658
        %v2915 = vpack.c.b16 %v2659, %v2659
        %v2916 = vpack.c.b16 %v2660, %v2660
        %v2917 = vpack.c.b16 %v2661, %v2661
        %v2918 = vpack.c.b16 %v2662, %v2662
        %v2919 = vpack.c.b16 %v2663, %v2663
        %v2920 = vpack.c.b16 %v2664, %v2664
        %v2921 = vpack.c.b16 %v2665, %v2665
        %v2922 = vpack.c.b16 %v2666, %v2666
        %v2923 = vpack.c.b16 %v2667, %v2667
        %v2924 = vpack.c.b16 %v2668, %v2668
        %v2925 = vpack.c.b16 %v2669, %v2669
        %v2926 = vpack.c.b16 %v2670, %v2670
        %v2927 = vpack.c.b16 %v2671, %v2671
        %v2928 = vpack.c.b16 %v2672, %v2672
        %v2929 = vpack.c.b16 %v2673, %v2673
        %v2930 = vpack.c.b16 %v2674, %v2674
        %v2931 = vpack.c.b16 %v2675, %v2675
        %v2932 = vpack.c.b16 %v2676, %v2676
        %v2933 = vpack.c.b16 %v2677, %v2677
        %v2934 = vpack.c.b16 %v2678, %v2678
        %v2935 = vpack.c.b16 %v2679, %v2679
        %v2936 = vpack.c.b16 %v2680, %v2680
        %v2937 = vpack.c.b16 %v2681, %v2681
        %v2938 = vpack.c.b16 %v2682, %v2682
        %v2939 = vpack.c.b16 %v2683, %v2683
        %v2940 = vpack.c.b16 %v2684, %v2684
        %v2941 = vpack.c.b16 %v2685, %v2685
        %v2942 = vpack.c.b16 %v2686, %v2686
        %v2943 = vpack.c.b16 %v2687, %v2687
        %v2944 = vpack.c.b16 %v2688, %v2688
        %v2945 = vpack.c.b16 %v2689, %v2689
        %v2946 = vpack.c.b16 %v2690, %v2690
        %3203 = vst [vmem:[%s4] sm:$0xf] %v2691
        %3204 = vst [vmem:[%s4 + $0x4] sm:$0xf] %v2692
        %3205 = vst [vmem:[%s4 + $0x8] sm:$0xf] %v2693
        %3206 = vst [vmem:[%s4 + $0xc] sm:$0xf] %v2694
        %3207 = vst [vmem:[%s4 + $0x10] sm:$0xf] %v2695
        %3208 = vst [vmem:[%s4 + $0x14] sm:$0xf] %v2696
        %3209 = vst [vmem:[%s4 + $0x18] sm:$0xf] %v2697
        %3210 = vst [vmem:[%s4 + $0x1c] sm:$0xf] %v2698
        %3211 = vst [vmem:[%s4 + $0x20] sm:$0xf] %v2699
        %3212 = vst [vmem:[%s4 + $0x24] sm:$0xf] %v2700
        %3213 = vst [vmem:[%s4 + $0x28] sm:$0xf] %v2701
        %3214 = vst [vmem:[%s4 + $0x2c] sm:$0xf] %v2702
        %3215 = vst [vmem:[%s4 + $0x30] sm:$0xf] %v2703
        %3216 = vst [vmem:[%s4 + $0x34] sm:$0xf] %v2704
        %3217 = vst [vmem:[%s4 + $0x38] sm:$0xf] %v2705
        %3218 = vst [vmem:[%s4 + $0x3c] sm:$0xf] %v2706
        %3219 = vst [vmem:[%s4 + $0x40] sm:$0xf] %v2707
        %3220 = vst [vmem:[%s4 + $0x44] sm:$0xf] %v2708
        %3221 = vst [vmem:[%s4 + $0x48] sm:$0xf] %v2709
        %3222 = vst [vmem:[%s4 + $0x4c] sm:$0xf] %v2710
        %3223 = vst [vmem:[%s4 + $0x50] sm:$0xf] %v2711
        %3224 = vst [vmem:[%s4 + $0x54] sm:$0xf] %v2712
        %3225 = vst [vmem:[%s4 + $0x58] sm:$0xf] %v2713
        %3226 = vst [vmem:[%s4 + $0x5c] sm:$0xf] %v2714
        %3227 = vst [vmem:[%s4 + $0x60] sm:$0xf] %v2715
        %3228 = vst [vmem:[%s4 + $0x64] sm:$0xf] %v2716
        %3229 = vst [vmem:[%s4 + $0x68] sm:$0xf] %v2717
        %3230 = vst [vmem:[%s4 + $0x6c] sm:$0xf] %v2718
        %3231 = vst [vmem:[%s4 + $0x70] sm:$0xf] %v2719
        %3232 = vst [vmem:[%s4 + $0x74] sm:$0xf] %v2720
        %3233 = vst [vmem:[%s4 + $0x78] sm:$0xf] %v2721
        %3234 = vst [vmem:[%s4 + $0x7c] sm:$0xf] %v2722
        %3235 = vst [vmem:[%s4 + $0x80] sm:$0xf] %v2723
        %3236 = vst [vmem:[%s4 + $0x84] sm:$0xf] %v2724
        %3237 = vst [vmem:[%s4 + $0x88] sm:$0xf] %v2725
        %3238 = vst [vmem:[%s4 + $0x8c] sm:$0xf] %v2726
        %3239 = vst [vmem:[%s4 + $0x90] sm:$0xf] %v2727
        %3240 = vst [vmem:[%s4 + $0x94] sm:$0xf] %v2728
        %3241 = vst [vmem:[%s4 + $0x98] sm:$0xf] %v2729
        %3242 = vst [vmem:[%s4 + $0x9c] sm:$0xf] %v2730
        %3243 = vst [vmem:[%s4 + $0xa0] sm:$0xf] %v2731
        %3244 = vst [vmem:[%s4 + $0xa4] sm:$0xf] %v2732
        %3245 = vst [vmem:[%s4 + $0xa8] sm:$0xf] %v2733
        %3246 = vst [vmem:[%s4 + $0xac] sm:$0xf] %v2734
        %3247 = vst [vmem:[%s4 + $0xb0] sm:$0xf] %v2735
        %3248 = vst [vmem:[%s4 + $0xb4] sm:$0xf] %v2736
        %3249 = vst [vmem:[%s4 + $0xb8] sm:$0xf] %v2737
        %3250 = vst [vmem:[%s4 + $0xbc] sm:$0xf] %v2738
        %3251 = vst [vmem:[%s4 + $0xc0] sm:$0xf] %v2739
        %3252 = vst [vmem:[%s4 + $0xc4] sm:$0xf] %v2740
        %3253 = vst [vmem:[%s4 + $0xc8] sm:$0xf] %v2741
        %3254 = vst [vmem:[%s4 + $0xcc] sm:$0xf] %v2742
        %3255 = vst [vmem:[%s4 + $0xd0] sm:$0xf] %v2743
        %3256 = vst [vmem:[%s4 + $0xd4] sm:$0xf] %v2744
        %3257 = vst [vmem:[%s4 + $0xd8] sm:$0xf] %v2745
        %3258 = vst [vmem:[%s4 + $0xdc] sm:$0xf] %v2746
        %3259 = vst [vmem:[%s4 + $0xe0] sm:$0xf] %v2747
        %3260 = vst [vmem:[%s4 + $0xe4] sm:$0xf] %v2748
        %3261 = vst [vmem:[%s4 + $0xe8] sm:$0xf] %v2749
        %3262 = vst [vmem:[%s4 + $0xec] sm:$0xf] %v2750
        %3263 = vst [vmem:[%s4 + $0xf0] sm:$0xf] %v2751
        %3264 = vst [vmem:[%s4 + $0xf4] sm:$0xf] %v2752
        %3265 = vst [vmem:[%s4 + $0xf8] sm:$0xf] %v2753
        %3266 = vst [vmem:[%s4 + $0xfc] sm:$0xf] %v2754
        %3267 = vst [vmem:[%s4 + $0x100] sm:$0xf] %v2755
        %3268 = vst [vmem:[%s4 + $0x104] sm:$0xf] %v2756
        %3269 = vst [vmem:[%s4 + $0x108] sm:$0xf] %v2757
        %3270 = vst [vmem:[%s4 + $0x10c] sm:$0xf] %v2758
        %3271 = vst [vmem:[%s4 + $0x110] sm:$0xf] %v2759
        %3272 = vst [vmem:[%s4 + $0x114] sm:$0xf] %v2760
        %3273 = vst [vmem:[%s4 + $0x118] sm:$0xf] %v2761
        %3274 = vst [vmem:[%s4 + $0x11c] sm:$0xf] %v2762
        %3275 = vst [vmem:[%s4 + $0x120] sm:$0xf] %v2763
        %3276 = vst [vmem:[%s4 + $0x124] sm:$0xf] %v2764
        %3277 = vst [vmem:[%s4 + $0x128] sm:$0xf] %v2765
        %3278 = vst [vmem:[%s4 + $0x12c] sm:$0xf] %v2766
        %3279 = vst [vmem:[%s4 + $0x130] sm:$0xf] %v2767
        %3280 = vst [vmem:[%s4 + $0x134] sm:$0xf] %v2768
        %3281 = vst [vmem:[%s4 + $0x138] sm:$0xf] %v2769
        %3282 = vst [vmem:[%s4 + $0x13c] sm:$0xf] %v2770
        %3283 = vst [vmem:[%s4 + $0x140] sm:$0xf] %v2771
        %3284 = vst [vmem:[%s4 + $0x144] sm:$0xf] %v2772
        %3285 = vst [vmem:[%s4 + $0x148] sm:$0xf] %v2773
        %3286 = vst [vmem:[%s4 + $0x14c] sm:$0xf] %v2774
        %3287 = vst [vmem:[%s4 + $0x150] sm:$0xf] %v2775
        %3288 = vst [vmem:[%s4 + $0x154] sm:$0xf] %v2776
        %3289 = vst [vmem:[%s4 + $0x158] sm:$0xf] %v2777
        %3290 = vst [vmem:[%s4 + $0x15c] sm:$0xf] %v2778
        %3291 = vst [vmem:[%s4 + $0x160] sm:$0xf] %v2779
        %3292 = vst [vmem:[%s4 + $0x164] sm:$0xf] %v2780
        %3293 = vst [vmem:[%s4 + $0x168] sm:$0xf] %v2781
        %3294 = vst [vmem:[%s4 + $0x16c] sm:$0xf] %v2782
        %3295 = vst [vmem:[%s4 + $0x170] sm:$0xf] %v2783
        %3296 = vst [vmem:[%s4 + $0x174] sm:$0xf] %v2784
        %3297 = vst [vmem:[%s4 + $0x178] sm:$0xf] %v2785
        %3298 = vst [vmem:[%s4 + $0x17c] sm:$0xf] %v2786
        %3299 = vst [vmem:[%s4 + $0x180] sm:$0xf] %v2787
        %3300 = vst [vmem:[%s4 + $0x184] sm:$0xf] %v2788
        %3301 = vst [vmem:[%s4 + $0x188] sm:$0xf] %v2789
        %3302 = vst [vmem:[%s4 + $0x18c] sm:$0xf] %v2790
        %3303 = vst [vmem:[%s4 + $0x190] sm:$0xf] %v2791
        %3304 = vst [vmem:[%s4 + $0x194] sm:$0xf] %v2792
        %3305 = vst [vmem:[%s4 + $0x198] sm:$0xf] %v2793
        %3306 = vst [vmem:[%s4 + $0x19c] sm:$0xf] %v2794
        %3307 = vst [vmem:[%s4 + $0x1a0] sm:$0xf] %v2795
        %3308 = vst [vmem:[%s4 + $0x1a4] sm:$0xf] %v2796
        %3309 = vst [vmem:[%s4 + $0x1a8] sm:$0xf] %v2797
        %3310 = vst [vmem:[%s4 + $0x1ac] sm:$0xf] %v2798
        %3311 = vst [vmem:[%s4 + $0x1b0] sm:$0xf] %v2799
        %3312 = vst [vmem:[%s4 + $0x1b4] sm:$0xf] %v2800
        %3313 = vst [vmem:[%s4 + $0x1b8] sm:$0xf] %v2801
        %3314 = vst [vmem:[%s4 + $0x1bc] sm:$0xf] %v2802
        %3315 = vst [vmem:[%s4 + $0x1c0] sm:$0xf] %v2803
        %3316 = vst [vmem:[%s4 + $0x1c4] sm:$0xf] %v2804
        %3317 = vst [vmem:[%s4 + $0x1c8] sm:$0xf] %v2805
        %3318 = vst [vmem:[%s4 + $0x1cc] sm:$0xf] %v2806
        %3319 = vst [vmem:[%s4 + $0x1d0] sm:$0xf] %v2807
        %3320 = vst [vmem:[%s4 + $0x1d4] sm:$0xf] %v2808
        %3321 = vst [vmem:[%s4 + $0x1d8] sm:$0xf] %v2809
        %3322 = vst [vmem:[%s4 + $0x1dc] sm:$0xf] %v2810
        %3323 = vst [vmem:[%s4 + $0x1e0] sm:$0xf] %v2811
        %3324 = vst [vmem:[%s4 + $0x1e4] sm:$0xf] %v2812
        %3325 = vst [vmem:[%s4 + $0x1e8] sm:$0xf] %v2813
        %3326 = vst [vmem:[%s4 + $0x1ec] sm:$0xf] %v2814
        %3327 = vst [vmem:[%s4 + $0x1f0] sm:$0xf] %v2815
        %3328 = vst [vmem:[%s4 + $0x1f4] sm:$0xf] %v2816
        %3329 = vst [vmem:[%s4 + $0x1f8] sm:$0xf] %v2817
        %3330 = vst [vmem:[%s4 + $0x1fc] sm:$0xf] %v2818
        %3331 = vst [vmem:[%s4 + $0x200] sm:$0xf] %v2819
        %3332 = vst [vmem:[%s4 + $0x204] sm:$0xf] %v2820
        %3333 = vst [vmem:[%s4 + $0x208] sm:$0xf] %v2821
        %3334 = vst [vmem:[%s4 + $0x20c] sm:$0xf] %v2822
        %3335 = vst [vmem:[%s4 + $0x210] sm:$0xf] %v2823
        %3336 = vst [vmem:[%s4 + $0x214] sm:$0xf] %v2824
        %3337 = vst [vmem:[%s4 + $0x218] sm:$0xf] %v2825
        %3338 = vst [vmem:[%s4 + $0x21c] sm:$0xf] %v2826
        %3339 = vst [vmem:[%s4 + $0x220] sm:$0xf] %v2827
        %3340 = vst [vmem:[%s4 + $0x224] sm:$0xf] %v2828
        %3341 = vst [vmem:[%s4 + $0x228] sm:$0xf] %v2829
        %3342 = vst [vmem:[%s4 + $0x22c] sm:$0xf] %v2830
        %3343 = vst [vmem:[%s4 + $0x230] sm:$0xf] %v2831
        %3344 = vst [vmem:[%s4 + $0x234] sm:$0xf] %v2832
        %3345 = vst [vmem:[%s4 + $0x238] sm:$0xf] %v2833
        %3346 = vst [vmem:[%s4 + $0x23c] sm:$0xf] %v2834
        %3347 = vst [vmem:[%s4 + $0x240] sm:$0xf] %v2835
        %3348 = vst [vmem:[%s4 + $0x244] sm:$0xf] %v2836
        %3349 = vst [vmem:[%s4 + $0x248] sm:$0xf] %v2837
        %3350 = vst [vmem:[%s4 + $0x24c] sm:$0xf] %v2838
        %3351 = vst [vmem:[%s4 + $0x250] sm:$0xf] %v2839
        %3352 = vst [vmem:[%s4 + $0x254] sm:$0xf] %v2840
        %3353 = vst [vmem:[%s4 + $0x258] sm:$0xf] %v2841
        %3354 = vst [vmem:[%s4 + $0x25c] sm:$0xf] %v2842
        %3355 = vst [vmem:[%s4 + $0x260] sm:$0xf] %v2843
        %3356 = vst [vmem:[%s4 + $0x264] sm:$0xf] %v2844
        %3357 = vst [vmem:[%s4 + $0x268] sm:$0xf] %v2845
        %3358 = vst [vmem:[%s4 + $0x26c] sm:$0xf] %v2846
        %3359 = vst [vmem:[%s4 + $0x270] sm:$0xf] %v2847
        %3360 = vst [vmem:[%s4 + $0x274] sm:$0xf] %v2848
        %3361 = vst [vmem:[%s4 + $0x278] sm:$0xf] %v2849
        %3362 = vst [vmem:[%s4 + $0x27c] sm:$0xf] %v2850
        %3363 = vst [vmem:[%s4 + $0x280] sm:$0xf] %v2851
        %3364 = vst [vmem:[%s4 + $0x284] sm:$0xf] %v2852
        %3365 = vst [vmem:[%s4 + $0x288] sm:$0xf] %v2853
        %3366 = vst [vmem:[%s4 + $0x28c] sm:$0xf] %v2854
        %3367 = vst [vmem:[%s4 + $0x290] sm:$0xf] %v2855
        %3368 = vst [vmem:[%s4 + $0x294] sm:$0xf] %v2856
        %3369 = vst [vmem:[%s4 + $0x298] sm:$0xf] %v2857
        %3370 = vst [vmem:[%s4 + $0x29c] sm:$0xf] %v2858
        %3371 = vst [vmem:[%s4 + $0x2a0] sm:$0xf] %v2859
        %3372 = vst [vmem:[%s4 + $0x2a4] sm:$0xf] %v2860
        %3373 = vst [vmem:[%s4 + $0x2a8] sm:$0xf] %v2861
        %3374 = vst [vmem:[%s4 + $0x2ac] sm:$0xf] %v2862
        %3375 = vst [vmem:[%s4 + $0x2b0] sm:$0xf] %v2863
        %3376 = vst [vmem:[%s4 + $0x2b4] sm:$0xf] %v2864
        %3377 = vst [vmem:[%s4 + $0x2b8] sm:$0xf] %v2865
        %3378 = vst [vmem:[%s4 + $0x2bc] sm:$0xf] %v2866
        %3379 = vst [vmem:[%s4 + $0x2c0] sm:$0xf] %v2867
        %3380 = vst [vmem:[%s4 + $0x2c4] sm:$0xf] %v2868
        %3381 = vst [vmem:[%s4 + $0x2c8] sm:$0xf] %v2869
        %3382 = vst [vmem:[%s4 + $0x2cc] sm:$0xf] %v2870
        %3383 = vst [vmem:[%s4 + $0x2d0] sm:$0xf] %v2871
        %3384 = vst [vmem:[%s4 + $0x2d4] sm:$0xf] %v2872
        %3385 = vst [vmem:[%s4 + $0x2d8] sm:$0xf] %v2873
        %3386 = vst [vmem:[%s4 + $0x2dc] sm:$0xf] %v2874
        %3387 = vst [vmem:[%s4 + $0x2e0] sm:$0xf] %v2875
        %3388 = vst [vmem:[%s4 + $0x2e4] sm:$0xf] %v2876
        %3389 = vst [vmem:[%s4 + $0x2e8] sm:$0xf] %v2877
        %3390 = vst [vmem:[%s4 + $0x2ec] sm:$0xf] %v2878
        %3391 = vst [vmem:[%s4 + $0x2f0] sm:$0xf] %v2879
        %3392 = vst [vmem:[%s4 + $0x2f4] sm:$0xf] %v2880
        %3393 = vst [vmem:[%s4 + $0x2f8] sm:$0xf] %v2881
        %3394 = vst [vmem:[%s4 + $0x2fc] sm:$0xf] %v2882
        %3395 = vst [vmem:[%s4 + $0x300] sm:$0xf] %v2883
        %3396 = vst [vmem:[%s4 + $0x304] sm:$0xf] %v2884
        %3397 = vst [vmem:[%s4 + $0x308] sm:$0xf] %v2885
        %3398 = vst [vmem:[%s4 + $0x30c] sm:$0xf] %v2886
        %3399 = vst [vmem:[%s4 + $0x310] sm:$0xf] %v2887
        %3400 = vst [vmem:[%s4 + $0x314] sm:$0xf] %v2888
        %3401 = vst [vmem:[%s4 + $0x318] sm:$0xf] %v2889
        %3402 = vst [vmem:[%s4 + $0x31c] sm:$0xf] %v2890
        %3403 = vst [vmem:[%s4 + $0x320] sm:$0xf] %v2891
        %3404 = vst [vmem:[%s4 + $0x324] sm:$0xf] %v2892
        %3405 = vst [vmem:[%s4 + $0x328] sm:$0xf] %v2893
        %3406 = vst [vmem:[%s4 + $0x32c] sm:$0xf] %v2894
        %3407 = vst [vmem:[%s4 + $0x330] sm:$0xf] %v2895
        %3408 = vst [vmem:[%s4 + $0x334] sm:$0xf] %v2896
        %3409 = vst [vmem:[%s4 + $0x338] sm:$0xf] %v2897
        %3410 = vst [vmem:[%s4 + $0x33c] sm:$0xf] %v2898
        %3411 = vst [vmem:[%s4 + $0x340] sm:$0xf] %v2899
        %3412 = vst [vmem:[%s4 + $0x344] sm:$0xf] %v2900
        %3413 = vst [vmem:[%s4 + $0x348] sm:$0xf] %v2901
        %3414 = vst [vmem:[%s4 + $0x34c] sm:$0xf] %v2902
        %3415 = vst [vmem:[%s4 + $0x350] sm:$0xf] %v2903
        %3416 = vst [vmem:[%s4 + $0x354] sm:$0xf] %v2904
        %3417 = vst [vmem:[%s4 + $0x358] sm:$0xf] %v2905
        %3418 = vst [vmem:[%s4 + $0x35c] sm:$0xf] %v2906
        %3419 = vst [vmem:[%s4 + $0x360] sm:$0xf] %v2907
        %3420 = vst [vmem:[%s4 + $0x364] sm:$0xf] %v2908
        %3421 = vst [vmem:[%s4 + $0x368] sm:$0xf] %v2909
        %3422 = vst [vmem:[%s4 + $0x36c] sm:$0xf] %v2910
        %3423 = vst [vmem:[%s4 + $0x370] sm:$0xf] %v2911
        %3424 = vst [vmem:[%s4 + $0x374] sm:$0xf] %v2912
        %3425 = vst [vmem:[%s4 + $0x378] sm:$0xf] %v2913
        %3426 = vst [vmem:[%s4 + $0x37c] sm:$0xf] %v2914
        %3427 = vst [vmem:[%s4 + $0x380] sm:$0xf] %v2915
        %3428 = vst [vmem:[%s4 + $0x384] sm:$0xf] %v2916
        %3429 = vst [vmem:[%s4 + $0x388] sm:$0xf] %v2917
        %3430 = vst [vmem:[%s4 + $0x38c] sm:$0xf] %v2918
        %3431 = vst [vmem:[%s4 + $0x390] sm:$0xf] %v2919
        %3432 = vst [vmem:[%s4 + $0x394] sm:$0xf] %v2920
        %3433 = vst [vmem:[%s4 + $0x398] sm:$0xf] %v2921
        %3434 = vst [vmem:[%s4 + $0x39c] sm:$0xf] %v2922
        %3435 = vst [vmem:[%s4 + $0x3a0] sm:$0xf] %v2923
        %3436 = vst [vmem:[%s4 + $0x3a4] sm:$0xf] %v2924
        %3437 = vst [vmem:[%s4 + $0x3a8] sm:$0xf] %v2925
        %3438 = vst [vmem:[%s4 + $0x3ac] sm:$0xf] %v2926
        %3439 = vst [vmem:[%s4 + $0x3b0] sm:$0xf] %v2927
        %3440 = vst [vmem:[%s4 + $0x3b4] sm:$0xf] %v2928
        %3441 = vst [vmem:[%s4 + $0x3b8] sm:$0xf] %v2929
        %3442 = vst [vmem:[%s4 + $0x3bc] sm:$0xf] %v2930
        %3443 = vst [vmem:[%s4 + $0x3c0] sm:$0xf] %v2931
        %3444 = vst [vmem:[%s4 + $0x3c4] sm:$0xf] %v2932
        %3445 = vst [vmem:[%s4 + $0x3c8] sm:$0xf] %v2933
        %3446 = vst [vmem:[%s4 + $0x3cc] sm:$0xf] %v2934
        %3447 = vst [vmem:[%s4 + $0x3d0] sm:$0xf] %v2935
        %3448 = vst [vmem:[%s4 + $0x3d4] sm:$0xf] %v2936
        %3449 = vst [vmem:[%s4 + $0x3d8] sm:$0xf] %v2937
        %3450 = vst [vmem:[%s4 + $0x3dc] sm:$0xf] %v2938
        %3451 = vst [vmem:[%s4 + $0x3e0] sm:$0xf] %v2939
        %3452 = vst [vmem:[%s4 + $0x3e4] sm:$0xf] %v2940
        %3453 = vst [vmem:[%s4 + $0x3e8] sm:$0xf] %v2941
        %3454 = vst [vmem:[%s4 + $0x3ec] sm:$0xf] %v2942
        %3455 = vst [vmem:[%s4 + $0x3f0] sm:$0xf] %v2943
        %3456 = vst [vmem:[%s4 + $0x3f4] sm:$0xf] %v2944
        %3457 = vst [vmem:[%s4 + $0x3f8] sm:$0xf] %v2945
        %3458 = vst [vmem:[%s4 + $0x3fc] sm:$0xf] %v2946
      $region44: #{egan_generator_64_forward.10} parent=35 // pred_fallthru
        _
      // Predicated region
      $region45: #{egan_generator_64_forward.10} parent=35 // pred_check
        %p3459 = pneg %p136
      $region46: #{egan_generator_64_forward.10} parent=35 // pred_check_branch
        %3461 = sbr.rel (%p3459) target = $region48
      $region47: #{egan_generator_64_forward.10} parent=35 // pred_region
        _
      $region48: #{egan_generator_64_forward.10} parent=35 // pred_fallthru
        _
      // Predicated region
      $region49: #{egan_generator_64_forward.10} parent=35 // pred_check
        %p3462 = pneg %p136
      $region50: #{egan_generator_64_forward.10} parent=35 // pred_check_branch
        %3464 = sbr.rel (%p3462) target = $region52
      $region51: #{egan_generator_64_forward.10} parent=35 // pred_region
        _
      $region52: #{egan_generator_64_forward.10} parent=35 // pred_fallthru
        _
    $region36: #{egan_generator_64_forward.10} parent=5 // pred_fallthru
      _
    %p3465 = scmp.le.s32.totalorder 2, %s10
    // Predicated region
    $region53: #{egan_generator_64_forward.10} parent=5 // pred_check
      %p3466 = pneg %p3465
    $region54: #{egan_generator_64_forward.10} parent=5 // pred_check_branch
      %3468 = sbr.rel (%p3466) target = $region56
    $region55: #{egan_generator_64_forward.10} parent=5 // pred_region
      %s3469 = ssub.s32 %s10, 2
    $region56: #{egan_generator_64_forward.10} parent=5 // pred_fallthru
      _
  $region6: #{egan_generator_64_forward.10} parent=0 // loop_footer
    %s14 = sadd.s32 1, %s10
  $region7: #{egan_generator_64_forward.10} parent=0 // loop_footer_branch
    %9 = sbr.rel target = $region3
  $region8: #{egan_generator_64_forward.10} parent=0 // loop_exit
    _

// kernel: egan_generator_64_forward.11
$region0: #{egan_generator_64_forward.11}
  #allocation0 [shape = 'u32[]', space=smem, size = 0x4, offset = 0x4, fixed_abs, tag = 'smem constant byte address 0x4 - core index']
  #allocation1 [shape = 'u32[144,128]{1,0:T(1,128)}', space=vmem, size = 0x12000, scoped, tag = 'internal scratch']
  %s0 = inlined_call_operand.vmem [shape: bf16[1,2320,144], index: 0, kind: input, shape index: {}]
  %s1 = inlined_call_operand.vmem [shape: bf16[1,144,128], index: 1, kind: input, shape index: {}]
  %s2 = inlined_call_operand.vmem [shape: f32[1,128], index: 2, kind: input, shape index: {}]
  %s3 = inlined_call_operand.vmem [shape: f32[1,2320,128], index: 3, kind: output, shape index: {}]
  %s4 = sld [smem:[#allocation0]]
  $region45: #{egan_generator_64_forward.11} parent=0
    _
  %s6 = ssub.s32 1, %s4
  %s7 = scalar_select 0, %s6, %s4
  loop: start=0, step=1, limit=7
  $region2: #{egan_generator_64_forward.11} parent=0 // loop_pre_header
    _
  $region3: #{egan_generator_64_forward.11} parent=0 // loop_header
    %s9 = sphi 0, %s13
    %p10 = scmp.ge.s32.totalorder %s9, 7
    %s16 = sphi 0, %s28
    %s17 = sphi 0, %s24
    %s18 = sphi 0, %s16
    %s19 = sphi 0, %s17
    %s20 = sphi 0, %s18
    %s21 = sphi 0, %s19
    %s33 = sphi 0, %s35
    %s36 = sphi 0, %s33
    %s37 = sphi 0, %s36
    %s53 = sphi 0, %s37
    %s59 = sphi 0, %s61
    %s62 = sphi 0, %s59
    %s63 = sphi 0, %s62
    %s79 = sphi 0, %s63
    %s83 = sphi 0, %s83
    %s85 = sphi 0, %s83
    %s86 = sphi 0, %s85
    %s100 = sphi 0, %s86
    %s108 = sphi 0, %s110
    %s111 = sphi 0, %s108
    %s112 = sphi 0, %s111
    %s128 = sphi 0, %s112
  $region4: #{egan_generator_64_forward.11} parent=0 // loop_header_branch
    %12 = sbr.rel (%p10) target = $region8
  $region5: #{egan_generator_64_forward.11} parent=0 // loop_body
    %s14 = ssub.s32 %s9, 1
    %s15 = ssub.s32 %s9, 2
    %s22 = sadd.s32 1, %s17
    %p23 = scmp.ge.s32.totalorder %s22, 5
    %s24 = scalar_select %p23, 0, %s22
    %s25 = sadd.s32 1, %s16
    %s26 = scalar_select %p23, %s25, %s16
    %p27 = scmp.ge.s32.totalorder %s26, 1
    %s28 = scalar_select %p27, 0, %s26
    %s29 = ssub.s32 %s16, %s28
    %s30 = ssub.s32 %s17, %s24
    %s31 = sor.u32 %s29, %s30
    %p32 = scmp.eq.s32.totalorder %s31, 0
    %s34 = sadd.s32 %s33, 1
    %s35 = scalar_select %p32, %s33, %s34
    %p38 = pneg %p32
    %p39 = scmp.eq.s32.totalorder %s9, 4
    %p40 = por %p38, %p39
    %p41 = scmp.ne.s32.totalorder %s33, %s36
    %p42 = scmp.eq.s32.totalorder %s9, 0
    %p43 = por %p41, %p42
    %p44 = scmp.ne.s32.totalorder %s33, %s36
    %p45 = scmp.eq.s32.totalorder %s14, 4
    %p46 = por %p44, %p45
    %p47 = scmp.ne.s32.totalorder %s36, %s37
    %p48 = scmp.eq.s32.totalorder %s14, 0
    %p49 = por %p47, %p48
    %p50 = scmp.ne.s32.totalorder %s36, %s37
    %p51 = scmp.eq.s32.totalorder %s15, 4
    %p52 = por %p50, %p51
    %p54 = scmp.ne.s32.totalorder %s37, %s53
    %p55 = scmp.eq.s32.totalorder %s15, 0
    %p56 = por %p54, %p55
    %s57 = ssub.s32 %s16, %s28
    %p58 = scmp.eq.s32.totalorder %s57, 0
    %s60 = sadd.s32 %s59, 1
    %s61 = scalar_select %p58, %s59, %s60
    %p64 = pneg %p58
    %p65 = scmp.eq.s32.totalorder %s9, 4
    %p66 = por %p64, %p65
    %p67 = scmp.ne.s32.totalorder %s59, %s62
    %p68 = scmp.eq.s32.totalorder %s9, 0
    %p69 = por %p67, %p68
    %p70 = scmp.ne.s32.totalorder %s59, %s62
    %p71 = scmp.eq.s32.totalorder %s14, 4
    %p72 = por %p70, %p71
    %p73 = scmp.ne.s32.totalorder %s62, %s63
    %p74 = scmp.eq.s32.totalorder %s14, 0
    %p75 = por %p73, %p74
    %p76 = scmp.ne.s32.totalorder %s62, %s63
    %p77 = scmp.eq.s32.totalorder %s15, 4
    %p78 = por %p76, %p77
    %p80 = scmp.ne.s32.totalorder %s63, %s79
    %p81 = scmp.eq.s32.totalorder %s15, 0
    %p82 = por %p80, %p81
    %s84 = sadd.s32 %s83, 1
    %p87 = scmp.eq.s32.totalorder %s9, 4
    %p88 = scmp.ne.s32.totalorder %s83, %s85
    %p89 = scmp.eq.s32.totalorder %s9, 0
    %p90 = por %p88, %p89
    %p91 = scmp.ne.s32.totalorder %s83, %s85
    %p92 = scmp.eq.s32.totalorder %s14, 4
    %p93 = por %p91, %p92
    %p94 = scmp.ne.s32.totalorder %s85, %s86
    %p95 = scmp.eq.s32.totalorder %s14, 0
    %p96 = por %p94, %p95
    %p97 = scmp.ne.s32.totalorder %s85, %s86
    %p98 = scmp.eq.s32.totalorder %s15, 4
    %p99 = por %p97, %p98
    %p101 = scmp.ne.s32.totalorder %s86, %s100
    %p102 = scmp.eq.s32.totalorder %s15, 0
    %p103 = por %p101, %p102
    %s104 = ssub.s32 %s16, %s28
    %s105 = ssub.s32 %s17, %s24
    %s106 = sor.u32 %s104, %s105
    %p107 = scmp.eq.s32.totalorder %s106, 0
    %s109 = sadd.s32 %s108, 1
    %s110 = scalar_select %p107, %s108, %s109
    %p113 = pneg %p107
    %p114 = scmp.eq.s32.totalorder %s9, 4
    %p115 = por %p113, %p114
    %p116 = scmp.ne.s32.totalorder %s108, %s111
    %p117 = scmp.eq.s32.totalorder %s9, 0
    %p118 = por %p116, %p117
    %p119 = scmp.ne.s32.totalorder %s108, %s111
    %p120 = scmp.eq.s32.totalorder %s14, 4
    %p121 = por %p119, %p120
    %p122 = scmp.ne.s32.totalorder %s111, %s112
    %p123 = scmp.eq.s32.totalorder %s14, 0
    %p124 = por %p122, %p123
    %p125 = scmp.ne.s32.totalorder %s111, %s112
    %p126 = scmp.eq.s32.totalorder %s15, 4
    %p127 = por %p125, %p126
    %p129 = scmp.ne.s32.totalorder %s112, %s128
    %p130 = scmp.eq.s32.totalorder %s15, 0
    %p131 = por %p129, %p130
    %p132 = scmp.le.s32.totalorder 1, %s9
    %p133 = scmp.lt.s32.totalorder %s9, 6
    %p134 = pnand %p132, %p133
    %p135 = pneg %p134
    // Predicated region
    $region9: #{egan_generator_64_forward.11} parent=5 // pred_check
      _
    $region10: #{egan_generator_64_forward.11} parent=5 // pred_check_branch
      %137 = sbr.rel (%p134) target = $region12
    $region11: #{egan_generator_64_forward.11} parent=5 // pred_region
      %s138 = ssub.s32 %s9, 1
      // Predicated region
      $region13: #{egan_generator_64_forward.11} parent=11 // pred_check
        %p139 = pneg %p75
      $region14: #{egan_generator_64_forward.11} parent=11 // pred_check_branch
        %141 = sbr.rel (%p139) target = $region16
      $region15: #{egan_generator_64_forward.11} parent=11 // pred_region
        %p142 = scmp.lt.s32.totalorder %s18, 0
        %s143 = scalar_select %p142, %s18, 0
        %s144 = smul.addr %s143, 18
        %s145 = smul.addr %s144, 4
        %s146 = scalar_lea.vmem %s1, %s145
      $region16: #{egan_generator_64_forward.11} parent=11 // pred_fallthru
        _
      // Predicated region
      $region17: #{egan_generator_64_forward.11} parent=11 // pred_check
        %p147 = pneg %p96
      $region18: #{egan_generator_64_forward.11} parent=11 // pred_check_branch
        %149 = sbr.rel (%p147) target = $region20
      $region19: #{egan_generator_64_forward.11} parent=11 // pred_region
        _
      $region20: #{egan_generator_64_forward.11} parent=11 // pred_fallthru
        _
    $region12: #{egan_generator_64_forward.11} parent=5 // pred_fallthru
      _
    %p150 = scmp.lt.s32.totalorder %s9, 5
    // Predicated region
    $region21: #{egan_generator_64_forward.11} parent=5 // pred_check
      %p151 = pneg %p150
    $region22: #{egan_generator_64_forward.11} parent=5 // pred_check_branch
      %153 = sbr.rel (%p151) target = $region24
    $region23: #{egan_generator_64_forward.11} parent=5 // pred_region
      // Predicated region
      $region25: #{egan_generator_64_forward.11} parent=23 // pred_check
        %p154 = pneg %p43
      $region26: #{egan_generator_64_forward.11} parent=23 // pred_check_branch
        %156 = sbr.rel (%p154) target = $region28
      $region27: #{egan_generator_64_forward.11} parent=23 // pred_region
        %s157 = smul.u32 58, %s17
        %p158 = scmp.lt.s32.totalorder %s16, 0
        %s159 = scalar_select %p158, %s16, 0
        %p160 = scmp.lt.s32.totalorder %s157, 289
        %s161 = scalar_select %p160, %s157, 289
        %s162 = smul.addr %s161, 2
        %s163 = smul.addr %s159, 580
        %s164 = sadd.s32 %s162, %s163
        %s165 = smul.addr %s164, 4
        %s166 = scalar_lea.vmem %s0, %s165
        %s167 = smul.u32 58, %s17
      $region28: #{egan_generator_64_forward.11} parent=23 // pred_fallthru
        _
    $region24: #{egan_generator_64_forward.11} parent=5 // pred_fallthru
      _
    %p168 = scmp.le.s32.totalorder 1, %s9
    %p169 = scmp.lt.s32.totalorder %s9, 6
    %p170 = pnand %p168, %p169
    %p171 = pneg %p170
    // Predicated region
    $region29: #{egan_generator_64_forward.11} parent=5 // pred_check
      _
    $region30: #{egan_generator_64_forward.11} parent=5 // pred_check_branch
      %173 = sbr.rel (%p170) target = $region32
    $region31: #{egan_generator_64_forward.11} parent=5 // pred_region
      %s174 = ssub.s32 %s9, 1
      %s175 = smul.u32 58, %s19
      %p176 = scmp.lt.s32.totalorder %s18, 0
      %s177 = scalar_select %p176, %s18, 0
      %p178 = scmp.lt.s32.totalorder %s175, 289
      %s179 = scalar_select %p178, %s175, 289
      %s180 = smul.addr %s179, 2
      %s181 = smul.addr %s177, 580
      %s182 = sadd.s32 %s180, %s181
      %s183 = smul.addr %s182, 4
      %s184 = scalar_lea.vmem %s0, %s183
      %p185 = pneg %p49
      %p186 = pneg %p46
      %p187 = scmp.lt.s32.totalorder %s18, 0
      %s188 = scalar_select %p187, %s18, 0
      %s189 = smul.addr %s188, 18
      %s190 = smul.addr %s189, 4
      %s191 = scalar_lea.vmem %s1, %s190
      %p192 = pneg %p75
      %p193 = pneg %p72
      %p194 = pneg %p96
      %p195 = pneg %p93
      %p196 = pneg %p124
      %p197 = pneg %p121
      %s198 = smul.u32 58, %s19
      %p199 = scmp.lt.s32.totalorder %s18, 0
      %s200 = scalar_select %p199, %s18, 0
      %p201 = scmp.lt.s32.totalorder %s198, 289
      %s202 = scalar_select %p201, %s198, 289
      %s203 = smul.addr %s200, 290
      %s204 = sadd.s32 %s202, %s203
      %s205 = smul.addr %s204, 8
      %s206 = scalar_lea.vmem %s3, %s205
      %s207 = smul.u32 58, %s19
      %p208 = scmp.lt.s32.totalorder %s18, 0
      %s209 = scalar_select %p208, %s18, 0
      %p210 = scmp.lt.s32.totalorder %s207, 289
      %s211 = scalar_select %p210, %s207, 289
      %s212 = smul.addr %s211, 2
      %s213 = smul.addr %s209, 580
      %s214 = sadd.s32 %s212, %s213
      %s215 = smul.addr %s214, 4
      %s216 = scalar_lea.vmem %s0, %s215
      %s217 = smul.u32 58, %s19
      %p218 = scmp.lt.s32.totalorder %s18, 0
      %s219 = scalar_select %p218, %s18, 0
      %s220 = smul.addr %s219, 18
      %s221 = smul.addr %s220, 4
      %s222 = scalar_lea.vmem %s1, %s221
      %s223 = smul.u32 58, %s19
      %p224 = scmp.lt.s32.totalorder %s18, 0
      %s225 = scalar_select %p224, %s18, 0
      %p226 = scmp.lt.s32.totalorder %s223, 289
      %s227 = scalar_select %p226, %s223, 289
      %s228 = smul.addr %s225, 290
      %s229 = sadd.s32 %s227, %s228
      %s230 = smul.addr %s229, 8
      %s231 = scalar_lea.vmem %s3, %s230
      %s232 = smul.u32 58, %s19
      %v234 = vld [vmem:[%s216] sm:$0xff]
      %v235 = vld [vmem:[%s216 + $0x8] sm:$0xff]
      %v236 = vld [vmem:[%s216 + $0x10] sm:$0xff]
      %v237 = vld [vmem:[%s216 + $0x18] sm:$0xff]
      %v238 = vld [vmem:[%s216 + $0x20] sm:$0xff]
      %v239 = vld [vmem:[%s216 + $0x28] sm:$0xff]
      %v240 = vld [vmem:[%s216 + $0x30] sm:$0xff]
      %v241 = vld [vmem:[%s216 + $0x38] sm:$0xff]
      %v242 = vld [vmem:[%s216 + $0x40] sm:$0xff]
      %v243 = vld [vmem:[%s216 + $0x48] sm:$0xff]
      %v244 = vld [vmem:[%s216 + $0x50] sm:$0xff]
      %v245 = vld [vmem:[%s216 + $0x58] sm:$0xff]
      %v246 = vld [vmem:[%s216 + $0x60] sm:$0xff]
      %v247 = vld [vmem:[%s216 + $0x68] sm:$0xff]
      %v248 = vld [vmem:[%s216 + $0x70] sm:$0xff]
      %v249 = vld [vmem:[%s216 + $0x78] sm:$0xff]
      %v250 = vld [vmem:[%s216 + $0x80] sm:$0xff]
      %v251 = vld [vmem:[%s216 + $0x88] sm:$0xff]
      %v252 = vld [vmem:[%s216 + $0x90] sm:$0xff]
      %v253 = vld [vmem:[%s216 + $0x98] sm:$0xff]
      %v254 = vld [vmem:[%s216 + $0xa0] sm:$0xff]
      %v255 = vld [vmem:[%s216 + $0xa8] sm:$0xff]
      %v256 = vld [vmem:[%s216 + $0xb0] sm:$0xff]
      %v257 = vld [vmem:[%s216 + $0xb8] sm:$0xff]
      %v258 = vld [vmem:[%s216 + $0xc0] sm:$0xff]
      %v259 = vld [vmem:[%s216 + $0xc8] sm:$0xff]
      %v260 = vld [vmem:[%s216 + $0xd0] sm:$0xff]
      %v261 = vld [vmem:[%s216 + $0xd8] sm:$0xff]
      %v262 = vld [vmem:[%s216 + $0xe0] sm:$0xff]
      %v263 = vld [vmem:[%s216 + $0xe8] sm:$0xff]
      %v264 = vld [vmem:[%s216 + $0xf0] sm:$0xff]
      %v265 = vld [vmem:[%s216 + $0xf8] sm:$0xff]
      %v266 = vld [vmem:[%s216 + $0x100] sm:$0xff]
      %v267 = vld [vmem:[%s216 + $0x108] sm:$0xff]
      %v268 = vld [vmem:[%s216 + $0x110] sm:$0xff]
      %v269 = vld [vmem:[%s216 + $0x118] sm:$0xff]
      %v270 = vld [vmem:[%s216 + $0x120] sm:$0xff]
      %v271 = vld [vmem:[%s216 + $0x128] sm:$0xff]
      %v272 = vld [vmem:[%s216 + $0x130] sm:$0xff]
      %v273 = vld [vmem:[%s216 + $0x138] sm:$0xff]
      %v274 = vld [vmem:[%s216 + $0x140] sm:$0xff]
      %v275 = vld [vmem:[%s216 + $0x148] sm:$0xff]
      %v276 = vld [vmem:[%s216 + $0x150] sm:$0xff]
      %v277 = vld [vmem:[%s216 + $0x158] sm:$0xff]
      %v278 = vld [vmem:[%s216 + $0x160] sm:$0xff]
      %v279 = vld [vmem:[%s216 + $0x168] sm:$0xff]
      %v280 = vld [vmem:[%s216 + $0x170] sm:$0xff]
      %v281 = vld [vmem:[%s216 + $0x178] sm:$0xff]
      %v282 = vld [vmem:[%s216 + $0x180] sm:$0xff]
      %v283 = vld [vmem:[%s216 + $0x188] sm:$0xff]
      %v284 = vld [vmem:[%s216 + $0x190] sm:$0xff]
      %v285 = vld [vmem:[%s216 + $0x198] sm:$0xff]
      %v286 = vld [vmem:[%s216 + $0x1a0] sm:$0xff]
      %v287 = vld [vmem:[%s216 + $0x1a8] sm:$0xff]
      %v288 = vld [vmem:[%s216 + $0x1b0] sm:$0xff]
      %v289 = vld [vmem:[%s216 + $0x1b8] sm:$0xff]
      %v290 = vld [vmem:[%s216 + $0x1c0] sm:$0xff]
      %v291 = vld [vmem:[%s216 + $0x1c8] sm:$0xff]
      %v292 = vld [vmem:[%s222] sm:$0xf]
      %v293 = vld [vmem:[%s222 + $0x4] sm:$0xf]
      %v294 = vld [vmem:[%s222 + $0x8] sm:$0xf]
      %v295 = vld [vmem:[%s222 + $0xc] sm:$0xf]
      %v296 = vld [vmem:[%s222 + $0x10] sm:$0xf]
      %v297 = vld [vmem:[%s222 + $0x14] sm:$0xf]
      %v298 = vld [vmem:[%s222 + $0x18] sm:$0xf]
      %v299 = vld [vmem:[%s222 + $0x1c] sm:$0xf]
      %v300 = vld [vmem:[%s222 + $0x20] sm:$0xf]
      %v301 = vld [vmem:[%s222 + $0x24] sm:$0xf]
      %v302 = vld [vmem:[%s222 + $0x28] sm:$0xf]
      %v303 = vld [vmem:[%s222 + $0x2c] sm:$0xf]
      %v304 = vld [vmem:[%s222 + $0x30] sm:$0xf]
      %v305 = vld [vmem:[%s222 + $0x34] sm:$0xf]
      %v306 = vld [vmem:[%s222 + $0x38] sm:$0xf]
      %v307 = vld [vmem:[%s222 + $0x3c] sm:$0xf]
      %v308 = vld [vmem:[%s222 + $0x40] sm:$0xf]
      %v309 = vld [vmem:[%s222 + $0x44] sm:$0xf]
      %v310 = vld [vmem:[%s2] sm:$0x1]
      %v312 = vlaneseq
      %v313 = vshrl.u32 %v312, 7
      %v314 = vsub.s32 0, %v313
      %v315 = vrot.slane %v310, %v314
      %v375 = vunpack.c.l.b16 %v234
      %v376 = vunpack.c.h.b16 %v234
      %v377 = vunpack.c.l.b16 %v235
      %v378 = vunpack.c.h.b16 %v235
      %v379 = vunpack.c.l.b16 %v236
      %v380 = vunpack.c.h.b16 %v236
      %v381 = vunpack.c.l.b16 %v237
      %v382 = vunpack.c.h.b16 %v237
      %v383 = vunpack.c.l.b16 %v238
      %v384 = vunpack.c.h.b16 %v238
      %v385 = vunpack.c.l.b16 %v239
      %v386 = vunpack.c.h.b16 %v239
      %v387 = vunpack.c.l.b16 %v240
      %v388 = vunpack.c.h.b16 %v240
      %v389 = vunpack.c.l.b16 %v241
      %v390 = vunpack.c.h.b16 %v241
      %v391 = vunpack.c.l.b16 %v242
      %v392 = vunpack.c.h.b16 %v242
      %v393 = vunpack.c.l.b16 %v243
      %v394 = vunpack.c.h.b16 %v243
      %v395 = vunpack.c.l.b16 %v244
      %v396 = vunpack.c.h.b16 %v244
      %v397 = vunpack.c.l.b16 %v245
      %v398 = vunpack.c.h.b16 %v245
      %v399 = vunpack.c.l.b16 %v246
      %v400 = vunpack.c.h.b16 %v246
      %v401 = vunpack.c.l.b16 %v247
      %v402 = vunpack.c.h.b16 %v247
      %v403 = vunpack.c.l.b16 %v248
      %v404 = vunpack.c.h.b16 %v248
      %v405 = vunpack.c.l.b16 %v249
      %v406 = vunpack.c.h.b16 %v249
      %v407 = vunpack.c.l.b16 %v250
      %v408 = vunpack.c.h.b16 %v250
      %v409 = vunpack.c.l.b16 %v251
      %v410 = vunpack.c.h.b16 %v251
      %v411 = vunpack.c.l.b16 %v252
      %v412 = vunpack.c.h.b16 %v252
      %v413 = vunpack.c.l.b16 %v253
      %v414 = vunpack.c.h.b16 %v253
      %v415 = vunpack.c.l.b16 %v254
      %v416 = vunpack.c.h.b16 %v254
      %v417 = vunpack.c.l.b16 %v255
      %v418 = vunpack.c.h.b16 %v255
      %v419 = vunpack.c.l.b16 %v256
      %v420 = vunpack.c.h.b16 %v256
      %v421 = vunpack.c.l.b16 %v257
      %v422 = vunpack.c.h.b16 %v257
      %v423 = vunpack.c.l.b16 %v258
      %v424 = vunpack.c.h.b16 %v258
      %v425 = vunpack.c.l.b16 %v259
      %v426 = vunpack.c.h.b16 %v259
      %v427 = vunpack.c.l.b16 %v260
      %v428 = vunpack.c.h.b16 %v260
      %v429 = vunpack.c.l.b16 %v261
      %v430 = vunpack.c.h.b16 %v261
      %v431 = vunpack.c.l.b16 %v262
      %v432 = vunpack.c.h.b16 %v262
      %v433 = vunpack.c.l.b16 %v263
      %v434 = vunpack.c.h.b16 %v263
      %v435 = vunpack.c.l.b16 %v264
      %v436 = vunpack.c.h.b16 %v264
      %v437 = vunpack.c.l.b16 %v265
      %v438 = vunpack.c.h.b16 %v265
      %v439 = vunpack.c.l.b16 %v266
      %v440 = vunpack.c.h.b16 %v266
      %v441 = vunpack.c.l.b16 %v267
      %v442 = vunpack.c.h.b16 %v267
      %v443 = vunpack.c.l.b16 %v268
      %v444 = vunpack.c.h.b16 %v268
      %v445 = vunpack.c.l.b16 %v269
      %v446 = vunpack.c.h.b16 %v269
      %v447 = vunpack.c.l.b16 %v270
      %v448 = vunpack.c.h.b16 %v270
      %v449 = vunpack.c.l.b16 %v271
      %v450 = vunpack.c.h.b16 %v271
      %v451 = vunpack.c.l.b16 %v272
      %v452 = vunpack.c.h.b16 %v272
      %v453 = vunpack.c.l.b16 %v273
      %v454 = vunpack.c.h.b16 %v273
      %v455 = vunpack.c.l.b16 %v274
      %v456 = vunpack.c.h.b16 %v274
      %v457 = vunpack.c.l.b16 %v275
      %v458 = vunpack.c.h.b16 %v275
      %v459 = vunpack.c.l.b16 %v276
      %v460 = vunpack.c.h.b16 %v276
      %v461 = vunpack.c.l.b16 %v277
      %v462 = vunpack.c.h.b16 %v277
      %v463 = vunpack.c.l.b16 %v278
      %v464 = vunpack.c.h.b16 %v278
      %v465 = vunpack.c.l.b16 %v279
      %v466 = vunpack.c.h.b16 %v279
      %v467 = vunpack.c.l.b16 %v280
      %v468 = vunpack.c.h.b16 %v280
      %v469 = vunpack.c.l.b16 %v281
      %v470 = vunpack.c.h.b16 %v281
      %v471 = vunpack.c.l.b16 %v282
      %v472 = vunpack.c.h.b16 %v282
      %v473 = vunpack.c.l.b16 %v283
      %v474 = vunpack.c.h.b16 %v283
      %v475 = vunpack.c.l.b16 %v284
      %v476 = vunpack.c.h.b16 %v284
      %v477 = vunpack.c.l.b16 %v285
      %v478 = vunpack.c.h.b16 %v285
      %v479 = vunpack.c.l.b16 %v286
      %v480 = vunpack.c.h.b16 %v286
      %v481 = vunpack.c.l.b16 %v287
      %v482 = vunpack.c.h.b16 %v287
      %v483 = vunpack.c.l.b16 %v288
      %v484 = vunpack.c.h.b16 %v288
      %v485 = vunpack.c.l.b16 %v289
      %v486 = vunpack.c.h.b16 %v289
      %v487 = vunpack.c.l.b16 %v290
      %v488 = vunpack.c.h.b16 %v290
      %v489 = vunpack.c.l.b16 %v291
      %v490 = vunpack.c.h.b16 %v291
      %v491 = vpack.c.b16 %v377, %v375
      %v492 = vpack.c.b16 %v378, %v376
      %v493 = vpack.c.b16 %v381, %v379
      %v494 = vpack.c.b16 %v382, %v380
      %v495 = vpack.c.b16 %v385, %v383
      %v496 = vpack.c.b16 %v386, %v384
      %v497 = vpack.c.b16 %v389, %v387
      %v498 = vpack.c.b16 %v390, %v388
      %v499 = vpack.c.b16 %v393, %v391
      %v500 = vpack.c.b16 %v394, %v392
      %v501 = vpack.c.b16 %v397, %v395
      %v502 = vpack.c.b16 %v398, %v396
      %v503 = vpack.c.b16 %v401, %v399
      %v504 = vpack.c.b16 %v402, %v400
      %v505 = vpack.c.b16 %v405, %v403
      %v506 = vpack.c.b16 %v406, %v404
      %v507 = vpack.c.b16 %v409, %v407
      %v508 = vpack.c.b16 %v410, %v408
      %v509 = vpack.c.b16 %v413, %v411
      %v510 = vpack.c.b16 %v414, %v412
      %v511 = vpack.c.b16 %v417, %v415
      %v512 = vpack.c.b16 %v418, %v416
      %v513 = vpack.c.b16 %v421, %v419
      %v514 = vpack.c.b16 %v422, %v420
      %v515 = vpack.c.b16 %v425, %v423
      %v516 = vpack.c.b16 %v426, %v424
      %v517 = vpack.c.b16 %v429, %v427
      %v518 = vpack.c.b16 %v430, %v428
      %v519 = vpack.c.b16 %v433, %v431
      %v520 = vpack.c.b16 %v434, %v432
      %v521 = vpack.c.b16 %v437, %v435
      %v522 = vpack.c.b16 %v438, %v436
      %v523 = vpack.c.b16 %v441, %v439
      %v524 = vpack.c.b16 %v442, %v440
      %v525 = vpack.c.b16 %v445, %v443
      %v526 = vpack.c.b16 %v446, %v444
      %v527 = vpack.c.b16 %v449, %v447
      %v528 = vpack.c.b16 %v450, %v448
      %v529 = vpack.c.b16 %v453, %v451
      %v530 = vpack.c.b16 %v454, %v452
      %v531 = vpack.c.b16 %v457, %v455
      %v532 = vpack.c.b16 %v458, %v456
      %v533 = vpack.c.b16 %v461, %v459
      %v534 = vpack.c.b16 %v462, %v460
      %v535 = vpack.c.b16 %v465, %v463
      %v536 = vpack.c.b16 %v466, %v464
      %v537 = vpack.c.b16 %v469, %v467
      %v538 = vpack.c.b16 %v470, %v468
      %v539 = vpack.c.b16 %v473, %v471
      %v540 = vpack.c.b16 %v474, %v472
      %v541 = vpack.c.b16 %v477, %v475
      %v542 = vpack.c.b16 %v478, %v476
      %v543 = vpack.c.b16 %v481, %v479
      %v544 = vpack.c.b16 %v482, %v480
      %v545 = vpack.c.b16 %v485, %v483
      %v546 = vpack.c.b16 %v486, %v484
      %v547 = vpack.c.b16 %v489, %v487
      %v548 = vpack.c.b16 %v490, %v488
      %v596 = vunpack.c.l.b16 %v292
      %v597 = vunpack.c.l.b16 %v293
      %v598 = vunpack.c.l.b16 %v294
      %v599 = vunpack.c.l.b16 %v295
      %v600 = vunpack.c.l.b16 %v296
      %v601 = vunpack.c.l.b16 %v297
      %v602 = vunpack.c.l.b16 %v298
      %v603 = vunpack.c.l.b16 %v299
      %v604 = vunpack.c.l.b16 %v300
      %v605 = vunpack.c.l.b16 %v301
      %v606 = vunpack.c.l.b16 %v302
      %v607 = vunpack.c.l.b16 %v303
      %v608 = vunpack.c.l.b16 %v304
      %v609 = vunpack.c.l.b16 %v305
      %v610 = vunpack.c.l.b16 %v306
      %v611 = vunpack.c.l.b16 %v307
      %v612 = vunpack.c.l.b16 %v308
      %v613 = vunpack.c.l.b16 %v309
      %v614 = vpack.c.b16 %v597, %v596
      %v615 = vpack.c.b16 %v599, %v598
      %v616 = vpack.c.b16 %v601, %v600
      %v617 = vpack.c.b16 %v603, %v602
      %v618 = vpack.c.b16 %v605, %v604
      %v619 = vpack.c.b16 %v607, %v606
      %v620 = vpack.c.b16 %v609, %v608
      %v621 = vpack.c.b16 %v611, %v610
      %v622 = vpack.c.b16 %v613, %v612
      %vm632 = vcmask 130048
      %v634 = vsel %vm632, %v492, 0
      %v637 = vsel %vm632, %v494, 0
      %v640 = vsel %vm632, %v496, 0
      %v643 = vsel %vm632, %v498, 0
      %v646 = vsel %vm632, %v500, 0
      %v649 = vsel %vm632, %v502, 0
      %v652 = vsel %vm632, %v504, 0
      %v655 = vsel %vm632, %v506, 0
      %v658 = vsel %vm632, %v508, 0
      %v661 = vsel %vm632, %v510, 0
      %v664 = vsel %vm632, %v512, 0
      %v667 = vsel %vm632, %v514, 0
      %v670 = vsel %vm632, %v516, 0
      %v673 = vsel %vm632, %v518, 0
      %v676 = vsel %vm632, %v520, 0
      %v679 = vsel %vm632, %v522, 0
      %v682 = vsel %vm632, %v524, 0
      %v685 = vsel %vm632, %v526, 0
      %v688 = vsel %vm632, %v528, 0
      %v691 = vsel %vm632, %v530, 0
      %v694 = vsel %vm632, %v532, 0
      %v697 = vsel %vm632, %v534, 0
      %v700 = vsel %vm632, %v536, 0
      %v703 = vsel %vm632, %v538, 0
      %v706 = vsel %vm632, %v540, 0
      %v709 = vsel %vm632, %v542, 0
      %v712 = vsel %vm632, %v544, 0
      %v715 = vsel %vm632, %v546, 0
      %v718 = vsel %vm632, %v548, 0
      %720 = vmatprep.subr.bf16.mxu0 0
      %721 = vmatpush1.bf16.msra.mxu0 %v614
      %722 = vmatprep.subr.bf16.mxu0 0
      %723 = vmatpush1.bf16.msra.mxu0 %v615
      %724 = vmatprep.subr.bf16.mxu0 0
      %725 = vmatpush1.bf16.msra.mxu0 %v616
      %726 = vmatprep.subr.bf16.mxu0 0
      %727 = vmatpush1.bf16.msra.mxu0 %v617
      %728 = vmatprep.subr.bf16.mxu0 0
      %729 = vmatpush1.bf16.msra.mxu0 %v618
      %730 = vmatprep.subr.bf16.mxu0 0
      %731 = vmatpush1.bf16.msra.mxu0 %v619
      %732 = vmatprep.subr.bf16.mxu0 0
      %733 = vmatpush1.bf16.msra.mxu0 %v620
      %734 = vmatprep.subr.bf16.mxu0 0
      %735 = vmatpush1.bf16.msra.mxu0 %v621
      %736 = vmatprep.subr.bf16.mxu0 0
      %737 = vmatpush1.bf16.msra.mxu0 %v622
      %738 = vmatprep.subr.bf16.mxu0 0
      %739 = vmatpush1.bf16.msra.mxu0 0
      %740 = vmatprep.subr.bf16.mxu0 0
      %741 = vmatpush1.bf16.msra.mxu0 0
      %742 = vmatprep.subr.bf16.mxu0 0
      %743 = vmatpush1.bf16.msra.mxu0 0
      %744 = vmatprep.subr.bf16.mxu0 0
      %745 = vmatpush1.bf16.msra.mxu0 0
      %746 = vmatprep.subr.bf16.mxu0 0
      %747 = vmatpush1.bf16.msra.mxu0 0
      %748 = vmatprep.subr.bf16.mxu0 0
      %749 = vmatpush1.bf16.msra.mxu0 0
      %750 = vmatprep.subr.bf16.mxu0 0
      %751 = vmatpush1.bf16.msra.mxu0 0
      %752 = vmatprep.mubr.bf16.mxu0 %v634
      %753 = vmatmul.mubr.bf16.gmra.mrb[0].mxu0 %v491
      %v754 = vpop.f32.mrb[0].mxu0
      %v755 = vadd.f32 %v315, %v754
      %v756 = vpop.f32.mrb[0].mxu0
      %v757 = vpop.f32.mrb[0].mxu0
      %v758 = vadd.f32 %v315, %v757
      %v759 = vpop.f32.mrb[0].mxu0
      %760 = vmatprep.mubr.bf16.mxu0 %v637
      %761 = vmatmul.mubr.bf16.gmra.mrb[0].mxu0 %v493
      %v762 = vpop.f32.mrb[0].mxu0
      %v763 = vadd.f32 %v315, %v762
      %v764 = vpop.f32.mrb[0].mxu0
      %v765 = vpop.f32.mrb[0].mxu0
      %v766 = vadd.f32 %v315, %v765
      %v767 = vpop.f32.mrb[0].mxu0
      %768 = vmatprep.mubr.bf16.mxu0 %v640
      %769 = vmatmul.mubr.bf16.gmra.mrb[0].mxu0 %v495
      %v770 = vpop.f32.mrb[0].mxu0
      %v771 = vadd.f32 %v315, %v770
      %v772 = vpop.f32.mrb[0].mxu0
      %v773 = vpop.f32.mrb[0].mxu0
      %v774 = vadd.f32 %v315, %v773
      %v775 = vpop.f32.mrb[0].mxu0
      %776 = vmatprep.mubr.bf16.mxu0 %v643
      %777 = vmatmul.mubr.bf16.gmra.mrb[0].mxu0 %v497
      %v778 = vpop.f32.mrb[0].mxu0
      %v779 = vadd.f32 %v315, %v778
      %v780 = vpop.f32.mrb[0].mxu0
      %v781 = vpop.f32.mrb[0].mxu0
      %v782 = vadd.f32 %v315, %v781
      %v783 = vpop.f32.mrb[0].mxu0
      %784 = vmatprep.mubr.bf16.mxu0 %v646
      %785 = vmatmul.mubr.bf16.gmra.mrb[0].mxu0 %v499
      %v786 = vpop.f32.mrb[0].mxu0
      %v787 = vadd.f32 %v315, %v786
      %v788 = vpop.f32.mrb[0].mxu0
      %v789 = vpop.f32.mrb[0].mxu0
      %v790 = vadd.f32 %v315, %v789
      %v791 = vpop.f32.mrb[0].mxu0
      %792 = vmatprep.mubr.bf16.mxu0 %v649
      %793 = vmatmul.mubr.bf16.gmra.mrb[0].mxu0 %v501
      %v794 = vpop.f32.mrb[0].mxu0
      %v795 = vadd.f32 %v315, %v794
      %v796 = vpop.f32.mrb[0].mxu0
      %v797 = vpop.f32.mrb[0].mxu0
      %v798 = vadd.f32 %v315, %v797
      %v799 = vpop.f32.mrb[0].mxu0
      %800 = vmatprep.mubr.bf16.mxu0 %v652
      %801 = vmatmul.mubr.bf16.gmra.mrb[0].mxu0 %v503
      %v802 = vpop.f32.mrb[0].mxu0
      %v803 = vadd.f32 %v315, %v802
      %v804 = vpop.f32.mrb[0].mxu0
      %v805 = vpop.f32.mrb[0].mxu0
      %v806 = vadd.f32 %v315, %v805
      %v807 = vpop.f32.mrb[0].mxu0
      %808 = vmatprep.mubr.bf16.mxu0 %v655
      %809 = vmatmul.mubr.bf16.gmra.mrb[0].mxu0 %v505
      %v810 = vpop.f32.mrb[0].mxu0
      %v811 = vadd.f32 %v315, %v810
      %v812 = vpop.f32.mrb[0].mxu0
      %v813 = vpop.f32.mrb[0].mxu0
      %v814 = vadd.f32 %v315, %v813
      %v815 = vpop.f32.mrb[0].mxu0
      %816 = vmatprep.mubr.bf16.mxu0 %v658
      %817 = vmatmul.mubr.bf16.gmra.mrb[0].mxu0 %v507
      %v818 = vpop.f32.mrb[0].mxu0
      %v819 = vadd.f32 %v315, %v818
      %v820 = vpop.f32.mrb[0].mxu0
      %v821 = vpop.f32.mrb[0].mxu0
      %v822 = vadd.f32 %v315, %v821
      %v823 = vpop.f32.mrb[0].mxu0
      %824 = vmatprep.mubr.bf16.mxu0 %v661
      %825 = vmatmul.mubr.bf16.gmra.mrb[0].mxu0 %v509
      %v826 = vpop.f32.mrb[0].mxu0
      %v827 = vadd.f32 %v315, %v826
      %v828 = vpop.f32.mrb[0].mxu0
      %v829 = vpop.f32.mrb[0].mxu0
      %v830 = vadd.f32 %v315, %v829
      %v831 = vpop.f32.mrb[0].mxu0
      %832 = vmatprep.mubr.bf16.mxu0 %v664
      %833 = vmatmul.mubr.bf16.gmra.mrb[0].mxu0 %v511
      %v834 = vpop.f32.mrb[0].mxu0
      %v835 = vadd.f32 %v315, %v834
      %v836 = vpop.f32.mrb[0].mxu0
      %v837 = vpop.f32.mrb[0].mxu0
      %v838 = vadd.f32 %v315, %v837
      %v839 = vpop.f32.mrb[0].mxu0
      %840 = vmatprep.mubr.bf16.mxu0 %v667
      %841 = vmatmul.mubr.bf16.gmra.mrb[0].mxu0 %v513
      %v842 = vpop.f32.mrb[0].mxu0
      %v843 = vadd.f32 %v315, %v842
      %v844 = vpop.f32.mrb[0].mxu0
      %v845 = vpop.f32.mrb[0].mxu0
      %v846 = vadd.f32 %v315, %v845
      %v847 = vpop.f32.mrb[0].mxu0
      %848 = vmatprep.mubr.bf16.mxu0 %v670
      %849 = vmatmul.mubr.bf16.gmra.mrb[0].mxu0 %v515
      %v850 = vpop.f32.mrb[0].mxu0
      %v851 = vadd.f32 %v315, %v850
      %v852 = vpop.f32.mrb[0].mxu0
      %v853 = vpop.f32.mrb[0].mxu0
      %v854 = vadd.f32 %v315, %v853
      %v855 = vpop.f32.mrb[0].mxu0
      %856 = vmatprep.mubr.bf16.mxu0 %v673
      %857 = vmatmul.mubr.bf16.gmra.mrb[0].mxu0 %v517
      %v858 = vpop.f32.mrb[0].mxu0
      %v859 = vadd.f32 %v315, %v858
      %v860 = vpop.f32.mrb[0].mxu0
      %v861 = vpop.f32.mrb[0].mxu0
      %v862 = vadd.f32 %v315, %v861
      %v863 = vpop.f32.mrb[0].mxu0
      %864 = vmatprep.mubr.bf16.mxu0 %v676
      %865 = vmatmul.mubr.bf16.gmra.mrb[0].mxu0 %v519
      %v866 = vpop.f32.mrb[0].mxu0
      %v867 = vadd.f32 %v315, %v866
      %v868 = vpop.f32.mrb[0].mxu0
      %v869 = vpop.f32.mrb[0].mxu0
      %v870 = vadd.f32 %v315, %v869
      %v871 = vpop.f32.mrb[0].mxu0
      %872 = vmatprep.mubr.bf16.mxu0 %v679
      %873 = vmatmul.mubr.bf16.gmra.mrb[0].mxu0 %v521
      %v874 = vpop.f32.mrb[0].mxu0
      %v875 = vadd.f32 %v315, %v874
      %v876 = vpop.f32.mrb[0].mxu0
      %v877 = vpop.f32.mrb[0].mxu0
      %v878 = vadd.f32 %v315, %v877
      %v879 = vpop.f32.mrb[0].mxu0
      %880 = vmatprep.mubr.bf16.mxu0 %v682
      %881 = vmatmul.mubr.bf16.gmra.mrb[0].mxu0 %v523
      %v882 = vpop.f32.mrb[0].mxu0
      %v883 = vadd.f32 %v315, %v882
      %v884 = vpop.f32.mrb[0].mxu0
      %v885 = vpop.f32.mrb[0].mxu0
      %v886 = vadd.f32 %v315, %v885
      %v887 = vpop.f32.mrb[0].mxu0
      %888 = vmatprep.mubr.bf16.mxu0 %v685
      %889 = vmatmul.mubr.bf16.gmra.mrb[0].mxu0 %v525
      %v890 = vpop.f32.mrb[0].mxu0
      %v891 = vadd.f32 %v315, %v890
      %v892 = vpop.f32.mrb[0].mxu0
      %v893 = vpop.f32.mrb[0].mxu0
      %v894 = vadd.f32 %v315, %v893
      %v895 = vpop.f32.mrb[0].mxu0
      %896 = vmatprep.mubr.bf16.mxu0 %v688
      %897 = vmatmul.mubr.bf16.gmra.mrb[0].mxu0 %v527
      %v898 = vpop.f32.mrb[0].mxu0
      %v899 = vadd.f32 %v315, %v898
      %v900 = vpop.f32.mrb[0].mxu0
      %v901 = vpop.f32.mrb[0].mxu0
      %v902 = vadd.f32 %v315, %v901
      %v903 = vpop.f32.mrb[0].mxu0
      %904 = vmatprep.mubr.bf16.mxu0 %v691
      %905 = vmatmul.mubr.bf16.gmra.mrb[0].mxu0 %v529
      %v906 = vpop.f32.mrb[0].mxu0
      %v907 = vadd.f32 %v315, %v906
      %v908 = vpop.f32.mrb[0].mxu0
      %v909 = vpop.f32.mrb[0].mxu0
      %v910 = vadd.f32 %v315, %v909
      %v911 = vpop.f32.mrb[0].mxu0
      %912 = vmatprep.mubr.bf16.mxu0 %v694
      %913 = vmatmul.mubr.bf16.gmra.mrb[0].mxu0 %v531
      %v914 = vpop.f32.mrb[0].mxu0
      %v915 = vadd.f32 %v315, %v914
      %v916 = vpop.f32.mrb[0].mxu0
      %v917 = vpop.f32.mrb[0].mxu0
      %v918 = vadd.f32 %v315, %v917
      %v919 = vpop.f32.mrb[0].mxu0
      %920 = vmatprep.mubr.bf16.mxu0 %v697
      %921 = vmatmul.mubr.bf16.gmra.mrb[0].mxu0 %v533
      %v922 = vpop.f32.mrb[0].mxu0
      %v923 = vadd.f32 %v315, %v922
      %v924 = vpop.f32.mrb[0].mxu0
      %v925 = vpop.f32.mrb[0].mxu0
      %v926 = vadd.f32 %v315, %v925
      %v927 = vpop.f32.mrb[0].mxu0
      %928 = vmatprep.mubr.bf16.mxu0 %v700
      %929 = vmatmul.mubr.bf16.gmra.mrb[0].mxu0 %v535
      %v930 = vpop.f32.mrb[0].mxu0
      %v931 = vadd.f32 %v315, %v930
      %v932 = vpop.f32.mrb[0].mxu0
      %v933 = vpop.f32.mrb[0].mxu0
      %v934 = vadd.f32 %v315, %v933
      %v935 = vpop.f32.mrb[0].mxu0
      %936 = vmatprep.mubr.bf16.mxu0 %v703
      %937 = vmatmul.mubr.bf16.gmra.mrb[0].mxu0 %v537
      %v938 = vpop.f32.mrb[0].mxu0
      %v939 = vadd.f32 %v315, %v938
      %v940 = vpop.f32.mrb[0].mxu0
      %v941 = vpop.f32.mrb[0].mxu0
      %v942 = vadd.f32 %v315, %v941
      %v943 = vpop.f32.mrb[0].mxu0
      %944 = vmatprep.mubr.bf16.mxu0 %v706
      %945 = vmatmul.mubr.bf16.gmra.mrb[0].mxu0 %v539
      %v946 = vpop.f32.mrb[0].mxu0
      %v947 = vadd.f32 %v315, %v946
      %v948 = vpop.f32.mrb[0].mxu0
      %v949 = vpop.f32.mrb[0].mxu0
      %v950 = vadd.f32 %v315, %v949
      %v951 = vpop.f32.mrb[0].mxu0
      %952 = vmatprep.mubr.bf16.mxu0 %v709
      %953 = vmatmul.mubr.bf16.gmra.mrb[0].mxu0 %v541
      %v954 = vpop.f32.mrb[0].mxu0
      %v955 = vadd.f32 %v315, %v954
      %v956 = vpop.f32.mrb[0].mxu0
      %v957 = vpop.f32.mrb[0].mxu0
      %v958 = vadd.f32 %v315, %v957
      %v959 = vpop.f32.mrb[0].mxu0
      %960 = vmatprep.mubr.bf16.mxu0 %v712
      %961 = vmatmul.mubr.bf16.gmra.mrb[0].mxu0 %v543
      %v962 = vpop.f32.mrb[0].mxu0
      %v963 = vadd.f32 %v315, %v962
      %v964 = vpop.f32.mrb[0].mxu0
      %v965 = vpop.f32.mrb[0].mxu0
      %v966 = vadd.f32 %v315, %v965
      %v967 = vpop.f32.mrb[0].mxu0
      %968 = vmatprep.mubr.bf16.mxu0 %v715
      %969 = vmatmul.mubr.bf16.gmra.mrb[0].mxu0 %v545
      %v970 = vpop.f32.mrb[0].mxu0
      %v971 = vadd.f32 %v315, %v970
      %v972 = vpop.f32.mrb[0].mxu0
      %v973 = vpop.f32.mrb[0].mxu0
      %v974 = vadd.f32 %v315, %v973
      %v975 = vpop.f32.mrb[0].mxu0
      %976 = vmatprep.mubr.bf16.mxu0 %v718
      %977 = vmatmul.mubr.bf16.gmra.mrb[0].mxu0 %v547
      %v978 = vpop.f32.mrb[0].mxu0
      %v979 = vadd.f32 %v315, %v978
      %v980 = vpop.f32.mrb[0].mxu0
      %v981 = vpop.f32.mrb[0].mxu0
      %v982 = vadd.f32 %v315, %v981
      %v983 = vpop.f32.mrb[0].mxu0
      %984 = vdwg.mxu0
      %v985 = vtanh.pop %v755
      %v986 = vtanh.pop %v758
      %v987 = vtanh.pop %v763
      %v988 = vtanh.pop %v766
      %v989 = vtanh.pop %v771
      %v990 = vtanh.pop %v774
      %v991 = vtanh.pop %v779
      %v992 = vtanh.pop %v782
      %v993 = vtanh.pop %v787
      %v994 = vtanh.pop %v790
      %v995 = vtanh.pop %v795
      %v996 = vtanh.pop %v798
      %v997 = vtanh.pop %v803
      %v998 = vtanh.pop %v806
      %v999 = vtanh.pop %v811
      %v1000 = vtanh.pop %v814
      %v1001 = vtanh.pop %v819
      %v1002 = vtanh.pop %v822
      %v1003 = vtanh.pop %v827
      %v1004 = vtanh.pop %v830
      %v1005 = vtanh.pop %v835
      %v1006 = vtanh.pop %v838
      %v1007 = vtanh.pop %v843
      %v1008 = vtanh.pop %v846
      %v1009 = vtanh.pop %v851
      %v1010 = vtanh.pop %v854
      %v1011 = vtanh.pop %v859
      %v1012 = vtanh.pop %v862
      %v1013 = vtanh.pop %v867
      %v1014 = vtanh.pop %v870
      %v1015 = vtanh.pop %v875
      %v1016 = vtanh.pop %v878
      %v1017 = vtanh.pop %v883
      %v1018 = vtanh.pop %v886
      %v1019 = vtanh.pop %v891
      %v1020 = vtanh.pop %v894
      %v1021 = vtanh.pop %v899
      %v1022 = vtanh.pop %v902
      %v1023 = vtanh.pop %v907
      %v1024 = vtanh.pop %v910
      %v1025 = vtanh.pop %v915
      %v1026 = vtanh.pop %v918
      %v1027 = vtanh.pop %v923
      %v1028 = vtanh.pop %v926
      %v1029 = vtanh.pop %v931
      %v1030 = vtanh.pop %v934
      %v1031 = vtanh.pop %v939
      %v1032 = vtanh.pop %v942
      %v1033 = vtanh.pop %v947
      %v1034 = vtanh.pop %v950
      %v1035 = vtanh.pop %v955
      %v1036 = vtanh.pop %v958
      %v1037 = vtanh.pop %v963
      %v1038 = vtanh.pop %v966
      %v1039 = vtanh.pop %v971
      %v1040 = vtanh.pop %v974
      %v1041 = vtanh.pop %v979
      %v1042 = vtanh.pop %v982
      %1043 = vst [vmem:[%s231] sm:$0xff] %v985
      %1044 = vst [vmem:[%s231 + $0x8] sm:$0xff] %v986
      %1045 = vst [vmem:[%s231 + $0x10] sm:$0xff] %v987
      %1046 = vst [vmem:[%s231 + $0x18] sm:$0xff] %v988
      %1047 = vst [vmem:[%s231 + $0x20] sm:$0xff] %v989
      %1048 = vst [vmem:[%s231 + $0x28] sm:$0xff] %v990
      %1049 = vst [vmem:[%s231 + $0x30] sm:$0xff] %v991
      %1050 = vst [vmem:[%s231 + $0x38] sm:$0xff] %v992
      %1051 = vst [vmem:[%s231 + $0x40] sm:$0xff] %v993
      %1052 = vst [vmem:[%s231 + $0x48] sm:$0xff] %v994
      %1053 = vst [vmem:[%s231 + $0x50] sm:$0xff] %v995
      %1054 = vst [vmem:[%s231 + $0x58] sm:$0xff] %v996
      %1055 = vst [vmem:[%s231 + $0x60] sm:$0xff] %v997
      %1056 = vst [vmem:[%s231 + $0x68] sm:$0xff] %v998
      %1057 = vst [vmem:[%s231 + $0x70] sm:$0xff] %v999
      %1058 = vst [vmem:[%s231 + $0x78] sm:$0xff] %v1000
      %1059 = vst [vmem:[%s231 + $0x80] sm:$0xff] %v1001
      %1060 = vst [vmem:[%s231 + $0x88] sm:$0xff] %v1002
      %1061 = vst [vmem:[%s231 + $0x90] sm:$0xff] %v1003
      %1062 = vst [vmem:[%s231 + $0x98] sm:$0xff] %v1004
      %1063 = vst [vmem:[%s231 + $0xa0] sm:$0xff] %v1005
      %1064 = vst [vmem:[%s231 + $0xa8] sm:$0xff] %v1006
      %1065 = vst [vmem:[%s231 + $0xb0] sm:$0xff] %v1007
      %1066 = vst [vmem:[%s231 + $0xb8] sm:$0xff] %v1008
      %1067 = vst [vmem:[%s231 + $0xc0] sm:$0xff] %v1009
      %1068 = vst [vmem:[%s231 + $0xc8] sm:$0xff] %v1010
      %1069 = vst [vmem:[%s231 + $0xd0] sm:$0xff] %v1011
      %1070 = vst [vmem:[%s231 + $0xd8] sm:$0xff] %v1012
      %1071 = vst [vmem:[%s231 + $0xe0] sm:$0xff] %v1013
      %1072 = vst [vmem:[%s231 + $0xe8] sm:$0xff] %v1014
      %1073 = vst [vmem:[%s231 + $0xf0] sm:$0xff] %v1015
      %1074 = vst [vmem:[%s231 + $0xf8] sm:$0xff] %v1016
      %1075 = vst [vmem:[%s231 + $0x100] sm:$0xff] %v1017
      %1076 = vst [vmem:[%s231 + $0x108] sm:$0xff] %v1018
      %1077 = vst [vmem:[%s231 + $0x110] sm:$0xff] %v1019
      %1078 = vst [vmem:[%s231 + $0x118] sm:$0xff] %v1020
      %1079 = vst [vmem:[%s231 + $0x120] sm:$0xff] %v1021
      %1080 = vst [vmem:[%s231 + $0x128] sm:$0xff] %v1022
      %1081 = vst [vmem:[%s231 + $0x130] sm:$0xff] %v1023
      %1082 = vst [vmem:[%s231 + $0x138] sm:$0xff] %v1024
      %1083 = vst [vmem:[%s231 + $0x140] sm:$0xff] %v1025
      %1084 = vst [vmem:[%s231 + $0x148] sm:$0xff] %v1026
      %1085 = vst [vmem:[%s231 + $0x150] sm:$0xff] %v1027
      %1086 = vst [vmem:[%s231 + $0x158] sm:$0xff] %v1028
      %1087 = vst [vmem:[%s231 + $0x160] sm:$0xff] %v1029
      %1088 = vst [vmem:[%s231 + $0x168] sm:$0xff] %v1030
      %1089 = vst [vmem:[%s231 + $0x170] sm:$0xff] %v1031
      %1090 = vst [vmem:[%s231 + $0x178] sm:$0xff] %v1032
      %1091 = vst [vmem:[%s231 + $0x180] sm:$0xff] %v1033
      %1092 = vst [vmem:[%s231 + $0x188] sm:$0xff] %v1034
      %1093 = vst [vmem:[%s231 + $0x190] sm:$0xff] %v1035
      %1094 = vst [vmem:[%s231 + $0x198] sm:$0xff] %v1036
      %1095 = vst [vmem:[%s231 + $0x1a0] sm:$0xff] %v1037
      %1096 = vst [vmem:[%s231 + $0x1a8] sm:$0xff] %v1038
      %1097 = vst [vmem:[%s231 + $0x1b0] sm:$0xff] %v1039
      %1098 = vst [vmem:[%s231 + $0x1b8] sm:$0xff] %v1040
      %1099 = vst [vmem:[%s231 + $0x1c0] sm:$0xff] %v1041
      %1100 = vst [vmem:[%s231 + $0x1c8] sm:$0xff] %v1042
      %s1101 = smul.u32 58, %s19
      %p1102 = scmp.lt.s32.totalorder %s18, 0
      %s1103 = scalar_select %p1102, %s18, 0
      %p1104 = scmp.lt.s32.totalorder %s1101, 289
      %s1105 = scalar_select %p1104, %s1101, 289
      %s1106 = smul.addr %s1103, 290
      %s1107 = sadd.s32 %s1105, %s1106
      %s1108 = smul.addr %s1107, 8
      %s1109 = scalar_lea.vmem %s3, %s1108
      // Predicated region
      $region33: #{egan_generator_64_forward.11} parent=31 // pred_check
        %p1110 = pneg %p121
      $region34: #{egan_generator_64_forward.11} parent=31 // pred_check_branch
        %1112 = sbr.rel (%p1110) target = $region36
      $region35: #{egan_generator_64_forward.11} parent=31 // pred_region
        %s1113 = smul.u32 58, %s19
      $region36: #{egan_generator_64_forward.11} parent=31 // pred_fallthru
        _
    $region32: #{egan_generator_64_forward.11} parent=5 // pred_fallthru
      _
    %p1114 = scmp.le.s32.totalorder 2, %s9
    // Predicated region
    $region37: #{egan_generator_64_forward.11} parent=5 // pred_check
      %p1115 = pneg %p1114
    $region38: #{egan_generator_64_forward.11} parent=5 // pred_check_branch
      %1117 = sbr.rel (%p1115) target = $region40
    $region39: #{egan_generator_64_forward.11} parent=5 // pred_region
      %s1118 = ssub.s32 %s9, 2
      // Predicated region
      $region41: #{egan_generator_64_forward.11} parent=39 // pred_check
        %p1119 = pneg %p127
      $region42: #{egan_generator_64_forward.11} parent=39 // pred_check_branch
        %1121 = sbr.rel (%p1119) target = $region44
      $region43: #{egan_generator_64_forward.11} parent=39 // pred_region
        %s1122 = smul.u32 58, %s21
        %p1123 = scmp.lt.s32.totalorder %s20, 0
        %s1124 = scalar_select %p1123, %s20, 0
        %p1125 = scmp.lt.s32.totalorder %s1122, 289
        %s1126 = scalar_select %p1125, %s1122, 289
        %s1127 = smul.addr %s1124, 290
        %s1128 = sadd.s32 %s1126, %s1127
        %s1129 = smul.addr %s1128, 8
        %s1130 = scalar_lea.vmem %s3, %s1129
      $region44: #{egan_generator_64_forward.11} parent=39 // pred_fallthru
        _
    $region40: #{egan_generator_64_forward.11} parent=5 // pred_fallthru
      _
  $region6: #{egan_generator_64_forward.11} parent=0 // loop_footer
    %s13 = sadd.s32 1, %s9
  $region7: #{egan_generator_64_forward.11} parent=0 // loop_footer_branch
    %8 = sbr.rel target = $region3
  $region8: #{egan_generator_64_forward.11} parent=0 // loop_exit
    _

</llo_original>
